<compile_context>
chip_gen: v6e
topology: v6e:2x2x1
jax: 0.10.0
libtpu: 0.0.40
codegen_flags: <defaults>
</compile_context>

<pallas_src>
import functools

import jax
import jax.numpy as jnp
from jax import lax
from jax.experimental import pallas as pl
from jax.experimental.pallas import tpu as pltpu

ACT = "silu"
ACT_DTYPE = jnp.bfloat16     # activation storage / MXU-input dtype
PALLAS_MIN_LANES = 128       # below this, the GEMM is left to XLA


# ----------------------------------------------------------------------------
# Activation helper (used both inside the Pallas kernel and in the XLA path)
# ----------------------------------------------------------------------------
def _apply_act(y, act):
    if act == "silu":
        return y * jax.nn.sigmoid(y)
    if act == "relu":
        return jnp.maximum(y, 0.0)
    if act == "sigmoid":
        return jax.nn.sigmoid(y)
    return y  # "linear"


# ----------------------------------------------------------------------------
# Pallas kernel: fused (Cout,K)x(K,M_tile) matmul + bias + act [+ residual]
# ----------------------------------------------------------------------------
def _gemm_bias_act_kernel(w_ref, x_ref, b_ref, *rest, act, has_res):
    if has_res:
        r_ref, o_ref = rest
    else:
        r_ref = None
        (o_ref,) = rest
    # bf16 x bf16 -> f32 accumulation on the MXU; epilogue stays f32 (v5e-safe).
    y = jnp.dot(w_ref[...], x_ref[...], preferred_element_type=jnp.float32)
    y = _apply_act(y + b_ref[...], act)          # folded-BN bias + activation
    if has_res:
        y = y + r_ref[...].astype(jnp.float32)   # fused residual add
    o_ref[...] = y.astype(o_ref.dtype)


def _pick_tn(m):
    # Prefer the largest lane tile that still leaves >= 2 grid steps
    # (megacore-splittable on v7x, one-deep pipeline overlap elsewhere),
    # capped at 2048 lanes -- plenty for these small-K, small-Cout GEMMs.
    for tn in (2048, 1024, 512, 256, 128):
        if m % tn == 0 and m // tn >= 2:
            return tn
    for tn in (1024, 512, 256, 128):
        if m % tn == 0:
            return tn
    return m  # single full-width block (block == full array dim is allowed)


def gemm_bias_act(w2, patches, bias, act=ACT, residual=None):
    """out(N,M) = act(w2(N,K) @ patches(K,M) + bias(N,1)) [+ residual(N,M)]."""
    N, K = w2.shape
    M = patches.shape[1]

    if M < PALLAS_MIN_LANES:
        # Tiny tail layers: a pallas_call launch costs more than the matmul.
        y = jnp.dot(w2, patches, preferred_element_type=jnp.float32) + bias
        y = _apply_act(y, act)
        if residual is not None:
            y = y + residual.astype(jnp.float32)
        return y.astype(ACT_DTYPE)

    tn = _pick_tn(M)
    has_res = residual is not None

    in_specs = [
        pl.BlockSpec((N, K), lambda i: (0, 0)),    # folded weights (resident)
        pl.BlockSpec((K, tn), lambda i: (0, i)),   # patch / activation lane tile
        pl.BlockSpec((N, 1), lambda i: (0, 0)),    # folded-BN bias
    ]
    args = [w2, patches, bias]
    if has_res:
        in_specs.append(pl.BlockSpec((N, tn), lambda i: (0, i)))
        args.append(residual)

    return pl.pallas_call(
        functools.partial(_gemm_bias_act_kernel, act=act, has_res=has_res),
        out_shape=jax.ShapeDtypeStruct((N, M), ACT_DTYPE),
        grid=(M // tn,),
        in_specs=in_specs,
        out_specs=pl.BlockSpec((N, tn), lambda i: (0, i)),
        compiler_params=pltpu.CompilerParams(dimension_semantics=("parallel",)),
    )(*args)


# ----------------------------------------------------------------------------
# Conv building blocks on the channel-major (C, B, H, W) layout
# ----------------------------------------------------------------------------
def _patches_t(x, k, s):
    """(C,B,H,W) -> (C*k*k, B*Ho*Wo) transposed patch matrix (no transposes)."""
    C, B, H, W = x.shape
    p = (k - 1) // 2
    if p:
        x = jnp.pad(x, ((0, 0), (0, 0), (p, p), (p, p)))
    Ho = (H + 2 * p - k) // s + 1
    Wo = (W + 2 * p - k) // s + 1
    # TODO(synk): stride-1 3x3 patches could be formed with shifted slices
    # inside the kernel (no k*k HBM materialization); activations here are tiny
    # so the XLA im2col is kept for robustness.
    cols = [x[:, :, kh:kh + (Ho - 1) * s + 1:s, kw:kw + (Wo - 1) * s + 1:s]
            for kh in range(k) for kw in range(k)]
    pat = jnp.stack(cols, axis=1)                 # (C, k*k, B, Ho, Wo)
    return pat.reshape(C * k * k, B * Ho * Wo), Ho, Wo


def conv_bn_act(x, p, k, s, act=ACT, residual=None):
    """BaseConv = Conv2d(bias=False) + folded BN + act; x: (Cin,B,H,W)."""
    cin, B, H, W = x.shape
    cout = p["w2"].shape[0]
    if k == 1 and s == 1:
        patches, Ho, Wo = x.reshape(cin, B * H * W), H, W
    else:
        patches, Ho, Wo = _patches_t(x, k, s)
    res = None if residual is None else residual.reshape(cout, B * Ho * Wo)
    y = gemm_bias_act(p["w2"], patches, p["b"], act=act, residual=res)
    return y.reshape(cout, B, Ho, Wo)


def focus(x, p, act=ACT):
    """Focus stem: space-to-depth then BaseConv 3x3 stride 1."""
    tl = x[..., ::2, ::2]
    bl = x[..., 1::2, ::2]
    tr = x[..., ::2, 1::2]
    br = x[..., 1::2, 1::2]
    x = jnp.concatenate([tl, bl, tr, br], axis=0)   # channel axis is 0
    return conv_bn_act(x, p["conv"], 3, 1, act)


def group_layer(x, p, stride, act=ACT):
    """BaseConv(3x3, stride) followed by ResLayers (residual fused in conv2)."""
    x = conv_bn_act(x, p["conv"], 3, stride, act)
    for rp in p["res"]:
        y = conv_bn_act(x, rp["l1"], 1, 1, act)
        x = conv_bn_act(y, rp["l2"], 3, 1, act, residual=x)
    return x


def _maxpool_same(x, ks):
    pad = ks // 2
    return lax.reduce_window(
        x, jnp.array(-jnp.inf, x.dtype), lax.max,
        window_dimensions=(1, 1, ks, ks),
        window_strides=(1, 1, 1, 1),
        padding=((0, 0), (0, 0), (pad, pad), (pad, pad)))


def spp_bottleneck(x, p, act=ACT):
    x = conv_bn_act(x, p["c1"], 1, 1, act)
    # Cascaded 5x5 pools reproduce 'same' max-pools of 5/9/13 exactly
    # (max composes; padding is -inf), at a fraction of the window work.
    p5 = _maxpool_same(x, 5)
    p9 = _maxpool_same(p5, 5)    # == 9x9 maxpool
    p13 = _maxpool_same(p9, 5)   # == 13x13 maxpool
    x = jnp.concatenate([x, p5, p9, p13], axis=0)
    return conv_bn_act(x, p["c2"], 1, 1, act)


def spp_block(x, p, act=ACT):
    x = conv_bn_act(x, p["c0"], 1, 1, act)
    x = conv_bn_act(x, p["c1"], 3, 1, act)
    x = spp_bottleneck(x, p["spp"], act)
    x = conv_bn_act(x, p["c3"], 3, 1, act)
    x = conv_bn_act(x, p["c4"], 1, 1, act)
    return x


# ----------------------------------------------------------------------------
# Deterministic parameter construction (BN folded into weights at build time)
# ----------------------------------------------------------------------------
class KeyGen:
    def __init__(self, key):
        self.key = key

    def __call__(self):
        self.key, sub = jax.random.split(self.key)
        return sub


def conv_params(kg, cin, cout, k):
    w = jax.random.normal(kg(), (cout, cin, k, k), jnp.float32)
    w = w * (1.0 / (cin * k * k) ** 0.5)
    gamma = 1.0 + 0.1 * jax.random.normal(kg(), (cout,), jnp.float32)
    beta = 0.1 * jax.random.normal(kg(), (cout,), jnp.float32)
    rmean = jnp.zeros((cout,), jnp.float32)
    rvar = jnp.ones((cout,), jnp.float32)
    scale = gamma / jnp.sqrt(rvar + 1e-5)
    bias = beta - rmean * scale
    w_folded = w * scale[:, None, None, None]            # fold BN scale into W
    return {"w2": w_folded.reshape(cout, cin * k * k).astype(ACT_DTYPE),
            "b": bias.reshape(cout, 1).astype(jnp.float32)}


def res_params(kg, ch):
    return {"l1": conv_params(kg, ch, ch // 2, 1),
            "l2": conv_params(kg, ch // 2, ch, 3)}


def group_params(kg, cin, cout, num_blocks):
    return {"conv": conv_params(kg, cin, cout, 3),
            "res": [res_params(kg, cout) for _ in range(num_blocks)]}


def build_darknet_params(key, depth=21, in_channels=3, base=8,
                         out_channels=(16, 24, 32)):
    assert out_channels[2] == 4 * base, "make_spp_block channel consistency"
    blocks = {21: [1, 2, 2, 1], 53: [2, 8, 8, 4]}[depth]
    kg = KeyGen(key)
    p = {}
    p["stem"] = {"conv": conv_params(kg, in_channels * 4, base, 3)}
    p["dark2"] = group_params(kg, base, base * 2, blocks[0])
    p["dark3"] = group_params(kg, base * 2, out_channels[0], blocks[1])
    p["dark4"] = group_params(kg, out_channels[0], out_channels[1], blocks[2])
    p["dark5"] = group_params(kg, out_channels[1], out_channels[2], blocks[3])
    oc2 = out_channels[2]
    hidden = oc2 // 2
    p["dark5_spp"] = {
        "c0": conv_params(kg, 4 * base, oc2, 1),
        "c1": conv_params(kg, oc2, oc2, 3),
        "spp": {"c1": conv_params(kg, oc2, hidden, 1),
                "c2": conv_params(kg, hidden * 4, oc2, 1)},
        "c3": conv_params(kg, oc2, oc2, 3),
        "c4": conv_params(kg, oc2, oc2, 1),
    }
    return p


# ----------------------------------------------------------------------------
# Darknet forward (out_features = ('dark3', 'dark4', 'dark5'))
# ----------------------------------------------------------------------------
def darknet_forward(x, params, act=ACT):
    # External NCHW f32 -> internal channel-major (C,B,H,W) bf16 (once).
    x = jnp.transpose(x, (1, 0, 2, 3)).astype(ACT_DTYPE)
    outputs = {}
    x = focus(x, params["stem"], act)
    outputs["stem"] = x
    x = group_layer(x, params["dark2"], 2, act)
    outputs["dark2"] = x
    x = group_layer(x, params["dark3"], 2, act)
    outputs["dark3"] = x
    x = group_layer(x, params["dark4"], 2, act)
    outputs["dark4"] = x
    x = group_layer(x, params["dark5"], 2, act)
    x = spp_block(x, params["dark5_spp"], act)
    outputs["dark5"] = x
    # Back to the module's NCHW float32 convention for the returned features.
    return [jnp.transpose(outputs[k], (1, 0, 2, 3)).astype(jnp.float32)
            for k in ("dark3", "dark4", "dark5")]


if __name__ == "__main__":
    key = jax.random.PRNGKey(0)
    k_in, k_par = jax.random.split(key)
    B, C, H, W = 2, 3, 128, 128
    x = jax.random.normal(k_in, (B, C, H, W), jnp.float32)
    params = build_darknet_params(k_par, depth=21, in_channels=C, base=8,
                                  out_channels=(16, 24, 32))

    fwd = jax.jit(darknet_forward)
    outs = jax.block_until_ready(fwd(x, params))

    expected = [(B, 16, 16, 16), (B, 24, 8, 8), (B, 32, 4, 4)]
    for o, shp in zip(outs, expected):
        assert o.shape == shp, (o.shape, shp)
        assert bool(jnp.all(jnp.isfinite(o)))
    print("KERNEL_OK")
</pallas_src>

<mosaic_0001>
module attributes {stable_mosaic.version = 11 : i64} {
  func.func @_gemm_bias_act_kernel(%arg0: i32, %arg1: memref<8x108xbf16, #tpu.memory_space<vmem>>, %arg2: memref<108x2048xbf16, #tpu.memory_space<vmem>>, %arg3: memref<8x1xf32, #tpu.memory_space<vmem>>, %arg4: memref<8x2048xbf16, #tpu.memory_space<vmem>>) attributes {dimension_semantics = [#tpu.dimension_semantics<parallel>], iteration_bounds = array<i64: 4>, scalar_prefetch = 0 : i64, scratch_operands = 0 : i64, tpu.core_type = #tpu.core_type<tc>, window_params = [{pipeline_mode = #tpu.pipeline_mode<synchronous>, transform_indices = @transform_0, window_bounds = array<i64: 8, 108>}, {transform_indices = @transform_1, window_bounds = array<i64: 108, 2048>}, {pipeline_mode = #tpu.pipeline_mode<synchronous>, transform_indices = @transform_2, window_bounds = array<i64: 8, 1>}, {transform_indices = @transform_3, window_bounds = array<i64: 8, 2048>}]} {
    %c0 = arith.constant 0 : index
    %c0_0 = arith.constant 0 : index
    %0 = vector.load %arg1[%c0, %c0_0] : memref<8x108xbf16, #tpu.memory_space<vmem>>, vector<8x108xbf16>
    %c0_1 = arith.constant 0 : index
    %c0_2 = arith.constant 0 : index
    %1 = vector.load %arg2[%c0_1, %c0_2] : memref<108x2048xbf16, #tpu.memory_space<vmem>>, vector<108x2048xbf16>
    %cst = arith.constant dense<0.000000e+00> : vector<8x2048xf32>
    %2 = tpu.matmul %0, %1, %cst {dimension_numbers = #tpu.dot_dimension_numbers<[1], [0], [0], [1], [0, 0, 1, 1], [], []>} : vector<8x108xbf16>, vector<108x2048xbf16>, vector<8x2048xf32> -> vector<8x2048xf32>
    %c0_3 = arith.constant 0 : index
    %c0_4 = arith.constant 0 : index
    %3 = vector.load %arg3[%c0_3, %c0_4] : memref<8x1xf32, #tpu.memory_space<vmem>>, vector<8x1xf32>
    %4 = vector.broadcast %3 : vector<8x1xf32> to vector<8x2048xf32>
    %5 = arith.addf %2, %4 : vector<8x2048xf32>
    %6 = arith.negf %5 : vector<8x2048xf32>
    %7 = math.exp %6 : vector<8x2048xf32>
    %cst_5 = arith.constant 1.000000e+00 : f32
    %8 = vector.broadcast %cst_5 : f32 to vector<8x2048xf32>
    %9 = arith.addf %8, %7 : vector<8x2048xf32>
    %10 = arith.divf %8, %9 : vector<8x2048xf32>
    %11 = arith.mulf %5, %10 : vector<8x2048xf32>
    %12 = arith.truncf %11 : vector<8x2048xf32> to vector<8x2048xbf16>
    %c0_6 = arith.constant 0 : index
    %c0_7 = arith.constant 0 : index
    %13 = vector.load %arg4[%c0_6, %c0_7] : memref<8x2048xbf16, #tpu.memory_space<vmem>>, vector<8x2048xbf16>
    tpu.vector_store %arg4[%c0_6, %c0_7], %12 {strides = array<i32>} : memref<8x2048xbf16, #tpu.memory_space<vmem>>, vector<8x2048xbf16>,
    return
  }
  func.func @transform_0(%arg0: i32) -> (i32, i32) {
    %c0_i32 = arith.constant 0 : i32
    %c0_i32_0 = arith.constant 0 : i32
    %c0_i32_1 = arith.constant 0 : i32
    return %c0_i32, %c0_i32_0 : i32, i32
  }
  func.func @transform_1(%arg0: i32) -> (i32, i32) {
    %c0_i32 = arith.constant 0 : i32
    %c0_i32_0 = arith.constant 0 : i32
    return %c0_i32, %arg0 : i32, i32
  }
  func.func @transform_2(%arg0: i32) -> (i32, i32) {
    %c0_i32 = arith.constant 0 : i32
    %c0_i32_0 = arith.constant 0 : i32
    %c0_i32_1 = arith.constant 0 : i32
    return %c0_i32, %c0_i32_0 : i32, i32
  }
  func.func @transform_3(%arg0: i32) -> (i32, i32) {
    %c0_i32 = arith.constant 0 : i32
    %c0_i32_0 = arith.constant 0 : i32
    return %c0_i32, %arg0 : i32, i32
  }
}

module attributes {stable_mosaic.version = 11 : i64} {
  func.func @_gemm_bias_act_kernel(%arg0: i32, %arg1: memref<16x72xbf16, #tpu.memory_space<vmem>>, %arg2: memref<72x1024xbf16, #tpu.memory_space<vmem>>, %arg3: memref<16x1xf32, #tpu.memory_space<vmem>>, %arg4: memref<16x1024xbf16, #tpu.memory_space<vmem>>) attributes {dimension_semantics = [#tpu.dimension_semantics<parallel>], iteration_bounds = array<i64: 2>, scalar_prefetch = 0 : i64, scratch_operands = 0 : i64, tpu.core_type = #tpu.core_type<tc>, window_params = [{pipeline_mode = #tpu.pipeline_mode<synchronous>, transform_indices = @transform_0, window_bounds = array<i64: 16, 72>}, {transform_indices = @transform_1, window_bounds = array<i64: 72, 1024>}, {pipeline_mode = #tpu.pipeline_mode<synchronous>, transform_indices = @transform_2, window_bounds = array<i64: 16, 1>}, {transform_indices = @transform_3, window_bounds = array<i64: 16, 1024>}]} {
    %c0 = arith.constant 0 : index
    %c0_0 = arith.constant 0 : index
    %0 = vector.load %arg1[%c0, %c0_0] : memref<16x72xbf16, #tpu.memory_space<vmem>>, vector<16x72xbf16>
    %c0_1 = arith.constant 0 : index
    %c0_2 = arith.constant 0 : index
    %1 = vector.load %arg2[%c0_1, %c0_2] : memref<72x1024xbf16, #tpu.memory_space<vmem>>, vector<72x1024xbf16>
    %cst = arith.constant dense<0.000000e+00> : vector<16x1024xf32>
    %2 = tpu.matmul %0, %1, %cst {dimension_numbers = #tpu.dot_dimension_numbers<[1], [0], [0], [1], [0, 0, 1, 1], [], []>} : vector<16x72xbf16>, vector<72x1024xbf16>, vector<16x1024xf32> -> vector<16x1024xf32>
    %c0_3 = arith.constant 0 : index
    %c0_4 = arith.constant 0 : index
    %3 = vector.load %arg3[%c0_3, %c0_4] : memref<16x1xf32, #tpu.memory_space<vmem>>, vector<16x1xf32>
    %4 = vector.broadcast %3 : vector<16x1xf32> to vector<16x1024xf32>
    %5 = arith.addf %2, %4 : vector<16x1024xf32>
    %6 = arith.negf %5 : vector<16x1024xf32>
    %7 = math.exp %6 : vector<16x1024xf32>
    %cst_5 = arith.constant 1.000000e+00 : f32
    %8 = vector.broadcast %cst_5 : f32 to vector<16x1024xf32>
    %9 = arith.addf %8, %7 : vector<16x1024xf32>
    %10 = arith.divf %8, %9 : vector<16x1024xf32>
    %11 = arith.mulf %5, %10 : vector<16x1024xf32>
    %12 = arith.truncf %11 : vector<16x1024xf32> to vector<16x1024xbf16>
    %c0_6 = arith.constant 0 : index
    %c0_7 = arith.constant 0 : index
    %13 = vector.load %arg4[%c0_6, %c0_7] : memref<16x1024xbf16, #tpu.memory_space<vmem>>, vector<16x1024xbf16>
    tpu.vector_store %arg4[%c0_6, %c0_7], %12 {strides = array<i32>} : memref<16x1024xbf16, #tpu.memory_space<vmem>>, vector<16x1024xbf16>,
    return
  }
  func.func @transform_0(%arg0: i32) -> (i32, i32) {
    %c0_i32 = arith.constant 0 : i32
    %c0_i32_0 = arith.constant 0 : i32
    %c0_i32_1 = arith.constant 0 : i32
    return %c0_i32, %c0_i32_0 : i32, i32
  }
  func.func @transform_1(%arg0: i32) -> (i32, i32) {
    %c0_i32 = arith.constant 0 : i32
    %c0_i32_0 = arith.constant 0 : i32
    return %c0_i32, %arg0 : i32, i32
  }
  func.func @transform_2(%arg0: i32) -> (i32, i32) {
    %c0_i32 = arith.constant 0 : i32
    %c0_i32_0 = arith.constant 0 : i32
    %c0_i32_1 = arith.constant 0 : i32
    return %c0_i32, %c0_i32_0 : i32, i32
  }
  func.func @transform_3(%arg0: i32) -> (i32, i32) {
    %c0_i32 = arith.constant 0 : i32
    %c0_i32_0 = arith.constant 0 : i32
    return %c0_i32, %arg0 : i32, i32
  }
}

module attributes {stable_mosaic.version = 11 : i64} {
  func.func @_gemm_bias_act_kernel(%arg0: i32, %arg1: memref<8x16xbf16, #tpu.memory_space<vmem>>, %arg2: memref<16x1024xbf16, #tpu.memory_space<vmem>>, %arg3: memref<8x1xf32, #tpu.memory_space<vmem>>, %arg4: memref<8x1024xbf16, #tpu.memory_space<vmem>>) attributes {dimension_semantics = [#tpu.dimension_semantics<parallel>], iteration_bounds = array<i64: 2>, scalar_prefetch = 0 : i64, scratch_operands = 0 : i64, tpu.core_type = #tpu.core_type<tc>, window_params = [{pipeline_mode = #tpu.pipeline_mode<synchronous>, transform_indices = @transform_0, window_bounds = array<i64: 8, 16>}, {transform_indices = @transform_1, window_bounds = array<i64: 16, 1024>}, {pipeline_mode = #tpu.pipeline_mode<synchronous>, transform_indices = @transform_2, window_bounds = array<i64: 8, 1>}, {transform_indices = @transform_3, window_bounds = array<i64: 8, 1024>}]} {
    %c0 = arith.constant 0 : index
    %c0_0 = arith.constant 0 : index
    %0 = vector.load %arg1[%c0, %c0_0] : memref<8x16xbf16, #tpu.memory_space<vmem>>, vector<8x16xbf16>
    %c0_1 = arith.constant 0 : index
    %c0_2 = arith.constant 0 : index
    %1 = vector.load %arg2[%c0_1, %c0_2] : memref<16x1024xbf16, #tpu.memory_space<vmem>>, vector<16x1024xbf16>
    %cst = arith.constant dense<0.000000e+00> : vector<8x1024xf32>
    %2 = tpu.matmul %0, %1, %cst {dimension_numbers = #tpu.dot_dimension_numbers<[1], [0], [0], [1], [0, 0, 1, 1], [], []>} : vector<8x16xbf16>, vector<16x1024xbf16>, vector<8x1024xf32> -> vector<8x1024xf32>
    %c0_3 = arith.constant 0 : index
    %c0_4 = arith.constant 0 : index
    %3 = vector.load %arg3[%c0_3, %c0_4] : memref<8x1xf32, #tpu.memory_space<vmem>>, vector<8x1xf32>
    %4 = vector.broadcast %3 : vector<8x1xf32> to vector<8x1024xf32>
    %5 = arith.addf %2, %4 : vector<8x1024xf32>
    %6 = arith.negf %5 : vector<8x1024xf32>
    %7 = math.exp %6 : vector<8x1024xf32>
    %cst_5 = arith.constant 1.000000e+00 : f32
    %8 = vector.broadcast %cst_5 : f32 to vector<8x1024xf32>
    %9 = arith.addf %8, %7 : vector<8x1024xf32>
    %10 = arith.divf %8, %9 : vector<8x1024xf32>
    %11 = arith.mulf %5, %10 : vector<8x1024xf32>
    %12 = arith.truncf %11 : vector<8x1024xf32> to vector<8x1024xbf16>
    %c0_6 = arith.constant 0 : index
    %c0_7 = arith.constant 0 : index
    %13 = vector.load %arg4[%c0_6, %c0_7] : memref<8x1024xbf16, #tpu.memory_space<vmem>>, vector<8x1024xbf16>
    tpu.vector_store %arg4[%c0_6, %c0_7], %12 {strides = array<i32>} : memref<8x1024xbf16, #tpu.memory_space<vmem>>, vector<8x1024xbf16>,
    return
  }
  func.func @transform_0(%arg0: i32) -> (i32, i32) {
    %c0_i32 = arith.constant 0 : i32
    %c0_i32_0 = arith.constant 0 : i32
    %c0_i32_1 = arith.constant 0 : i32
    return %c0_i32, %c0_i32_0 : i32, i32
  }
  func.func @transform_1(%arg0: i32) -> (i32, i32) {
    %c0_i32 = arith.constant 0 : i32
    %c0_i32_0 = arith.constant 0 : i32
    return %c0_i32, %arg0 : i32, i32
  }
  func.func @transform_2(%arg0: i32) -> (i32, i32) {
    %c0_i32 = arith.constant 0 : i32
    %c0_i32_0 = arith.constant 0 : i32
    %c0_i32_1 = arith.constant 0 : i32
    return %c0_i32, %c0_i32_0 : i32, i32
  }
  func.func @transform_3(%arg0: i32) -> (i32, i32) {
    %c0_i32 = arith.constant 0 : i32
    %c0_i32_0 = arith.constant 0 : i32
    return %c0_i32, %arg0 : i32, i32
  }
}

module attributes {stable_mosaic.version = 11 : i64} {
  func.func @_gemm_bias_act_kernel(%arg0: i32, %arg1: memref<16x72xbf16, #tpu.memory_space<vmem>>, %arg2: memref<72x1024xbf16, #tpu.memory_space<vmem>>, %arg3: memref<16x1xf32, #tpu.memory_space<vmem>>, %arg4: memref<16x1024xbf16, #tpu.memory_space<vmem>>, %arg5: memref<16x1024xbf16, #tpu.memory_space<vmem>>) attributes {dimension_semantics = [#tpu.dimension_semantics<parallel>], iteration_bounds = array<i64: 2>, scalar_prefetch = 0 : i64, scratch_operands = 0 : i64, tpu.core_type = #tpu.core_type<tc>, window_params = [{pipeline_mode = #tpu.pipeline_mode<synchronous>, transform_indices = @transform_0, window_bounds = array<i64: 16, 72>}, {transform_indices = @transform_1, window_bounds = array<i64: 72, 1024>}, {pipeline_mode = #tpu.pipeline_mode<synchronous>, transform_indices = @transform_2, window_bounds = array<i64: 16, 1>}, {transform_indices = @transform_3, window_bounds = array<i64: 16, 1024>}, {transform_indices = @transform_4, window_bounds = array<i64: 16, 1024>}]} {
    %c0 = arith.constant 0 : index
    %c0_0 = arith.constant 0 : index
    %0 = vector.load %arg1[%c0, %c0_0] : memref<16x72xbf16, #tpu.memory_space<vmem>>, vector<16x72xbf16>
    %c0_1 = arith.constant 0 : index
    %c0_2 = arith.constant 0 : index
    %1 = vector.load %arg2[%c0_1, %c0_2] : memref<72x1024xbf16, #tpu.memory_space<vmem>>, vector<72x1024xbf16>
    %cst = arith.constant dense<0.000000e+00> : vector<16x1024xf32>
    %2 = tpu.matmul %0, %1, %cst {dimension_numbers = #tpu.dot_dimension_numbers<[1], [0], [0], [1], [0, 0, 1, 1], [], []>} : vector<16x72xbf16>, vector<72x1024xbf16>, vector<16x1024xf32> -> vector<16x1024xf32>
    %c0_3 = arith.constant 0 : index
    %c0_4 = arith.constant 0 : index
    %3 = vector.load %arg3[%c0_3, %c0_4] : memref<16x1xf32, #tpu.memory_space<vmem>>, vector<16x1xf32>
    %4 = vector.broadcast %3 : vector<16x1xf32> to vector<16x1024xf32>
    %5 = arith.addf %2, %4 : vector<16x1024xf32>
    %6 = arith.negf %5 : vector<16x1024xf32>
    %7 = math.exp %6 : vector<16x1024xf32>
    %cst_5 = arith.constant 1.000000e+00 : f32
    %8 = vector.broadcast %cst_5 : f32 to vector<16x1024xf32>
    %9 = arith.addf %8, %7 : vector<16x1024xf32>
    %10 = arith.divf %8, %9 : vector<16x1024xf32>
    %11 = arith.mulf %5, %10 : vector<16x1024xf32>
    %c0_6 = arith.constant 0 : index
    %c0_7 = arith.constant 0 : index
    %12 = vector.load %arg4[%c0_6, %c0_7] : memref<16x1024xbf16, #tpu.memory_space<vmem>>, vector<16x1024xbf16>
    %13 = arith.extf %12 : vector<16x1024xbf16> to vector<16x1024xf32>
    %14 = arith.addf %11, %13 : vector<16x1024xf32>
    %15 = arith.truncf %14 : vector<16x1024xf32> to vector<16x1024xbf16>
    %c0_8 = arith.constant 0 : index
    %c0_9 = arith.constant 0 : index
    %16 = vector.load %arg5[%c0_8, %c0_9] : memref<16x1024xbf16, #tpu.memory_space<vmem>>, vector<16x1024xbf16>
    tpu.vector_store %arg5[%c0_8, %c0_9], %15 {strides = array<i32>} : memref<16x1024xbf16, #tpu.memory_space<vmem>>, vector<16x1024xbf16>,
    return
  }
  func.func @transform_0(%arg0: i32) -> (i32, i32) {
    %c0_i32 = arith.constant 0 : i32
    %c0_i32_0 = arith.constant 0 : i32
    %c0_i32_1 = arith.constant 0 : i32
    return %c0_i32, %c0_i32_0 : i32, i32
  }
  func.func @transform_1(%arg0: i32) -> (i32, i32) {
    %c0_i32 = arith.constant 0 : i32
    %c0_i32_0 = arith.constant 0 : i32
    return %c0_i32, %arg0 : i32, i32
  }
  func.func @transform_2(%arg0: i32) -> (i32, i32) {
    %c0_i32 = arith.constant 0 : i32
    %c0_i32_0 = arith.constant 0 : i32
    %c0_i32_1 = arith.constant 0 : i32
    return %c0_i32, %c0_i32_0 : i32, i32
  }
  func.func @transform_3(%arg0: i32) -> (i32, i32) {
    %c0_i32 = arith.constant 0 : i32
    %c0_i32_0 = arith.constant 0 : i32
    return %c0_i32, %arg0 : i32, i32
  }
  func.func @transform_4(%arg0: i32) -> (i32, i32) {
    %c0_i32 = arith.constant 0 : i32
    %c0_i32_0 = arith.constant 0 : i32
    return %c0_i32, %arg0 : i32, i32
  }
}

module attributes {stable_mosaic.version = 11 : i64} {
  func.func @_gemm_bias_act_kernel(%arg0: i32, %arg1: memref<16x144xbf16, #tpu.memory_space<vmem>>, %arg2: memref<144x256xbf16, #tpu.memory_space<vmem>>, %arg3: memref<16x1xf32, #tpu.memory_space<vmem>>, %arg4: memref<16x256xbf16, #tpu.memory_space<vmem>>) attributes {dimension_semantics = [#tpu.dimension_semantics<parallel>], iteration_bounds = array<i64: 2>, scalar_prefetch = 0 : i64, scratch_operands = 0 : i64, tpu.core_type = #tpu.core_type<tc>, window_params = [{pipeline_mode = #tpu.pipeline_mode<synchronous>, transform_indices = @transform_0, window_bounds = array<i64: 16, 144>}, {transform_indices = @transform_1, window_bounds = array<i64: 144, 256>}, {pipeline_mode = #tpu.pipeline_mode<synchronous>, transform_indices = @transform_2, window_bounds = array<i64: 16, 1>}, {transform_indices = @transform_3, window_bounds = array<i64: 16, 256>}]} {
    %c0 = arith.constant 0 : index
    %c0_0 = arith.constant 0 : index
    %0 = vector.load %arg1[%c0, %c0_0] : memref<16x144xbf16, #tpu.memory_space<vmem>>, vector<16x144xbf16>
    %c0_1 = arith.constant 0 : index
    %c0_2 = arith.constant 0 : index
    %1 = vector.load %arg2[%c0_1, %c0_2] : memref<144x256xbf16, #tpu.memory_space<vmem>>, vector<144x256xbf16>
    %cst = arith.constant dense<0.000000e+00> : vector<16x256xf32>
    %2 = tpu.matmul %0, %1, %cst {dimension_numbers = #tpu.dot_dimension_numbers<[1], [0], [0], [1], [0, 0, 1, 1], [], []>} : vector<16x144xbf16>, vector<144x256xbf16>, vector<16x256xf32> -> vector<16x256xf32>
    %c0_3 = arith.constant 0 : index
    %c0_4 = arith.constant 0 : index
    %3 = vector.load %arg3[%c0_3, %c0_4] : memref<16x1xf32, #tpu.memory_space<vmem>>, vector<16x1xf32>
    %4 = vector.broadcast %3 : vector<16x1xf32> to vector<16x256xf32>
    %5 = arith.addf %2, %4 : vector<16x256xf32>
    %6 = arith.negf %5 : vector<16x256xf32>
    %7 = math.exp %6 : vector<16x256xf32>
    %cst_5 = arith.constant 1.000000e+00 : f32
    %8 = vector.broadcast %cst_5 : f32 to vector<16x256xf32>
    %9 = arith.addf %8, %7 : vector<16x256xf32>
    %10 = arith.divf %8, %9 : vector<16x256xf32>
    %11 = arith.mulf %5, %10 : vector<16x256xf32>
    %12 = arith.truncf %11 : vector<16x256xf32> to vector<16x256xbf16>
    %c0_6 = arith.constant 0 : index
    %c0_7 = arith.constant 0 : index
    %13 = vector.load %arg4[%c0_6, %c0_7] : memref<16x256xbf16, #tpu.memory_space<vmem>>, vector<16x256xbf16>
    tpu.vector_store %arg4[%c0_6, %c0_7], %12 {strides = array<i32>} : memref<16x256xbf16, #tpu.memory_space<vmem>>, vector<16x256xbf16>,
    return
  }
  func.func @transform_0(%arg0: i32) -> (i32, i32) {
    %c0_i32 = arith.constant 0 : i32
    %c0_i32_0 = arith.constant 0 : i32
    %c0_i32_1 = arith.constant 0 : i32
    return %c0_i32, %c0_i32_0 : i32, i32
  }
  func.func @transform_1(%arg0: i32) -> (i32, i32) {
    %c0_i32 = arith.constant 0 : i32
    %c0_i32_0 = arith.constant 0 : i32
    return %c0_i32, %arg0 : i32, i32
  }
  func.func @transform_2(%arg0: i32) -> (i32, i32) {
    %c0_i32 = arith.constant 0 : i32
    %c0_i32_0 = arith.constant 0 : i32
    %c0_i32_1 = arith.constant 0 : i32
    return %c0_i32, %c0_i32_0 : i32, i32
  }
  func.func @transform_3(%arg0: i32) -> (i32, i32) {
    %c0_i32 = arith.constant 0 : i32
    %c0_i32_0 = arith.constant 0 : i32
    return %c0_i32, %arg0 : i32, i32
  }
}

module attributes {stable_mosaic.version = 11 : i64} {
  func.func @_gemm_bias_act_kernel(%arg0: i32, %arg1: memref<8x16xbf16, #tpu.memory_space<vmem>>, %arg2: memref<16x256xbf16, #tpu.memory_space<vmem>>, %arg3: memref<8x1xf32, #tpu.memory_space<vmem>>, %arg4: memref<8x256xbf16, #tpu.memory_space<vmem>>) attributes {dimension_semantics = [#tpu.dimension_semantics<parallel>], iteration_bounds = array<i64: 2>, scalar_prefetch = 0 : i64, scratch_operands = 0 : i64, tpu.core_type = #tpu.core_type<tc>, window_params = [{pipeline_mode = #tpu.pipeline_mode<synchronous>, transform_indices = @transform_0, window_bounds = array<i64: 8, 16>}, {transform_indices = @transform_1, window_bounds = array<i64: 16, 256>}, {pipeline_mode = #tpu.pipeline_mode<synchronous>, transform_indices = @transform_2, window_bounds = array<i64: 8, 1>}, {transform_indices = @transform_3, window_bounds = array<i64: 8, 256>}]} {
    %c0 = arith.constant 0 : index
    %c0_0 = arith.constant 0 : index
    %0 = vector.load %arg1[%c0, %c0_0] : memref<8x16xbf16, #tpu.memory_space<vmem>>, vector<8x16xbf16>
    %c0_1 = arith.constant 0 : index
    %c0_2 = arith.constant 0 : index
    %1 = vector.load %arg2[%c0_1, %c0_2] : memref<16x256xbf16, #tpu.memory_space<vmem>>, vector<16x256xbf16>
    %cst = arith.constant dense<0.000000e+00> : vector<8x256xf32>
    %2 = tpu.matmul %0, %1, %cst {dimension_numbers = #tpu.dot_dimension_numbers<[1], [0], [0], [1], [0, 0, 1, 1], [], []>} : vector<8x16xbf16>, vector<16x256xbf16>, vector<8x256xf32> -> vector<8x256xf32>
    %c0_3 = arith.constant 0 : index
    %c0_4 = arith.constant 0 : index
    %3 = vector.load %arg3[%c0_3, %c0_4] : memref<8x1xf32, #tpu.memory_space<vmem>>, vector<8x1xf32>
    %4 = vector.broadcast %3 : vector<8x1xf32> to vector<8x256xf32>
    %5 = arith.addf %2, %4 : vector<8x256xf32>
    %6 = arith.negf %5 : vector<8x256xf32>
    %7 = math.exp %6 : vector<8x256xf32>
    %cst_5 = arith.constant 1.000000e+00 : f32
    %8 = vector.broadcast %cst_5 : f32 to vector<8x256xf32>
    %9 = arith.addf %8, %7 : vector<8x256xf32>
    %10 = arith.divf %8, %9 : vector<8x256xf32>
    %11 = arith.mulf %5, %10 : vector<8x256xf32>
    %12 = arith.truncf %11 : vector<8x256xf32> to vector<8x256xbf16>
    %c0_6 = arith.constant 0 : index
    %c0_7 = arith.constant 0 : index
    %13 = vector.load %arg4[%c0_6, %c0_7] : memref<8x256xbf16, #tpu.memory_space<vmem>>, vector<8x256xbf16>
    tpu.vector_store %arg4[%c0_6, %c0_7], %12 {strides = array<i32>} : memref<8x256xbf16, #tpu.memory_space<vmem>>, vector<8x256xbf16>,
    return
  }
  func.func @transform_0(%arg0: i32) -> (i32, i32) {
    %c0_i32 = arith.constant 0 : i32
    %c0_i32_0 = arith.constant 0 : i32
    %c0_i32_1 = arith.constant 0 : i32
    return %c0_i32, %c0_i32_0 : i32, i32
  }
  func.func @transform_1(%arg0: i32) -> (i32, i32) {
    %c0_i32 = arith.constant 0 : i32
    %c0_i32_0 = arith.constant 0 : i32
    return %c0_i32, %arg0 : i32, i32
  }
  func.func @transform_2(%arg0: i32) -> (i32, i32) {
    %c0_i32 = arith.constant 0 : i32
    %c0_i32_0 = arith.constant 0 : i32
    %c0_i32_1 = arith.constant 0 : i32
    return %c0_i32, %c0_i32_0 : i32, i32
  }
  func.func @transform_3(%arg0: i32) -> (i32, i32) {
    %c0_i32 = arith.constant 0 : i32
    %c0_i32_0 = arith.constant 0 : i32
    return %c0_i32, %arg0 : i32, i32
  }
}

module attributes {stable_mosaic.version = 11 : i64} {
  func.func @_gemm_bias_act_kernel(%arg0: i32, %arg1: memref<16x72xbf16, #tpu.memory_space<vmem>>, %arg2: memref<72x256xbf16, #tpu.memory_space<vmem>>, %arg3: memref<16x1xf32, #tpu.memory_space<vmem>>, %arg4: memref<16x256xbf16, #tpu.memory_space<vmem>>, %arg5: memref<16x256xbf16, #tpu.memory_space<vmem>>) attributes {dimension_semantics = [#tpu.dimension_semantics<parallel>], iteration_bounds = array<i64: 2>, scalar_prefetch = 0 : i64, scratch_operands = 0 : i64, tpu.core_type = #tpu.core_type<tc>, window_params = [{pipeline_mode = #tpu.pipeline_mode<synchronous>, transform_indices = @transform_0, window_bounds = array<i64: 16, 72>}, {transform_indices = @transform_1, window_bounds = array<i64: 72, 256>}, {pipeline_mode = #tpu.pipeline_mode<synchronous>, transform_indices = @transform_2, window_bounds = array<i64: 16, 1>}, {transform_indices = @transform_3, window_bounds = array<i64: 16, 256>}, {transform_indices = @transform_4, window_bounds = array<i64: 16, 256>}]} {
    %c0 = arith.constant 0 : index
    %c0_0 = arith.constant 0 : index
    %0 = vector.load %arg1[%c0, %c0_0] : memref<16x72xbf16, #tpu.memory_space<vmem>>, vector<16x72xbf16>
    %c0_1 = arith.constant 0 : index
    %c0_2 = arith.constant 0 : index
    %1 = vector.load %arg2[%c0_1, %c0_2] : memref<72x256xbf16, #tpu.memory_space<vmem>>, vector<72x256xbf16>
    %cst = arith.constant dense<0.000000e+00> : vector<16x256xf32>
    %2 = tpu.matmul %0, %1, %cst {dimension_numbers = #tpu.dot_dimension_numbers<[1], [0], [0], [1], [0, 0, 1, 1], [], []>} : vector<16x72xbf16>, vector<72x256xbf16>, vector<16x256xf32> -> vector<16x256xf32>
    %c0_3 = arith.constant 0 : index
    %c0_4 = arith.constant 0 : index
    %3 = vector.load %arg3[%c0_3, %c0_4] : memref<16x1xf32, #tpu.memory_space<vmem>>, vector<16x1xf32>
    %4 = vector.broadcast %3 : vector<16x1xf32> to vector<16x256xf32>
    %5 = arith.addf %2, %4 : vector<16x256xf32>
    %6 = arith.negf %5 : vector<16x256xf32>
    %7 = math.exp %6 : vector<16x256xf32>
    %cst_5 = arith.constant 1.000000e+00 : f32
    %8 = vector.broadcast %cst_5 : f32 to vector<16x256xf32>
    %9 = arith.addf %8, %7 : vector<16x256xf32>
    %10 = arith.divf %8, %9 : vector<16x256xf32>
    %11 = arith.mulf %5, %10 : vector<16x256xf32>
    %c0_6 = arith.constant 0 : index
    %c0_7 = arith.constant 0 : index
    %12 = vector.load %arg4[%c0_6, %c0_7] : memref<16x256xbf16, #tpu.memory_space<vmem>>, vector<16x256xbf16>
    %13 = arith.extf %12 : vector<16x256xbf16> to vector<16x256xf32>
    %14 = arith.addf %11, %13 : vector<16x256xf32>
    %15 = arith.truncf %14 : vector<16x256xf32> to vector<16x256xbf16>
    %c0_8 = arith.constant 0 : index
    %c0_9 = arith.constant 0 : index
    %16 = vector.load %arg5[%c0_8, %c0_9] : memref<16x256xbf16, #tpu.memory_space<vmem>>, vector<16x256xbf16>
    tpu.vector_store %arg5[%c0_8, %c0_9], %15 {strides = array<i32>} : memref<16x256xbf16, #tpu.memory_space<vmem>>, vector<16x256xbf16>,
    return
  }
  func.func @transform_0(%arg0: i32) -> (i32, i32) {
    %c0_i32 = arith.constant 0 : i32
    %c0_i32_0 = arith.constant 0 : i32
    %c0_i32_1 = arith.constant 0 : i32
    return %c0_i32, %c0_i32_0 : i32, i32
  }
  func.func @transform_1(%arg0: i32) -> (i32, i32) {
    %c0_i32 = arith.constant 0 : i32
    %c0_i32_0 = arith.constant 0 : i32
    return %c0_i32, %arg0 : i32, i32
  }
  func.func @transform_2(%arg0: i32) -> (i32, i32) {
    %c0_i32 = arith.constant 0 : i32
    %c0_i32_0 = arith.constant 0 : i32
    %c0_i32_1 = arith.constant 0 : i32
    return %c0_i32, %c0_i32_0 : i32, i32
  }
  func.func @transform_3(%arg0: i32) -> (i32, i32) {
    %c0_i32 = arith.constant 0 : i32
    %c0_i32_0 = arith.constant 0 : i32
    return %c0_i32, %arg0 : i32, i32
  }
  func.func @transform_4(%arg0: i32) -> (i32, i32) {
    %c0_i32 = arith.constant 0 : i32
    %c0_i32_0 = arith.constant 0 : i32
    return %c0_i32, %arg0 : i32, i32
  }
}

module attributes {stable_mosaic.version = 11 : i64} {
  func.func @_gemm_bias_act_kernel(%arg0: i32, %arg1: memref<24x144xbf16, #tpu.memory_space<vmem>>, %arg2: memref<144x128xbf16, #tpu.memory_space<vmem>>, %arg3: memref<24x1xf32, #tpu.memory_space<vmem>>, %arg4: memref<24x128xbf16, #tpu.memory_space<vmem>>) attributes {dimension_semantics = [#tpu.dimension_semantics<parallel>], iteration_bounds = array<i64: 1>, scalar_prefetch = 0 : i64, scratch_operands = 0 : i64, tpu.core_type = #tpu.core_type<tc>, window_params = [{pipeline_mode = #tpu.pipeline_mode<synchronous>, transform_indices = @transform_0, window_bounds = array<i64: 24, 144>}, {transform_indices = @transform_1, window_bounds = array<i64: 144, 128>}, {pipeline_mode = #tpu.pipeline_mode<synchronous>, transform_indices = @transform_2, window_bounds = array<i64: 24, 1>}, {transform_indices = @transform_3, window_bounds = array<i64: 24, 128>}]} {
    %c0 = arith.constant 0 : index
    %c0_0 = arith.constant 0 : index
    %0 = vector.load %arg1[%c0, %c0_0] : memref<24x144xbf16, #tpu.memory_space<vmem>>, vector<24x144xbf16>
    %c0_1 = arith.constant 0 : index
    %c0_2 = arith.constant 0 : index
    %1 = vector.load %arg2[%c0_1, %c0_2] : memref<144x128xbf16, #tpu.memory_space<vmem>>, vector<144x128xbf16>
    %cst = arith.constant dense<0.000000e+00> : vector<24x128xf32>
    %2 = tpu.matmul %0, %1, %cst {dimension_numbers = #tpu.dot_dimension_numbers<[1], [0], [0], [1], [0, 0, 1, 1], [], []>} : vector<24x144xbf16>, vector<144x128xbf16>, vector<24x128xf32> -> vector<24x128xf32>
    %c0_3 = arith.constant 0 : index
    %c0_4 = arith.constant 0 : index
    %3 = vector.load %arg3[%c0_3, %c0_4] : memref<24x1xf32, #tpu.memory_space<vmem>>, vector<24x1xf32>
    %4 = vector.broadcast %3 : vector<24x1xf32> to vector<24x128xf32>
    %5 = arith.addf %2, %4 : vector<24x128xf32>
    %6 = arith.negf %5 : vector<24x128xf32>
    %7 = math.exp %6 : vector<24x128xf32>
    %cst_5 = arith.constant 1.000000e+00 : f32
    %8 = vector.broadcast %cst_5 : f32 to vector<24x128xf32>
    %9 = arith.addf %8, %7 : vector<24x128xf32>
    %10 = arith.divf %8, %9 : vector<24x128xf32>
    %11 = arith.mulf %5, %10 : vector<24x128xf32>
    %12 = arith.truncf %11 : vector<24x128xf32> to vector<24x128xbf16>
    %c0_6 = arith.constant 0 : index
    %c0_7 = arith.constant 0 : index
    %13 = vector.load %arg4[%c0_6, %c0_7] : memref<24x128xbf16, #tpu.memory_space<vmem>>, vector<24x128xbf16>
    tpu.vector_store %arg4[%c0_6, %c0_7], %12 {strides = array<i32>} : memref<24x128xbf16, #tpu.memory_space<vmem>>, vector<24x128xbf16>,
    return
  }
  func.func @transform_0(%arg0: i32) -> (i32, i32) {
    %c0_i32 = arith.constant 0 : i32
    %c0_i32_0 = arith.constant 0 : i32
    %c0_i32_1 = arith.constant 0 : i32
    return %c0_i32, %c0_i32_0 : i32, i32
  }
  func.func @transform_1(%arg0: i32) -> (i32, i32) {
    %c0_i32 = arith.constant 0 : i32
    %c0_i32_0 = arith.constant 0 : i32
    return %c0_i32, %arg0 : i32, i32
  }
  func.func @transform_2(%arg0: i32) -> (i32, i32) {
    %c0_i32 = arith.constant 0 : i32
    %c0_i32_0 = arith.constant 0 : i32
    %c0_i32_1 = arith.constant 0 : i32
    return %c0_i32, %c0_i32_0 : i32, i32
  }
  func.func @transform_3(%arg0: i32) -> (i32, i32) {
    %c0_i32 = arith.constant 0 : i32
    %c0_i32_0 = arith.constant 0 : i32
    return %c0_i32, %arg0 : i32, i32
  }
}

module attributes {stable_mosaic.version = 11 : i64} {
  func.func @_gemm_bias_act_kernel(%arg0: i32, %arg1: memref<12x24xbf16, #tpu.memory_space<vmem>>, %arg2: memref<24x128xbf16, #tpu.memory_space<vmem>>, %arg3: memref<12x1xf32, #tpu.memory_space<vmem>>, %arg4: memref<12x128xbf16, #tpu.memory_space<vmem>>) attributes {dimension_semantics = [#tpu.dimension_semantics<parallel>], iteration_bounds = array<i64: 1>, scalar_prefetch = 0 : i64, scratch_operands = 0 : i64, tpu.core_type = #tpu.core_type<tc>, window_params = [{pipeline_mode = #tpu.pipeline_mode<synchronous>, transform_indices = @transform_0, window_bounds = array<i64: 12, 24>}, {transform_indices = @transform_1, window_bounds = array<i64: 24, 128>}, {pipeline_mode = #tpu.pipeline_mode<synchronous>, transform_indices = @transform_2, window_bounds = array<i64: 12, 1>}, {transform_indices = @transform_3, window_bounds = array<i64: 12, 128>}]} {
    %c0 = arith.constant 0 : index
    %c0_0 = arith.constant 0 : index
    %0 = vector.load %arg1[%c0, %c0_0] : memref<12x24xbf16, #tpu.memory_space<vmem>>, vector<12x24xbf16>
    %c0_1 = arith.constant 0 : index
    %c0_2 = arith.constant 0 : index
    %1 = vector.load %arg2[%c0_1, %c0_2] : memref<24x128xbf16, #tpu.memory_space<vmem>>, vector<24x128xbf16>
    %cst = arith.constant dense<0.000000e+00> : vector<12x128xf32>
    %2 = tpu.matmul %0, %1, %cst {dimension_numbers = #tpu.dot_dimension_numbers<[1], [0], [0], [1], [0, 0, 1, 1], [], []>} : vector<12x24xbf16>, vector<24x128xbf16>, vector<12x128xf32> -> vector<12x128xf32>
    %c0_3 = arith.constant 0 : index
    %c0_4 = arith.constant 0 : index
    %3 = vector.load %arg3[%c0_3, %c0_4] : memref<12x1xf32, #tpu.memory_space<vmem>>, vector<12x1xf32>
    %4 = vector.broadcast %3 : vector<12x1xf32> to vector<12x128xf32>
    %5 = arith.addf %2, %4 : vector<12x128xf32>
    %6 = arith.negf %5 : vector<12x128xf32>
    %7 = math.exp %6 : vector<12x128xf32>
    %cst_5 = arith.constant 1.000000e+00 : f32
    %8 = vector.broadcast %cst_5 : f32 to vector<12x128xf32>
    %9 = arith.addf %8, %7 : vector<12x128xf32>
    %10 = arith.divf %8, %9 : vector<12x128xf32>
    %11 = arith.mulf %5, %10 : vector<12x128xf32>
    %12 = arith.truncf %11 : vector<12x128xf32> to vector<12x128xbf16>
    %c0_6 = arith.constant 0 : index
    %c0_7 = arith.constant 0 : index
    %13 = vector.load %arg4[%c0_6, %c0_7] : memref<12x128xbf16, #tpu.memory_space<vmem>>, vector<12x128xbf16>
    tpu.vector_store %arg4[%c0_6, %c0_7], %12 {strides = array<i32>} : memref<12x128xbf16, #tpu.memory_space<vmem>>, vector<12x128xbf16>,
    return
  }
  func.func @transform_0(%arg0: i32) -> (i32, i32) {
    %c0_i32 = arith.constant 0 : i32
    %c0_i32_0 = arith.constant 0 : i32
    %c0_i32_1 = arith.constant 0 : i32
    return %c0_i32, %c0_i32_0 : i32, i32
  }
  func.func @transform_1(%arg0: i32) -> (i32, i32) {
    %c0_i32 = arith.constant 0 : i32
    %c0_i32_0 = arith.constant 0 : i32
    return %c0_i32, %arg0 : i32, i32
  }
  func.func @transform_2(%arg0: i32) -> (i32, i32) {
    %c0_i32 = arith.constant 0 : i32
    %c0_i32_0 = arith.constant 0 : i32
    %c0_i32_1 = arith.constant 0 : i32
    return %c0_i32, %c0_i32_0 : i32, i32
  }
  func.func @transform_3(%arg0: i32) -> (i32, i32) {
    %c0_i32 = arith.constant 0 : i32
    %c0_i32_0 = arith.constant 0 : i32
    return %c0_i32, %arg0 : i32, i32
  }
}

module attributes {stable_mosaic.version = 11 : i64} {
  func.func @_gemm_bias_act_kernel(%arg0: i32, %arg1: memref<24x108xbf16, #tpu.memory_space<vmem>>, %arg2: memref<108x128xbf16, #tpu.memory_space<vmem>>, %arg3: memref<24x1xf32, #tpu.memory_space<vmem>>, %arg4: memref<24x128xbf16, #tpu.memory_space<vmem>>, %arg5: memref<24x128xbf16, #tpu.memory_space<vmem>>) attributes {dimension_semantics = [#tpu.dimension_semantics<parallel>], iteration_bounds = array<i64: 1>, scalar_prefetch = 0 : i64, scratch_operands = 0 : i64, tpu.core_type = #tpu.core_type<tc>, window_params = [{pipeline_mode = #tpu.pipeline_mode<synchronous>, transform_indices = @transform_0, window_bounds = array<i64: 24, 108>}, {transform_indices = @transform_1, window_bounds = array<i64: 108, 128>}, {pipeline_mode = #tpu.pipeline_mode<synchronous>, transform_indices = @transform_2, window_bounds = array<i64: 24, 1>}, {transform_indices = @transform_3, window_bounds = array<i64: 24, 128>}, {transform_indices = @transform_4, window_bounds = array<i64: 24, 128>}]} {
    %c0 = arith.constant 0 : index
    %c0_0 = arith.constant 0 : index
    %0 = vector.load %arg1[%c0, %c0_0] : memref<24x108xbf16, #tpu.memory_space<vmem>>, vector<24x108xbf16>
    %c0_1 = arith.constant 0 : index
    %c0_2 = arith.constant 0 : index
    %1 = vector.load %arg2[%c0_1, %c0_2] : memref<108x128xbf16, #tpu.memory_space<vmem>>, vector<108x128xbf16>
    %cst = arith.constant dense<0.000000e+00> : vector<24x128xf32>
    %2 = tpu.matmul %0, %1, %cst {dimension_numbers = #tpu.dot_dimension_numbers<[1], [0], [0], [1], [0, 0, 1, 1], [], []>} : vector<24x108xbf16>, vector<108x128xbf16>, vector<24x128xf32> -> vector<24x128xf32>
    %c0_3 = arith.constant 0 : index
    %c0_4 = arith.constant 0 : index
    %3 = vector.load %arg3[%c0_3, %c0_4] : memref<24x1xf32, #tpu.memory_space<vmem>>, vector<24x1xf32>
    %4 = vector.broadcast %3 : vector<24x1xf32> to vector<24x128xf32>
    %5 = arith.addf %2, %4 : vector<24x128xf32>
    %6 = arith.negf %5 : vector<24x128xf32>
    %7 = math.exp %6 : vector<24x128xf32>
    %cst_5 = arith.constant 1.000000e+00 : f32
    %8 = vector.broadcast %cst_5 : f32 to vector<24x128xf32>
    %9 = arith.addf %8, %7 : vector<24x128xf32>
    %10 = arith.divf %8, %9 : vector<24x128xf32>
    %11 = arith.mulf %5, %10 : vector<24x128xf32>
    %c0_6 = arith.constant 0 : index
    %c0_7 = arith.constant 0 : index
    %12 = vector.load %arg4[%c0_6, %c0_7] : memref<24x128xbf16, #tpu.memory_space<vmem>>, vector<24x128xbf16>
    %13 = arith.extf %12 : vector<24x128xbf16> to vector<24x128xf32>
    %14 = arith.addf %11, %13 : vector<24x128xf32>
    %15 = arith.truncf %14 : vector<24x128xf32> to vector<24x128xbf16>
    %c0_8 = arith.constant 0 : index
    %c0_9 = arith.constant 0 : index
    %16 = vector.load %arg5[%c0_8, %c0_9] : memref<24x128xbf16, #tpu.memory_space<vmem>>, vector<24x128xbf16>
    tpu.vector_store %arg5[%c0_8, %c0_9], %15 {strides = array<i32>} : memref<24x128xbf16, #tpu.memory_space<vmem>>, vector<24x128xbf16>,
    return
  }
  func.func @transform_0(%arg0: i32) -> (i32, i32) {
    %c0_i32 = arith.constant 0 : i32
    %c0_i32_0 = arith.constant 0 : i32
    %c0_i32_1 = arith.constant 0 : i32
    return %c0_i32, %c0_i32_0 : i32, i32
  }
  func.func @transform_1(%arg0: i32) -> (i32, i32) {
    %c0_i32 = arith.constant 0 : i32
    %c0_i32_0 = arith.constant 0 : i32
    return %c0_i32, %arg0 : i32, i32
  }
  func.func @transform_2(%arg0: i32) -> (i32, i32) {
    %c0_i32 = arith.constant 0 : i32
    %c0_i32_0 = arith.constant 0 : i32
    %c0_i32_1 = arith.constant 0 : i32
    return %c0_i32, %c0_i32_0 : i32, i32
  }
  func.func @transform_3(%arg0: i32) -> (i32, i32) {
    %c0_i32 = arith.constant 0 : i32
    %c0_i32_0 = arith.constant 0 : i32
    return %c0_i32, %arg0 : i32, i32
  }
  func.func @transform_4(%arg0: i32) -> (i32, i32) {
    %c0_i32 = arith.constant 0 : i32
    %c0_i32_0 = arith.constant 0 : i32
    return %c0_i32, %arg0 : i32, i32
  }
}

</mosaic_0001>

<llo_original>
// kernel: darknet_forward.14
$region0: #{darknet_forward.14}
  #allocation0 [shape = 'u32[]', space=smem, size = 0x4, offset = 0x4, fixed_abs, tag = 'smem constant byte address 0x4 - core index']
  #allocation1 [shape = 'u32[144,128]{1,0:T(1,128)}', space=vmem, size = 0x12000, scoped, tag = 'internal scratch']
  %s0 = inlined_call_operand.vmem [shape: bf16[8,108], index: 0, kind: input, shape index: {}]
  %s1 = inlined_call_operand.vmem [shape: bf16[108,8192], index: 1, kind: input, shape index: {}]
  %s2 = inlined_call_operand.vmem [shape: f32[8,1], index: 2, kind: input, shape index: {}]
  %s3 = inlined_call_operand.vmem [shape: bf16[8,8192], index: 3, kind: output, shape index: {}]
  %s4 = sld [smem:[#allocation0]]
  $region68: #{darknet_forward.14} parent=0
    _
  %s6 = ssub.s32 1, %s4
  %s7 = scalar_select 0, %s6, %s4
  $region1: #{darknet_forward.14} parent=0
    #allocation2 [shape = 'u8[917504]{0}', space=vmem, size = 0xe0000, scoped, tag = 'input window, operand 1']
    loop: start=0, step=1, limit=6
    $region2: #{darknet_forward.14} parent=1 // loop_pre_header
      _
    $region3: #{darknet_forward.14} parent=1 // loop_header
      %s9 = sphi 0, %s13
      %p10 = scmp.ge.s32.totalorder %s9, 6
      %s17 = sphi 0, %s17
      %s19 = sphi 0, %s17
      %s20 = sphi 0, %s19
      %s34 = sphi 0, %s20
      %s40 = sphi 0, %s42
      %s43 = sphi 0, %s40
      %s44 = sphi 0, %s43
      %s60 = sphi 0, %s44
      %s64 = sphi 0, %s64
      %s66 = sphi 0, %s64
      %s67 = sphi 0, %s66
      %s81 = sphi 0, %s67
      %s87 = sphi 0, %s89
      %s90 = sphi 0, %s87
      %s91 = sphi 0, %s90
      %s107 = sphi 0, %s91
    $region4: #{darknet_forward.14} parent=1 // loop_header_branch
      %12 = sbr.rel (%p10) target = $region8
    $region5: #{darknet_forward.14} parent=1 // loop_body
      %s14 = ssub.s32 %s9, 1
      %s15 = ssub.s32 %s9, 2
      %s16 = sadd.s32 %s9, 1
      %s18 = sadd.s32 %s17, 1
      %p21 = scmp.eq.s32.totalorder %s9, 3
      %p22 = scmp.ne.s32.totalorder %s17, %s19
      %p23 = scmp.eq.s32.totalorder %s9, 0
      %p24 = por %p22, %p23
      %p25 = scmp.ne.s32.totalorder %s17, %s19
      %p26 = scmp.eq.s32.totalorder %s14, 3
      %p27 = por %p25, %p26
      %p28 = scmp.ne.s32.totalorder %s19, %s20
      %p29 = scmp.eq.s32.totalorder %s14, 0
      %p30 = por %p28, %p29
      %p31 = scmp.ne.s32.totalorder %s19, %s20
      %p32 = scmp.eq.s32.totalorder %s15, 3
      %p33 = por %p31, %p32
      %p35 = scmp.ne.s32.totalorder %s20, %s34
      %p36 = scmp.eq.s32.totalorder %s15, 0
      %p37 = por %p35, %p36
      %s38 = ssub.s32 %s9, %s16
      %p39 = scmp.eq.s32.totalorder %s38, 0
      %s41 = sadd.s32 %s40, 1
      %s42 = scalar_select %p39, %s40, %s41
      %p45 = pneg %p39
      %p46 = scmp.eq.s32.totalorder %s9, 3
      %p47 = por %p45, %p46
      %p48 = scmp.ne.s32.totalorder %s40, %s43
      %p49 = scmp.eq.s32.totalorder %s9, 0
      %p50 = por %p48, %p49
      %p51 = scmp.ne.s32.totalorder %s40, %s43
      %p52 = scmp.eq.s32.totalorder %s14, 3
      %p53 = por %p51, %p52
      %p54 = scmp.ne.s32.totalorder %s43, %s44
      %p55 = scmp.eq.s32.totalorder %s14, 0
      %p56 = por %p54, %p55
      %p57 = scmp.ne.s32.totalorder %s43, %s44
      %p58 = scmp.eq.s32.totalorder %s15, 3
      %p59 = por %p57, %p58
      %p61 = scmp.ne.s32.totalorder %s44, %s60
      %p62 = scmp.eq.s32.totalorder %s15, 0
      %p63 = por %p61, %p62
      %s65 = sadd.s32 %s64, 1
      %p68 = scmp.eq.s32.totalorder %s9, 3
      %p69 = scmp.ne.s32.totalorder %s64, %s66
      %p70 = scmp.eq.s32.totalorder %s9, 0
      %p71 = por %p69, %p70
      %p72 = scmp.ne.s32.totalorder %s64, %s66
      %p73 = scmp.eq.s32.totalorder %s14, 3
      %p74 = por %p72, %p73
      %p75 = scmp.ne.s32.totalorder %s66, %s67
      %p76 = scmp.eq.s32.totalorder %s14, 0
      %p77 = por %p75, %p76
      %p78 = scmp.ne.s32.totalorder %s66, %s67
      %p79 = scmp.eq.s32.totalorder %s15, 3
      %p80 = por %p78, %p79
      %p82 = scmp.ne.s32.totalorder %s67, %s81
      %p83 = scmp.eq.s32.totalorder %s15, 0
      %p84 = por %p82, %p83
      %s85 = ssub.s32 %s9, %s16
      %p86 = scmp.eq.s32.totalorder %s85, 0
      %s88 = sadd.s32 %s87, 1
      %s89 = scalar_select %p86, %s87, %s88
      %p92 = pneg %p86
      %p93 = scmp.eq.s32.totalorder %s9, 3
      %p94 = por %p92, %p93
      %p95 = scmp.ne.s32.totalorder %s87, %s90
      %p96 = scmp.eq.s32.totalorder %s9, 0
      %p97 = por %p95, %p96
      %p98 = scmp.ne.s32.totalorder %s87, %s90
      %p99 = scmp.eq.s32.totalorder %s14, 3
      %p100 = por %p98, %p99
      %p101 = scmp.ne.s32.totalorder %s90, %s91
      %p102 = scmp.eq.s32.totalorder %s14, 0
      %p103 = por %p101, %p102
      %p104 = scmp.ne.s32.totalorder %s90, %s91
      %p105 = scmp.eq.s32.totalorder %s15, 3
      %p106 = por %p104, %p105
      %p108 = scmp.ne.s32.totalorder %s91, %s107
      %p109 = scmp.eq.s32.totalorder %s15, 0
      %p110 = por %p108, %p109
      %p111 = scmp.le.s32.totalorder 1, %s9
      %p112 = scmp.lt.s32.totalorder %s9, 5
      %p113 = pnand %p111, %p112
      %p114 = pneg %p113
      // Predicated region
      $region9: #{darknet_forward.14} parent=5 // pred_check
        _
      $region10: #{darknet_forward.14} parent=5 // pred_check_branch
        %116 = sbr.rel (%p113) target = $region12
      $region11: #{darknet_forward.14} parent=5 // pred_region
        %s117 = ssub.s32 %s9, 1
        // Predicated region
        $region13: #{darknet_forward.14} parent=11 // pred_check
          %p118 = pneg %p30
        $region14: #{darknet_forward.14} parent=11 // pred_check_branch
          %120 = sbr.rel (%p118) target = $region16
        $region15: #{darknet_forward.14} parent=11 // pred_region
          _
        $region16: #{darknet_forward.14} parent=11 // pred_fallthru
          _
        // Predicated region
        $region17: #{darknet_forward.14} parent=11 // pred_check
          %p121 = pneg %p77
        $region18: #{darknet_forward.14} parent=11 // pred_check_branch
          %123 = sbr.rel (%p121) target = $region20
        $region19: #{darknet_forward.14} parent=11 // pred_region
          _
        $region20: #{darknet_forward.14} parent=11 // pred_fallthru
          _
      $region12: #{darknet_forward.14} parent=5 // pred_fallthru
        _
      %p124 = scmp.lt.s32.totalorder %s9, 4
      // Predicated region
      $region21: #{darknet_forward.14} parent=5 // pred_check
        %p125 = pneg %p124
      $region22: #{darknet_forward.14} parent=5 // pred_check_branch
        %127 = sbr.rel (%p125) target = $region24
      $region23: #{darknet_forward.14} parent=5 // pred_region
        // Predicated region
        $region25: #{darknet_forward.14} parent=23 // pred_check
          %p128 = pneg %p50
        $region26: #{darknet_forward.14} parent=23 // pred_check_branch
          %130 = sbr.rel (%p128) target = $region28
        $region27: #{darknet_forward.14} parent=23 // pred_region
          %s131 = sand.u32 %s40, 1
          %s132 = sand.u32 %s40, 1
          %s133 = smul.addr %s132, 896
          %s134 = scalar_lea.vmem [#allocation2], %s133
          %s135 = smul.u32 16, %s9
          %s136 = smul.addr %s135, 4
          %s137 = scalar_lea.vmem %s1, %s136
          // Predicated region
          $region29: #{darknet_forward.14} parent=27 // pred_check
            _
          $region30: #{darknet_forward.14} parent=27 // pred_check_branch
            %139 = sbr.rel (0) target = $region32
          $region31: #{darknet_forward.14} parent=27 // pred_region
            // Predicated region
            $region33: #{darknet_forward.14} parent=31 // pred_check
              _
            $region34: #{darknet_forward.14} parent=31 // pred_check_branch
              %141 = sbr.rel (0) target = $region36
            $region35: #{darknet_forward.14} parent=31 // pred_region
              loop: start=0, step=1, limit=1
              $region37: #{darknet_forward.14} parent=35 // loop_pre_header
                _
              $region38: #{darknet_forward.14} parent=35 // loop_header
                %s143 = sphi 0, %s147
                %p144 = scmp.ge.s32.totalorder %s143, 1
                %s148 = sphi %s137, %s137
                %s149 = sphi %s134, %s134
              $region39: #{darknet_forward.14} parent=35 // loop_header_branch
                %146 = sbr.rel (%p144) target = $region43
              $region40: #{darknet_forward.14} parent=35 // loop_body
                %v150 = vld [vmem:[%s148] sm:$0xff]
                %151 = vst [vmem:[%s149] sm:$0xff] %v150
                %v152 = vld [vmem:[%s148 + $0x8] sm:$0xff]
                %153 = vst [vmem:[%s149 + $0x8] sm:$0xff] %v152
                %v154 = vld [vmem:[%s148 + $0x10] sm:$0xff]
                %155 = vst [vmem:[%s149 + $0x10] sm:$0xff] %v154
                %v156 = vld [vmem:[%s148 + $0x18] sm:$0xff]
                %157 = vst [vmem:[%s149 + $0x18] sm:$0xff] %v156
                %v158 = vld [vmem:[%s148 + $0x20] sm:$0xff]
                %159 = vst [vmem:[%s149 + $0x20] sm:$0xff] %v158
                %v160 = vld [vmem:[%s148 + $0x28] sm:$0xff]
                %161 = vst [vmem:[%s149 + $0x28] sm:$0xff] %v160
                %v162 = vld [vmem:[%s148 + $0x30] sm:$0xff]
                %163 = vst [vmem:[%s149 + $0x30] sm:$0xff] %v162
                %v164 = vld [vmem:[%s148 + $0x38] sm:$0xff]
                %165 = vst [vmem:[%s149 + $0x38] sm:$0xff] %v164
                %v166 = vld [vmem:[%s148 + $0x100] sm:$0xff]
                %167 = vst [vmem:[%s149 + $0x40] sm:$0xff] %v166
                %v168 = vld [vmem:[%s148 + $0x108] sm:$0xff]
                %169 = vst [vmem:[%s149 + $0x48] sm:$0xff] %v168
                %v170 = vld [vmem:[%s148 + $0x110] sm:$0xff]
                %171 = vst [vmem:[%s149 + $0x50] sm:$0xff] %v170
                %v172 = vld [vmem:[%s148 + $0x118] sm:$0xff]
                %173 = vst [vmem:[%s149 + $0x58] sm:$0xff] %v172
                %v174 = vld [vmem:[%s148 + $0x120] sm:$0xff]
                %175 = vst [vmem:[%s149 + $0x60] sm:$0xff] %v174
                %v176 = vld [vmem:[%s148 + $0x128] sm:$0xff]
                %177 = vst [vmem:[%s149 + $0x68] sm:$0xff] %v176
                %v178 = vld [vmem:[%s148 + $0x130] sm:$0xff]
                %179 = vst [vmem:[%s149 + $0x70] sm:$0xff] %v178
                %v180 = vld [vmem:[%s148 + $0x138] sm:$0xff]
                %181 = vst [vmem:[%s149 + $0x78] sm:$0xff] %v180
                %v182 = vld [vmem:[%s148 + $0x200] sm:$0xff]
                %183 = vst [vmem:[%s149 + $0x80] sm:$0xff] %v182
                %v184 = vld [vmem:[%s148 + $0x208] sm:$0xff]
                %185 = vst [vmem:[%s149 + $0x88] sm:$0xff] %v184
                %v186 = vld [vmem:[%s148 + $0x210] sm:$0xff]
                %187 = vst [vmem:[%s149 + $0x90] sm:$0xff] %v186
                %v188 = vld [vmem:[%s148 + $0x218] sm:$0xff]
                %189 = vst [vmem:[%s149 + $0x98] sm:$0xff] %v188
                %v190 = vld [vmem:[%s148 + $0x220] sm:$0xff]
                %191 = vst [vmem:[%s149 + $0xa0] sm:$0xff] %v190
                %v192 = vld [vmem:[%s148 + $0x228] sm:$0xff]
                %193 = vst [vmem:[%s149 + $0xa8] sm:$0xff] %v192
                %v194 = vld [vmem:[%s148 + $0x230] sm:$0xff]
                %195 = vst [vmem:[%s149 + $0xb0] sm:$0xff] %v194
                %v196 = vld [vmem:[%s148 + $0x238] sm:$0xff]
                %197 = vst [vmem:[%s149 + $0xb8] sm:$0xff] %v196
                %v198 = vld [vmem:[%s148 + $0x300] sm:$0xff]
                %199 = vst [vmem:[%s149 + $0xc0] sm:$0xff] %v198
                %v200 = vld [vmem:[%s148 + $0x308] sm:$0xff]
                %201 = vst [vmem:[%s149 + $0xc8] sm:$0xff] %v200
                %v202 = vld [vmem:[%s148 + $0x310] sm:$0xff]
                %203 = vst [vmem:[%s149 + $0xd0] sm:$0xff] %v202
                %v204 = vld [vmem:[%s148 + $0x318] sm:$0xff]
                %205 = vst [vmem:[%s149 + $0xd8] sm:$0xff] %v204
                %v206 = vld [vmem:[%s148 + $0x320] sm:$0xff]
                %207 = vst [vmem:[%s149 + $0xe0] sm:$0xff] %v206
                %v208 = vld [vmem:[%s148 + $0x328] sm:$0xff]
                %209 = vst [vmem:[%s149 + $0xe8] sm:$0xff] %v208
                %v210 = vld [vmem:[%s148 + $0x330] sm:$0xff]
                %211 = vst [vmem:[%s149 + $0xf0] sm:$0xff] %v210
                %v212 = vld [vmem:[%s148 + $0x338] sm:$0xff]
                %213 = vst [vmem:[%s149 + $0xf8] sm:$0xff] %v212
                %v214 = vld [vmem:[%s148 + $0x400] sm:$0xff]
                %215 = vst [vmem:[%s149 + $0x100] sm:$0xff] %v214
                %v216 = vld [vmem:[%s148 + $0x408] sm:$0xff]
                %217 = vst [vmem:[%s149 + $0x108] sm:$0xff] %v216
                %v218 = vld [vmem:[%s148 + $0x410] sm:$0xff]
                %219 = vst [vmem:[%s149 + $0x110] sm:$0xff] %v218
                %v220 = vld [vmem:[%s148 + $0x418] sm:$0xff]
                %221 = vst [vmem:[%s149 + $0x118] sm:$0xff] %v220
                %v222 = vld [vmem:[%s148 + $0x420] sm:$0xff]
                %223 = vst [vmem:[%s149 + $0x120] sm:$0xff] %v222
                %v224 = vld [vmem:[%s148 + $0x428] sm:$0xff]
                %225 = vst [vmem:[%s149 + $0x128] sm:$0xff] %v224
                %v226 = vld [vmem:[%s148 + $0x430] sm:$0xff]
                %227 = vst [vmem:[%s149 + $0x130] sm:$0xff] %v226
                %v228 = vld [vmem:[%s148 + $0x438] sm:$0xff]
                %229 = vst [vmem:[%s149 + $0x138] sm:$0xff] %v228
                %v230 = vld [vmem:[%s148 + $0x500] sm:$0xff]
                %231 = vst [vmem:[%s149 + $0x140] sm:$0xff] %v230
                %v232 = vld [vmem:[%s148 + $0x508] sm:$0xff]
                %233 = vst [vmem:[%s149 + $0x148] sm:$0xff] %v232
                %v234 = vld [vmem:[%s148 + $0x510] sm:$0xff]
                %235 = vst [vmem:[%s149 + $0x150] sm:$0xff] %v234
                %v236 = vld [vmem:[%s148 + $0x518] sm:$0xff]
                %237 = vst [vmem:[%s149 + $0x158] sm:$0xff] %v236
                %v238 = vld [vmem:[%s148 + $0x520] sm:$0xff]
                %239 = vst [vmem:[%s149 + $0x160] sm:$0xff] %v238
                %v240 = vld [vmem:[%s148 + $0x528] sm:$0xff]
                %241 = vst [vmem:[%s149 + $0x168] sm:$0xff] %v240
                %v242 = vld [vmem:[%s148 + $0x530] sm:$0xff]
                %243 = vst [vmem:[%s149 + $0x170] sm:$0xff] %v242
                %v244 = vld [vmem:[%s148 + $0x538] sm:$0xff]
                %245 = vst [vmem:[%s149 + $0x178] sm:$0xff] %v244
                %v246 = vld [vmem:[%s148 + $0x600] sm:$0xff]
                %247 = vst [vmem:[%s149 + $0x180] sm:$0xff] %v246
                %v248 = vld [vmem:[%s148 + $0x608] sm:$0xff]
                %249 = vst [vmem:[%s149 + $0x188] sm:$0xff] %v248
                %v250 = vld [vmem:[%s148 + $0x610] sm:$0xff]
                %251 = vst [vmem:[%s149 + $0x190] sm:$0xff] %v250
                %v252 = vld [vmem:[%s148 + $0x618] sm:$0xff]
                %253 = vst [vmem:[%s149 + $0x198] sm:$0xff] %v252
                %v254 = vld [vmem:[%s148 + $0x620] sm:$0xff]
                %255 = vst [vmem:[%s149 + $0x1a0] sm:$0xff] %v254
                %v256 = vld [vmem:[%s148 + $0x628] sm:$0xff]
                %257 = vst [vmem:[%s149 + $0x1a8] sm:$0xff] %v256
                %v258 = vld [vmem:[%s148 + $0x630] sm:$0xff]
                %259 = vst [vmem:[%s149 + $0x1b0] sm:$0xff] %v258
                %v260 = vld [vmem:[%s148 + $0x638] sm:$0xff]
                %261 = vst [vmem:[%s149 + $0x1b8] sm:$0xff] %v260
                %v262 = vld [vmem:[%s148 + $0x700] sm:$0xff]
                %263 = vst [vmem:[%s149 + $0x1c0] sm:$0xff] %v262
                %v264 = vld [vmem:[%s148 + $0x708] sm:$0xff]
                %265 = vst [vmem:[%s149 + $0x1c8] sm:$0xff] %v264
                %v266 = vld [vmem:[%s148 + $0x710] sm:$0xff]
                %267 = vst [vmem:[%s149 + $0x1d0] sm:$0xff] %v266
                %v268 = vld [vmem:[%s148 + $0x718] sm:$0xff]
                %269 = vst [vmem:[%s149 + $0x1d8] sm:$0xff] %v268
                %v270 = vld [vmem:[%s148 + $0x720] sm:$0xff]
                %271 = vst [vmem:[%s149 + $0x1e0] sm:$0xff] %v270
                %v272 = vld [vmem:[%s148 + $0x728] sm:$0xff]
                %273 = vst [vmem:[%s149 + $0x1e8] sm:$0xff] %v272
                %v274 = vld [vmem:[%s148 + $0x730] sm:$0xff]
                %275 = vst [vmem:[%s149 + $0x1f0] sm:$0xff] %v274
                %v276 = vld [vmem:[%s148 + $0x738] sm:$0xff]
                %277 = vst [vmem:[%s149 + $0x1f8] sm:$0xff] %v276
                %v278 = vld [vmem:[%s148 + $0x800] sm:$0xff]
                %279 = vst [vmem:[%s149 + $0x200] sm:$0xff] %v278
                %v280 = vld [vmem:[%s148 + $0x808] sm:$0xff]
                %281 = vst [vmem:[%s149 + $0x208] sm:$0xff] %v280
                %v282 = vld [vmem:[%s148 + $0x810] sm:$0xff]
                %283 = vst [vmem:[%s149 + $0x210] sm:$0xff] %v282
                %v284 = vld [vmem:[%s148 + $0x818] sm:$0xff]
                %285 = vst [vmem:[%s149 + $0x218] sm:$0xff] %v284
                %v286 = vld [vmem:[%s148 + $0x820] sm:$0xff]
                %287 = vst [vmem:[%s149 + $0x220] sm:$0xff] %v286
                %v288 = vld [vmem:[%s148 + $0x828] sm:$0xff]
                %289 = vst [vmem:[%s149 + $0x228] sm:$0xff] %v288
                %v290 = vld [vmem:[%s148 + $0x830] sm:$0xff]
                %291 = vst [vmem:[%s149 + $0x230] sm:$0xff] %v290
                %v292 = vld [vmem:[%s148 + $0x838] sm:$0xff]
                %293 = vst [vmem:[%s149 + $0x238] sm:$0xff] %v292
                %v294 = vld [vmem:[%s148 + $0x900] sm:$0xff]
                %295 = vst [vmem:[%s149 + $0x240] sm:$0xff] %v294
                %v296 = vld [vmem:[%s148 + $0x908] sm:$0xff]
                %297 = vst [vmem:[%s149 + $0x248] sm:$0xff] %v296
                %v298 = vld [vmem:[%s148 + $0x910] sm:$0xff]
                %299 = vst [vmem:[%s149 + $0x250] sm:$0xff] %v298
                %v300 = vld [vmem:[%s148 + $0x918] sm:$0xff]
                %301 = vst [vmem:[%s149 + $0x258] sm:$0xff] %v300
                %v302 = vld [vmem:[%s148 + $0x920] sm:$0xff]
                %303 = vst [vmem:[%s149 + $0x260] sm:$0xff] %v302
                %v304 = vld [vmem:[%s148 + $0x928] sm:$0xff]
                %305 = vst [vmem:[%s149 + $0x268] sm:$0xff] %v304
                %v306 = vld [vmem:[%s148 + $0x930] sm:$0xff]
                %307 = vst [vmem:[%s149 + $0x270] sm:$0xff] %v306
                %v308 = vld [vmem:[%s148 + $0x938] sm:$0xff]
                %309 = vst [vmem:[%s149 + $0x278] sm:$0xff] %v308
                %v310 = vld [vmem:[%s148 + $0xa00] sm:$0xff]
                %311 = vst [vmem:[%s149 + $0x280] sm:$0xff] %v310
                %v312 = vld [vmem:[%s148 + $0xa08] sm:$0xff]
                %313 = vst [vmem:[%s149 + $0x288] sm:$0xff] %v312
                %v314 = vld [vmem:[%s148 + $0xa10] sm:$0xff]
                %315 = vst [vmem:[%s149 + $0x290] sm:$0xff] %v314
                %v316 = vld [vmem:[%s148 + $0xa18] sm:$0xff]
                %317 = vst [vmem:[%s149 + $0x298] sm:$0xff] %v316
                %v318 = vld [vmem:[%s148 + $0xa20] sm:$0xff]
                %319 = vst [vmem:[%s149 + $0x2a0] sm:$0xff] %v318
                %v320 = vld [vmem:[%s148 + $0xa28] sm:$0xff]
                %321 = vst [vmem:[%s149 + $0x2a8] sm:$0xff] %v320
                %v322 = vld [vmem:[%s148 + $0xa30] sm:$0xff]
                %323 = vst [vmem:[%s149 + $0x2b0] sm:$0xff] %v322
                %v324 = vld [vmem:[%s148 + $0xa38] sm:$0xff]
                %325 = vst [vmem:[%s149 + $0x2b8] sm:$0xff] %v324
                %v326 = vld [vmem:[%s148 + $0xb00] sm:$0xff]
                %327 = vst [vmem:[%s149 + $0x2c0] sm:$0xff] %v326
                %v328 = vld [vmem:[%s148 + $0xb08] sm:$0xff]
                %329 = vst [vmem:[%s149 + $0x2c8] sm:$0xff] %v328
                %v330 = vld [vmem:[%s148 + $0xb10] sm:$0xff]
                %331 = vst [vmem:[%s149 + $0x2d0] sm:$0xff] %v330
                %v332 = vld [vmem:[%s148 + $0xb18] sm:$0xff]
                %333 = vst [vmem:[%s149 + $0x2d8] sm:$0xff] %v332
                %v334 = vld [vmem:[%s148 + $0xb20] sm:$0xff]
                %335 = vst [vmem:[%s149 + $0x2e0] sm:$0xff] %v334
                %v336 = vld [vmem:[%s148 + $0xb28] sm:$0xff]
                %337 = vst [vmem:[%s149 + $0x2e8] sm:$0xff] %v336
                %v338 = vld [vmem:[%s148 + $0xb30] sm:$0xff]
                %339 = vst [vmem:[%s149 + $0x2f0] sm:$0xff] %v338
                %v340 = vld [vmem:[%s148 + $0xb38] sm:$0xff]
                %341 = vst [vmem:[%s149 + $0x2f8] sm:$0xff] %v340
                %v342 = vld [vmem:[%s148 + $0xc00] sm:$0xff]
                %343 = vst [vmem:[%s149 + $0x300] sm:$0xff] %v342
                %v344 = vld [vmem:[%s148 + $0xc08] sm:$0xff]
                %345 = vst [vmem:[%s149 + $0x308] sm:$0xff] %v344
                %v346 = vld [vmem:[%s148 + $0xc10] sm:$0xff]
                %347 = vst [vmem:[%s149 + $0x310] sm:$0xff] %v346
                %v348 = vld [vmem:[%s148 + $0xc18] sm:$0xff]
                %349 = vst [vmem:[%s149 + $0x318] sm:$0xff] %v348
                %v350 = vld [vmem:[%s148 + $0xc20] sm:$0xff]
                %351 = vst [vmem:[%s149 + $0x320] sm:$0xff] %v350
                %v352 = vld [vmem:[%s148 + $0xc28] sm:$0xff]
                %353 = vst [vmem:[%s149 + $0x328] sm:$0xff] %v352
                %v354 = vld [vmem:[%s148 + $0xc30] sm:$0xff]
                %355 = vst [vmem:[%s149 + $0x330] sm:$0xff] %v354
                %v356 = vld [vmem:[%s148 + $0xc38] sm:$0xff]
                %357 = vst [vmem:[%s149 + $0x338] sm:$0xff] %v356
                %v358 = vld [vmem:[%s148 + $0xd00] sm:$0xff]
                %359 = vst [vmem:[%s149 + $0x340] sm:$0xff] %v358
                %v360 = vld [vmem:[%s148 + $0xd08] sm:$0xff]
                %361 = vst [vmem:[%s149 + $0x348] sm:$0xff] %v360
                %v362 = vld [vmem:[%s148 + $0xd10] sm:$0xff]
                %363 = vst [vmem:[%s149 + $0x350] sm:$0xff] %v362
                %v364 = vld [vmem:[%s148 + $0xd18] sm:$0xff]
                %365 = vst [vmem:[%s149 + $0x358] sm:$0xff] %v364
                %v366 = vld [vmem:[%s148 + $0xd20] sm:$0xff]
                %367 = vst [vmem:[%s149 + $0x360] sm:$0xff] %v366
                %v368 = vld [vmem:[%s148 + $0xd28] sm:$0xff]
                %369 = vst [vmem:[%s149 + $0x368] sm:$0xff] %v368
                %v370 = vld [vmem:[%s148 + $0xd30] sm:$0xff]
                %371 = vst [vmem:[%s149 + $0x370] sm:$0xff] %v370
                %v372 = vld [vmem:[%s148 + $0xd38] sm:$0xff]
                %373 = vst [vmem:[%s149 + $0x378] sm:$0xff] %v372
              $region41: #{darknet_forward.14} parent=35 // loop_footer
                %s147 = sadd.s32 1, %s143
              $region42: #{darknet_forward.14} parent=35 // loop_footer_branch
                %142 = sbr.rel target = $region38
              $region43: #{darknet_forward.14} parent=35 // loop_exit
                _
            $region36: #{darknet_forward.14} parent=31 // pred_fallthru
              _
            // Predicated region
            $region44: #{darknet_forward.14} parent=31 // pred_check
              _
            $region45: #{darknet_forward.14} parent=31 // pred_check_branch
              %375 = sbr.rel target = $region47
            $region46: #{darknet_forward.14} parent=31 // pred_region
              _
            $region47: #{darknet_forward.14} parent=31 // pred_fallthru
              _
          $region32: #{darknet_forward.14} parent=27 // pred_fallthru
            _
          %376 = vnop
        $region28: #{darknet_forward.14} parent=23 // pred_fallthru
          _
      $region24: #{darknet_forward.14} parent=5 // pred_fallthru
        _
      %p377 = scmp.le.s32.totalorder 1, %s9
      %p378 = scmp.lt.s32.totalorder %s9, 5
      %p379 = pnand %p377, %p378
      %p380 = pneg %p379
      // Predicated region
      $region48: #{darknet_forward.14} parent=5 // pred_check
        _
      $region49: #{darknet_forward.14} parent=5 // pred_check_branch
        %382 = sbr.rel (%p379) target = $region51
      $region50: #{darknet_forward.14} parent=5 // pred_region
        %s383 = ssub.s32 %s9, 1
        %s384 = sand.u32 %s43, 1
        %s385 = sand.u32 %s43, 1
        %s386 = smul.addr %s385, 896
        %s387 = scalar_lea.vmem [#allocation2], %s386
        // Predicated region
        $region52: #{darknet_forward.14} parent=50 // pred_check
          %p388 = pneg %p56
        $region53: #{darknet_forward.14} parent=50 // pred_check_branch
          %390 = sbr.rel (%p388) target = $region55
        $region54: #{darknet_forward.14} parent=50 // pred_region
          _
        $region55: #{darknet_forward.14} parent=50 // pred_fallthru
          _
        %p391 = pneg %p30
        %p392 = pneg %p27
        %s393 = sand.u32 %s43, 1
        %s394 = sand.u32 %s43, 1
        %s395 = smul.addr %s394, 896
        %s396 = scalar_lea.vmem [#allocation2], %s395
        %p397 = pneg %p56
        %p398 = pneg %p53
        %p399 = pneg %p77
        %p400 = pneg %p74
        %p401 = pneg %p103
        %p402 = pneg %p100
        %s403 = smul.u32 16, %s14
        %p404 = scmp.lt.s32.totalorder %s403, 63
        %s405 = scalar_select %p404, %s403, 63
        %s406 = smul.addr %s405, 4
        %s407 = scalar_lea.vmem %s3, %s406
        %s408 = smul.u32 16, %s14
        %s409 = smul.u32 16, %s14
        %p410 = scmp.lt.s32.totalorder %s409, 63
        %s411 = scalar_select %p410, %s409, 63
        %s412 = smul.addr %s411, 4
        %s413 = scalar_lea.vmem %s3, %s412
        %s414 = smul.u32 16, %s14
        %v416 = vld [vmem:[%s0] sm:$0xf]
        %v417 = vld [vmem:[%s387] sm:$0xff]
        %v418 = vld [vmem:[%s387 + $0x8] sm:$0xff]
        %v419 = vld [vmem:[%s387 + $0x10] sm:$0xff]
        %v420 = vld [vmem:[%s387 + $0x18] sm:$0xff]
        %v421 = vld [vmem:[%s387 + $0x20] sm:$0xff]
        %v422 = vld [vmem:[%s387 + $0x28] sm:$0xff]
        %v423 = vld [vmem:[%s387 + $0x30] sm:$0xff]
        %v424 = vld [vmem:[%s387 + $0x38] sm:$0xff]
        %v425 = vld [vmem:[%s387 + $0x40] sm:$0xff]
        %v426 = vld [vmem:[%s387 + $0x48] sm:$0xff]
        %v427 = vld [vmem:[%s387 + $0x50] sm:$0xff]
        %v428 = vld [vmem:[%s387 + $0x58] sm:$0xff]
        %v429 = vld [vmem:[%s387 + $0x60] sm:$0xff]
        %v430 = vld [vmem:[%s387 + $0x68] sm:$0xff]
        %v431 = vld [vmem:[%s387 + $0x70] sm:$0xff]
        %v432 = vld [vmem:[%s387 + $0x78] sm:$0xff]
        %v433 = vld [vmem:[%s387 + $0x80] sm:$0xff]
        %v434 = vld [vmem:[%s387 + $0x88] sm:$0xff]
        %v435 = vld [vmem:[%s387 + $0x90] sm:$0xff]
        %v436 = vld [vmem:[%s387 + $0x98] sm:$0xff]
        %v437 = vld [vmem:[%s387 + $0xa0] sm:$0xff]
        %v438 = vld [vmem:[%s387 + $0xa8] sm:$0xff]
        %v439 = vld [vmem:[%s387 + $0xb0] sm:$0xff]
        %v440 = vld [vmem:[%s387 + $0xb8] sm:$0xff]
        %v441 = vld [vmem:[%s387 + $0xc0] sm:$0xff]
        %v442 = vld [vmem:[%s387 + $0xc8] sm:$0xff]
        %v443 = vld [vmem:[%s387 + $0xd0] sm:$0xff]
        %v444 = vld [vmem:[%s387 + $0xd8] sm:$0xff]
        %v445 = vld [vmem:[%s387 + $0xe0] sm:$0xff]
        %v446 = vld [vmem:[%s387 + $0xe8] sm:$0xff]
        %v447 = vld [vmem:[%s387 + $0xf0] sm:$0xff]
        %v448 = vld [vmem:[%s387 + $0xf8] sm:$0xff]
        %v449 = vld [vmem:[%s387 + $0x100] sm:$0xff]
        %v450 = vld [vmem:[%s387 + $0x108] sm:$0xff]
        %v451 = vld [vmem:[%s387 + $0x110] sm:$0xff]
        %v452 = vld [vmem:[%s387 + $0x118] sm:$0xff]
        %v453 = vld [vmem:[%s387 + $0x120] sm:$0xff]
        %v454 = vld [vmem:[%s387 + $0x128] sm:$0xff]
        %v455 = vld [vmem:[%s387 + $0x130] sm:$0xff]
        %v456 = vld [vmem:[%s387 + $0x138] sm:$0xff]
        %v457 = vld [vmem:[%s387 + $0x140] sm:$0xff]
        %v458 = vld [vmem:[%s387 + $0x148] sm:$0xff]
        %v459 = vld [vmem:[%s387 + $0x150] sm:$0xff]
        %v460 = vld [vmem:[%s387 + $0x158] sm:$0xff]
        %v461 = vld [vmem:[%s387 + $0x160] sm:$0xff]
        %v462 = vld [vmem:[%s387 + $0x168] sm:$0xff]
        %v463 = vld [vmem:[%s387 + $0x170] sm:$0xff]
        %v464 = vld [vmem:[%s387 + $0x178] sm:$0xff]
        %v465 = vld [vmem:[%s387 + $0x180] sm:$0xff]
        %v466 = vld [vmem:[%s387 + $0x188] sm:$0xff]
        %v467 = vld [vmem:[%s387 + $0x190] sm:$0xff]
        %v468 = vld [vmem:[%s387 + $0x198] sm:$0xff]
        %v469 = vld [vmem:[%s387 + $0x1a0] sm:$0xff]
        %v470 = vld [vmem:[%s387 + $0x1a8] sm:$0xff]
        %v471 = vld [vmem:[%s387 + $0x1b0] sm:$0xff]
        %v472 = vld [vmem:[%s387 + $0x1b8] sm:$0xff]
        %v473 = vld [vmem:[%s387 + $0x1c0] sm:$0xff]
        %v474 = vld [vmem:[%s387 + $0x1c8] sm:$0xff]
        %v475 = vld [vmem:[%s387 + $0x1d0] sm:$0xff]
        %v476 = vld [vmem:[%s387 + $0x1d8] sm:$0xff]
        %v477 = vld [vmem:[%s387 + $0x1e0] sm:$0xff]
        %v478 = vld [vmem:[%s387 + $0x1e8] sm:$0xff]
        %v479 = vld [vmem:[%s387 + $0x1f0] sm:$0xff]
        %v480 = vld [vmem:[%s387 + $0x1f8] sm:$0xff]
        %v481 = vld [vmem:[%s387 + $0x200] sm:$0xff]
        %v482 = vld [vmem:[%s387 + $0x208] sm:$0xff]
        %v483 = vld [vmem:[%s387 + $0x210] sm:$0xff]
        %v484 = vld [vmem:[%s387 + $0x218] sm:$0xff]
        %v485 = vld [vmem:[%s387 + $0x220] sm:$0xff]
        %v486 = vld [vmem:[%s387 + $0x228] sm:$0xff]
        %v487 = vld [vmem:[%s387 + $0x230] sm:$0xff]
        %v488 = vld [vmem:[%s387 + $0x238] sm:$0xff]
        %v489 = vld [vmem:[%s387 + $0x240] sm:$0xff]
        %v490 = vld [vmem:[%s387 + $0x248] sm:$0xff]
        %v491 = vld [vmem:[%s387 + $0x250] sm:$0xff]
        %v492 = vld [vmem:[%s387 + $0x258] sm:$0xff]
        %v493 = vld [vmem:[%s387 + $0x260] sm:$0xff]
        %v494 = vld [vmem:[%s387 + $0x268] sm:$0xff]
        %v495 = vld [vmem:[%s387 + $0x270] sm:$0xff]
        %v496 = vld [vmem:[%s387 + $0x278] sm:$0xff]
        %v497 = vld [vmem:[%s387 + $0x280] sm:$0xff]
        %v498 = vld [vmem:[%s387 + $0x288] sm:$0xff]
        %v499 = vld [vmem:[%s387 + $0x290] sm:$0xff]
        %v500 = vld [vmem:[%s387 + $0x298] sm:$0xff]
        %v501 = vld [vmem:[%s387 + $0x2a0] sm:$0xff]
        %v502 = vld [vmem:[%s387 + $0x2a8] sm:$0xff]
        %v503 = vld [vmem:[%s387 + $0x2b0] sm:$0xff]
        %v504 = vld [vmem:[%s387 + $0x2b8] sm:$0xff]
        %v505 = vld [vmem:[%s387 + $0x2c0] sm:$0xff]
        %v506 = vld [vmem:[%s387 + $0x2c8] sm:$0xff]
        %v507 = vld [vmem:[%s387 + $0x2d0] sm:$0xff]
        %v508 = vld [vmem:[%s387 + $0x2d8] sm:$0xff]
        %v509 = vld [vmem:[%s387 + $0x2e0] sm:$0xff]
        %v510 = vld [vmem:[%s387 + $0x2e8] sm:$0xff]
        %v511 = vld [vmem:[%s387 + $0x2f0] sm:$0xff]
        %v512 = vld [vmem:[%s387 + $0x2f8] sm:$0xff]
        %v513 = vld [vmem:[%s387 + $0x300] sm:$0xff]
        %v514 = vld [vmem:[%s387 + $0x308] sm:$0xff]
        %v515 = vld [vmem:[%s387 + $0x310] sm:$0xff]
        %v516 = vld [vmem:[%s387 + $0x318] sm:$0xff]
        %v517 = vld [vmem:[%s387 + $0x320] sm:$0xff]
        %v518 = vld [vmem:[%s387 + $0x328] sm:$0xff]
        %v519 = vld [vmem:[%s387 + $0x330] sm:$0xff]
        %v520 = vld [vmem:[%s387 + $0x338] sm:$0xff]
        %v521 = vld [vmem:[%s387 + $0x340] sm:$0x33]
        %v522 = vld [vmem:[%s387 + $0x348] sm:$0x33]
        %v523 = vld [vmem:[%s387 + $0x350] sm:$0x33]
        %v524 = vld [vmem:[%s387 + $0x358] sm:$0x33]
        %v525 = vld [vmem:[%s387 + $0x360] sm:$0x33]
        %v526 = vld [vmem:[%s387 + $0x368] sm:$0x33]
        %v527 = vld [vmem:[%s387 + $0x370] sm:$0x33]
        %v528 = vld [vmem:[%s387 + $0x378] sm:$0x33]
        %v529 = vld [vmem:[%s2] sm:$0xff]
        %531 = vset.pattern.permute.xlu0 0
        %532 = vperm.xlu0 %531, %v529
        %v533 = vpop.permute.xlu0 %532
        %v647 = vunpack.c.l.b16 %v417
        %v648 = vunpack.c.h.b16 %v417
        %v649 = vunpack.c.l.b16 %v418
        %v650 = vunpack.c.h.b16 %v418
        %v651 = vunpack.c.l.b16 %v419
        %v652 = vunpack.c.h.b16 %v419
        %v653 = vunpack.c.l.b16 %v420
        %v654 = vunpack.c.h.b16 %v420
        %v655 = vunpack.c.l.b16 %v421
        %v656 = vunpack.c.h.b16 %v421
        %v657 = vunpack.c.l.b16 %v422
        %v658 = vunpack.c.h.b16 %v422
        %v659 = vunpack.c.l.b16 %v423
        %v660 = vunpack.c.h.b16 %v423
        %v661 = vunpack.c.l.b16 %v424
        %v662 = vunpack.c.h.b16 %v424
        %v663 = vunpack.c.l.b16 %v425
        %v664 = vunpack.c.h.b16 %v425
        %v665 = vunpack.c.l.b16 %v426
        %v666 = vunpack.c.h.b16 %v426
        %v667 = vunpack.c.l.b16 %v427
        %v668 = vunpack.c.h.b16 %v427
        %v669 = vunpack.c.l.b16 %v428
        %v670 = vunpack.c.h.b16 %v428
        %v671 = vunpack.c.l.b16 %v429
        %v672 = vunpack.c.h.b16 %v429
        %v673 = vunpack.c.l.b16 %v430
        %v674 = vunpack.c.h.b16 %v430
        %v675 = vunpack.c.l.b16 %v431
        %v676 = vunpack.c.h.b16 %v431
        %v677 = vunpack.c.l.b16 %v432
        %v678 = vunpack.c.h.b16 %v432
        %v679 = vunpack.c.l.b16 %v433
        %v680 = vunpack.c.h.b16 %v433
        %v681 = vunpack.c.l.b16 %v434
        %v682 = vunpack.c.h.b16 %v434
        %v683 = vunpack.c.l.b16 %v435
        %v684 = vunpack.c.h.b16 %v435
        %v685 = vunpack.c.l.b16 %v436
        %v686 = vunpack.c.h.b16 %v436
        %v687 = vunpack.c.l.b16 %v437
        %v688 = vunpack.c.h.b16 %v437
        %v689 = vunpack.c.l.b16 %v438
        %v690 = vunpack.c.h.b16 %v438
        %v691 = vunpack.c.l.b16 %v439
        %v692 = vunpack.c.h.b16 %v439
        %v693 = vunpack.c.l.b16 %v440
        %v694 = vunpack.c.h.b16 %v440
        %v695 = vunpack.c.l.b16 %v441
        %v696 = vunpack.c.h.b16 %v441
        %v697 = vunpack.c.l.b16 %v442
        %v698 = vunpack.c.h.b16 %v442
        %v699 = vunpack.c.l.b16 %v443
        %v700 = vunpack.c.h.b16 %v443
        %v701 = vunpack.c.l.b16 %v444
        %v702 = vunpack.c.h.b16 %v444
        %v703 = vunpack.c.l.b16 %v445
        %v704 = vunpack.c.h.b16 %v445
        %v705 = vunpack.c.l.b16 %v446
        %v706 = vunpack.c.h.b16 %v446
        %v707 = vunpack.c.l.b16 %v447
        %v708 = vunpack.c.h.b16 %v447
        %v709 = vunpack.c.l.b16 %v448
        %v710 = vunpack.c.h.b16 %v448
        %v711 = vunpack.c.l.b16 %v449
        %v712 = vunpack.c.h.b16 %v449
        %v713 = vunpack.c.l.b16 %v450
        %v714 = vunpack.c.h.b16 %v450
        %v715 = vunpack.c.l.b16 %v451
        %v716 = vunpack.c.h.b16 %v451
        %v717 = vunpack.c.l.b16 %v452
        %v718 = vunpack.c.h.b16 %v452
        %v719 = vunpack.c.l.b16 %v453
        %v720 = vunpack.c.h.b16 %v453
        %v721 = vunpack.c.l.b16 %v454
        %v722 = vunpack.c.h.b16 %v454
        %v723 = vunpack.c.l.b16 %v455
        %v724 = vunpack.c.h.b16 %v455
        %v725 = vunpack.c.l.b16 %v456
        %v726 = vunpack.c.h.b16 %v456
        %v727 = vunpack.c.l.b16 %v457
        %v728 = vunpack.c.h.b16 %v457
        %v729 = vunpack.c.l.b16 %v458
        %v730 = vunpack.c.h.b16 %v458
        %v731 = vunpack.c.l.b16 %v459
        %v732 = vunpack.c.h.b16 %v459
        %v733 = vunpack.c.l.b16 %v460
        %v734 = vunpack.c.h.b16 %v460
        %v735 = vunpack.c.l.b16 %v461
        %v736 = vunpack.c.h.b16 %v461
        %v737 = vunpack.c.l.b16 %v462
        %v738 = vunpack.c.h.b16 %v462
        %v739 = vunpack.c.l.b16 %v463
        %v740 = vunpack.c.h.b16 %v463
        %v741 = vunpack.c.l.b16 %v464
        %v742 = vunpack.c.h.b16 %v464
        %v743 = vunpack.c.l.b16 %v465
        %v744 = vunpack.c.h.b16 %v465
        %v745 = vunpack.c.l.b16 %v466
        %v746 = vunpack.c.h.b16 %v466
        %v747 = vunpack.c.l.b16 %v467
        %v748 = vunpack.c.h.b16 %v467
        %v749 = vunpack.c.l.b16 %v468
        %v750 = vunpack.c.h.b16 %v468
        %v751 = vunpack.c.l.b16 %v469
        %v752 = vunpack.c.h.b16 %v469
        %v753 = vunpack.c.l.b16 %v470
        %v754 = vunpack.c.h.b16 %v470
        %v755 = vunpack.c.l.b16 %v471
        %v756 = vunpack.c.h.b16 %v471
        %v757 = vunpack.c.l.b16 %v472
        %v758 = vunpack.c.h.b16 %v472
        %v759 = vunpack.c.l.b16 %v473
        %v760 = vunpack.c.h.b16 %v473
        %v761 = vunpack.c.l.b16 %v474
        %v762 = vunpack.c.h.b16 %v474
        %v763 = vunpack.c.l.b16 %v475
        %v764 = vunpack.c.h.b16 %v475
        %v765 = vunpack.c.l.b16 %v476
        %v766 = vunpack.c.h.b16 %v476
        %v767 = vunpack.c.l.b16 %v477
        %v768 = vunpack.c.h.b16 %v477
        %v769 = vunpack.c.l.b16 %v478
        %v770 = vunpack.c.h.b16 %v478
        %v771 = vunpack.c.l.b16 %v479
        %v772 = vunpack.c.h.b16 %v479
        %v773 = vunpack.c.l.b16 %v480
        %v774 = vunpack.c.h.b16 %v480
        %v775 = vunpack.c.l.b16 %v481
        %v776 = vunpack.c.h.b16 %v481
        %v777 = vunpack.c.l.b16 %v482
        %v778 = vunpack.c.h.b16 %v482
        %v779 = vunpack.c.l.b16 %v483
        %v780 = vunpack.c.h.b16 %v483
        %v781 = vunpack.c.l.b16 %v484
        %v782 = vunpack.c.h.b16 %v484
        %v783 = vunpack.c.l.b16 %v485
        %v784 = vunpack.c.h.b16 %v485
        %v785 = vunpack.c.l.b16 %v486
        %v786 = vunpack.c.h.b16 %v486
        %v787 = vunpack.c.l.b16 %v487
        %v788 = vunpack.c.h.b16 %v487
        %v789 = vunpack.c.l.b16 %v488
        %v790 = vunpack.c.h.b16 %v488
        %v791 = vunpack.c.l.b16 %v489
        %v792 = vunpack.c.h.b16 %v489
        %v793 = vunpack.c.l.b16 %v490
        %v794 = vunpack.c.h.b16 %v490
        %v795 = vunpack.c.l.b16 %v491
        %v796 = vunpack.c.h.b16 %v491
        %v797 = vunpack.c.l.b16 %v492
        %v798 = vunpack.c.h.b16 %v492
        %v799 = vunpack.c.l.b16 %v493
        %v800 = vunpack.c.h.b16 %v493
        %v801 = vunpack.c.l.b16 %v494
        %v802 = vunpack.c.h.b16 %v494
        %v803 = vunpack.c.l.b16 %v495
        %v804 = vunpack.c.h.b16 %v495
        %v805 = vunpack.c.l.b16 %v496
        %v806 = vunpack.c.h.b16 %v496
        %v807 = vunpack.c.l.b16 %v497
        %v808 = vunpack.c.h.b16 %v497
        %v809 = vunpack.c.l.b16 %v498
        %v810 = vunpack.c.h.b16 %v498
        %v811 = vunpack.c.l.b16 %v499
        %v812 = vunpack.c.h.b16 %v499
        %v813 = vunpack.c.l.b16 %v500
        %v814 = vunpack.c.h.b16 %v500
        %v815 = vunpack.c.l.b16 %v501
        %v816 = vunpack.c.h.b16 %v501
        %v817 = vunpack.c.l.b16 %v502
        %v818 = vunpack.c.h.b16 %v502
        %v819 = vunpack.c.l.b16 %v503
        %v820 = vunpack.c.h.b16 %v503
        %v821 = vunpack.c.l.b16 %v504
        %v822 = vunpack.c.h.b16 %v504
        %v823 = vunpack.c.l.b16 %v505
        %v824 = vunpack.c.h.b16 %v505
        %v825 = vunpack.c.l.b16 %v506
        %v826 = vunpack.c.h.b16 %v506
        %v827 = vunpack.c.l.b16 %v507
        %v828 = vunpack.c.h.b16 %v507
        %v829 = vunpack.c.l.b16 %v508
        %v830 = vunpack.c.h.b16 %v508
        %v831 = vunpack.c.l.b16 %v509
        %v832 = vunpack.c.h.b16 %v509
        %v833 = vunpack.c.l.b16 %v510
        %v834 = vunpack.c.h.b16 %v510
        %v835 = vunpack.c.l.b16 %v511
        %v836 = vunpack.c.h.b16 %v511
        %v837 = vunpack.c.l.b16 %v512
        %v838 = vunpack.c.h.b16 %v512
        %v839 = vunpack.c.l.b16 %v513
        %v840 = vunpack.c.h.b16 %v513
        %v841 = vunpack.c.l.b16 %v514
        %v842 = vunpack.c.h.b16 %v514
        %v843 = vunpack.c.l.b16 %v515
        %v844 = vunpack.c.h.b16 %v515
        %v845 = vunpack.c.l.b16 %v516
        %v846 = vunpack.c.h.b16 %v516
        %v847 = vunpack.c.l.b16 %v517
        %v848 = vunpack.c.h.b16 %v517
        %v849 = vunpack.c.l.b16 %v518
        %v850 = vunpack.c.h.b16 %v518
        %v851 = vunpack.c.l.b16 %v519
        %v852 = vunpack.c.h.b16 %v519
        %v853 = vunpack.c.l.b16 %v520
        %v854 = vunpack.c.h.b16 %v520
        %v855 = vunpack.c.l.b16 %v521
        %v856 = vunpack.c.h.b16 %v521
        %v857 = vunpack.c.l.b16 %v522
        %v858 = vunpack.c.h.b16 %v522
        %v859 = vunpack.c.l.b16 %v523
        %v860 = vunpack.c.h.b16 %v523
        %v861 = vunpack.c.l.b16 %v524
        %v862 = vunpack.c.h.b16 %v524
        %v863 = vunpack.c.l.b16 %v525
        %v864 = vunpack.c.h.b16 %v525
        %v865 = vunpack.c.l.b16 %v526
        %v866 = vunpack.c.h.b16 %v526
        %v867 = vunpack.c.l.b16 %v527
        %v868 = vunpack.c.h.b16 %v527
        %v869 = vunpack.c.l.b16 %v528
        %v870 = vunpack.c.h.b16 %v528
        %v871 = vpack.c.b16 %v663, %v647
        %v872 = vpack.c.b16 %v664, %v648
        %v873 = vpack.c.b16 %v665, %v649
        %v874 = vpack.c.b16 %v666, %v650
        %v875 = vpack.c.b16 %v667, %v651
        %v876 = vpack.c.b16 %v668, %v652
        %v877 = vpack.c.b16 %v669, %v653
        %v878 = vpack.c.b16 %v670, %v654
        %v879 = vpack.c.b16 %v671, %v655
        %v880 = vpack.c.b16 %v672, %v656
        %v881 = vpack.c.b16 %v673, %v657
        %v882 = vpack.c.b16 %v674, %v658
        %v883 = vpack.c.b16 %v675, %v659
        %v884 = vpack.c.b16 %v676, %v660
        %v885 = vpack.c.b16 %v677, %v661
        %v886 = vpack.c.b16 %v678, %v662
        %v887 = vpack.c.b16 %v695, %v679
        %v888 = vpack.c.b16 %v696, %v680
        %v889 = vpack.c.b16 %v697, %v681
        %v890 = vpack.c.b16 %v698, %v682
        %v891 = vpack.c.b16 %v699, %v683
        %v892 = vpack.c.b16 %v700, %v684
        %v893 = vpack.c.b16 %v701, %v685
        %v894 = vpack.c.b16 %v702, %v686
        %v895 = vpack.c.b16 %v703, %v687
        %v896 = vpack.c.b16 %v704, %v688
        %v897 = vpack.c.b16 %v705, %v689
        %v898 = vpack.c.b16 %v706, %v690
        %v899 = vpack.c.b16 %v707, %v691
        %v900 = vpack.c.b16 %v708, %v692
        %v901 = vpack.c.b16 %v709, %v693
        %v902 = vpack.c.b16 %v710, %v694
        %v903 = vpack.c.b16 %v727, %v711
        %v904 = vpack.c.b16 %v728, %v712
        %v905 = vpack.c.b16 %v729, %v713
        %v906 = vpack.c.b16 %v730, %v714
        %v907 = vpack.c.b16 %v731, %v715
        %v908 = vpack.c.b16 %v732, %v716
        %v909 = vpack.c.b16 %v733, %v717
        %v910 = vpack.c.b16 %v734, %v718
        %v911 = vpack.c.b16 %v735, %v719
        %v912 = vpack.c.b16 %v736, %v720
        %v913 = vpack.c.b16 %v737, %v721
        %v914 = vpack.c.b16 %v738, %v722
        %v915 = vpack.c.b16 %v739, %v723
        %v916 = vpack.c.b16 %v740, %v724
        %v917 = vpack.c.b16 %v741, %v725
        %v918 = vpack.c.b16 %v742, %v726
        %v919 = vpack.c.b16 %v759, %v743
        %v920 = vpack.c.b16 %v760, %v744
        %v921 = vpack.c.b16 %v761, %v745
        %v922 = vpack.c.b16 %v762, %v746
        %v923 = vpack.c.b16 %v763, %v747
        %v924 = vpack.c.b16 %v764, %v748
        %v925 = vpack.c.b16 %v765, %v749
        %v926 = vpack.c.b16 %v766, %v750
        %v927 = vpack.c.b16 %v767, %v751
        %v928 = vpack.c.b16 %v768, %v752
        %v929 = vpack.c.b16 %v769, %v753
        %v930 = vpack.c.b16 %v770, %v754
        %v931 = vpack.c.b16 %v771, %v755
        %v932 = vpack.c.b16 %v772, %v756
        %v933 = vpack.c.b16 %v773, %v757
        %v934 = vpack.c.b16 %v774, %v758
        %v935 = vpack.c.b16 %v791, %v775
        %v936 = vpack.c.b16 %v792, %v776
        %v937 = vpack.c.b16 %v793, %v777
        %v938 = vpack.c.b16 %v794, %v778
        %v939 = vpack.c.b16 %v795, %v779
        %v940 = vpack.c.b16 %v796, %v780
        %v941 = vpack.c.b16 %v797, %v781
        %v942 = vpack.c.b16 %v798, %v782
        %v943 = vpack.c.b16 %v799, %v783
        %v944 = vpack.c.b16 %v800, %v784
        %v945 = vpack.c.b16 %v801, %v785
        %v946 = vpack.c.b16 %v802, %v786
        %v947 = vpack.c.b16 %v803, %v787
        %v948 = vpack.c.b16 %v804, %v788
        %v949 = vpack.c.b16 %v805, %v789
        %v950 = vpack.c.b16 %v806, %v790
        %v951 = vpack.c.b16 %v823, %v807
        %v952 = vpack.c.b16 %v824, %v808
        %v953 = vpack.c.b16 %v825, %v809
        %v954 = vpack.c.b16 %v826, %v810
        %v955 = vpack.c.b16 %v827, %v811
        %v956 = vpack.c.b16 %v828, %v812
        %v957 = vpack.c.b16 %v829, %v813
        %v958 = vpack.c.b16 %v830, %v814
        %v959 = vpack.c.b16 %v831, %v815
        %v960 = vpack.c.b16 %v832, %v816
        %v961 = vpack.c.b16 %v833, %v817
        %v962 = vpack.c.b16 %v834, %v818
        %v963 = vpack.c.b16 %v835, %v819
        %v964 = vpack.c.b16 %v836, %v820
        %v965 = vpack.c.b16 %v837, %v821
        %v966 = vpack.c.b16 %v838, %v822
        %v967 = vpack.c.b16 %v855, %v839
        %v968 = vpack.c.b16 %v856, %v840
        %v969 = vpack.c.b16 %v857, %v841
        %v970 = vpack.c.b16 %v858, %v842
        %v971 = vpack.c.b16 %v859, %v843
        %v972 = vpack.c.b16 %v860, %v844
        %v973 = vpack.c.b16 %v861, %v845
        %v974 = vpack.c.b16 %v862, %v846
        %v975 = vpack.c.b16 %v863, %v847
        %v976 = vpack.c.b16 %v864, %v848
        %v977 = vpack.c.b16 %v865, %v849
        %v978 = vpack.c.b16 %v866, %v850
        %v979 = vpack.c.b16 %v867, %v851
        %v980 = vpack.c.b16 %v868, %v852
        %v981 = vpack.c.b16 %v869, %v853
        %v982 = vpack.c.b16 %v870, %v854
        %vm1079 = vcmask 883712
        %v1081 = vsel %vm1079, %v416, 0
        %vm1083 = vcmask 1045504
        %v1085 = vsel %vm1083, %v967, 0
        %v1088 = vsel %vm1083, %v968, 0
        %v1091 = vsel %vm1083, %v969, 0
        %v1094 = vsel %vm1083, %v970, 0
        %v1097 = vsel %vm1083, %v971, 0
        %v1100 = vsel %vm1083, %v972, 0
        %v1103 = vsel %vm1083, %v973, 0
        %v1106 = vsel %vm1083, %v974, 0
        %v1109 = vsel %vm1083, %v975, 0
        %v1112 = vsel %vm1083, %v976, 0
        %v1115 = vsel %vm1083, %v977, 0
        %v1118 = vsel %vm1083, %v978, 0
        %v1121 = vsel %vm1083, %v979, 0
        %v1124 = vsel %vm1083, %v980, 0
        %v1127 = vsel %vm1083, %v981, 0
        %v1130 = vsel %vm1083, %v982, 0
        %1132 = vmatprep.subr.bf16.mxu0 0
        %1133 = vmatpush1.bf16.msra.mxu0 0
        %1134 = vmatprep.subr.bf16.mxu0 %v1088
        %1135 = vmatpush1.bf16.msra.mxu0 %v1085
        %1136 = vmatprep.subr.bf16.mxu0 %v952
        %1137 = vmatpush1.bf16.msra.mxu0 %v951
        %1138 = vmatprep.subr.bf16.mxu0 %v936
        %1139 = vmatpush1.bf16.msra.mxu0 %v935
        %1140 = vmatprep.subr.bf16.mxu0 %v920
        %1141 = vmatpush1.bf16.msra.mxu0 %v919
        %1142 = vmatprep.subr.bf16.mxu0 %v904
        %1143 = vmatpush1.bf16.msra.mxu0 %v903
        %1144 = vmatprep.subr.bf16.mxu0 %v888
        %1145 = vmatpush1.bf16.msra.mxu0 %v887
        %1146 = vmatprep.subr.bf16.mxu0 %v872
        %1147 = vmatpush1.bf16.msra.mxu0 %v871
        %1148 = vmatprep.subr.bf16.mxu0 0
        %1149 = vmatpush2.bf16.msra.mxu0 0
        %1150 = vmatprep.subr.bf16.mxu0 0
        %1151 = vmatpush2.bf16.msra.mxu0 0
        %1152 = vmatprep.subr.bf16.mxu0 0
        %1153 = vmatpush2.bf16.msra.mxu0 0
        %1154 = vmatprep.subr.bf16.mxu0 0
        %1155 = vmatpush2.bf16.msra.mxu0 0
        %1156 = vmatprep.subr.bf16.mxu0 0
        %1157 = vmatpush2.bf16.msra.mxu0 0
        %1158 = vmatprep.subr.bf16.mxu0 0
        %1159 = vmatpush2.bf16.msra.mxu0 0
        %1160 = vmatprep.subr.bf16.mxu0 0
        %1161 = vmatpush2.bf16.msra.mxu0 0
        %1162 = vmatprep.subr.bf16.mxu0 0
        %1163 = vmatpush2.bf16.msra.mxu0 0
        %1164 = vmatprep.mubr.bf16.mxu0 0
        %1165 = vmatmul.mubr.bf16.gmra.mxu0 %v1081
        %v1166 = vpop.f32.mrf.mxu0
        %v1167 = vadd.f32 %v533, %v1166
        %v1168 = vpop.f32.mrf.mxu0
        %v1169 = vadd.f32 %v533, %v1168
        %v1170 = vpop.f32.mrf.mxu0
        %v1171 = vpop.f32.mrf.mxu0
        %1172 = vdwg.mxu0
        %1173 = vmatprep.subr.bf16.mxu0 0
        %1174 = vmatpush1.bf16.msra.mxu0 0
        %1175 = vmatprep.subr.bf16.mxu0 %v1094
        %1176 = vmatpush1.bf16.msra.mxu0 %v1091
        %1177 = vmatprep.subr.bf16.mxu0 %v954
        %1178 = vmatpush1.bf16.msra.mxu0 %v953
        %1179 = vmatprep.subr.bf16.mxu0 %v938
        %1180 = vmatpush1.bf16.msra.mxu0 %v937
        %1181 = vmatprep.subr.bf16.mxu0 %v922
        %1182 = vmatpush1.bf16.msra.mxu0 %v921
        %1183 = vmatprep.subr.bf16.mxu0 %v906
        %1184 = vmatpush1.bf16.msra.mxu0 %v905
        %1185 = vmatprep.subr.bf16.mxu0 %v890
        %1186 = vmatpush1.bf16.msra.mxu0 %v889
        %1187 = vmatprep.subr.bf16.mxu0 %v874
        %1188 = vmatpush1.bf16.msra.mxu0 %v873
        %1189 = vmatprep.subr.bf16.mxu0 0
        %1190 = vmatpush2.bf16.msra.mxu0 0
        %1191 = vmatprep.subr.bf16.mxu0 0
        %1192 = vmatpush2.bf16.msra.mxu0 0
        %1193 = vmatprep.subr.bf16.mxu0 0
        %1194 = vmatpush2.bf16.msra.mxu0 0
        %1195 = vmatprep.subr.bf16.mxu0 0
        %1196 = vmatpush2.bf16.msra.mxu0 0
        %1197 = vmatprep.subr.bf16.mxu0 0
        %1198 = vmatpush2.bf16.msra.mxu0 0
        %1199 = vmatprep.subr.bf16.mxu0 0
        %1200 = vmatpush2.bf16.msra.mxu0 0
        %1201 = vmatprep.subr.bf16.mxu0 0
        %1202 = vmatpush2.bf16.msra.mxu0 0
        %1203 = vmatprep.subr.bf16.mxu0 0
        %1204 = vmatpush2.bf16.msra.mxu0 0
        %1205 = vmatprep.mubr.bf16.mxu0 0
        %1206 = vmatmul.mubr.bf16.gmra.mxu0 %v1081
        %v1207 = vpop.f32.mrf.mxu0
        %v1208 = vadd.f32 %v533, %v1207
        %v1209 = vpop.f32.mrf.mxu0
        %v1210 = vadd.f32 %v533, %v1209
        %v1211 = vpop.f32.mrf.mxu0
        %v1212 = vpop.f32.mrf.mxu0
        %1213 = vdwg.mxu0
        %1214 = vmatprep.subr.bf16.mxu0 0
        %1215 = vmatpush1.bf16.msra.mxu0 0
        %1216 = vmatprep.subr.bf16.mxu0 %v1100
        %1217 = vmatpush1.bf16.msra.mxu0 %v1097
        %1218 = vmatprep.subr.bf16.mxu0 %v956
        %1219 = vmatpush1.bf16.msra.mxu0 %v955
        %1220 = vmatprep.subr.bf16.mxu0 %v940
        %1221 = vmatpush1.bf16.msra.mxu0 %v939
        %1222 = vmatprep.subr.bf16.mxu0 %v924
        %1223 = vmatpush1.bf16.msra.mxu0 %v923
        %1224 = vmatprep.subr.bf16.mxu0 %v908
        %1225 = vmatpush1.bf16.msra.mxu0 %v907
        %1226 = vmatprep.subr.bf16.mxu0 %v892
        %1227 = vmatpush1.bf16.msra.mxu0 %v891
        %1228 = vmatprep.subr.bf16.mxu0 %v876
        %1229 = vmatpush1.bf16.msra.mxu0 %v875
        %1230 = vmatprep.subr.bf16.mxu0 0
        %1231 = vmatpush2.bf16.msra.mxu0 0
        %1232 = vmatprep.subr.bf16.mxu0 0
        %1233 = vmatpush2.bf16.msra.mxu0 0
        %1234 = vmatprep.subr.bf16.mxu0 0
        %1235 = vmatpush2.bf16.msra.mxu0 0
        %1236 = vmatprep.subr.bf16.mxu0 0
        %1237 = vmatpush2.bf16.msra.mxu0 0
        %1238 = vmatprep.subr.bf16.mxu0 0
        %1239 = vmatpush2.bf16.msra.mxu0 0
        %1240 = vmatprep.subr.bf16.mxu0 0
        %1241 = vmatpush2.bf16.msra.mxu0 0
        %1242 = vmatprep.subr.bf16.mxu0 0
        %1243 = vmatpush2.bf16.msra.mxu0 0
        %1244 = vmatprep.subr.bf16.mxu0 0
        %1245 = vmatpush2.bf16.msra.mxu0 0
        %1246 = vmatprep.mubr.bf16.mxu0 0
        %1247 = vmatmul.mubr.bf16.gmra.mxu0 %v1081
        %v1248 = vpop.f32.mrf.mxu0
        %v1249 = vadd.f32 %v533, %v1248
        %v1250 = vpop.f32.mrf.mxu0
        %v1251 = vadd.f32 %v533, %v1250
        %v1252 = vpop.f32.mrf.mxu0
        %v1253 = vpop.f32.mrf.mxu0
        %1254 = vdwg.mxu0
        %1255 = vmatprep.subr.bf16.mxu0 0
        %1256 = vmatpush1.bf16.msra.mxu0 0
        %1257 = vmatprep.subr.bf16.mxu0 %v1106
        %1258 = vmatpush1.bf16.msra.mxu0 %v1103
        %1259 = vmatprep.subr.bf16.mxu0 %v958
        %1260 = vmatpush1.bf16.msra.mxu0 %v957
        %1261 = vmatprep.subr.bf16.mxu0 %v942
        %1262 = vmatpush1.bf16.msra.mxu0 %v941
        %1263 = vmatprep.subr.bf16.mxu0 %v926
        %1264 = vmatpush1.bf16.msra.mxu0 %v925
        %1265 = vmatprep.subr.bf16.mxu0 %v910
        %1266 = vmatpush1.bf16.msra.mxu0 %v909
        %1267 = vmatprep.subr.bf16.mxu0 %v894
        %1268 = vmatpush1.bf16.msra.mxu0 %v893
        %1269 = vmatprep.subr.bf16.mxu0 %v878
        %1270 = vmatpush1.bf16.msra.mxu0 %v877
        %1271 = vmatprep.subr.bf16.mxu0 0
        %1272 = vmatpush2.bf16.msra.mxu0 0
        %1273 = vmatprep.subr.bf16.mxu0 0
        %1274 = vmatpush2.bf16.msra.mxu0 0
        %1275 = vmatprep.subr.bf16.mxu0 0
        %1276 = vmatpush2.bf16.msra.mxu0 0
        %1277 = vmatprep.subr.bf16.mxu0 0
        %1278 = vmatpush2.bf16.msra.mxu0 0
        %1279 = vmatprep.subr.bf16.mxu0 0
        %1280 = vmatpush2.bf16.msra.mxu0 0
        %1281 = vmatprep.subr.bf16.mxu0 0
        %1282 = vmatpush2.bf16.msra.mxu0 0
        %1283 = vmatprep.subr.bf16.mxu0 0
        %1284 = vmatpush2.bf16.msra.mxu0 0
        %1285 = vmatprep.subr.bf16.mxu0 0
        %1286 = vmatpush2.bf16.msra.mxu0 0
        %1287 = vmatprep.mubr.bf16.mxu0 0
        %1288 = vmatmul.mubr.bf16.gmra.mxu0 %v1081
        %v1289 = vpop.f32.mrf.mxu0
        %v1290 = vadd.f32 %v533, %v1289
        %v1291 = vpop.f32.mrf.mxu0
        %v1292 = vadd.f32 %v533, %v1291
        %v1293 = vpop.f32.mrf.mxu0
        %v1294 = vpop.f32.mrf.mxu0
        %1295 = vdwg.mxu0
        %1296 = vmatprep.subr.bf16.mxu0 0
        %1297 = vmatpush1.bf16.msra.mxu0 0
        %1298 = vmatprep.subr.bf16.mxu0 %v1112
        %1299 = vmatpush1.bf16.msra.mxu0 %v1109
        %1300 = vmatprep.subr.bf16.mxu0 %v960
        %1301 = vmatpush1.bf16.msra.mxu0 %v959
        %1302 = vmatprep.subr.bf16.mxu0 %v944
        %1303 = vmatpush1.bf16.msra.mxu0 %v943
        %1304 = vmatprep.subr.bf16.mxu0 %v928
        %1305 = vmatpush1.bf16.msra.mxu0 %v927
        %1306 = vmatprep.subr.bf16.mxu0 %v912
        %1307 = vmatpush1.bf16.msra.mxu0 %v911
        %1308 = vmatprep.subr.bf16.mxu0 %v896
        %1309 = vmatpush1.bf16.msra.mxu0 %v895
        %1310 = vmatprep.subr.bf16.mxu0 %v880
        %1311 = vmatpush1.bf16.msra.mxu0 %v879
        %1312 = vmatprep.subr.bf16.mxu0 0
        %1313 = vmatpush2.bf16.msra.mxu0 0
        %1314 = vmatprep.subr.bf16.mxu0 0
        %1315 = vmatpush2.bf16.msra.mxu0 0
        %1316 = vmatprep.subr.bf16.mxu0 0
        %1317 = vmatpush2.bf16.msra.mxu0 0
        %1318 = vmatprep.subr.bf16.mxu0 0
        %1319 = vmatpush2.bf16.msra.mxu0 0
        %1320 = vmatprep.subr.bf16.mxu0 0
        %1321 = vmatpush2.bf16.msra.mxu0 0
        %1322 = vmatprep.subr.bf16.mxu0 0
        %1323 = vmatpush2.bf16.msra.mxu0 0
        %1324 = vmatprep.subr.bf16.mxu0 0
        %1325 = vmatpush2.bf16.msra.mxu0 0
        %1326 = vmatprep.subr.bf16.mxu0 0
        %1327 = vmatpush2.bf16.msra.mxu0 0
        %1328 = vmatprep.mubr.bf16.mxu0 0
        %1329 = vmatmul.mubr.bf16.gmra.mxu0 %v1081
        %v1330 = vpop.f32.mrf.mxu0
        %v1331 = vadd.f32 %v533, %v1330
        %v1332 = vpop.f32.mrf.mxu0
        %v1333 = vadd.f32 %v533, %v1332
        %v1334 = vpop.f32.mrf.mxu0
        %v1335 = vpop.f32.mrf.mxu0
        %1336 = vdwg.mxu0
        %1337 = vmatprep.subr.bf16.mxu0 0
        %1338 = vmatpush1.bf16.msra.mxu0 0
        %1339 = vmatprep.subr.bf16.mxu0 %v1118
        %1340 = vmatpush1.bf16.msra.mxu0 %v1115
        %1341 = vmatprep.subr.bf16.mxu0 %v962
        %1342 = vmatpush1.bf16.msra.mxu0 %v961
        %1343 = vmatprep.subr.bf16.mxu0 %v946
        %1344 = vmatpush1.bf16.msra.mxu0 %v945
        %1345 = vmatprep.subr.bf16.mxu0 %v930
        %1346 = vmatpush1.bf16.msra.mxu0 %v929
        %1347 = vmatprep.subr.bf16.mxu0 %v914
        %1348 = vmatpush1.bf16.msra.mxu0 %v913
        %1349 = vmatprep.subr.bf16.mxu0 %v898
        %1350 = vmatpush1.bf16.msra.mxu0 %v897
        %1351 = vmatprep.subr.bf16.mxu0 %v882
        %1352 = vmatpush1.bf16.msra.mxu0 %v881
        %1353 = vmatprep.subr.bf16.mxu0 0
        %1354 = vmatpush2.bf16.msra.mxu0 0
        %1355 = vmatprep.subr.bf16.mxu0 0
        %1356 = vmatpush2.bf16.msra.mxu0 0
        %1357 = vmatprep.subr.bf16.mxu0 0
        %1358 = vmatpush2.bf16.msra.mxu0 0
        %1359 = vmatprep.subr.bf16.mxu0 0
        %1360 = vmatpush2.bf16.msra.mxu0 0
        %1361 = vmatprep.subr.bf16.mxu0 0
        %1362 = vmatpush2.bf16.msra.mxu0 0
        %1363 = vmatprep.subr.bf16.mxu0 0
        %1364 = vmatpush2.bf16.msra.mxu0 0
        %1365 = vmatprep.subr.bf16.mxu0 0
        %1366 = vmatpush2.bf16.msra.mxu0 0
        %1367 = vmatprep.subr.bf16.mxu0 0
        %1368 = vmatpush2.bf16.msra.mxu0 0
        %1369 = vmatprep.mubr.bf16.mxu0 0
        %1370 = vmatmul.mubr.bf16.gmra.mxu0 %v1081
        %v1371 = vpop.f32.mrf.mxu0
        %v1372 = vadd.f32 %v533, %v1371
        %v1373 = vpop.f32.mrf.mxu0
        %v1374 = vadd.f32 %v533, %v1373
        %v1375 = vpop.f32.mrf.mxu0
        %v1376 = vpop.f32.mrf.mxu0
        %1377 = vdwg.mxu0
        %1378 = vmatprep.subr.bf16.mxu0 0
        %1379 = vmatpush1.bf16.msra.mxu0 0
        %1380 = vmatprep.subr.bf16.mxu0 %v1124
        %1381 = vmatpush1.bf16.msra.mxu0 %v1121
        %1382 = vmatprep.subr.bf16.mxu0 %v964
        %1383 = vmatpush1.bf16.msra.mxu0 %v963
        %1384 = vmatprep.subr.bf16.mxu0 %v948
        %1385 = vmatpush1.bf16.msra.mxu0 %v947
        %1386 = vmatprep.subr.bf16.mxu0 %v932
        %1387 = vmatpush1.bf16.msra.mxu0 %v931
        %1388 = vmatprep.subr.bf16.mxu0 %v916
        %1389 = vmatpush1.bf16.msra.mxu0 %v915
        %1390 = vmatprep.subr.bf16.mxu0 %v900
        %1391 = vmatpush1.bf16.msra.mxu0 %v899
        %1392 = vmatprep.subr.bf16.mxu0 %v884
        %1393 = vmatpush1.bf16.msra.mxu0 %v883
        %1394 = vmatprep.subr.bf16.mxu0 0
        %1395 = vmatpush2.bf16.msra.mxu0 0
        %1396 = vmatprep.subr.bf16.mxu0 0
        %1397 = vmatpush2.bf16.msra.mxu0 0
        %1398 = vmatprep.subr.bf16.mxu0 0
        %1399 = vmatpush2.bf16.msra.mxu0 0
        %1400 = vmatprep.subr.bf16.mxu0 0
        %1401 = vmatpush2.bf16.msra.mxu0 0
        %1402 = vmatprep.subr.bf16.mxu0 0
        %1403 = vmatpush2.bf16.msra.mxu0 0
        %1404 = vmatprep.subr.bf16.mxu0 0
        %1405 = vmatpush2.bf16.msra.mxu0 0
        %1406 = vmatprep.subr.bf16.mxu0 0
        %1407 = vmatpush2.bf16.msra.mxu0 0
        %1408 = vmatprep.subr.bf16.mxu0 0
        %1409 = vmatpush2.bf16.msra.mxu0 0
        %1410 = vmatprep.mubr.bf16.mxu0 0
        %1411 = vmatmul.mubr.bf16.gmra.mxu0 %v1081
        %v1412 = vpop.f32.mrf.mxu0
        %v1413 = vadd.f32 %v533, %v1412
        %v1414 = vpop.f32.mrf.mxu0
        %v1415 = vadd.f32 %v533, %v1414
        %v1416 = vpop.f32.mrf.mxu0
        %v1417 = vpop.f32.mrf.mxu0
        %1418 = vdwg.mxu0
        %1419 = vmatprep.subr.bf16.mxu0 0
        %1420 = vmatpush1.bf16.msra.mxu0 0
        %1421 = vmatprep.subr.bf16.mxu0 %v1130
        %1422 = vmatpush1.bf16.msra.mxu0 %v1127
        %1423 = vmatprep.subr.bf16.mxu0 %v966
        %1424 = vmatpush1.bf16.msra.mxu0 %v965
        %1425 = vmatprep.subr.bf16.mxu0 %v950
        %1426 = vmatpush1.bf16.msra.mxu0 %v949
        %1427 = vmatprep.subr.bf16.mxu0 %v934
        %1428 = vmatpush1.bf16.msra.mxu0 %v933
        %1429 = vmatprep.subr.bf16.mxu0 %v918
        %1430 = vmatpush1.bf16.msra.mxu0 %v917
        %1431 = vmatprep.subr.bf16.mxu0 %v902
        %1432 = vmatpush1.bf16.msra.mxu0 %v901
        %1433 = vmatprep.subr.bf16.mxu0 %v886
        %1434 = vmatpush1.bf16.msra.mxu0 %v885
        %1435 = vmatprep.subr.bf16.mxu0 0
        %1436 = vmatpush2.bf16.msra.mxu0 0
        %1437 = vmatprep.subr.bf16.mxu0 0
        %1438 = vmatpush2.bf16.msra.mxu0 0
        %1439 = vmatprep.subr.bf16.mxu0 0
        %1440 = vmatpush2.bf16.msra.mxu0 0
        %1441 = vmatprep.subr.bf16.mxu0 0
        %1442 = vmatpush2.bf16.msra.mxu0 0
        %1443 = vmatprep.subr.bf16.mxu0 0
        %1444 = vmatpush2.bf16.msra.mxu0 0
        %1445 = vmatprep.subr.bf16.mxu0 0
        %1446 = vmatpush2.bf16.msra.mxu0 0
        %1447 = vmatprep.subr.bf16.mxu0 0
        %1448 = vmatpush2.bf16.msra.mxu0 0
        %1449 = vmatprep.subr.bf16.mxu0 0
        %1450 = vmatpush2.bf16.msra.mxu0 0
        %1451 = vmatprep.mubr.bf16.mxu0 0
        %1452 = vmatmul.mubr.bf16.gmra.mxu0 %v1081
        %v1453 = vpop.f32.mrf.mxu0
        %v1454 = vadd.f32 %v533, %v1453
        %v1455 = vpop.f32.mrf.mxu0
        %v1456 = vadd.f32 %v533, %v1455
        %v1457 = vpop.f32.mrf.mxu0
        %v1458 = vpop.f32.mrf.mxu0
        %1459 = vdwg.mxu0
        %v1460 = vxor.u32 %v1167, 2147483648
        %v1461 = vxor.u32 %v1169, 2147483648
        %v1462 = vxor.u32 %v1208, 2147483648
        %v1463 = vxor.u32 %v1210, 2147483648
        %v1464 = vxor.u32 %v1249, 2147483648
        %v1465 = vxor.u32 %v1251, 2147483648
        %v1466 = vxor.u32 %v1290, 2147483648
        %v1467 = vxor.u32 %v1292, 2147483648
        %v1468 = vxor.u32 %v1331, 2147483648
        %v1469 = vxor.u32 %v1333, 2147483648
        %v1470 = vxor.u32 %v1372, 2147483648
        %v1471 = vxor.u32 %v1374, 2147483648
        %v1472 = vxor.u32 %v1413, 2147483648
        %v1473 = vxor.u32 %v1415, 2147483648
        %v1474 = vxor.u32 %v1454, 2147483648
        %v1475 = vxor.u32 %v1456, 2147483648
        %v1476 = vmul.f32 %v1460, 1.442695
        %v1477 = vpow.pop %v1476
        %v1478 = vmul.f32 %v1461, 1.442695
        %v1479 = vpow.pop %v1478
        %v1480 = vmul.f32 %v1462, 1.442695
        %v1481 = vpow.pop %v1480
        %v1482 = vmul.f32 %v1463, 1.442695
        %v1483 = vpow.pop %v1482
        %v1484 = vmul.f32 %v1464, 1.442695
        %v1485 = vpow.pop %v1484
        %v1486 = vmul.f32 %v1465, 1.442695
        %v1487 = vpow.pop %v1486
        %v1488 = vmul.f32 %v1466, 1.442695
        %v1489 = vpow.pop %v1488
        %v1490 = vmul.f32 %v1467, 1.442695
        %v1491 = vpow.pop %v1490
        %v1492 = vmul.f32 %v1468, 1.442695
        %v1493 = vpow.pop %v1492
        %v1494 = vmul.f32 %v1469, 1.442695
        %v1495 = vpow.pop %v1494
        %v1496 = vmul.f32 %v1470, 1.442695
        %v1497 = vpow.pop %v1496
        %v1498 = vmul.f32 %v1471, 1.442695
        %v1499 = vpow.pop %v1498
        %v1500 = vmul.f32 %v1472, 1.442695
        %v1501 = vpow.pop %v1500
        %v1502 = vmul.f32 %v1473, 1.442695
        %v1503 = vpow.pop %v1502
        %v1504 = vmul.f32 %v1474, 1.442695
        %v1505 = vpow.pop %v1504
        %v1506 = vmul.f32 %v1475, 1.442695
        %v1507 = vpow.pop %v1506
        %v1508 = vadd.f32 %v1477, 1.0
        %v1509 = vadd.f32 %v1479, 1.0
        %v1510 = vadd.f32 %v1481, 1.0
        %v1511 = vadd.f32 %v1483, 1.0
        %v1512 = vadd.f32 %v1485, 1.0
        %v1513 = vadd.f32 %v1487, 1.0
        %v1514 = vadd.f32 %v1489, 1.0
        %v1515 = vadd.f32 %v1491, 1.0
        %v1516 = vadd.f32 %v1493, 1.0
        %v1517 = vadd.f32 %v1495, 1.0
        %v1518 = vadd.f32 %v1497, 1.0
        %v1519 = vadd.f32 %v1499, 1.0
        %v1520 = vadd.f32 %v1501, 1.0
        %v1521 = vadd.f32 %v1503, 1.0
        %v1522 = vadd.f32 %v1505, 1.0
        %v1523 = vadd.f32 %v1507, 1.0
        %v1524 = vrcp.pop %v1508
        %v1525 = vmul.f32 1.0, %v1524
        %v1526 = vrcp.pop %v1509
        %v1527 = vmul.f32 1.0, %v1526
        %v1528 = vrcp.pop %v1510
        %v1529 = vmul.f32 1.0, %v1528
        %v1530 = vrcp.pop %v1511
        %v1531 = vmul.f32 1.0, %v1530
        %v1532 = vrcp.pop %v1512
        %v1533 = vmul.f32 1.0, %v1532
        %v1534 = vrcp.pop %v1513
        %v1535 = vmul.f32 1.0, %v1534
        %v1536 = vrcp.pop %v1514
        %v1537 = vmul.f32 1.0, %v1536
        %v1538 = vrcp.pop %v1515
        %v1539 = vmul.f32 1.0, %v1538
        %v1540 = vrcp.pop %v1516
        %v1541 = vmul.f32 1.0, %v1540
        %v1542 = vrcp.pop %v1517
        %v1543 = vmul.f32 1.0, %v1542
        %v1544 = vrcp.pop %v1518
        %v1545 = vmul.f32 1.0, %v1544
        %v1546 = vrcp.pop %v1519
        %v1547 = vmul.f32 1.0, %v1546
        %v1548 = vrcp.pop %v1520
        %v1549 = vmul.f32 1.0, %v1548
        %v1550 = vrcp.pop %v1521
        %v1551 = vmul.f32 1.0, %v1550
        %v1552 = vrcp.pop %v1522
        %v1553 = vmul.f32 1.0, %v1552
        %v1554 = vrcp.pop %v1523
        %v1555 = vmul.f32 1.0, %v1554
        %v1556 = vmul.f32 %v1167, %v1525
        %v1557 = vmul.f32 %v1169, %v1527
        %v1558 = vmul.f32 %v1208, %v1529
        %v1559 = vmul.f32 %v1210, %v1531
        %v1560 = vmul.f32 %v1249, %v1533
        %v1561 = vmul.f32 %v1251, %v1535
        %v1562 = vmul.f32 %v1290, %v1537
        %v1563 = vmul.f32 %v1292, %v1539
        %v1564 = vmul.f32 %v1331, %v1541
        %v1565 = vmul.f32 %v1333, %v1543
        %v1566 = vmul.f32 %v1372, %v1545
        %v1567 = vmul.f32 %v1374, %v1547
        %v1568 = vmul.f32 %v1413, %v1549
        %v1569 = vmul.f32 %v1415, %v1551
        %v1570 = vmul.f32 %v1454, %v1553
        %v1571 = vmul.f32 %v1456, %v1555
        %v1572 = vpack.c.bf16 %v1556, %v1556
        %v1573 = vpack.c.bf16 %v1557, %v1557
        %v1574 = vpack.c.bf16 %v1558, %v1558
        %v1575 = vpack.c.bf16 %v1559, %v1559
        %v1576 = vpack.c.bf16 %v1560, %v1560
        %v1577 = vpack.c.bf16 %v1561, %v1561
        %v1578 = vpack.c.bf16 %v1562, %v1562
        %v1579 = vpack.c.bf16 %v1563, %v1563
        %v1580 = vpack.c.bf16 %v1564, %v1564
        %v1581 = vpack.c.bf16 %v1565, %v1565
        %v1582 = vpack.c.bf16 %v1566, %v1566
        %v1583 = vpack.c.bf16 %v1567, %v1567
        %v1584 = vpack.c.bf16 %v1568, %v1568
        %v1585 = vpack.c.bf16 %v1569, %v1569
        %v1586 = vpack.c.bf16 %v1570, %v1570
        %v1587 = vpack.c.bf16 %v1571, %v1571
        %v1604 = vunpack.c.l.b16 %v1572
        %v1605 = vunpack.c.l.b16 %v1573
        %v1606 = vunpack.c.l.b16 %v1574
        %v1607 = vunpack.c.l.b16 %v1575
        %v1608 = vunpack.c.l.b16 %v1576
        %v1609 = vunpack.c.l.b16 %v1577
        %v1610 = vunpack.c.l.b16 %v1578
        %v1611 = vunpack.c.l.b16 %v1579
        %v1612 = vunpack.c.l.b16 %v1580
        %v1613 = vunpack.c.l.b16 %v1581
        %v1614 = vunpack.c.l.b16 %v1582
        %v1615 = vunpack.c.l.b16 %v1583
        %v1616 = vunpack.c.l.b16 %v1584
        %v1617 = vunpack.c.l.b16 %v1585
        %v1618 = vunpack.c.l.b16 %v1586
        %v1619 = vunpack.c.l.b16 %v1587
        %v1620 = vpack.c.b16 %v1605, %v1604
        %v1621 = vpack.c.b16 %v1607, %v1606
        %v1622 = vpack.c.b16 %v1609, %v1608
        %v1623 = vpack.c.b16 %v1611, %v1610
        %v1624 = vpack.c.b16 %v1613, %v1612
        %v1625 = vpack.c.b16 %v1615, %v1614
        %v1626 = vpack.c.b16 %v1617, %v1616
        %v1627 = vpack.c.b16 %v1619, %v1618
        %1636 = vst [vmem:[%s413] sm:$0xff] %v1620
        %1637 = vst [vmem:[%s413 + $0x8] sm:$0xff] %v1621
        %1638 = vst [vmem:[%s413 + $0x10] sm:$0xff] %v1622
        %1639 = vst [vmem:[%s413 + $0x18] sm:$0xff] %v1623
        %1640 = vst [vmem:[%s413 + $0x20] sm:$0xff] %v1624
        %1641 = vst [vmem:[%s413 + $0x28] sm:$0xff] %v1625
        %1642 = vst [vmem:[%s413 + $0x30] sm:$0xff] %v1626
        %1643 = vst [vmem:[%s413 + $0x38] sm:$0xff] %v1627
        %s1644 = smul.u32 16, %s14
        %p1645 = scmp.lt.s32.totalorder %s1644, 63
        %s1646 = scalar_select %p1645, %s1644, 63
        %s1647 = smul.addr %s1646, 4
        %s1648 = scalar_lea.vmem %s3, %s1647
        // Predicated region
        $region56: #{darknet_forward.14} parent=50 // pred_check
          %p1649 = pneg %p100
        $region57: #{darknet_forward.14} parent=50 // pred_check_branch
          %1651 = sbr.rel (%p1649) target = $region59
        $region58: #{darknet_forward.14} parent=50 // pred_region
          %s1652 = smul.u32 16, %s14
        $region59: #{darknet_forward.14} parent=50 // pred_fallthru
          _
      $region51: #{darknet_forward.14} parent=5 // pred_fallthru
        _
      %p1653 = scmp.le.s32.totalorder 2, %s9
      // Predicated region
      $region60: #{darknet_forward.14} parent=5 // pred_check
        %p1654 = pneg %p1653
      $region61: #{darknet_forward.14} parent=5 // pred_check_branch
        %1656 = sbr.rel (%p1654) target = $region63
      $region62: #{darknet_forward.14} parent=5 // pred_region
        %s1657 = ssub.s32 %s9, 2
        // Predicated region
        $region64: #{darknet_forward.14} parent=62 // pred_check
          %p1658 = pneg %p106
        $region65: #{darknet_forward.14} parent=62 // pred_check_branch
          %1660 = sbr.rel (%p1658) target = $region67
        $region66: #{darknet_forward.14} parent=62 // pred_region
          %s1661 = smul.u32 16, %s15
          %p1662 = scmp.lt.s32.totalorder %s1661, 63
          %s1663 = scalar_select %p1662, %s1661, 63
          %s1664 = smul.addr %s1663, 4
          %s1665 = scalar_lea.vmem %s3, %s1664
        $region67: #{darknet_forward.14} parent=62 // pred_fallthru
          _
      $region63: #{darknet_forward.14} parent=5 // pred_fallthru
        _
    $region6: #{darknet_forward.14} parent=1 // loop_footer
      %s13 = sadd.s32 1, %s9
    $region7: #{darknet_forward.14} parent=1 // loop_footer_branch
      %8 = sbr.rel target = $region3
    $region8: #{darknet_forward.14} parent=1 // loop_exit
      _

// kernel: darknet_forward.15
$region0: #{darknet_forward.15}
  #allocation0 [shape = 'u32[]', space=smem, size = 0x4, offset = 0x4, fixed_abs, tag = 'smem constant byte address 0x4 - core index']
  #allocation1 [shape = 'u32[144,128]{1,0:T(1,128)}', space=vmem, size = 0x12000, scoped, tag = 'internal scratch']
  %s0 = inlined_call_operand.vmem [shape: bf16[16,72], index: 0, kind: input, shape index: {}]
  %s1 = inlined_call_operand.vmem [shape: bf16[72,2048], index: 1, kind: input, shape index: {}]
  %s2 = inlined_call_operand.vmem [shape: f32[16,1], index: 2, kind: input, shape index: {}]
  %s3 = inlined_call_operand.vmem [shape: bf16[16,2048], index: 3, kind: output, shape index: {}]
  %s4 = sld [smem:[#allocation0]]
  $region87: #{darknet_forward.15} parent=0
    _
  %s6 = ssub.s32 1, %s4
  %s7 = scalar_select 0, %s6, %s4
  $region1: #{darknet_forward.15} parent=0
    #allocation2 [shape = 'u8[294912]{0}', space=vmem, size = 0x48000, scoped, tag = 'input window, operand 1']
    #allocation3 [shape = 'u8[65536]{0}', space=vmem, size = 0x10000, scoped, tag = 'output window, operand 0']
    loop: start=0, step=1, limit=4
    $region2: #{darknet_forward.15} parent=1 // loop_pre_header
      _
    $region3: #{darknet_forward.15} parent=1 // loop_header
      %s9 = sphi 0, %s13
      %p10 = scmp.ge.s32.totalorder %s9, 4
      %s17 = sphi 0, %s17
      %s19 = sphi 0, %s17
      %s20 = sphi 0, %s19
      %s34 = sphi 0, %s20
      %s40 = sphi 0, %s42
      %s43 = sphi 0, %s40
      %s44 = sphi 0, %s43
      %s60 = sphi 0, %s44
      %s64 = sphi 0, %s64
      %s66 = sphi 0, %s64
      %s67 = sphi 0, %s66
      %s81 = sphi 0, %s67
      %s87 = sphi 0, %s89
      %s90 = sphi 0, %s87
      %s91 = sphi 0, %s90
      %s107 = sphi 0, %s91
    $region4: #{darknet_forward.15} parent=1 // loop_header_branch
      %12 = sbr.rel (%p10) target = $region8
    $region5: #{darknet_forward.15} parent=1 // loop_body
      %s14 = ssub.s32 %s9, 1
      %s15 = ssub.s32 %s9, 2
      %s16 = sadd.s32 %s9, 1
      %s18 = sadd.s32 %s17, 1
      %p21 = scmp.eq.s32.totalorder %s9, 1
      %p22 = scmp.ne.s32.totalorder %s17, %s19
      %p23 = scmp.eq.s32.totalorder %s9, 0
      %p24 = por %p22, %p23
      %p25 = scmp.ne.s32.totalorder %s17, %s19
      %p26 = scmp.eq.s32.totalorder %s14, 1
      %p27 = por %p25, %p26
      %p28 = scmp.ne.s32.totalorder %s19, %s20
      %p29 = scmp.eq.s32.totalorder %s14, 0
      %p30 = por %p28, %p29
      %p31 = scmp.ne.s32.totalorder %s19, %s20
      %p32 = scmp.eq.s32.totalorder %s15, 1
      %p33 = por %p31, %p32
      %p35 = scmp.ne.s32.totalorder %s20, %s34
      %p36 = scmp.eq.s32.totalorder %s15, 0
      %p37 = por %p35, %p36
      %s38 = ssub.s32 %s9, %s16
      %p39 = scmp.eq.s32.totalorder %s38, 0
      %s41 = sadd.s32 %s40, 1
      %s42 = scalar_select %p39, %s40, %s41
      %p45 = pneg %p39
      %p46 = scmp.eq.s32.totalorder %s9, 1
      %p47 = por %p45, %p46
      %p48 = scmp.ne.s32.totalorder %s40, %s43
      %p49 = scmp.eq.s32.totalorder %s9, 0
      %p50 = por %p48, %p49
      %p51 = scmp.ne.s32.totalorder %s40, %s43
      %p52 = scmp.eq.s32.totalorder %s14, 1
      %p53 = por %p51, %p52
      %p54 = scmp.ne.s32.totalorder %s43, %s44
      %p55 = scmp.eq.s32.totalorder %s14, 0
      %p56 = por %p54, %p55
      %p57 = scmp.ne.s32.totalorder %s43, %s44
      %p58 = scmp.eq.s32.totalorder %s15, 1
      %p59 = por %p57, %p58
      %p61 = scmp.ne.s32.totalorder %s44, %s60
      %p62 = scmp.eq.s32.totalorder %s15, 0
      %p63 = por %p61, %p62
      %s65 = sadd.s32 %s64, 1
      %p68 = scmp.eq.s32.totalorder %s9, 1
      %p69 = scmp.ne.s32.totalorder %s64, %s66
      %p70 = scmp.eq.s32.totalorder %s9, 0
      %p71 = por %p69, %p70
      %p72 = scmp.ne.s32.totalorder %s64, %s66
      %p73 = scmp.eq.s32.totalorder %s14, 1
      %p74 = por %p72, %p73
      %p75 = scmp.ne.s32.totalorder %s66, %s67
      %p76 = scmp.eq.s32.totalorder %s14, 0
      %p77 = por %p75, %p76
      %p78 = scmp.ne.s32.totalorder %s66, %s67
      %p79 = scmp.eq.s32.totalorder %s15, 1
      %p80 = por %p78, %p79
      %p82 = scmp.ne.s32.totalorder %s67, %s81
      %p83 = scmp.eq.s32.totalorder %s15, 0
      %p84 = por %p82, %p83
      %s85 = ssub.s32 %s9, %s16
      %p86 = scmp.eq.s32.totalorder %s85, 0
      %s88 = sadd.s32 %s87, 1
      %s89 = scalar_select %p86, %s87, %s88
      %p92 = pneg %p86
      %p93 = scmp.eq.s32.totalorder %s9, 1
      %p94 = por %p92, %p93
      %p95 = scmp.ne.s32.totalorder %s87, %s90
      %p96 = scmp.eq.s32.totalorder %s9, 0
      %p97 = por %p95, %p96
      %p98 = scmp.ne.s32.totalorder %s87, %s90
      %p99 = scmp.eq.s32.totalorder %s14, 1
      %p100 = por %p98, %p99
      %p101 = scmp.ne.s32.totalorder %s90, %s91
      %p102 = scmp.eq.s32.totalorder %s14, 0
      %p103 = por %p101, %p102
      %p104 = scmp.ne.s32.totalorder %s90, %s91
      %p105 = scmp.eq.s32.totalorder %s15, 1
      %p106 = por %p104, %p105
      %p108 = scmp.ne.s32.totalorder %s91, %s107
      %p109 = scmp.eq.s32.totalorder %s15, 0
      %p110 = por %p108, %p109
      %p111 = scmp.le.s32.totalorder 1, %s9
      %p112 = scmp.lt.s32.totalorder %s9, 3
      %p113 = pnand %p111, %p112
      %p114 = pneg %p113
      // Predicated region
      $region9: #{darknet_forward.15} parent=5 // pred_check
        _
      $region10: #{darknet_forward.15} parent=5 // pred_check_branch
        %116 = sbr.rel (%p113) target = $region12
      $region11: #{darknet_forward.15} parent=5 // pred_region
        %s117 = ssub.s32 %s9, 1
        // Predicated region
        $region13: #{darknet_forward.15} parent=11 // pred_check
          %p118 = pneg %p30
        $region14: #{darknet_forward.15} parent=11 // pred_check_branch
          %120 = sbr.rel (%p118) target = $region16
        $region15: #{darknet_forward.15} parent=11 // pred_region
          _
        $region16: #{darknet_forward.15} parent=11 // pred_fallthru
          _
        // Predicated region
        $region17: #{darknet_forward.15} parent=11 // pred_check
          %p121 = pneg %p77
        $region18: #{darknet_forward.15} parent=11 // pred_check_branch
          %123 = sbr.rel (%p121) target = $region20
        $region19: #{darknet_forward.15} parent=11 // pred_region
          _
        $region20: #{darknet_forward.15} parent=11 // pred_fallthru
          _
      $region12: #{darknet_forward.15} parent=5 // pred_fallthru
        _
      %p124 = scmp.lt.s32.totalorder %s9, 2
      // Predicated region
      $region21: #{darknet_forward.15} parent=5 // pred_check
        %p125 = pneg %p124
      $region22: #{darknet_forward.15} parent=5 // pred_check_branch
        %127 = sbr.rel (%p125) target = $region24
      $region23: #{darknet_forward.15} parent=5 // pred_region
        // Predicated region
        $region25: #{darknet_forward.15} parent=23 // pred_check
          %p128 = pneg %p50
        $region26: #{darknet_forward.15} parent=23 // pred_check_branch
          %130 = sbr.rel (%p128) target = $region28
        $region27: #{darknet_forward.15} parent=23 // pred_region
          %s131 = sand.u32 %s40, 1
          %s132 = sand.u32 %s40, 1
          %s133 = smul.addr %s132, 288
          %s134 = scalar_lea.vmem [#allocation2], %s133
          %s135 = smul.u32 8, %s9
          %s136 = smul.addr %s135, 4
          %s137 = scalar_lea.vmem %s1, %s136
          // Predicated region
          $region29: #{darknet_forward.15} parent=27 // pred_check
            _
          $region30: #{darknet_forward.15} parent=27 // pred_check_branch
            %139 = sbr.rel (0) target = $region32
          $region31: #{darknet_forward.15} parent=27 // pred_region
            // Predicated region
            $region33: #{darknet_forward.15} parent=31 // pred_check
              _
            $region34: #{darknet_forward.15} parent=31 // pred_check_branch
              %141 = sbr.rel (0) target = $region36
            $region35: #{darknet_forward.15} parent=31 // pred_region
              loop: start=0, step=1, limit=1
              $region37: #{darknet_forward.15} parent=35 // loop_pre_header
                _
              $region38: #{darknet_forward.15} parent=35 // loop_header
                %s143 = sphi 0, %s147
                %p144 = scmp.ge.s32.totalorder %s143, 1
                %s148 = sphi %s137, %s137
                %s149 = sphi %s134, %s134
              $region39: #{darknet_forward.15} parent=35 // loop_header_branch
                %146 = sbr.rel (%p144) target = $region43
              $region40: #{darknet_forward.15} parent=35 // loop_body
                %v150 = vld [vmem:[%s148] sm:$0xff]
                %151 = vst [vmem:[%s149] sm:$0xff] %v150
                %v152 = vld [vmem:[%s148 + $0x8] sm:$0xff]
                %153 = vst [vmem:[%s149 + $0x8] sm:$0xff] %v152
                %v154 = vld [vmem:[%s148 + $0x10] sm:$0xff]
                %155 = vst [vmem:[%s149 + $0x10] sm:$0xff] %v154
                %v156 = vld [vmem:[%s148 + $0x18] sm:$0xff]
                %157 = vst [vmem:[%s149 + $0x18] sm:$0xff] %v156
                %v158 = vld [vmem:[%s148 + $0x40] sm:$0xff]
                %159 = vst [vmem:[%s149 + $0x20] sm:$0xff] %v158
                %v160 = vld [vmem:[%s148 + $0x48] sm:$0xff]
                %161 = vst [vmem:[%s149 + $0x28] sm:$0xff] %v160
                %v162 = vld [vmem:[%s148 + $0x50] sm:$0xff]
                %163 = vst [vmem:[%s149 + $0x30] sm:$0xff] %v162
                %v164 = vld [vmem:[%s148 + $0x58] sm:$0xff]
                %165 = vst [vmem:[%s149 + $0x38] sm:$0xff] %v164
                %v166 = vld [vmem:[%s148 + $0x80] sm:$0xff]
                %167 = vst [vmem:[%s149 + $0x40] sm:$0xff] %v166
                %v168 = vld [vmem:[%s148 + $0x88] sm:$0xff]
                %169 = vst [vmem:[%s149 + $0x48] sm:$0xff] %v168
                %v170 = vld [vmem:[%s148 + $0x90] sm:$0xff]
                %171 = vst [vmem:[%s149 + $0x50] sm:$0xff] %v170
                %v172 = vld [vmem:[%s148 + $0x98] sm:$0xff]
                %173 = vst [vmem:[%s149 + $0x58] sm:$0xff] %v172
                %v174 = vld [vmem:[%s148 + $0xc0] sm:$0xff]
                %175 = vst [vmem:[%s149 + $0x60] sm:$0xff] %v174
                %v176 = vld [vmem:[%s148 + $0xc8] sm:$0xff]
                %177 = vst [vmem:[%s149 + $0x68] sm:$0xff] %v176
                %v178 = vld [vmem:[%s148 + $0xd0] sm:$0xff]
                %179 = vst [vmem:[%s149 + $0x70] sm:$0xff] %v178
                %v180 = vld [vmem:[%s148 + $0xd8] sm:$0xff]
                %181 = vst [vmem:[%s149 + $0x78] sm:$0xff] %v180
                %v182 = vld [vmem:[%s148 + $0x100] sm:$0xff]
                %183 = vst [vmem:[%s149 + $0x80] sm:$0xff] %v182
                %v184 = vld [vmem:[%s148 + $0x108] sm:$0xff]
                %185 = vst [vmem:[%s149 + $0x88] sm:$0xff] %v184
                %v186 = vld [vmem:[%s148 + $0x110] sm:$0xff]
                %187 = vst [vmem:[%s149 + $0x90] sm:$0xff] %v186
                %v188 = vld [vmem:[%s148 + $0x118] sm:$0xff]
                %189 = vst [vmem:[%s149 + $0x98] sm:$0xff] %v188
                %v190 = vld [vmem:[%s148 + $0x140] sm:$0xff]
                %191 = vst [vmem:[%s149 + $0xa0] sm:$0xff] %v190
                %v192 = vld [vmem:[%s148 + $0x148] sm:$0xff]
                %193 = vst [vmem:[%s149 + $0xa8] sm:$0xff] %v192
                %v194 = vld [vmem:[%s148 + $0x150] sm:$0xff]
                %195 = vst [vmem:[%s149 + $0xb0] sm:$0xff] %v194
                %v196 = vld [vmem:[%s148 + $0x158] sm:$0xff]
                %197 = vst [vmem:[%s149 + $0xb8] sm:$0xff] %v196
                %v198 = vld [vmem:[%s148 + $0x180] sm:$0xff]
                %199 = vst [vmem:[%s149 + $0xc0] sm:$0xff] %v198
                %v200 = vld [vmem:[%s148 + $0x188] sm:$0xff]
                %201 = vst [vmem:[%s149 + $0xc8] sm:$0xff] %v200
                %v202 = vld [vmem:[%s148 + $0x190] sm:$0xff]
                %203 = vst [vmem:[%s149 + $0xd0] sm:$0xff] %v202
                %v204 = vld [vmem:[%s148 + $0x198] sm:$0xff]
                %205 = vst [vmem:[%s149 + $0xd8] sm:$0xff] %v204
                %v206 = vld [vmem:[%s148 + $0x1c0] sm:$0xff]
                %207 = vst [vmem:[%s149 + $0xe0] sm:$0xff] %v206
                %v208 = vld [vmem:[%s148 + $0x1c8] sm:$0xff]
                %209 = vst [vmem:[%s149 + $0xe8] sm:$0xff] %v208
                %v210 = vld [vmem:[%s148 + $0x1d0] sm:$0xff]
                %211 = vst [vmem:[%s149 + $0xf0] sm:$0xff] %v210
                %v212 = vld [vmem:[%s148 + $0x1d8] sm:$0xff]
                %213 = vst [vmem:[%s149 + $0xf8] sm:$0xff] %v212
                %v214 = vld [vmem:[%s148 + $0x200] sm:$0xff]
                %215 = vst [vmem:[%s149 + $0x100] sm:$0xff] %v214
                %v216 = vld [vmem:[%s148 + $0x208] sm:$0xff]
                %217 = vst [vmem:[%s149 + $0x108] sm:$0xff] %v216
                %v218 = vld [vmem:[%s148 + $0x210] sm:$0xff]
                %219 = vst [vmem:[%s149 + $0x110] sm:$0xff] %v218
                %v220 = vld [vmem:[%s148 + $0x218] sm:$0xff]
                %221 = vst [vmem:[%s149 + $0x118] sm:$0xff] %v220
              $region41: #{darknet_forward.15} parent=35 // loop_footer
                %s147 = sadd.s32 1, %s143
              $region42: #{darknet_forward.15} parent=35 // loop_footer_branch
                %142 = sbr.rel target = $region38
              $region43: #{darknet_forward.15} parent=35 // loop_exit
                _
            $region36: #{darknet_forward.15} parent=31 // pred_fallthru
              _
            // Predicated region
            $region44: #{darknet_forward.15} parent=31 // pred_check
              _
            $region45: #{darknet_forward.15} parent=31 // pred_check_branch
              %223 = sbr.rel target = $region47
            $region46: #{darknet_forward.15} parent=31 // pred_region
              _
            $region47: #{darknet_forward.15} parent=31 // pred_fallthru
              _
          $region32: #{darknet_forward.15} parent=27 // pred_fallthru
            _
          %224 = vnop
        $region28: #{darknet_forward.15} parent=23 // pred_fallthru
          _
      $region24: #{darknet_forward.15} parent=5 // pred_fallthru
        _
      %p225 = scmp.le.s32.totalorder 1, %s9
      %p226 = scmp.lt.s32.totalorder %s9, 3
      %p227 = pnand %p225, %p226
      %p228 = pneg %p227
      // Predicated region
      $region48: #{darknet_forward.15} parent=5 // pred_check
        _
      $region49: #{darknet_forward.15} parent=5 // pred_check_branch
        %230 = sbr.rel (%p227) target = $region51
      $region50: #{darknet_forward.15} parent=5 // pred_region
        %s231 = ssub.s32 %s9, 1
        %s232 = sand.u32 %s43, 1
        %s233 = sand.u32 %s43, 1
        %s234 = smul.addr %s233, 288
        %s235 = scalar_lea.vmem [#allocation2], %s234
        // Predicated region
        $region52: #{darknet_forward.15} parent=50 // pred_check
          %p236 = pneg %p56
        $region53: #{darknet_forward.15} parent=50 // pred_check_branch
          %238 = sbr.rel (%p236) target = $region55
        $region54: #{darknet_forward.15} parent=50 // pred_region
          _
        $region55: #{darknet_forward.15} parent=50 // pred_fallthru
          _
        %p239 = pneg %p30
        %p240 = pneg %p27
        %s241 = sand.u32 %s43, 1
        %s242 = sand.u32 %s43, 1
        %s243 = smul.addr %s242, 288
        %s244 = scalar_lea.vmem [#allocation2], %s243
        %p245 = pneg %p56
        %p246 = pneg %p53
        %p247 = pneg %p77
        %p248 = pneg %p74
        %p249 = pneg %p103
        %p250 = pneg %p100
        %s251 = sand.u32 %s90, 1
        %s252 = sand.u32 %s90, 1
        %s253 = smul.addr %s252, 64
        %s254 = scalar_lea.vmem [#allocation3], %s253
        %s255 = smul.u32 8, %s14
        %s256 = smul.u32 8, %s14
        %v258 = vld [vmem:[%s0] sm:$0xf]
        %v259 = vld [vmem:[%s0 + $0x4] sm:$0xf]
        %v260 = vld [vmem:[%s235] sm:$0xff]
        %v261 = vld [vmem:[%s235 + $0x8] sm:$0xff]
        %v262 = vld [vmem:[%s235 + $0x10] sm:$0xff]
        %v263 = vld [vmem:[%s235 + $0x18] sm:$0xff]
        %v264 = vld [vmem:[%s235 + $0x20] sm:$0xff]
        %v265 = vld [vmem:[%s235 + $0x28] sm:$0xff]
        %v266 = vld [vmem:[%s235 + $0x30] sm:$0xff]
        %v267 = vld [vmem:[%s235 + $0x38] sm:$0xff]
        %v268 = vld [vmem:[%s235 + $0x40] sm:$0xff]
        %v269 = vld [vmem:[%s235 + $0x48] sm:$0xff]
        %v270 = vld [vmem:[%s235 + $0x50] sm:$0xff]
        %v271 = vld [vmem:[%s235 + $0x58] sm:$0xff]
        %v272 = vld [vmem:[%s235 + $0x60] sm:$0xff]
        %v273 = vld [vmem:[%s235 + $0x68] sm:$0xff]
        %v274 = vld [vmem:[%s235 + $0x70] sm:$0xff]
        %v275 = vld [vmem:[%s235 + $0x78] sm:$0xff]
        %v276 = vld [vmem:[%s235 + $0x80] sm:$0xff]
        %v277 = vld [vmem:[%s235 + $0x88] sm:$0xff]
        %v278 = vld [vmem:[%s235 + $0x90] sm:$0xff]
        %v279 = vld [vmem:[%s235 + $0x98] sm:$0xff]
        %v280 = vld [vmem:[%s235 + $0xa0] sm:$0xff]
        %v281 = vld [vmem:[%s235 + $0xa8] sm:$0xff]
        %v282 = vld [vmem:[%s235 + $0xb0] sm:$0xff]
        %v283 = vld [vmem:[%s235 + $0xb8] sm:$0xff]
        %v284 = vld [vmem:[%s235 + $0xc0] sm:$0xff]
        %v285 = vld [vmem:[%s235 + $0xc8] sm:$0xff]
        %v286 = vld [vmem:[%s235 + $0xd0] sm:$0xff]
        %v287 = vld [vmem:[%s235 + $0xd8] sm:$0xff]
        %v288 = vld [vmem:[%s235 + $0xe0] sm:$0xff]
        %v289 = vld [vmem:[%s235 + $0xe8] sm:$0xff]
        %v290 = vld [vmem:[%s235 + $0xf0] sm:$0xff]
        %v291 = vld [vmem:[%s235 + $0xf8] sm:$0xff]
        %v292 = vld [vmem:[%s235 + $0x100] sm:$0xff]
        %v293 = vld [vmem:[%s235 + $0x108] sm:$0xff]
        %v294 = vld [vmem:[%s235 + $0x110] sm:$0xff]
        %v295 = vld [vmem:[%s235 + $0x118] sm:$0xff]
        %v296 = vld [vmem:[%s2] sm:$0xff]
        %v297 = vld [vmem:[%s2 + $0x8] sm:$0xff]
        %299 = vset.pattern.permute.xlu0 0
        %300 = vperm.xlu0 %299, %v296
        %v301 = vpop.permute.xlu0 %300
        %304 = vset.pattern.permute.xlu0 0
        %305 = vperm.xlu0 %304, %v297
        %v306 = vpop.permute.xlu0 %305
        %v310 = vunpack.c.l.b16 %v258
        %v311 = vunpack.c.l.b16 %v259
        %v312 = vpack.c.b16 %v311, %v310
        %v349 = vunpack.c.l.b16 %v260
        %v350 = vunpack.c.h.b16 %v260
        %v351 = vunpack.c.l.b16 %v261
        %v352 = vunpack.c.h.b16 %v261
        %v353 = vunpack.c.l.b16 %v262
        %v354 = vunpack.c.h.b16 %v262
        %v355 = vunpack.c.l.b16 %v263
        %v356 = vunpack.c.h.b16 %v263
        %v357 = vunpack.c.l.b16 %v264
        %v358 = vunpack.c.h.b16 %v264
        %v359 = vunpack.c.l.b16 %v265
        %v360 = vunpack.c.h.b16 %v265
        %v361 = vunpack.c.l.b16 %v266
        %v362 = vunpack.c.h.b16 %v266
        %v363 = vunpack.c.l.b16 %v267
        %v364 = vunpack.c.h.b16 %v267
        %v365 = vunpack.c.l.b16 %v268
        %v366 = vunpack.c.h.b16 %v268
        %v367 = vunpack.c.l.b16 %v269
        %v368 = vunpack.c.h.b16 %v269
        %v369 = vunpack.c.l.b16 %v270
        %v370 = vunpack.c.h.b16 %v270
        %v371 = vunpack.c.l.b16 %v271
        %v372 = vunpack.c.h.b16 %v271
        %v373 = vunpack.c.l.b16 %v272
        %v374 = vunpack.c.h.b16 %v272
        %v375 = vunpack.c.l.b16 %v273
        %v376 = vunpack.c.h.b16 %v273
        %v377 = vunpack.c.l.b16 %v274
        %v378 = vunpack.c.h.b16 %v274
        %v379 = vunpack.c.l.b16 %v275
        %v380 = vunpack.c.h.b16 %v275
        %v381 = vunpack.c.l.b16 %v276
        %v382 = vunpack.c.h.b16 %v276
        %v383 = vunpack.c.l.b16 %v277
        %v384 = vunpack.c.h.b16 %v277
        %v385 = vunpack.c.l.b16 %v278
        %v386 = vunpack.c.h.b16 %v278
        %v387 = vunpack.c.l.b16 %v279
        %v388 = vunpack.c.h.b16 %v279
        %v389 = vunpack.c.l.b16 %v280
        %v390 = vunpack.c.h.b16 %v280
        %v391 = vunpack.c.l.b16 %v281
        %v392 = vunpack.c.h.b16 %v281
        %v393 = vunpack.c.l.b16 %v282
        %v394 = vunpack.c.h.b16 %v282
        %v395 = vunpack.c.l.b16 %v283
        %v396 = vunpack.c.h.b16 %v283
        %v397 = vunpack.c.l.b16 %v284
        %v398 = vunpack.c.h.b16 %v284
        %v399 = vunpack.c.l.b16 %v285
        %v400 = vunpack.c.h.b16 %v285
        %v401 = vunpack.c.l.b16 %v286
        %v402 = vunpack.c.h.b16 %v286
        %v403 = vunpack.c.l.b16 %v287
        %v404 = vunpack.c.h.b16 %v287
        %v405 = vunpack.c.l.b16 %v288
        %v406 = vunpack.c.h.b16 %v288
        %v407 = vunpack.c.l.b16 %v289
        %v408 = vunpack.c.h.b16 %v289
        %v409 = vunpack.c.l.b16 %v290
        %v410 = vunpack.c.h.b16 %v290
        %v411 = vunpack.c.l.b16 %v291
        %v412 = vunpack.c.h.b16 %v291
        %v413 = vunpack.c.l.b16 %v292
        %v414 = vunpack.c.h.b16 %v292
        %v415 = vunpack.c.l.b16 %v293
        %v416 = vunpack.c.h.b16 %v293
        %v417 = vunpack.c.l.b16 %v294
        %v418 = vunpack.c.h.b16 %v294
        %v419 = vunpack.c.l.b16 %v295
        %v420 = vunpack.c.h.b16 %v295
        %v421 = vpack.c.b16 %v357, %v349
        %v422 = vpack.c.b16 %v358, %v350
        %v423 = vpack.c.b16 %v359, %v351
        %v424 = vpack.c.b16 %v360, %v352
        %v425 = vpack.c.b16 %v361, %v353
        %v426 = vpack.c.b16 %v362, %v354
        %v427 = vpack.c.b16 %v363, %v355
        %v428 = vpack.c.b16 %v364, %v356
        %v429 = vpack.c.b16 %v373, %v365
        %v430 = vpack.c.b16 %v374, %v366
        %v431 = vpack.c.b16 %v375, %v367
        %v432 = vpack.c.b16 %v376, %v368
        %v433 = vpack.c.b16 %v377, %v369
        %v434 = vpack.c.b16 %v378, %v370
        %v435 = vpack.c.b16 %v379, %v371
        %v436 = vpack.c.b16 %v380, %v372
        %v437 = vpack.c.b16 %v389, %v381
        %v438 = vpack.c.b16 %v390, %v382
        %v439 = vpack.c.b16 %v391, %v383
        %v440 = vpack.c.b16 %v392, %v384
        %v441 = vpack.c.b16 %v393, %v385
        %v442 = vpack.c.b16 %v394, %v386
        %v443 = vpack.c.b16 %v395, %v387
        %v444 = vpack.c.b16 %v396, %v388
        %v445 = vpack.c.b16 %v405, %v397
        %v446 = vpack.c.b16 %v406, %v398
        %v447 = vpack.c.b16 %v407, %v399
        %v448 = vpack.c.b16 %v408, %v400
        %v449 = vpack.c.b16 %v409, %v401
        %v450 = vpack.c.b16 %v410, %v402
        %v451 = vpack.c.b16 %v411, %v403
        %v452 = vpack.c.b16 %v412, %v404
        %v453 = vpack.c.b16 %v413, %v413
        %v454 = vpack.c.b16 %v414, %v414
        %v455 = vpack.c.b16 %v415, %v415
        %v456 = vpack.c.b16 %v416, %v416
        %v457 = vpack.c.b16 %v417, %v417
        %v458 = vpack.c.b16 %v418, %v418
        %v459 = vpack.c.b16 %v419, %v419
        %v460 = vpack.c.b16 %v420, %v420
        %vm493 = vcmask 588800
        %v495 = vsel %vm493, %v312, 0
        %vm497 = vcmask 1043456
        %v499 = vsel %vm497, %v453, 0
        %v502 = vsel %vm497, %v454, 0
        %v505 = vsel %vm497, %v455, 0
        %v508 = vsel %vm497, %v456, 0
        %v511 = vsel %vm497, %v457, 0
        %v514 = vsel %vm497, %v458, 0
        %v517 = vsel %vm497, %v459, 0
        %v520 = vsel %vm497, %v460, 0
        %522 = vmatprep.subr.bf16.mxu0 0
        %523 = vmatpush1.bf16.msra.mxu0 0
        %524 = vmatprep.subr.bf16.mxu0 0
        %525 = vmatpush1.bf16.msra.mxu0 0
        %526 = vmatprep.subr.bf16.mxu0 0
        %527 = vmatpush1.bf16.msra.mxu0 0
        %528 = vmatprep.subr.bf16.mxu0 %v502
        %529 = vmatpush1.bf16.msra.mxu0 %v499
        %530 = vmatprep.subr.bf16.mxu0 %v446
        %531 = vmatpush1.bf16.msra.mxu0 %v445
        %532 = vmatprep.subr.bf16.mxu0 %v438
        %533 = vmatpush1.bf16.msra.mxu0 %v437
        %534 = vmatprep.subr.bf16.mxu0 %v430
        %535 = vmatpush1.bf16.msra.mxu0 %v429
        %536 = vmatprep.subr.bf16.mxu0 %v422
        %537 = vmatpush1.bf16.msra.mxu0 %v421
        %538 = vmatprep.subr.bf16.mxu0 0
        %539 = vmatpush2.bf16.msra.mxu0 0
        %540 = vmatprep.subr.bf16.mxu0 0
        %541 = vmatpush2.bf16.msra.mxu0 0
        %542 = vmatprep.subr.bf16.mxu0 0
        %543 = vmatpush2.bf16.msra.mxu0 0
        %544 = vmatprep.subr.bf16.mxu0 0
        %545 = vmatpush2.bf16.msra.mxu0 0
        %546 = vmatprep.subr.bf16.mxu0 0
        %547 = vmatpush2.bf16.msra.mxu0 0
        %548 = vmatprep.subr.bf16.mxu0 0
        %549 = vmatpush2.bf16.msra.mxu0 0
        %550 = vmatprep.subr.bf16.mxu0 0
        %551 = vmatpush2.bf16.msra.mxu0 0
        %552 = vmatprep.subr.bf16.mxu0 0
        %553 = vmatpush2.bf16.msra.mxu0 0
        %554 = vmatprep.mubr.bf16.mxu0 0
        %555 = vmatmul.mubr.bf16.gmra.mxu0 %v495
        %v556 = vpop.f32.mrf.mxu0
        %v557 = vadd.f32 %v301, %v556
        %v558 = vpop.f32.mrf.mxu0
        %v559 = vadd.f32 %v301, %v558
        %v560 = vpop.f32.mrf.mxu0
        %v561 = vadd.f32 %v306, %v560
        %v562 = vpop.f32.mrf.mxu0
        %v563 = vadd.f32 %v306, %v562
        %564 = vdwg.mxu0
        %565 = vmatprep.subr.bf16.mxu0 0
        %566 = vmatpush1.bf16.msra.mxu0 0
        %567 = vmatprep.subr.bf16.mxu0 0
        %568 = vmatpush1.bf16.msra.mxu0 0
        %569 = vmatprep.subr.bf16.mxu0 0
        %570 = vmatpush1.bf16.msra.mxu0 0
        %571 = vmatprep.subr.bf16.mxu0 %v508
        %572 = vmatpush1.bf16.msra.mxu0 %v505
        %573 = vmatprep.subr.bf16.mxu0 %v448
        %574 = vmatpush1.bf16.msra.mxu0 %v447
        %575 = vmatprep.subr.bf16.mxu0 %v440
        %576 = vmatpush1.bf16.msra.mxu0 %v439
        %577 = vmatprep.subr.bf16.mxu0 %v432
        %578 = vmatpush1.bf16.msra.mxu0 %v431
        %579 = vmatprep.subr.bf16.mxu0 %v424
        %580 = vmatpush1.bf16.msra.mxu0 %v423
        %581 = vmatprep.subr.bf16.mxu0 0
        %582 = vmatpush2.bf16.msra.mxu0 0
        %583 = vmatprep.subr.bf16.mxu0 0
        %584 = vmatpush2.bf16.msra.mxu0 0
        %585 = vmatprep.subr.bf16.mxu0 0
        %586 = vmatpush2.bf16.msra.mxu0 0
        %587 = vmatprep.subr.bf16.mxu0 0
        %588 = vmatpush2.bf16.msra.mxu0 0
        %589 = vmatprep.subr.bf16.mxu0 0
        %590 = vmatpush2.bf16.msra.mxu0 0
        %591 = vmatprep.subr.bf16.mxu0 0
        %592 = vmatpush2.bf16.msra.mxu0 0
        %593 = vmatprep.subr.bf16.mxu0 0
        %594 = vmatpush2.bf16.msra.mxu0 0
        %595 = vmatprep.subr.bf16.mxu0 0
        %596 = vmatpush2.bf16.msra.mxu0 0
        %597 = vmatprep.mubr.bf16.mxu0 0
        %598 = vmatmul.mubr.bf16.gmra.mxu0 %v495
        %v599 = vpop.f32.mrf.mxu0
        %v600 = vadd.f32 %v301, %v599
        %v601 = vpop.f32.mrf.mxu0
        %v602 = vadd.f32 %v301, %v601
        %v603 = vpop.f32.mrf.mxu0
        %v604 = vadd.f32 %v306, %v603
        %v605 = vpop.f32.mrf.mxu0
        %v606 = vadd.f32 %v306, %v605
        %607 = vdwg.mxu0
        %608 = vmatprep.subr.bf16.mxu0 0
        %609 = vmatpush1.bf16.msra.mxu0 0
        %610 = vmatprep.subr.bf16.mxu0 0
        %611 = vmatpush1.bf16.msra.mxu0 0
        %612 = vmatprep.subr.bf16.mxu0 0
        %613 = vmatpush1.bf16.msra.mxu0 0
        %614 = vmatprep.subr.bf16.mxu0 %v514
        %615 = vmatpush1.bf16.msra.mxu0 %v511
        %616 = vmatprep.subr.bf16.mxu0 %v450
        %617 = vmatpush1.bf16.msra.mxu0 %v449
        %618 = vmatprep.subr.bf16.mxu0 %v442
        %619 = vmatpush1.bf16.msra.mxu0 %v441
        %620 = vmatprep.subr.bf16.mxu0 %v434
        %621 = vmatpush1.bf16.msra.mxu0 %v433
        %622 = vmatprep.subr.bf16.mxu0 %v426
        %623 = vmatpush1.bf16.msra.mxu0 %v425
        %624 = vmatprep.subr.bf16.mxu0 0
        %625 = vmatpush2.bf16.msra.mxu0 0
        %626 = vmatprep.subr.bf16.mxu0 0
        %627 = vmatpush2.bf16.msra.mxu0 0
        %628 = vmatprep.subr.bf16.mxu0 0
        %629 = vmatpush2.bf16.msra.mxu0 0
        %630 = vmatprep.subr.bf16.mxu0 0
        %631 = vmatpush2.bf16.msra.mxu0 0
        %632 = vmatprep.subr.bf16.mxu0 0
        %633 = vmatpush2.bf16.msra.mxu0 0
        %634 = vmatprep.subr.bf16.mxu0 0
        %635 = vmatpush2.bf16.msra.mxu0 0
        %636 = vmatprep.subr.bf16.mxu0 0
        %637 = vmatpush2.bf16.msra.mxu0 0
        %638 = vmatprep.subr.bf16.mxu0 0
        %639 = vmatpush2.bf16.msra.mxu0 0
        %640 = vmatprep.mubr.bf16.mxu0 0
        %641 = vmatmul.mubr.bf16.gmra.mxu0 %v495
        %v642 = vpop.f32.mrf.mxu0
        %v643 = vadd.f32 %v301, %v642
        %v644 = vpop.f32.mrf.mxu0
        %v645 = vadd.f32 %v301, %v644
        %v646 = vpop.f32.mrf.mxu0
        %v647 = vadd.f32 %v306, %v646
        %v648 = vpop.f32.mrf.mxu0
        %v649 = vadd.f32 %v306, %v648
        %650 = vdwg.mxu0
        %651 = vmatprep.subr.bf16.mxu0 0
        %652 = vmatpush1.bf16.msra.mxu0 0
        %653 = vmatprep.subr.bf16.mxu0 0
        %654 = vmatpush1.bf16.msra.mxu0 0
        %655 = vmatprep.subr.bf16.mxu0 0
        %656 = vmatpush1.bf16.msra.mxu0 0
        %657 = vmatprep.subr.bf16.mxu0 %v520
        %658 = vmatpush1.bf16.msra.mxu0 %v517
        %659 = vmatprep.subr.bf16.mxu0 %v452
        %660 = vmatpush1.bf16.msra.mxu0 %v451
        %661 = vmatprep.subr.bf16.mxu0 %v444
        %662 = vmatpush1.bf16.msra.mxu0 %v443
        %663 = vmatprep.subr.bf16.mxu0 %v436
        %664 = vmatpush1.bf16.msra.mxu0 %v435
        %665 = vmatprep.subr.bf16.mxu0 %v428
        %666 = vmatpush1.bf16.msra.mxu0 %v427
        %667 = vmatprep.subr.bf16.mxu0 0
        %668 = vmatpush2.bf16.msra.mxu0 0
        %669 = vmatprep.subr.bf16.mxu0 0
        %670 = vmatpush2.bf16.msra.mxu0 0
        %671 = vmatprep.subr.bf16.mxu0 0
        %672 = vmatpush2.bf16.msra.mxu0 0
        %673 = vmatprep.subr.bf16.mxu0 0
        %674 = vmatpush2.bf16.msra.mxu0 0
        %675 = vmatprep.subr.bf16.mxu0 0
        %676 = vmatpush2.bf16.msra.mxu0 0
        %677 = vmatprep.subr.bf16.mxu0 0
        %678 = vmatpush2.bf16.msra.mxu0 0
        %679 = vmatprep.subr.bf16.mxu0 0
        %680 = vmatpush2.bf16.msra.mxu0 0
        %681 = vmatprep.subr.bf16.mxu0 0
        %682 = vmatpush2.bf16.msra.mxu0 0
        %683 = vmatprep.mubr.bf16.mxu0 0
        %684 = vmatmul.mubr.bf16.gmra.mxu0 %v495
        %v685 = vpop.f32.mrf.mxu0
        %v686 = vadd.f32 %v301, %v685
        %v687 = vpop.f32.mrf.mxu0
        %v688 = vadd.f32 %v301, %v687
        %v689 = vpop.f32.mrf.mxu0
        %v690 = vadd.f32 %v306, %v689
        %v691 = vpop.f32.mrf.mxu0
        %v692 = vadd.f32 %v306, %v691
        %693 = vdwg.mxu0
        %v694 = vxor.u32 %v557, 2147483648
        %v695 = vxor.u32 %v559, 2147483648
        %v696 = vxor.u32 %v600, 2147483648
        %v697 = vxor.u32 %v602, 2147483648
        %v698 = vxor.u32 %v643, 2147483648
        %v699 = vxor.u32 %v645, 2147483648
        %v700 = vxor.u32 %v686, 2147483648
        %v701 = vxor.u32 %v688, 2147483648
        %v702 = vxor.u32 %v561, 2147483648
        %v703 = vxor.u32 %v563, 2147483648
        %v704 = vxor.u32 %v604, 2147483648
        %v705 = vxor.u32 %v606, 2147483648
        %v706 = vxor.u32 %v647, 2147483648
        %v707 = vxor.u32 %v649, 2147483648
        %v708 = vxor.u32 %v690, 2147483648
        %v709 = vxor.u32 %v692, 2147483648
        %v710 = vmul.f32 %v694, 1.442695
        %v711 = vpow.pop %v710
        %v712 = vmul.f32 %v695, 1.442695
        %v713 = vpow.pop %v712
        %v714 = vmul.f32 %v696, 1.442695
        %v715 = vpow.pop %v714
        %v716 = vmul.f32 %v697, 1.442695
        %v717 = vpow.pop %v716
        %v718 = vmul.f32 %v698, 1.442695
        %v719 = vpow.pop %v718
        %v720 = vmul.f32 %v699, 1.442695
        %v721 = vpow.pop %v720
        %v722 = vmul.f32 %v700, 1.442695
        %v723 = vpow.pop %v722
        %v724 = vmul.f32 %v701, 1.442695
        %v725 = vpow.pop %v724
        %v726 = vmul.f32 %v702, 1.442695
        %v727 = vpow.pop %v726
        %v728 = vmul.f32 %v703, 1.442695
        %v729 = vpow.pop %v728
        %v730 = vmul.f32 %v704, 1.442695
        %v731 = vpow.pop %v730
        %v732 = vmul.f32 %v705, 1.442695
        %v733 = vpow.pop %v732
        %v734 = vmul.f32 %v706, 1.442695
        %v735 = vpow.pop %v734
        %v736 = vmul.f32 %v707, 1.442695
        %v737 = vpow.pop %v736
        %v738 = vmul.f32 %v708, 1.442695
        %v739 = vpow.pop %v738
        %v740 = vmul.f32 %v709, 1.442695
        %v741 = vpow.pop %v740
        %v742 = vadd.f32 %v711, 1.0
        %v743 = vadd.f32 %v713, 1.0
        %v744 = vadd.f32 %v715, 1.0
        %v745 = vadd.f32 %v717, 1.0
        %v746 = vadd.f32 %v719, 1.0
        %v747 = vadd.f32 %v721, 1.0
        %v748 = vadd.f32 %v723, 1.0
        %v749 = vadd.f32 %v725, 1.0
        %v750 = vadd.f32 %v727, 1.0
        %v751 = vadd.f32 %v729, 1.0
        %v752 = vadd.f32 %v731, 1.0
        %v753 = vadd.f32 %v733, 1.0
        %v754 = vadd.f32 %v735, 1.0
        %v755 = vadd.f32 %v737, 1.0
        %v756 = vadd.f32 %v739, 1.0
        %v757 = vadd.f32 %v741, 1.0
        %v758 = vrcp.pop %v742
        %v759 = vmul.f32 1.0, %v758
        %v760 = vrcp.pop %v743
        %v761 = vmul.f32 1.0, %v760
        %v762 = vrcp.pop %v744
        %v763 = vmul.f32 1.0, %v762
        %v764 = vrcp.pop %v745
        %v765 = vmul.f32 1.0, %v764
        %v766 = vrcp.pop %v746
        %v767 = vmul.f32 1.0, %v766
        %v768 = vrcp.pop %v747
        %v769 = vmul.f32 1.0, %v768
        %v770 = vrcp.pop %v748
        %v771 = vmul.f32 1.0, %v770
        %v772 = vrcp.pop %v749
        %v773 = vmul.f32 1.0, %v772
        %v774 = vrcp.pop %v750
        %v775 = vmul.f32 1.0, %v774
        %v776 = vrcp.pop %v751
        %v777 = vmul.f32 1.0, %v776
        %v778 = vrcp.pop %v752
        %v779 = vmul.f32 1.0, %v778
        %v780 = vrcp.pop %v753
        %v781 = vmul.f32 1.0, %v780
        %v782 = vrcp.pop %v754
        %v783 = vmul.f32 1.0, %v782
        %v784 = vrcp.pop %v755
        %v785 = vmul.f32 1.0, %v784
        %v786 = vrcp.pop %v756
        %v787 = vmul.f32 1.0, %v786
        %v788 = vrcp.pop %v757
        %v789 = vmul.f32 1.0, %v788
        %v790 = vmul.f32 %v557, %v759
        %v791 = vmul.f32 %v559, %v761
        %v792 = vmul.f32 %v600, %v763
        %v793 = vmul.f32 %v602, %v765
        %v794 = vmul.f32 %v643, %v767
        %v795 = vmul.f32 %v645, %v769
        %v796 = vmul.f32 %v686, %v771
        %v797 = vmul.f32 %v688, %v773
        %v798 = vmul.f32 %v561, %v775
        %v799 = vmul.f32 %v563, %v777
        %v800 = vmul.f32 %v604, %v779
        %v801 = vmul.f32 %v606, %v781
        %v802 = vmul.f32 %v647, %v783
        %v803 = vmul.f32 %v649, %v785
        %v804 = vmul.f32 %v690, %v787
        %v805 = vmul.f32 %v692, %v789
        %v806 = vpack.c.bf16 %v798, %v790
        %v807 = vpack.c.bf16 %v799, %v791
        %v808 = vpack.c.bf16 %v800, %v792
        %v809 = vpack.c.bf16 %v801, %v793
        %v810 = vpack.c.bf16 %v802, %v794
        %v811 = vpack.c.bf16 %v803, %v795
        %v812 = vpack.c.bf16 %v804, %v796
        %v813 = vpack.c.bf16 %v805, %v797
        %v822 = vunpack.c.l.b16 %v806
        %v823 = vunpack.c.l.b16 %v807
        %v824 = vunpack.c.l.b16 %v808
        %v825 = vunpack.c.l.b16 %v809
        %v826 = vunpack.c.l.b16 %v810
        %v827 = vunpack.c.l.b16 %v811
        %v828 = vunpack.c.l.b16 %v812
        %v829 = vunpack.c.l.b16 %v813
        %v830 = vunpack.c.h.b16 %v806
        %v831 = vunpack.c.h.b16 %v807
        %v832 = vunpack.c.h.b16 %v808
        %v833 = vunpack.c.h.b16 %v809
        %v834 = vunpack.c.h.b16 %v810
        %v835 = vunpack.c.h.b16 %v811
        %v836 = vunpack.c.h.b16 %v812
        %v837 = vunpack.c.h.b16 %v813
        %v838 = vpack.c.b16 %v823, %v822
        %v839 = vpack.c.b16 %v825, %v824
        %v840 = vpack.c.b16 %v827, %v826
        %v841 = vpack.c.b16 %v829, %v828
        %v842 = vpack.c.b16 %v831, %v830
        %v843 = vpack.c.b16 %v833, %v832
        %v844 = vpack.c.b16 %v835, %v834
        %v845 = vpack.c.b16 %v837, %v836
        %854 = vst [vmem:[%s254] sm:$0xff] %v838
        %855 = vst [vmem:[%s254 + $0x8] sm:$0xff] %v839
        %856 = vst [vmem:[%s254 + $0x10] sm:$0xff] %v840
        %857 = vst [vmem:[%s254 + $0x18] sm:$0xff] %v841
        %858 = vst [vmem:[%s254 + $0x20] sm:$0xff] %v842
        %859 = vst [vmem:[%s254 + $0x28] sm:$0xff] %v843
        %860 = vst [vmem:[%s254 + $0x30] sm:$0xff] %v844
        %861 = vst [vmem:[%s254 + $0x38] sm:$0xff] %v845
        %s862 = sand.u32 %s90, 1
        %s863 = sand.u32 %s90, 1
        %s864 = smul.addr %s863, 64
        %s865 = scalar_lea.vmem [#allocation3], %s864
        // Predicated region
        $region56: #{darknet_forward.15} parent=50 // pred_check
          %p866 = pneg %p100
        $region57: #{darknet_forward.15} parent=50 // pred_check_branch
          %868 = sbr.rel (%p866) target = $region59
        $region58: #{darknet_forward.15} parent=50 // pred_region
          %s869 = smul.u32 8, %s14
          %s870 = smul.addr %s869, 4
          %s871 = scalar_lea.vmem %s3, %s870
          // Predicated region
          $region60: #{darknet_forward.15} parent=58 // pred_check
            _
          $region61: #{darknet_forward.15} parent=58 // pred_check_branch
            %873 = sbr.rel (0) target = $region63
          $region62: #{darknet_forward.15} parent=58 // pred_region
            // Predicated region
            $region64: #{darknet_forward.15} parent=62 // pred_check
              _
            $region65: #{darknet_forward.15} parent=62 // pred_check_branch
              %875 = sbr.rel (0) target = $region67
            $region66: #{darknet_forward.15} parent=62 // pred_region
              loop: start=0, step=1, limit=1
              $region68: #{darknet_forward.15} parent=66 // loop_pre_header
                _
              $region69: #{darknet_forward.15} parent=66 // loop_header
                %s877 = sphi 0, %s881
                %p878 = scmp.ge.s32.totalorder %s877, 1
                %s882 = sphi %s865, %s865
                %s883 = sphi %s871, %s871
              $region70: #{darknet_forward.15} parent=66 // loop_header_branch
                %880 = sbr.rel (%p878) target = $region74
              $region71: #{darknet_forward.15} parent=66 // loop_body
                %v884 = vld [vmem:[%s882] sm:$0xff]
                %885 = vst [vmem:[%s883] sm:$0xff] %v884
                %v886 = vld [vmem:[%s882 + $0x8] sm:$0xff]
                %887 = vst [vmem:[%s883 + $0x8] sm:$0xff] %v886
                %v888 = vld [vmem:[%s882 + $0x10] sm:$0xff]
                %889 = vst [vmem:[%s883 + $0x10] sm:$0xff] %v888
                %v890 = vld [vmem:[%s882 + $0x18] sm:$0xff]
                %891 = vst [vmem:[%s883 + $0x18] sm:$0xff] %v890
                %v892 = vld [vmem:[%s882 + $0x20] sm:$0xff]
                %893 = vst [vmem:[%s883 + $0x40] sm:$0xff] %v892
                %v894 = vld [vmem:[%s882 + $0x28] sm:$0xff]
                %895 = vst [vmem:[%s883 + $0x48] sm:$0xff] %v894
                %v896 = vld [vmem:[%s882 + $0x30] sm:$0xff]
                %897 = vst [vmem:[%s883 + $0x50] sm:$0xff] %v896
                %v898 = vld [vmem:[%s882 + $0x38] sm:$0xff]
                %899 = vst [vmem:[%s883 + $0x58] sm:$0xff] %v898
              $region72: #{darknet_forward.15} parent=66 // loop_footer
                %s881 = sadd.s32 1, %s877
              $region73: #{darknet_forward.15} parent=66 // loop_footer_branch
                %876 = sbr.rel target = $region69
              $region74: #{darknet_forward.15} parent=66 // loop_exit
                _
            $region67: #{darknet_forward.15} parent=62 // pred_fallthru
              _
            // Predicated region
            $region75: #{darknet_forward.15} parent=62 // pred_check
              _
            $region76: #{darknet_forward.15} parent=62 // pred_check_branch
              %901 = sbr.rel target = $region78
            $region77: #{darknet_forward.15} parent=62 // pred_region
              _
            $region78: #{darknet_forward.15} parent=62 // pred_fallthru
              _
          $region63: #{darknet_forward.15} parent=58 // pred_fallthru
            _
          %902 = vnop
        $region59: #{darknet_forward.15} parent=50 // pred_fallthru
          _
      $region51: #{darknet_forward.15} parent=5 // pred_fallthru
        _
      %p903 = scmp.le.s32.totalorder 2, %s9
      // Predicated region
      $region79: #{darknet_forward.15} parent=5 // pred_check
        %p904 = pneg %p903
      $region80: #{darknet_forward.15} parent=5 // pred_check_branch
        %906 = sbr.rel (%p904) target = $region82
      $region81: #{darknet_forward.15} parent=5 // pred_region
        %s907 = ssub.s32 %s9, 2
        // Predicated region
        $region83: #{darknet_forward.15} parent=81 // pred_check
          %p908 = pneg %p106
        $region84: #{darknet_forward.15} parent=81 // pred_check_branch
          %910 = sbr.rel (%p908) target = $region86
        $region85: #{darknet_forward.15} parent=81 // pred_region
          %s911 = sand.u32 %s91, 1
          %s912 = sand.u32 %s91, 1
          %s913 = smul.addr %s912, 64
          %s914 = scalar_lea.vmem [#allocation3], %s913
        $region86: #{darknet_forward.15} parent=81 // pred_fallthru
          _
      $region82: #{darknet_forward.15} parent=5 // pred_fallthru
        _
    $region6: #{darknet_forward.15} parent=1 // loop_footer
      %s13 = sadd.s32 1, %s9
    $region7: #{darknet_forward.15} parent=1 // loop_footer_branch
      %8 = sbr.rel target = $region3
    $region8: #{darknet_forward.15} parent=1 // loop_exit
      _

// kernel: darknet_forward.16
$region0: #{darknet_forward.16}
  #allocation0 [shape = 'u32[]', space=smem, size = 0x4, offset = 0x4, fixed_abs, tag = 'smem constant byte address 0x4 - core index']
  #allocation1 [shape = 'u32[144,128]{1,0:T(1,128)}', space=vmem, size = 0x12000, scoped, tag = 'internal scratch']
  %s0 = inlined_call_operand.vmem [shape: bf16[8,16], index: 0, kind: input, shape index: {}]
  %s1 = inlined_call_operand.vmem [shape: bf16[16,2048], index: 1, kind: input, shape index: {}]
  %s2 = inlined_call_operand.vmem [shape: f32[8,1], index: 2, kind: input, shape index: {}]
  %s3 = inlined_call_operand.vmem [shape: bf16[8,2048], index: 3, kind: output, shape index: {}]
  %s4 = sld [smem:[#allocation0]]
  $region68: #{darknet_forward.16} parent=0
    _
  %s6 = ssub.s32 1, %s4
  %s7 = scalar_select 0, %s6, %s4
  $region1: #{darknet_forward.16} parent=0
    #allocation2 [shape = 'u8[65536]{0}', space=vmem, size = 0x10000, scoped, tag = 'input window, operand 1']
    loop: start=0, step=1, limit=4
    $region2: #{darknet_forward.16} parent=1 // loop_pre_header
      _
    $region3: #{darknet_forward.16} parent=1 // loop_header
      %s9 = sphi 0, %s13
      %p10 = scmp.ge.s32.totalorder %s9, 4
      %s17 = sphi 0, %s17
      %s19 = sphi 0, %s17
      %s20 = sphi 0, %s19
      %s34 = sphi 0, %s20
      %s40 = sphi 0, %s42
      %s43 = sphi 0, %s40
      %s44 = sphi 0, %s43
      %s60 = sphi 0, %s44
      %s64 = sphi 0, %s64
      %s66 = sphi 0, %s64
      %s67 = sphi 0, %s66
      %s81 = sphi 0, %s67
      %s87 = sphi 0, %s89
      %s90 = sphi 0, %s87
      %s91 = sphi 0, %s90
      %s107 = sphi 0, %s91
    $region4: #{darknet_forward.16} parent=1 // loop_header_branch
      %12 = sbr.rel (%p10) target = $region8
    $region5: #{darknet_forward.16} parent=1 // loop_body
      %s14 = ssub.s32 %s9, 1
      %s15 = ssub.s32 %s9, 2
      %s16 = sadd.s32 %s9, 1
      %s18 = sadd.s32 %s17, 1
      %p21 = scmp.eq.s32.totalorder %s9, 1
      %p22 = scmp.ne.s32.totalorder %s17, %s19
      %p23 = scmp.eq.s32.totalorder %s9, 0
      %p24 = por %p22, %p23
      %p25 = scmp.ne.s32.totalorder %s17, %s19
      %p26 = scmp.eq.s32.totalorder %s14, 1
      %p27 = por %p25, %p26
      %p28 = scmp.ne.s32.totalorder %s19, %s20
      %p29 = scmp.eq.s32.totalorder %s14, 0
      %p30 = por %p28, %p29
      %p31 = scmp.ne.s32.totalorder %s19, %s20
      %p32 = scmp.eq.s32.totalorder %s15, 1
      %p33 = por %p31, %p32
      %p35 = scmp.ne.s32.totalorder %s20, %s34
      %p36 = scmp.eq.s32.totalorder %s15, 0
      %p37 = por %p35, %p36
      %s38 = ssub.s32 %s9, %s16
      %p39 = scmp.eq.s32.totalorder %s38, 0
      %s41 = sadd.s32 %s40, 1
      %s42 = scalar_select %p39, %s40, %s41
      %p45 = pneg %p39
      %p46 = scmp.eq.s32.totalorder %s9, 1
      %p47 = por %p45, %p46
      %p48 = scmp.ne.s32.totalorder %s40, %s43
      %p49 = scmp.eq.s32.totalorder %s9, 0
      %p50 = por %p48, %p49
      %p51 = scmp.ne.s32.totalorder %s40, %s43
      %p52 = scmp.eq.s32.totalorder %s14, 1
      %p53 = por %p51, %p52
      %p54 = scmp.ne.s32.totalorder %s43, %s44
      %p55 = scmp.eq.s32.totalorder %s14, 0
      %p56 = por %p54, %p55
      %p57 = scmp.ne.s32.totalorder %s43, %s44
      %p58 = scmp.eq.s32.totalorder %s15, 1
      %p59 = por %p57, %p58
      %p61 = scmp.ne.s32.totalorder %s44, %s60
      %p62 = scmp.eq.s32.totalorder %s15, 0
      %p63 = por %p61, %p62
      %s65 = sadd.s32 %s64, 1
      %p68 = scmp.eq.s32.totalorder %s9, 1
      %p69 = scmp.ne.s32.totalorder %s64, %s66
      %p70 = scmp.eq.s32.totalorder %s9, 0
      %p71 = por %p69, %p70
      %p72 = scmp.ne.s32.totalorder %s64, %s66
      %p73 = scmp.eq.s32.totalorder %s14, 1
      %p74 = por %p72, %p73
      %p75 = scmp.ne.s32.totalorder %s66, %s67
      %p76 = scmp.eq.s32.totalorder %s14, 0
      %p77 = por %p75, %p76
      %p78 = scmp.ne.s32.totalorder %s66, %s67
      %p79 = scmp.eq.s32.totalorder %s15, 1
      %p80 = por %p78, %p79
      %p82 = scmp.ne.s32.totalorder %s67, %s81
      %p83 = scmp.eq.s32.totalorder %s15, 0
      %p84 = por %p82, %p83
      %s85 = ssub.s32 %s9, %s16
      %p86 = scmp.eq.s32.totalorder %s85, 0
      %s88 = sadd.s32 %s87, 1
      %s89 = scalar_select %p86, %s87, %s88
      %p92 = pneg %p86
      %p93 = scmp.eq.s32.totalorder %s9, 1
      %p94 = por %p92, %p93
      %p95 = scmp.ne.s32.totalorder %s87, %s90
      %p96 = scmp.eq.s32.totalorder %s9, 0
      %p97 = por %p95, %p96
      %p98 = scmp.ne.s32.totalorder %s87, %s90
      %p99 = scmp.eq.s32.totalorder %s14, 1
      %p100 = por %p98, %p99
      %p101 = scmp.ne.s32.totalorder %s90, %s91
      %p102 = scmp.eq.s32.totalorder %s14, 0
      %p103 = por %p101, %p102
      %p104 = scmp.ne.s32.totalorder %s90, %s91
      %p105 = scmp.eq.s32.totalorder %s15, 1
      %p106 = por %p104, %p105
      %p108 = scmp.ne.s32.totalorder %s91, %s107
      %p109 = scmp.eq.s32.totalorder %s15, 0
      %p110 = por %p108, %p109
      %p111 = scmp.le.s32.totalorder 1, %s9
      %p112 = scmp.lt.s32.totalorder %s9, 3
      %p113 = pnand %p111, %p112
      %p114 = pneg %p113
      // Predicated region
      $region9: #{darknet_forward.16} parent=5 // pred_check
        _
      $region10: #{darknet_forward.16} parent=5 // pred_check_branch
        %116 = sbr.rel (%p113) target = $region12
      $region11: #{darknet_forward.16} parent=5 // pred_region
        %s117 = ssub.s32 %s9, 1
        // Predicated region
        $region13: #{darknet_forward.16} parent=11 // pred_check
          %p118 = pneg %p30
        $region14: #{darknet_forward.16} parent=11 // pred_check_branch
          %120 = sbr.rel (%p118) target = $region16
        $region15: #{darknet_forward.16} parent=11 // pred_region
          _
        $region16: #{darknet_forward.16} parent=11 // pred_fallthru
          _
        // Predicated region
        $region17: #{darknet_forward.16} parent=11 // pred_check
          %p121 = pneg %p77
        $region18: #{darknet_forward.16} parent=11 // pred_check_branch
          %123 = sbr.rel (%p121) target = $region20
        $region19: #{darknet_forward.16} parent=11 // pred_region
          _
        $region20: #{darknet_forward.16} parent=11 // pred_fallthru
          _
      $region12: #{darknet_forward.16} parent=5 // pred_fallthru
        _
      %p124 = scmp.lt.s32.totalorder %s9, 2
      // Predicated region
      $region21: #{darknet_forward.16} parent=5 // pred_check
        %p125 = pneg %p124
      $region22: #{darknet_forward.16} parent=5 // pred_check_branch
        %127 = sbr.rel (%p125) target = $region24
      $region23: #{darknet_forward.16} parent=5 // pred_region
        // Predicated region
        $region25: #{darknet_forward.16} parent=23 // pred_check
          %p128 = pneg %p50
        $region26: #{darknet_forward.16} parent=23 // pred_check_branch
          %130 = sbr.rel (%p128) target = $region28
        $region27: #{darknet_forward.16} parent=23 // pred_region
          %s131 = sand.u32 %s40, 1
          %s132 = sand.u32 %s40, 1
          %s133 = smul.addr %s132, 64
          %s134 = scalar_lea.vmem [#allocation2], %s133
          %s135 = smul.u32 8, %s9
          %s136 = smul.addr %s135, 4
          %s137 = scalar_lea.vmem %s1, %s136
          // Predicated region
          $region29: #{darknet_forward.16} parent=27 // pred_check
            _
          $region30: #{darknet_forward.16} parent=27 // pred_check_branch
            %139 = sbr.rel (0) target = $region32
          $region31: #{darknet_forward.16} parent=27 // pred_region
            // Predicated region
            $region33: #{darknet_forward.16} parent=31 // pred_check
              _
            $region34: #{darknet_forward.16} parent=31 // pred_check_branch
              %141 = sbr.rel (0) target = $region36
            $region35: #{darknet_forward.16} parent=31 // pred_region
              loop: start=0, step=1, limit=1
              $region37: #{darknet_forward.16} parent=35 // loop_pre_header
                _
              $region38: #{darknet_forward.16} parent=35 // loop_header
                %s143 = sphi 0, %s147
                %p144 = scmp.ge.s32.totalorder %s143, 1
                %s148 = sphi %s137, %s137
                %s149 = sphi %s134, %s134
              $region39: #{darknet_forward.16} parent=35 // loop_header_branch
                %146 = sbr.rel (%p144) target = $region43
              $region40: #{darknet_forward.16} parent=35 // loop_body
                %v150 = vld [vmem:[%s148] sm:$0xff]
                %151 = vst [vmem:[%s149] sm:$0xff] %v150
                %v152 = vld [vmem:[%s148 + $0x8] sm:$0xff]
                %153 = vst [vmem:[%s149 + $0x8] sm:$0xff] %v152
                %v154 = vld [vmem:[%s148 + $0x10] sm:$0xff]
                %155 = vst [vmem:[%s149 + $0x10] sm:$0xff] %v154
                %v156 = vld [vmem:[%s148 + $0x18] sm:$0xff]
                %157 = vst [vmem:[%s149 + $0x18] sm:$0xff] %v156
                %v158 = vld [vmem:[%s148 + $0x40] sm:$0xff]
                %159 = vst [vmem:[%s149 + $0x20] sm:$0xff] %v158
                %v160 = vld [vmem:[%s148 + $0x48] sm:$0xff]
                %161 = vst [vmem:[%s149 + $0x28] sm:$0xff] %v160
                %v162 = vld [vmem:[%s148 + $0x50] sm:$0xff]
                %163 = vst [vmem:[%s149 + $0x30] sm:$0xff] %v162
                %v164 = vld [vmem:[%s148 + $0x58] sm:$0xff]
                %165 = vst [vmem:[%s149 + $0x38] sm:$0xff] %v164
              $region41: #{darknet_forward.16} parent=35 // loop_footer
                %s147 = sadd.s32 1, %s143
              $region42: #{darknet_forward.16} parent=35 // loop_footer_branch
                %142 = sbr.rel target = $region38
              $region43: #{darknet_forward.16} parent=35 // loop_exit
                _
            $region36: #{darknet_forward.16} parent=31 // pred_fallthru
              _
            // Predicated region
            $region44: #{darknet_forward.16} parent=31 // pred_check
              _
            $region45: #{darknet_forward.16} parent=31 // pred_check_branch
              %167 = sbr.rel target = $region47
            $region46: #{darknet_forward.16} parent=31 // pred_region
              _
            $region47: #{darknet_forward.16} parent=31 // pred_fallthru
              _
          $region32: #{darknet_forward.16} parent=27 // pred_fallthru
            _
          %168 = vnop
        $region28: #{darknet_forward.16} parent=23 // pred_fallthru
          _
      $region24: #{darknet_forward.16} parent=5 // pred_fallthru
        _
      %p169 = scmp.le.s32.totalorder 1, %s9
      %p170 = scmp.lt.s32.totalorder %s9, 3
      %p171 = pnand %p169, %p170
      %p172 = pneg %p171
      // Predicated region
      $region48: #{darknet_forward.16} parent=5 // pred_check
        _
      $region49: #{darknet_forward.16} parent=5 // pred_check_branch
        %174 = sbr.rel (%p171) target = $region51
      $region50: #{darknet_forward.16} parent=5 // pred_region
        %s175 = ssub.s32 %s9, 1
        %s176 = sand.u32 %s43, 1
        %s177 = sand.u32 %s43, 1
        %s178 = smul.addr %s177, 64
        %s179 = scalar_lea.vmem [#allocation2], %s178
        // Predicated region
        $region52: #{darknet_forward.16} parent=50 // pred_check
          %p180 = pneg %p56
        $region53: #{darknet_forward.16} parent=50 // pred_check_branch
          %182 = sbr.rel (%p180) target = $region55
        $region54: #{darknet_forward.16} parent=50 // pred_region
          _
        $region55: #{darknet_forward.16} parent=50 // pred_fallthru
          _
        %p183 = pneg %p30
        %p184 = pneg %p27
        %s185 = sand.u32 %s43, 1
        %s186 = sand.u32 %s43, 1
        %s187 = smul.addr %s186, 64
        %s188 = scalar_lea.vmem [#allocation2], %s187
        %p189 = pneg %p56
        %p190 = pneg %p53
        %p191 = pneg %p77
        %p192 = pneg %p74
        %p193 = pneg %p103
        %p194 = pneg %p100
        %s195 = smul.u32 8, %s14
        %p196 = scmp.lt.s32.totalorder %s195, 15
        %s197 = scalar_select %p196, %s195, 15
        %s198 = smul.addr %s197, 4
        %s199 = scalar_lea.vmem %s3, %s198
        %s200 = smul.u32 8, %s14
        %s201 = smul.u32 8, %s14
        %p202 = scmp.lt.s32.totalorder %s201, 15
        %s203 = scalar_select %p202, %s201, 15
        %s204 = smul.addr %s203, 4
        %s205 = scalar_lea.vmem %s3, %s204
        %s206 = smul.u32 8, %s14
        %v208 = vld [vmem:[%s0] sm:$0xf]
        %v209 = vld [vmem:[%s179] sm:$0xff]
        %v210 = vld [vmem:[%s179 + $0x8] sm:$0xff]
        %v211 = vld [vmem:[%s179 + $0x10] sm:$0xff]
        %v212 = vld [vmem:[%s179 + $0x18] sm:$0xff]
        %v213 = vld [vmem:[%s179 + $0x20] sm:$0xff]
        %v214 = vld [vmem:[%s179 + $0x28] sm:$0xff]
        %v215 = vld [vmem:[%s179 + $0x30] sm:$0xff]
        %v216 = vld [vmem:[%s179 + $0x38] sm:$0xff]
        %v217 = vld [vmem:[%s2] sm:$0xff]
        %219 = vset.pattern.permute.xlu0 0
        %220 = vperm.xlu0 %219, %v217
        %v221 = vpop.permute.xlu0 %220
        %v231 = vunpack.c.l.b16 %v209
        %v232 = vunpack.c.h.b16 %v209
        %v233 = vunpack.c.l.b16 %v210
        %v234 = vunpack.c.h.b16 %v210
        %v235 = vunpack.c.l.b16 %v211
        %v236 = vunpack.c.h.b16 %v211
        %v237 = vunpack.c.l.b16 %v212
        %v238 = vunpack.c.h.b16 %v212
        %v239 = vunpack.c.l.b16 %v213
        %v240 = vunpack.c.h.b16 %v213
        %v241 = vunpack.c.l.b16 %v214
        %v242 = vunpack.c.h.b16 %v214
        %v243 = vunpack.c.l.b16 %v215
        %v244 = vunpack.c.h.b16 %v215
        %v245 = vunpack.c.l.b16 %v216
        %v246 = vunpack.c.h.b16 %v216
        %v247 = vpack.c.b16 %v239, %v231
        %v248 = vpack.c.b16 %v240, %v232
        %v249 = vpack.c.b16 %v241, %v233
        %v250 = vpack.c.b16 %v242, %v234
        %v251 = vpack.c.b16 %v243, %v235
        %v252 = vpack.c.b16 %v244, %v236
        %v253 = vpack.c.b16 %v245, %v237
        %v254 = vpack.c.b16 %v246, %v238
        %vm263 = vcmask 130048
        %v265 = vsel %vm263, %v208, 0
        %267 = vmatprep.subr.bf16.mxu0 0
        %268 = vmatpush1.bf16.msra.mxu0 0
        %269 = vmatprep.subr.bf16.mxu0 0
        %270 = vmatpush1.bf16.msra.mxu0 0
        %271 = vmatprep.subr.bf16.mxu0 0
        %272 = vmatpush1.bf16.msra.mxu0 0
        %273 = vmatprep.subr.bf16.mxu0 0
        %274 = vmatpush1.bf16.msra.mxu0 0
        %275 = vmatprep.subr.bf16.mxu0 0
        %276 = vmatpush1.bf16.msra.mxu0 0
        %277 = vmatprep.subr.bf16.mxu0 0
        %278 = vmatpush1.bf16.msra.mxu0 0
        %279 = vmatprep.subr.bf16.mxu0 0
        %280 = vmatpush1.bf16.msra.mxu0 0
        %281 = vmatprep.subr.bf16.mxu0 %v248
        %282 = vmatpush1.bf16.msra.mxu0 %v247
        %283 = vmatprep.subr.bf16.mxu0 0
        %284 = vmatpush2.bf16.msra.mxu0 0
        %285 = vmatprep.subr.bf16.mxu0 0
        %286 = vmatpush2.bf16.msra.mxu0 0
        %287 = vmatprep.subr.bf16.mxu0 0
        %288 = vmatpush2.bf16.msra.mxu0 0
        %289 = vmatprep.subr.bf16.mxu0 0
        %290 = vmatpush2.bf16.msra.mxu0 0
        %291 = vmatprep.subr.bf16.mxu0 0
        %292 = vmatpush2.bf16.msra.mxu0 0
        %293 = vmatprep.subr.bf16.mxu0 0
        %294 = vmatpush2.bf16.msra.mxu0 0
        %295 = vmatprep.subr.bf16.mxu0 0
        %296 = vmatpush2.bf16.msra.mxu0 0
        %297 = vmatprep.subr.bf16.mxu0 0
        %298 = vmatpush2.bf16.msra.mxu0 0
        %299 = vmatprep.mubr.bf16.mxu0 0
        %300 = vmatmul.mubr.bf16.gmra.mxu0 %v265
        %v301 = vpop.f32.mrf.mxu0
        %v302 = vadd.f32 %v221, %v301
        %v303 = vpop.f32.mrf.mxu0
        %v304 = vadd.f32 %v221, %v303
        %v305 = vpop.f32.mrf.mxu0
        %v306 = vpop.f32.mrf.mxu0
        %307 = vdwg.mxu0
        %308 = vmatprep.subr.bf16.mxu0 0
        %309 = vmatpush1.bf16.msra.mxu0 0
        %310 = vmatprep.subr.bf16.mxu0 0
        %311 = vmatpush1.bf16.msra.mxu0 0
        %312 = vmatprep.subr.bf16.mxu0 0
        %313 = vmatpush1.bf16.msra.mxu0 0
        %314 = vmatprep.subr.bf16.mxu0 0
        %315 = vmatpush1.bf16.msra.mxu0 0
        %316 = vmatprep.subr.bf16.mxu0 0
        %317 = vmatpush1.bf16.msra.mxu0 0
        %318 = vmatprep.subr.bf16.mxu0 0
        %319 = vmatpush1.bf16.msra.mxu0 0
        %320 = vmatprep.subr.bf16.mxu0 0
        %321 = vmatpush1.bf16.msra.mxu0 0
        %322 = vmatprep.subr.bf16.mxu0 %v250
        %323 = vmatpush1.bf16.msra.mxu0 %v249
        %324 = vmatprep.subr.bf16.mxu0 0
        %325 = vmatpush2.bf16.msra.mxu0 0
        %326 = vmatprep.subr.bf16.mxu0 0
        %327 = vmatpush2.bf16.msra.mxu0 0
        %328 = vmatprep.subr.bf16.mxu0 0
        %329 = vmatpush2.bf16.msra.mxu0 0
        %330 = vmatprep.subr.bf16.mxu0 0
        %331 = vmatpush2.bf16.msra.mxu0 0
        %332 = vmatprep.subr.bf16.mxu0 0
        %333 = vmatpush2.bf16.msra.mxu0 0
        %334 = vmatprep.subr.bf16.mxu0 0
        %335 = vmatpush2.bf16.msra.mxu0 0
        %336 = vmatprep.subr.bf16.mxu0 0
        %337 = vmatpush2.bf16.msra.mxu0 0
        %338 = vmatprep.subr.bf16.mxu0 0
        %339 = vmatpush2.bf16.msra.mxu0 0
        %340 = vmatprep.mubr.bf16.mxu0 0
        %341 = vmatmul.mubr.bf16.gmra.mxu0 %v265
        %v342 = vpop.f32.mrf.mxu0
        %v343 = vadd.f32 %v221, %v342
        %v344 = vpop.f32.mrf.mxu0
        %v345 = vadd.f32 %v221, %v344
        %v346 = vpop.f32.mrf.mxu0
        %v347 = vpop.f32.mrf.mxu0
        %348 = vdwg.mxu0
        %349 = vmatprep.subr.bf16.mxu0 0
        %350 = vmatpush1.bf16.msra.mxu0 0
        %351 = vmatprep.subr.bf16.mxu0 0
        %352 = vmatpush1.bf16.msra.mxu0 0
        %353 = vmatprep.subr.bf16.mxu0 0
        %354 = vmatpush1.bf16.msra.mxu0 0
        %355 = vmatprep.subr.bf16.mxu0 0
        %356 = vmatpush1.bf16.msra.mxu0 0
        %357 = vmatprep.subr.bf16.mxu0 0
        %358 = vmatpush1.bf16.msra.mxu0 0
        %359 = vmatprep.subr.bf16.mxu0 0
        %360 = vmatpush1.bf16.msra.mxu0 0
        %361 = vmatprep.subr.bf16.mxu0 0
        %362 = vmatpush1.bf16.msra.mxu0 0
        %363 = vmatprep.subr.bf16.mxu0 %v252
        %364 = vmatpush1.bf16.msra.mxu0 %v251
        %365 = vmatprep.subr.bf16.mxu0 0
        %366 = vmatpush2.bf16.msra.mxu0 0
        %367 = vmatprep.subr.bf16.mxu0 0
        %368 = vmatpush2.bf16.msra.mxu0 0
        %369 = vmatprep.subr.bf16.mxu0 0
        %370 = vmatpush2.bf16.msra.mxu0 0
        %371 = vmatprep.subr.bf16.mxu0 0
        %372 = vmatpush2.bf16.msra.mxu0 0
        %373 = vmatprep.subr.bf16.mxu0 0
        %374 = vmatpush2.bf16.msra.mxu0 0
        %375 = vmatprep.subr.bf16.mxu0 0
        %376 = vmatpush2.bf16.msra.mxu0 0
        %377 = vmatprep.subr.bf16.mxu0 0
        %378 = vmatpush2.bf16.msra.mxu0 0
        %379 = vmatprep.subr.bf16.mxu0 0
        %380 = vmatpush2.bf16.msra.mxu0 0
        %381 = vmatprep.mubr.bf16.mxu0 0
        %382 = vmatmul.mubr.bf16.gmra.mxu0 %v265
        %v383 = vpop.f32.mrf.mxu0
        %v384 = vadd.f32 %v221, %v383
        %v385 = vpop.f32.mrf.mxu0
        %v386 = vadd.f32 %v221, %v385
        %v387 = vpop.f32.mrf.mxu0
        %v388 = vpop.f32.mrf.mxu0
        %389 = vdwg.mxu0
        %390 = vmatprep.subr.bf16.mxu0 0
        %391 = vmatpush1.bf16.msra.mxu0 0
        %392 = vmatprep.subr.bf16.mxu0 0
        %393 = vmatpush1.bf16.msra.mxu0 0
        %394 = vmatprep.subr.bf16.mxu0 0
        %395 = vmatpush1.bf16.msra.mxu0 0
        %396 = vmatprep.subr.bf16.mxu0 0
        %397 = vmatpush1.bf16.msra.mxu0 0
        %398 = vmatprep.subr.bf16.mxu0 0
        %399 = vmatpush1.bf16.msra.mxu0 0
        %400 = vmatprep.subr.bf16.mxu0 0
        %401 = vmatpush1.bf16.msra.mxu0 0
        %402 = vmatprep.subr.bf16.mxu0 0
        %403 = vmatpush1.bf16.msra.mxu0 0
        %404 = vmatprep.subr.bf16.mxu0 %v254
        %405 = vmatpush1.bf16.msra.mxu0 %v253
        %406 = vmatprep.subr.bf16.mxu0 0
        %407 = vmatpush2.bf16.msra.mxu0 0
        %408 = vmatprep.subr.bf16.mxu0 0
        %409 = vmatpush2.bf16.msra.mxu0 0
        %410 = vmatprep.subr.bf16.mxu0 0
        %411 = vmatpush2.bf16.msra.mxu0 0
        %412 = vmatprep.subr.bf16.mxu0 0
        %413 = vmatpush2.bf16.msra.mxu0 0
        %414 = vmatprep.subr.bf16.mxu0 0
        %415 = vmatpush2.bf16.msra.mxu0 0
        %416 = vmatprep.subr.bf16.mxu0 0
        %417 = vmatpush2.bf16.msra.mxu0 0
        %418 = vmatprep.subr.bf16.mxu0 0
        %419 = vmatpush2.bf16.msra.mxu0 0
        %420 = vmatprep.subr.bf16.mxu0 0
        %421 = vmatpush2.bf16.msra.mxu0 0
        %422 = vmatprep.mubr.bf16.mxu0 0
        %423 = vmatmul.mubr.bf16.gmra.mxu0 %v265
        %v424 = vpop.f32.mrf.mxu0
        %v425 = vadd.f32 %v221, %v424
        %v426 = vpop.f32.mrf.mxu0
        %v427 = vadd.f32 %v221, %v426
        %v428 = vpop.f32.mrf.mxu0
        %v429 = vpop.f32.mrf.mxu0
        %430 = vdwg.mxu0
        %v431 = vxor.u32 %v302, 2147483648
        %v432 = vxor.u32 %v304, 2147483648
        %v433 = vxor.u32 %v343, 2147483648
        %v434 = vxor.u32 %v345, 2147483648
        %v435 = vxor.u32 %v384, 2147483648
        %v436 = vxor.u32 %v386, 2147483648
        %v437 = vxor.u32 %v425, 2147483648
        %v438 = vxor.u32 %v427, 2147483648
        %v439 = vmul.f32 %v431, 1.442695
        %v440 = vpow.pop %v439
        %v441 = vmul.f32 %v432, 1.442695
        %v442 = vpow.pop %v441
        %v443 = vmul.f32 %v433, 1.442695
        %v444 = vpow.pop %v443
        %v445 = vmul.f32 %v434, 1.442695
        %v446 = vpow.pop %v445
        %v447 = vmul.f32 %v435, 1.442695
        %v448 = vpow.pop %v447
        %v449 = vmul.f32 %v436, 1.442695
        %v450 = vpow.pop %v449
        %v451 = vmul.f32 %v437, 1.442695
        %v452 = vpow.pop %v451
        %v453 = vmul.f32 %v438, 1.442695
        %v454 = vpow.pop %v453
        %v455 = vadd.f32 %v440, 1.0
        %v456 = vadd.f32 %v442, 1.0
        %v457 = vadd.f32 %v444, 1.0
        %v458 = vadd.f32 %v446, 1.0
        %v459 = vadd.f32 %v448, 1.0
        %v460 = vadd.f32 %v450, 1.0
        %v461 = vadd.f32 %v452, 1.0
        %v462 = vadd.f32 %v454, 1.0
        %v463 = vrcp.pop %v455
        %v464 = vmul.f32 1.0, %v463
        %v465 = vrcp.pop %v456
        %v466 = vmul.f32 1.0, %v465
        %v467 = vrcp.pop %v457
        %v468 = vmul.f32 1.0, %v467
        %v469 = vrcp.pop %v458
        %v470 = vmul.f32 1.0, %v469
        %v471 = vrcp.pop %v459
        %v472 = vmul.f32 1.0, %v471
        %v473 = vrcp.pop %v460
        %v474 = vmul.f32 1.0, %v473
        %v475 = vrcp.pop %v461
        %v476 = vmul.f32 1.0, %v475
        %v477 = vrcp.pop %v462
        %v478 = vmul.f32 1.0, %v477
        %v479 = vmul.f32 %v302, %v464
        %v480 = vmul.f32 %v304, %v466
        %v481 = vmul.f32 %v343, %v468
        %v482 = vmul.f32 %v345, %v470
        %v483 = vmul.f32 %v384, %v472
        %v484 = vmul.f32 %v386, %v474
        %v485 = vmul.f32 %v425, %v476
        %v486 = vmul.f32 %v427, %v478
        %v487 = vpack.c.bf16 %v479, %v479
        %v488 = vpack.c.bf16 %v480, %v480
        %v489 = vpack.c.bf16 %v481, %v481
        %v490 = vpack.c.bf16 %v482, %v482
        %v491 = vpack.c.bf16 %v483, %v483
        %v492 = vpack.c.bf16 %v484, %v484
        %v493 = vpack.c.bf16 %v485, %v485
        %v494 = vpack.c.bf16 %v486, %v486
        %v503 = vunpack.c.l.b16 %v487
        %v504 = vunpack.c.l.b16 %v488
        %v505 = vunpack.c.l.b16 %v489
        %v506 = vunpack.c.l.b16 %v490
        %v507 = vunpack.c.l.b16 %v491
        %v508 = vunpack.c.l.b16 %v492
        %v509 = vunpack.c.l.b16 %v493
        %v510 = vunpack.c.l.b16 %v494
        %v511 = vpack.c.b16 %v504, %v503
        %v512 = vpack.c.b16 %v506, %v505
        %v513 = vpack.c.b16 %v508, %v507
        %v514 = vpack.c.b16 %v510, %v509
        %519 = vst [vmem:[%s205] sm:$0xff] %v511
        %520 = vst [vmem:[%s205 + $0x8] sm:$0xff] %v512
        %521 = vst [vmem:[%s205 + $0x10] sm:$0xff] %v513
        %522 = vst [vmem:[%s205 + $0x18] sm:$0xff] %v514
        %s523 = smul.u32 8, %s14
        %p524 = scmp.lt.s32.totalorder %s523, 15
        %s525 = scalar_select %p524, %s523, 15
        %s526 = smul.addr %s525, 4
        %s527 = scalar_lea.vmem %s3, %s526
        // Predicated region
        $region56: #{darknet_forward.16} parent=50 // pred_check
          %p528 = pneg %p100
        $region57: #{darknet_forward.16} parent=50 // pred_check_branch
          %530 = sbr.rel (%p528) target = $region59
        $region58: #{darknet_forward.16} parent=50 // pred_region
          %s531 = smul.u32 8, %s14
        $region59: #{darknet_forward.16} parent=50 // pred_fallthru
          _
      $region51: #{darknet_forward.16} parent=5 // pred_fallthru
        _
      %p532 = scmp.le.s32.totalorder 2, %s9
      // Predicated region
      $region60: #{darknet_forward.16} parent=5 // pred_check
        %p533 = pneg %p532
      $region61: #{darknet_forward.16} parent=5 // pred_check_branch
        %535 = sbr.rel (%p533) target = $region63
      $region62: #{darknet_forward.16} parent=5 // pred_region
        %s536 = ssub.s32 %s9, 2
        // Predicated region
        $region64: #{darknet_forward.16} parent=62 // pred_check
          %p537 = pneg %p106
        $region65: #{darknet_forward.16} parent=62 // pred_check_branch
          %539 = sbr.rel (%p537) target = $region67
        $region66: #{darknet_forward.16} parent=62 // pred_region
          %s540 = smul.u32 8, %s15
          %p541 = scmp.lt.s32.totalorder %s540, 15
          %s542 = scalar_select %p541, %s540, 15
          %s543 = smul.addr %s542, 4
          %s544 = scalar_lea.vmem %s3, %s543
        $region67: #{darknet_forward.16} parent=62 // pred_fallthru
          _
      $region63: #{darknet_forward.16} parent=5 // pred_fallthru
        _
    $region6: #{darknet_forward.16} parent=1 // loop_footer
      %s13 = sadd.s32 1, %s9
    $region7: #{darknet_forward.16} parent=1 // loop_footer_branch
      %8 = sbr.rel target = $region3
    $region8: #{darknet_forward.16} parent=1 // loop_exit
      _

// kernel: darknet_forward.17
$region0: #{darknet_forward.17}
  #allocation0 [shape = 'u32[]', space=smem, size = 0x4, offset = 0x4, fixed_abs, tag = 'smem constant byte address 0x4 - core index']
  #allocation1 [shape = 'u32[144,128]{1,0:T(1,128)}', space=vmem, size = 0x12000, scoped, tag = 'internal scratch']
  %s0 = inlined_call_operand.vmem [shape: bf16[16,72], index: 0, kind: input, shape index: {}]
  %s1 = inlined_call_operand.vmem [shape: bf16[72,2048], index: 1, kind: input, shape index: {}]
  %s2 = inlined_call_operand.vmem [shape: f32[16,1], index: 2, kind: input, shape index: {}]
  %s3 = inlined_call_operand.vmem [shape: bf16[16,2048], index: 3, kind: input, shape index: {}]
  %s4 = inlined_call_operand.vmem [shape: bf16[16,2048], index: 4, kind: output, shape index: {}]
  %s5 = sld [smem:[#allocation0]]
  $region114: #{darknet_forward.17} parent=0
    _
  %s7 = ssub.s32 1, %s5
  %s8 = scalar_select 0, %s7, %s5
  $region1: #{darknet_forward.17} parent=0
    #allocation2 [shape = 'u8[294912]{0}', space=vmem, size = 0x48000, scoped, tag = 'input window, operand 1']
    #allocation3 [shape = 'u8[65536]{0}', space=vmem, size = 0x10000, scoped, tag = 'input window, operand 3']
    #allocation4 [shape = 'u8[65536]{0}', space=vmem, size = 0x10000, scoped, tag = 'output window, operand 0']
    loop: start=0, step=1, limit=4
    $region2: #{darknet_forward.17} parent=1 // loop_pre_header
      _
    $region3: #{darknet_forward.17} parent=1 // loop_header
      %s10 = sphi 0, %s14
      %p11 = scmp.ge.s32.totalorder %s10, 4
      %s18 = sphi 0, %s18
      %s20 = sphi 0, %s18
      %s21 = sphi 0, %s20
      %s35 = sphi 0, %s21
      %s41 = sphi 0, %s43
      %s44 = sphi 0, %s41
      %s45 = sphi 0, %s44
      %s61 = sphi 0, %s45
      %s65 = sphi 0, %s65
      %s67 = sphi 0, %s65
      %s68 = sphi 0, %s67
      %s82 = sphi 0, %s68
      %s88 = sphi 0, %s90
      %s91 = sphi 0, %s88
      %s92 = sphi 0, %s91
      %s108 = sphi 0, %s92
      %s114 = sphi 0, %s116
      %s117 = sphi 0, %s114
      %s118 = sphi 0, %s117
      %s134 = sphi 0, %s118
    $region4: #{darknet_forward.17} parent=1 // loop_header_branch
      %13 = sbr.rel (%p11) target = $region8
    $region5: #{darknet_forward.17} parent=1 // loop_body
      %s15 = ssub.s32 %s10, 1
      %s16 = ssub.s32 %s10, 2
      %s17 = sadd.s32 %s10, 1
      %s19 = sadd.s32 %s18, 1
      %p22 = scmp.eq.s32.totalorder %s10, 1
      %p23 = scmp.ne.s32.totalorder %s18, %s20
      %p24 = scmp.eq.s32.totalorder %s10, 0
      %p25 = por %p23, %p24
      %p26 = scmp.ne.s32.totalorder %s18, %s20
      %p27 = scmp.eq.s32.totalorder %s15, 1
      %p28 = por %p26, %p27
      %p29 = scmp.ne.s32.totalorder %s20, %s21
      %p30 = scmp.eq.s32.totalorder %s15, 0
      %p31 = por %p29, %p30
      %p32 = scmp.ne.s32.totalorder %s20, %s21
      %p33 = scmp.eq.s32.totalorder %s16, 1
      %p34 = por %p32, %p33
      %p36 = scmp.ne.s32.totalorder %s21, %s35
      %p37 = scmp.eq.s32.totalorder %s16, 0
      %p38 = por %p36, %p37
      %s39 = ssub.s32 %s10, %s17
      %p40 = scmp.eq.s32.totalorder %s39, 0
      %s42 = sadd.s32 %s41, 1
      %s43 = scalar_select %p40, %s41, %s42
      %p46 = pneg %p40
      %p47 = scmp.eq.s32.totalorder %s10, 1
      %p48 = por %p46, %p47
      %p49 = scmp.ne.s32.totalorder %s41, %s44
      %p50 = scmp.eq.s32.totalorder %s10, 0
      %p51 = por %p49, %p50
      %p52 = scmp.ne.s32.totalorder %s41, %s44
      %p53 = scmp.eq.s32.totalorder %s15, 1
      %p54 = por %p52, %p53
      %p55 = scmp.ne.s32.totalorder %s44, %s45
      %p56 = scmp.eq.s32.totalorder %s15, 0
      %p57 = por %p55, %p56
      %p58 = scmp.ne.s32.totalorder %s44, %s45
      %p59 = scmp.eq.s32.totalorder %s16, 1
      %p60 = por %p58, %p59
      %p62 = scmp.ne.s32.totalorder %s45, %s61
      %p63 = scmp.eq.s32.totalorder %s16, 0
      %p64 = por %p62, %p63
      %s66 = sadd.s32 %s65, 1
      %p69 = scmp.eq.s32.totalorder %s10, 1
      %p70 = scmp.ne.s32.totalorder %s65, %s67
      %p71 = scmp.eq.s32.totalorder %s10, 0
      %p72 = por %p70, %p71
      %p73 = scmp.ne.s32.totalorder %s65, %s67
      %p74 = scmp.eq.s32.totalorder %s15, 1
      %p75 = por %p73, %p74
      %p76 = scmp.ne.s32.totalorder %s67, %s68
      %p77 = scmp.eq.s32.totalorder %s15, 0
      %p78 = por %p76, %p77
      %p79 = scmp.ne.s32.totalorder %s67, %s68
      %p80 = scmp.eq.s32.totalorder %s16, 1
      %p81 = por %p79, %p80
      %p83 = scmp.ne.s32.totalorder %s68, %s82
      %p84 = scmp.eq.s32.totalorder %s16, 0
      %p85 = por %p83, %p84
      %s86 = ssub.s32 %s10, %s17
      %p87 = scmp.eq.s32.totalorder %s86, 0
      %s89 = sadd.s32 %s88, 1
      %s90 = scalar_select %p87, %s88, %s89
      %p93 = pneg %p87
      %p94 = scmp.eq.s32.totalorder %s10, 1
      %p95 = por %p93, %p94
      %p96 = scmp.ne.s32.totalorder %s88, %s91
      %p97 = scmp.eq.s32.totalorder %s10, 0
      %p98 = por %p96, %p97
      %p99 = scmp.ne.s32.totalorder %s88, %s91
      %p100 = scmp.eq.s32.totalorder %s15, 1
      %p101 = por %p99, %p100
      %p102 = scmp.ne.s32.totalorder %s91, %s92
      %p103 = scmp.eq.s32.totalorder %s15, 0
      %p104 = por %p102, %p103
      %p105 = scmp.ne.s32.totalorder %s91, %s92
      %p106 = scmp.eq.s32.totalorder %s16, 1
      %p107 = por %p105, %p106
      %p109 = scmp.ne.s32.totalorder %s92, %s108
      %p110 = scmp.eq.s32.totalorder %s16, 0
      %p111 = por %p109, %p110
      %s112 = ssub.s32 %s10, %s17
      %p113 = scmp.eq.s32.totalorder %s112, 0
      %s115 = sadd.s32 %s114, 1
      %s116 = scalar_select %p113, %s114, %s115
      %p119 = pneg %p113
      %p120 = scmp.eq.s32.totalorder %s10, 1
      %p121 = por %p119, %p120
      %p122 = scmp.ne.s32.totalorder %s114, %s117
      %p123 = scmp.eq.s32.totalorder %s10, 0
      %p124 = por %p122, %p123
      %p125 = scmp.ne.s32.totalorder %s114, %s117
      %p126 = scmp.eq.s32.totalorder %s15, 1
      %p127 = por %p125, %p126
      %p128 = scmp.ne.s32.totalorder %s117, %s118
      %p129 = scmp.eq.s32.totalorder %s15, 0
      %p130 = por %p128, %p129
      %p131 = scmp.ne.s32.totalorder %s117, %s118
      %p132 = scmp.eq.s32.totalorder %s16, 1
      %p133 = por %p131, %p132
      %p135 = scmp.ne.s32.totalorder %s118, %s134
      %p136 = scmp.eq.s32.totalorder %s16, 0
      %p137 = por %p135, %p136
      %p138 = scmp.le.s32.totalorder 1, %s10
      %p139 = scmp.lt.s32.totalorder %s10, 3
      %p140 = pnand %p138, %p139
      %p141 = pneg %p140
      // Predicated region
      $region9: #{darknet_forward.17} parent=5 // pred_check
        _
      $region10: #{darknet_forward.17} parent=5 // pred_check_branch
        %143 = sbr.rel (%p140) target = $region12
      $region11: #{darknet_forward.17} parent=5 // pred_region
        %s144 = ssub.s32 %s10, 1
        // Predicated region
        $region13: #{darknet_forward.17} parent=11 // pred_check
          %p145 = pneg %p31
        $region14: #{darknet_forward.17} parent=11 // pred_check_branch
          %147 = sbr.rel (%p145) target = $region16
        $region15: #{darknet_forward.17} parent=11 // pred_region
          _
        $region16: #{darknet_forward.17} parent=11 // pred_fallthru
          _
        // Predicated region
        $region17: #{darknet_forward.17} parent=11 // pred_check
          %p148 = pneg %p78
        $region18: #{darknet_forward.17} parent=11 // pred_check_branch
          %150 = sbr.rel (%p148) target = $region20
        $region19: #{darknet_forward.17} parent=11 // pred_region
          _
        $region20: #{darknet_forward.17} parent=11 // pred_fallthru
          _
      $region12: #{darknet_forward.17} parent=5 // pred_fallthru
        _
      %p151 = scmp.lt.s32.totalorder %s10, 2
      // Predicated region
      $region21: #{darknet_forward.17} parent=5 // pred_check
        %p152 = pneg %p151
      $region22: #{darknet_forward.17} parent=5 // pred_check_branch
        %154 = sbr.rel (%p152) target = $region24
      $region23: #{darknet_forward.17} parent=5 // pred_region
        // Predicated region
        $region25: #{darknet_forward.17} parent=23 // pred_check
          %p155 = pneg %p51
        $region26: #{darknet_forward.17} parent=23 // pred_check_branch
          %157 = sbr.rel (%p155) target = $region28
        $region27: #{darknet_forward.17} parent=23 // pred_region
          %s158 = sand.u32 %s41, 1
          %s159 = sand.u32 %s41, 1
          %s160 = smul.addr %s159, 288
          %s161 = scalar_lea.vmem [#allocation2], %s160
          %s162 = smul.u32 8, %s10
          %s163 = smul.addr %s162, 4
          %s164 = scalar_lea.vmem %s1, %s163
          // Predicated region
          $region29: #{darknet_forward.17} parent=27 // pred_check
            _
          $region30: #{darknet_forward.17} parent=27 // pred_check_branch
            %166 = sbr.rel (0) target = $region32
          $region31: #{darknet_forward.17} parent=27 // pred_region
            // Predicated region
            $region33: #{darknet_forward.17} parent=31 // pred_check
              _
            $region34: #{darknet_forward.17} parent=31 // pred_check_branch
              %168 = sbr.rel (0) target = $region36
            $region35: #{darknet_forward.17} parent=31 // pred_region
              loop: start=0, step=1, limit=1
              $region37: #{darknet_forward.17} parent=35 // loop_pre_header
                _
              $region38: #{darknet_forward.17} parent=35 // loop_header
                %s170 = sphi 0, %s174
                %p171 = scmp.ge.s32.totalorder %s170, 1
                %s175 = sphi %s164, %s164
                %s176 = sphi %s161, %s161
              $region39: #{darknet_forward.17} parent=35 // loop_header_branch
                %173 = sbr.rel (%p171) target = $region43
              $region40: #{darknet_forward.17} parent=35 // loop_body
                %v177 = vld [vmem:[%s175] sm:$0xff]
                %178 = vst [vmem:[%s176] sm:$0xff] %v177
                %v179 = vld [vmem:[%s175 + $0x8] sm:$0xff]
                %180 = vst [vmem:[%s176 + $0x8] sm:$0xff] %v179
                %v181 = vld [vmem:[%s175 + $0x10] sm:$0xff]
                %182 = vst [vmem:[%s176 + $0x10] sm:$0xff] %v181
                %v183 = vld [vmem:[%s175 + $0x18] sm:$0xff]
                %184 = vst [vmem:[%s176 + $0x18] sm:$0xff] %v183
                %v185 = vld [vmem:[%s175 + $0x40] sm:$0xff]
                %186 = vst [vmem:[%s176 + $0x20] sm:$0xff] %v185
                %v187 = vld [vmem:[%s175 + $0x48] sm:$0xff]
                %188 = vst [vmem:[%s176 + $0x28] sm:$0xff] %v187
                %v189 = vld [vmem:[%s175 + $0x50] sm:$0xff]
                %190 = vst [vmem:[%s176 + $0x30] sm:$0xff] %v189
                %v191 = vld [vmem:[%s175 + $0x58] sm:$0xff]
                %192 = vst [vmem:[%s176 + $0x38] sm:$0xff] %v191
                %v193 = vld [vmem:[%s175 + $0x80] sm:$0xff]
                %194 = vst [vmem:[%s176 + $0x40] sm:$0xff] %v193
                %v195 = vld [vmem:[%s175 + $0x88] sm:$0xff]
                %196 = vst [vmem:[%s176 + $0x48] sm:$0xff] %v195
                %v197 = vld [vmem:[%s175 + $0x90] sm:$0xff]
                %198 = vst [vmem:[%s176 + $0x50] sm:$0xff] %v197
                %v199 = vld [vmem:[%s175 + $0x98] sm:$0xff]
                %200 = vst [vmem:[%s176 + $0x58] sm:$0xff] %v199
                %v201 = vld [vmem:[%s175 + $0xc0] sm:$0xff]
                %202 = vst [vmem:[%s176 + $0x60] sm:$0xff] %v201
                %v203 = vld [vmem:[%s175 + $0xc8] sm:$0xff]
                %204 = vst [vmem:[%s176 + $0x68] sm:$0xff] %v203
                %v205 = vld [vmem:[%s175 + $0xd0] sm:$0xff]
                %206 = vst [vmem:[%s176 + $0x70] sm:$0xff] %v205
                %v207 = vld [vmem:[%s175 + $0xd8] sm:$0xff]
                %208 = vst [vmem:[%s176 + $0x78] sm:$0xff] %v207
                %v209 = vld [vmem:[%s175 + $0x100] sm:$0xff]
                %210 = vst [vmem:[%s176 + $0x80] sm:$0xff] %v209
                %v211 = vld [vmem:[%s175 + $0x108] sm:$0xff]
                %212 = vst [vmem:[%s176 + $0x88] sm:$0xff] %v211
                %v213 = vld [vmem:[%s175 + $0x110] sm:$0xff]
                %214 = vst [vmem:[%s176 + $0x90] sm:$0xff] %v213
                %v215 = vld [vmem:[%s175 + $0x118] sm:$0xff]
                %216 = vst [vmem:[%s176 + $0x98] sm:$0xff] %v215
                %v217 = vld [vmem:[%s175 + $0x140] sm:$0xff]
                %218 = vst [vmem:[%s176 + $0xa0] sm:$0xff] %v217
                %v219 = vld [vmem:[%s175 + $0x148] sm:$0xff]
                %220 = vst [vmem:[%s176 + $0xa8] sm:$0xff] %v219
                %v221 = vld [vmem:[%s175 + $0x150] sm:$0xff]
                %222 = vst [vmem:[%s176 + $0xb0] sm:$0xff] %v221
                %v223 = vld [vmem:[%s175 + $0x158] sm:$0xff]
                %224 = vst [vmem:[%s176 + $0xb8] sm:$0xff] %v223
                %v225 = vld [vmem:[%s175 + $0x180] sm:$0xff]
                %226 = vst [vmem:[%s176 + $0xc0] sm:$0xff] %v225
                %v227 = vld [vmem:[%s175 + $0x188] sm:$0xff]
                %228 = vst [vmem:[%s176 + $0xc8] sm:$0xff] %v227
                %v229 = vld [vmem:[%s175 + $0x190] sm:$0xff]
                %230 = vst [vmem:[%s176 + $0xd0] sm:$0xff] %v229
                %v231 = vld [vmem:[%s175 + $0x198] sm:$0xff]
                %232 = vst [vmem:[%s176 + $0xd8] sm:$0xff] %v231
                %v233 = vld [vmem:[%s175 + $0x1c0] sm:$0xff]
                %234 = vst [vmem:[%s176 + $0xe0] sm:$0xff] %v233
                %v235 = vld [vmem:[%s175 + $0x1c8] sm:$0xff]
                %236 = vst [vmem:[%s176 + $0xe8] sm:$0xff] %v235
                %v237 = vld [vmem:[%s175 + $0x1d0] sm:$0xff]
                %238 = vst [vmem:[%s176 + $0xf0] sm:$0xff] %v237
                %v239 = vld [vmem:[%s175 + $0x1d8] sm:$0xff]
                %240 = vst [vmem:[%s176 + $0xf8] sm:$0xff] %v239
                %v241 = vld [vmem:[%s175 + $0x200] sm:$0xff]
                %242 = vst [vmem:[%s176 + $0x100] sm:$0xff] %v241
                %v243 = vld [vmem:[%s175 + $0x208] sm:$0xff]
                %244 = vst [vmem:[%s176 + $0x108] sm:$0xff] %v243
                %v245 = vld [vmem:[%s175 + $0x210] sm:$0xff]
                %246 = vst [vmem:[%s176 + $0x110] sm:$0xff] %v245
                %v247 = vld [vmem:[%s175 + $0x218] sm:$0xff]
                %248 = vst [vmem:[%s176 + $0x118] sm:$0xff] %v247
              $region41: #{darknet_forward.17} parent=35 // loop_footer
                %s174 = sadd.s32 1, %s170
              $region42: #{darknet_forward.17} parent=35 // loop_footer_branch
                %169 = sbr.rel target = $region38
              $region43: #{darknet_forward.17} parent=35 // loop_exit
                _
            $region36: #{darknet_forward.17} parent=31 // pred_fallthru
              _
            // Predicated region
            $region44: #{darknet_forward.17} parent=31 // pred_check
              _
            $region45: #{darknet_forward.17} parent=31 // pred_check_branch
              %250 = sbr.rel target = $region47
            $region46: #{darknet_forward.17} parent=31 // pred_region
              _
            $region47: #{darknet_forward.17} parent=31 // pred_fallthru
              _
          $region32: #{darknet_forward.17} parent=27 // pred_fallthru
            _
          %251 = vnop
        $region28: #{darknet_forward.17} parent=23 // pred_fallthru
          _
        // Predicated region
        $region48: #{darknet_forward.17} parent=23 // pred_check
          %p252 = pneg %p98
        $region49: #{darknet_forward.17} parent=23 // pred_check_branch
          %254 = sbr.rel (%p252) target = $region51
        $region50: #{darknet_forward.17} parent=23 // pred_region
          %s255 = sand.u32 %s88, 1
          %s256 = sand.u32 %s88, 1
          %s257 = smul.addr %s256, 64
          %s258 = scalar_lea.vmem [#allocation3], %s257
          %s259 = smul.u32 8, %s10
          %s260 = smul.addr %s259, 4
          %s261 = scalar_lea.vmem %s3, %s260
          // Predicated region
          $region52: #{darknet_forward.17} parent=50 // pred_check
            _
          $region53: #{darknet_forward.17} parent=50 // pred_check_branch
            %263 = sbr.rel (0) target = $region55
          $region54: #{darknet_forward.17} parent=50 // pred_region
            // Predicated region
            $region56: #{darknet_forward.17} parent=54 // pred_check
              _
            $region57: #{darknet_forward.17} parent=54 // pred_check_branch
              %265 = sbr.rel (0) target = $region59
            $region58: #{darknet_forward.17} parent=54 // pred_region
              loop: start=0, step=1, limit=1
              $region60: #{darknet_forward.17} parent=58 // loop_pre_header
                _
              $region61: #{darknet_forward.17} parent=58 // loop_header
                %s267 = sphi 0, %s271
                %p268 = scmp.ge.s32.totalorder %s267, 1
                %s272 = sphi %s261, %s261
                %s273 = sphi %s258, %s258
              $region62: #{darknet_forward.17} parent=58 // loop_header_branch
                %270 = sbr.rel (%p268) target = $region66
              $region63: #{darknet_forward.17} parent=58 // loop_body
                %v274 = vld [vmem:[%s272] sm:$0xff]
                %275 = vst [vmem:[%s273] sm:$0xff] %v274
                %v276 = vld [vmem:[%s272 + $0x8] sm:$0xff]
                %277 = vst [vmem:[%s273 + $0x8] sm:$0xff] %v276
                %v278 = vld [vmem:[%s272 + $0x10] sm:$0xff]
                %279 = vst [vmem:[%s273 + $0x10] sm:$0xff] %v278
                %v280 = vld [vmem:[%s272 + $0x18] sm:$0xff]
                %281 = vst [vmem:[%s273 + $0x18] sm:$0xff] %v280
                %v282 = vld [vmem:[%s272 + $0x40] sm:$0xff]
                %283 = vst [vmem:[%s273 + $0x20] sm:$0xff] %v282
                %v284 = vld [vmem:[%s272 + $0x48] sm:$0xff]
                %285 = vst [vmem:[%s273 + $0x28] sm:$0xff] %v284
                %v286 = vld [vmem:[%s272 + $0x50] sm:$0xff]
                %287 = vst [vmem:[%s273 + $0x30] sm:$0xff] %v286
                %v288 = vld [vmem:[%s272 + $0x58] sm:$0xff]
                %289 = vst [vmem:[%s273 + $0x38] sm:$0xff] %v288
              $region64: #{darknet_forward.17} parent=58 // loop_footer
                %s271 = sadd.s32 1, %s267
              $region65: #{darknet_forward.17} parent=58 // loop_footer_branch
                %266 = sbr.rel target = $region61
              $region66: #{darknet_forward.17} parent=58 // loop_exit
                _
            $region59: #{darknet_forward.17} parent=54 // pred_fallthru
              _
            // Predicated region
            $region67: #{darknet_forward.17} parent=54 // pred_check
              _
            $region68: #{darknet_forward.17} parent=54 // pred_check_branch
              %291 = sbr.rel target = $region70
            $region69: #{darknet_forward.17} parent=54 // pred_region
              _
            $region70: #{darknet_forward.17} parent=54 // pred_fallthru
              _
          $region55: #{darknet_forward.17} parent=50 // pred_fallthru
            _
          %292 = vnop
        $region51: #{darknet_forward.17} parent=23 // pred_fallthru
          _
      $region24: #{darknet_forward.17} parent=5 // pred_fallthru
        _
      %p293 = scmp.le.s32.totalorder 1, %s10
      %p294 = scmp.lt.s32.totalorder %s10, 3
      %p295 = pnand %p293, %p294
      %p296 = pneg %p295
      // Predicated region
      $region71: #{darknet_forward.17} parent=5 // pred_check
        _
      $region72: #{darknet_forward.17} parent=5 // pred_check_branch
        %298 = sbr.rel (%p295) target = $region74
      $region73: #{darknet_forward.17} parent=5 // pred_region
        %s299 = ssub.s32 %s10, 1
        %s300 = sand.u32 %s44, 1
        %s301 = sand.u32 %s44, 1
        %s302 = smul.addr %s301, 288
        %s303 = scalar_lea.vmem [#allocation2], %s302
        // Predicated region
        $region75: #{darknet_forward.17} parent=73 // pred_check
          %p304 = pneg %p57
        $region76: #{darknet_forward.17} parent=73 // pred_check_branch
          %306 = sbr.rel (%p304) target = $region78
        $region77: #{darknet_forward.17} parent=73 // pred_region
          _
        $region78: #{darknet_forward.17} parent=73 // pred_fallthru
          _
        %s307 = sand.u32 %s91, 1
        %s308 = sand.u32 %s91, 1
        %s309 = smul.addr %s308, 64
        %s310 = scalar_lea.vmem [#allocation3], %s309
        // Predicated region
        $region79: #{darknet_forward.17} parent=73 // pred_check
          %p311 = pneg %p104
        $region80: #{darknet_forward.17} parent=73 // pred_check_branch
          %313 = sbr.rel (%p311) target = $region82
        $region81: #{darknet_forward.17} parent=73 // pred_region
          _
        $region82: #{darknet_forward.17} parent=73 // pred_fallthru
          _
        %p314 = pneg %p31
        %p315 = pneg %p28
        %s316 = sand.u32 %s44, 1
        %s317 = sand.u32 %s44, 1
        %s318 = smul.addr %s317, 288
        %s319 = scalar_lea.vmem [#allocation2], %s318
        %p320 = pneg %p57
        %p321 = pneg %p54
        %p322 = pneg %p78
        %p323 = pneg %p75
        %s324 = sand.u32 %s91, 1
        %s325 = sand.u32 %s91, 1
        %s326 = smul.addr %s325, 64
        %s327 = scalar_lea.vmem [#allocation3], %s326
        %p328 = pneg %p104
        %p329 = pneg %p101
        %p330 = pneg %p130
        %p331 = pneg %p127
        %s332 = sand.u32 %s117, 1
        %s333 = sand.u32 %s117, 1
        %s334 = smul.addr %s333, 64
        %s335 = scalar_lea.vmem [#allocation4], %s334
        %s336 = smul.u32 8, %s15
        %s337 = smul.u32 8, %s15
        %s338 = smul.u32 8, %s15
        %v340 = vld [vmem:[%s0] sm:$0xf]
        %v341 = vld [vmem:[%s0 + $0x4] sm:$0xf]
        %v342 = vld [vmem:[%s303] sm:$0xff]
        %v343 = vld [vmem:[%s303 + $0x8] sm:$0xff]
        %v344 = vld [vmem:[%s303 + $0x10] sm:$0xff]
        %v345 = vld [vmem:[%s303 + $0x18] sm:$0xff]
        %v346 = vld [vmem:[%s303 + $0x20] sm:$0xff]
        %v347 = vld [vmem:[%s303 + $0x28] sm:$0xff]
        %v348 = vld [vmem:[%s303 + $0x30] sm:$0xff]
        %v349 = vld [vmem:[%s303 + $0x38] sm:$0xff]
        %v350 = vld [vmem:[%s303 + $0x40] sm:$0xff]
        %v351 = vld [vmem:[%s303 + $0x48] sm:$0xff]
        %v352 = vld [vmem:[%s303 + $0x50] sm:$0xff]
        %v353 = vld [vmem:[%s303 + $0x58] sm:$0xff]
        %v354 = vld [vmem:[%s303 + $0x60] sm:$0xff]
        %v355 = vld [vmem:[%s303 + $0x68] sm:$0xff]
        %v356 = vld [vmem:[%s303 + $0x70] sm:$0xff]
        %v357 = vld [vmem:[%s303 + $0x78] sm:$0xff]
        %v358 = vld [vmem:[%s303 + $0x80] sm:$0xff]
        %v359 = vld [vmem:[%s303 + $0x88] sm:$0xff]
        %v360 = vld [vmem:[%s303 + $0x90] sm:$0xff]
        %v361 = vld [vmem:[%s303 + $0x98] sm:$0xff]
        %v362 = vld [vmem:[%s303 + $0xa0] sm:$0xff]
        %v363 = vld [vmem:[%s303 + $0xa8] sm:$0xff]
        %v364 = vld [vmem:[%s303 + $0xb0] sm:$0xff]
        %v365 = vld [vmem:[%s303 + $0xb8] sm:$0xff]
        %v366 = vld [vmem:[%s303 + $0xc0] sm:$0xff]
        %v367 = vld [vmem:[%s303 + $0xc8] sm:$0xff]
        %v368 = vld [vmem:[%s303 + $0xd0] sm:$0xff]
        %v369 = vld [vmem:[%s303 + $0xd8] sm:$0xff]
        %v370 = vld [vmem:[%s303 + $0xe0] sm:$0xff]
        %v371 = vld [vmem:[%s303 + $0xe8] sm:$0xff]
        %v372 = vld [vmem:[%s303 + $0xf0] sm:$0xff]
        %v373 = vld [vmem:[%s303 + $0xf8] sm:$0xff]
        %v374 = vld [vmem:[%s303 + $0x100] sm:$0xff]
        %v375 = vld [vmem:[%s303 + $0x108] sm:$0xff]
        %v376 = vld [vmem:[%s303 + $0x110] sm:$0xff]
        %v377 = vld [vmem:[%s303 + $0x118] sm:$0xff]
        %v378 = vld [vmem:[%s2] sm:$0xff]
        %v379 = vld [vmem:[%s2 + $0x8] sm:$0xff]
        %381 = vset.pattern.permute.xlu0 0
        %382 = vperm.xlu0 %381, %v378
        %v383 = vpop.permute.xlu0 %382
        %386 = vset.pattern.permute.xlu0 0
        %387 = vperm.xlu0 %386, %v379
        %v388 = vpop.permute.xlu0 %387
        %v392 = vunpack.c.l.b16 %v340
        %v393 = vunpack.c.l.b16 %v341
        %v394 = vpack.c.b16 %v393, %v392
        %v431 = vunpack.c.l.b16 %v342
        %v432 = vunpack.c.h.b16 %v342
        %v433 = vunpack.c.l.b16 %v343
        %v434 = vunpack.c.h.b16 %v343
        %v435 = vunpack.c.l.b16 %v344
        %v436 = vunpack.c.h.b16 %v344
        %v437 = vunpack.c.l.b16 %v345
        %v438 = vunpack.c.h.b16 %v345
        %v439 = vunpack.c.l.b16 %v346
        %v440 = vunpack.c.h.b16 %v346
        %v441 = vunpack.c.l.b16 %v347
        %v442 = vunpack.c.h.b16 %v347
        %v443 = vunpack.c.l.b16 %v348
        %v444 = vunpack.c.h.b16 %v348
        %v445 = vunpack.c.l.b16 %v349
        %v446 = vunpack.c.h.b16 %v349
        %v447 = vunpack.c.l.b16 %v350
        %v448 = vunpack.c.h.b16 %v350
        %v449 = vunpack.c.l.b16 %v351
        %v450 = vunpack.c.h.b16 %v351
        %v451 = vunpack.c.l.b16 %v352
        %v452 = vunpack.c.h.b16 %v352
        %v453 = vunpack.c.l.b16 %v353
        %v454 = vunpack.c.h.b16 %v353
        %v455 = vunpack.c.l.b16 %v354
        %v456 = vunpack.c.h.b16 %v354
        %v457 = vunpack.c.l.b16 %v355
        %v458 = vunpack.c.h.b16 %v355
        %v459 = vunpack.c.l.b16 %v356
        %v460 = vunpack.c.h.b16 %v356
        %v461 = vunpack.c.l.b16 %v357
        %v462 = vunpack.c.h.b16 %v357
        %v463 = vunpack.c.l.b16 %v358
        %v464 = vunpack.c.h.b16 %v358
        %v465 = vunpack.c.l.b16 %v359
        %v466 = vunpack.c.h.b16 %v359
        %v467 = vunpack.c.l.b16 %v360
        %v468 = vunpack.c.h.b16 %v360
        %v469 = vunpack.c.l.b16 %v361
        %v470 = vunpack.c.h.b16 %v361
        %v471 = vunpack.c.l.b16 %v362
        %v472 = vunpack.c.h.b16 %v362
        %v473 = vunpack.c.l.b16 %v363
        %v474 = vunpack.c.h.b16 %v363
        %v475 = vunpack.c.l.b16 %v364
        %v476 = vunpack.c.h.b16 %v364
        %v477 = vunpack.c.l.b16 %v365
        %v478 = vunpack.c.h.b16 %v365
        %v479 = vunpack.c.l.b16 %v366
        %v480 = vunpack.c.h.b16 %v366
        %v481 = vunpack.c.l.b16 %v367
        %v482 = vunpack.c.h.b16 %v367
        %v483 = vunpack.c.l.b16 %v368
        %v484 = vunpack.c.h.b16 %v368
        %v485 = vunpack.c.l.b16 %v369
        %v486 = vunpack.c.h.b16 %v369
        %v487 = vunpack.c.l.b16 %v370
        %v488 = vunpack.c.h.b16 %v370
        %v489 = vunpack.c.l.b16 %v371
        %v490 = vunpack.c.h.b16 %v371
        %v491 = vunpack.c.l.b16 %v372
        %v492 = vunpack.c.h.b16 %v372
        %v493 = vunpack.c.l.b16 %v373
        %v494 = vunpack.c.h.b16 %v373
        %v495 = vunpack.c.l.b16 %v374
        %v496 = vunpack.c.h.b16 %v374
        %v497 = vunpack.c.l.b16 %v375
        %v498 = vunpack.c.h.b16 %v375
        %v499 = vunpack.c.l.b16 %v376
        %v500 = vunpack.c.h.b16 %v376
        %v501 = vunpack.c.l.b16 %v377
        %v502 = vunpack.c.h.b16 %v377
        %v503 = vpack.c.b16 %v439, %v431
        %v504 = vpack.c.b16 %v440, %v432
        %v505 = vpack.c.b16 %v441, %v433
        %v506 = vpack.c.b16 %v442, %v434
        %v507 = vpack.c.b16 %v443, %v435
        %v508 = vpack.c.b16 %v444, %v436
        %v509 = vpack.c.b16 %v445, %v437
        %v510 = vpack.c.b16 %v446, %v438
        %v511 = vpack.c.b16 %v455, %v447
        %v512 = vpack.c.b16 %v456, %v448
        %v513 = vpack.c.b16 %v457, %v449
        %v514 = vpack.c.b16 %v458, %v450
        %v515 = vpack.c.b16 %v459, %v451
        %v516 = vpack.c.b16 %v460, %v452
        %v517 = vpack.c.b16 %v461, %v453
        %v518 = vpack.c.b16 %v462, %v454
        %v519 = vpack.c.b16 %v471, %v463
        %v520 = vpack.c.b16 %v472, %v464
        %v521 = vpack.c.b16 %v473, %v465
        %v522 = vpack.c.b16 %v474, %v466
        %v523 = vpack.c.b16 %v475, %v467
        %v524 = vpack.c.b16 %v476, %v468
        %v525 = vpack.c.b16 %v477, %v469
        %v526 = vpack.c.b16 %v478, %v470
        %v527 = vpack.c.b16 %v487, %v479
        %v528 = vpack.c.b16 %v488, %v480
        %v529 = vpack.c.b16 %v489, %v481
        %v530 = vpack.c.b16 %v490, %v482
        %v531 = vpack.c.b16 %v491, %v483
        %v532 = vpack.c.b16 %v492, %v484
        %v533 = vpack.c.b16 %v493, %v485
        %v534 = vpack.c.b16 %v494, %v486
        %v535 = vpack.c.b16 %v495, %v495
        %v536 = vpack.c.b16 %v496, %v496
        %v537 = vpack.c.b16 %v497, %v497
        %v538 = vpack.c.b16 %v498, %v498
        %v539 = vpack.c.b16 %v499, %v499
        %v540 = vpack.c.b16 %v500, %v500
        %v541 = vpack.c.b16 %v501, %v501
        %v542 = vpack.c.b16 %v502, %v502
        %vm575 = vcmask 588800
        %v577 = vsel %vm575, %v394, 0
        %vm579 = vcmask 1043456
        %v581 = vsel %vm579, %v535, 0
        %v584 = vsel %vm579, %v536, 0
        %v587 = vsel %vm579, %v537, 0
        %v590 = vsel %vm579, %v538, 0
        %v593 = vsel %vm579, %v539, 0
        %v596 = vsel %vm579, %v540, 0
        %v599 = vsel %vm579, %v541, 0
        %v602 = vsel %vm579, %v542, 0
        %604 = vmatprep.subr.bf16.mxu0 0
        %605 = vmatpush1.bf16.msra.mxu0 0
        %606 = vmatprep.subr.bf16.mxu0 0
        %607 = vmatpush1.bf16.msra.mxu0 0
        %608 = vmatprep.subr.bf16.mxu0 0
        %609 = vmatpush1.bf16.msra.mxu0 0
        %610 = vmatprep.subr.bf16.mxu0 %v584
        %611 = vmatpush1.bf16.msra.mxu0 %v581
        %612 = vmatprep.subr.bf16.mxu0 %v528
        %613 = vmatpush1.bf16.msra.mxu0 %v527
        %614 = vmatprep.subr.bf16.mxu0 %v520
        %615 = vmatpush1.bf16.msra.mxu0 %v519
        %616 = vmatprep.subr.bf16.mxu0 %v512
        %617 = vmatpush1.bf16.msra.mxu0 %v511
        %618 = vmatprep.subr.bf16.mxu0 %v504
        %619 = vmatpush1.bf16.msra.mxu0 %v503
        %620 = vmatprep.subr.bf16.mxu0 0
        %621 = vmatpush2.bf16.msra.mxu0 0
        %622 = vmatprep.subr.bf16.mxu0 0
        %623 = vmatpush2.bf16.msra.mxu0 0
        %624 = vmatprep.subr.bf16.mxu0 0
        %625 = vmatpush2.bf16.msra.mxu0 0
        %626 = vmatprep.subr.bf16.mxu0 0
        %627 = vmatpush2.bf16.msra.mxu0 0
        %628 = vmatprep.subr.bf16.mxu0 0
        %629 = vmatpush2.bf16.msra.mxu0 0
        %630 = vmatprep.subr.bf16.mxu0 0
        %631 = vmatpush2.bf16.msra.mxu0 0
        %632 = vmatprep.subr.bf16.mxu0 0
        %633 = vmatpush2.bf16.msra.mxu0 0
        %634 = vmatprep.subr.bf16.mxu0 0
        %635 = vmatpush2.bf16.msra.mxu0 0
        %636 = vmatprep.mubr.bf16.mxu0 0
        %637 = vmatmul.mubr.bf16.gmra.mxu0 %v577
        %v638 = vpop.f32.mrf.mxu0
        %v639 = vadd.f32 %v383, %v638
        %v640 = vpop.f32.mrf.mxu0
        %v641 = vadd.f32 %v383, %v640
        %v642 = vpop.f32.mrf.mxu0
        %v643 = vadd.f32 %v388, %v642
        %v644 = vpop.f32.mrf.mxu0
        %v645 = vadd.f32 %v388, %v644
        %646 = vdwg.mxu0
        %647 = vmatprep.subr.bf16.mxu0 0
        %648 = vmatpush1.bf16.msra.mxu0 0
        %649 = vmatprep.subr.bf16.mxu0 0
        %650 = vmatpush1.bf16.msra.mxu0 0
        %651 = vmatprep.subr.bf16.mxu0 0
        %652 = vmatpush1.bf16.msra.mxu0 0
        %653 = vmatprep.subr.bf16.mxu0 %v590
        %654 = vmatpush1.bf16.msra.mxu0 %v587
        %655 = vmatprep.subr.bf16.mxu0 %v530
        %656 = vmatpush1.bf16.msra.mxu0 %v529
        %657 = vmatprep.subr.bf16.mxu0 %v522
        %658 = vmatpush1.bf16.msra.mxu0 %v521
        %659 = vmatprep.subr.bf16.mxu0 %v514
        %660 = vmatpush1.bf16.msra.mxu0 %v513
        %661 = vmatprep.subr.bf16.mxu0 %v506
        %662 = vmatpush1.bf16.msra.mxu0 %v505
        %663 = vmatprep.subr.bf16.mxu0 0
        %664 = vmatpush2.bf16.msra.mxu0 0
        %665 = vmatprep.subr.bf16.mxu0 0
        %666 = vmatpush2.bf16.msra.mxu0 0
        %667 = vmatprep.subr.bf16.mxu0 0
        %668 = vmatpush2.bf16.msra.mxu0 0
        %669 = vmatprep.subr.bf16.mxu0 0
        %670 = vmatpush2.bf16.msra.mxu0 0
        %671 = vmatprep.subr.bf16.mxu0 0
        %672 = vmatpush2.bf16.msra.mxu0 0
        %673 = vmatprep.subr.bf16.mxu0 0
        %674 = vmatpush2.bf16.msra.mxu0 0
        %675 = vmatprep.subr.bf16.mxu0 0
        %676 = vmatpush2.bf16.msra.mxu0 0
        %677 = vmatprep.subr.bf16.mxu0 0
        %678 = vmatpush2.bf16.msra.mxu0 0
        %679 = vmatprep.mubr.bf16.mxu0 0
        %680 = vmatmul.mubr.bf16.gmra.mxu0 %v577
        %v681 = vpop.f32.mrf.mxu0
        %v682 = vadd.f32 %v383, %v681
        %v683 = vpop.f32.mrf.mxu0
        %v684 = vadd.f32 %v383, %v683
        %v685 = vpop.f32.mrf.mxu0
        %v686 = vadd.f32 %v388, %v685
        %v687 = vpop.f32.mrf.mxu0
        %v688 = vadd.f32 %v388, %v687
        %689 = vdwg.mxu0
        %690 = vmatprep.subr.bf16.mxu0 0
        %691 = vmatpush1.bf16.msra.mxu0 0
        %692 = vmatprep.subr.bf16.mxu0 0
        %693 = vmatpush1.bf16.msra.mxu0 0
        %694 = vmatprep.subr.bf16.mxu0 0
        %695 = vmatpush1.bf16.msra.mxu0 0
        %696 = vmatprep.subr.bf16.mxu0 %v596
        %697 = vmatpush1.bf16.msra.mxu0 %v593
        %698 = vmatprep.subr.bf16.mxu0 %v532
        %699 = vmatpush1.bf16.msra.mxu0 %v531
        %700 = vmatprep.subr.bf16.mxu0 %v524
        %701 = vmatpush1.bf16.msra.mxu0 %v523
        %702 = vmatprep.subr.bf16.mxu0 %v516
        %703 = vmatpush1.bf16.msra.mxu0 %v515
        %704 = vmatprep.subr.bf16.mxu0 %v508
        %705 = vmatpush1.bf16.msra.mxu0 %v507
        %706 = vmatprep.subr.bf16.mxu0 0
        %707 = vmatpush2.bf16.msra.mxu0 0
        %708 = vmatprep.subr.bf16.mxu0 0
        %709 = vmatpush2.bf16.msra.mxu0 0
        %710 = vmatprep.subr.bf16.mxu0 0
        %711 = vmatpush2.bf16.msra.mxu0 0
        %712 = vmatprep.subr.bf16.mxu0 0
        %713 = vmatpush2.bf16.msra.mxu0 0
        %714 = vmatprep.subr.bf16.mxu0 0
        %715 = vmatpush2.bf16.msra.mxu0 0
        %716 = vmatprep.subr.bf16.mxu0 0
        %717 = vmatpush2.bf16.msra.mxu0 0
        %718 = vmatprep.subr.bf16.mxu0 0
        %719 = vmatpush2.bf16.msra.mxu0 0
        %720 = vmatprep.subr.bf16.mxu0 0
        %721 = vmatpush2.bf16.msra.mxu0 0
        %722 = vmatprep.mubr.bf16.mxu0 0
        %723 = vmatmul.mubr.bf16.gmra.mxu0 %v577
        %v724 = vpop.f32.mrf.mxu0
        %v725 = vadd.f32 %v383, %v724
        %v726 = vpop.f32.mrf.mxu0
        %v727 = vadd.f32 %v383, %v726
        %v728 = vpop.f32.mrf.mxu0
        %v729 = vadd.f32 %v388, %v728
        %v730 = vpop.f32.mrf.mxu0
        %v731 = vadd.f32 %v388, %v730
        %732 = vdwg.mxu0
        %733 = vmatprep.subr.bf16.mxu0 0
        %734 = vmatpush1.bf16.msra.mxu0 0
        %735 = vmatprep.subr.bf16.mxu0 0
        %736 = vmatpush1.bf16.msra.mxu0 0
        %737 = vmatprep.subr.bf16.mxu0 0
        %738 = vmatpush1.bf16.msra.mxu0 0
        %739 = vmatprep.subr.bf16.mxu0 %v602
        %740 = vmatpush1.bf16.msra.mxu0 %v599
        %741 = vmatprep.subr.bf16.mxu0 %v534
        %742 = vmatpush1.bf16.msra.mxu0 %v533
        %743 = vmatprep.subr.bf16.mxu0 %v526
        %744 = vmatpush1.bf16.msra.mxu0 %v525
        %745 = vmatprep.subr.bf16.mxu0 %v518
        %746 = vmatpush1.bf16.msra.mxu0 %v517
        %747 = vmatprep.subr.bf16.mxu0 %v510
        %748 = vmatpush1.bf16.msra.mxu0 %v509
        %749 = vmatprep.subr.bf16.mxu0 0
        %750 = vmatpush2.bf16.msra.mxu0 0
        %751 = vmatprep.subr.bf16.mxu0 0
        %752 = vmatpush2.bf16.msra.mxu0 0
        %753 = vmatprep.subr.bf16.mxu0 0
        %754 = vmatpush2.bf16.msra.mxu0 0
        %755 = vmatprep.subr.bf16.mxu0 0
        %756 = vmatpush2.bf16.msra.mxu0 0
        %757 = vmatprep.subr.bf16.mxu0 0
        %758 = vmatpush2.bf16.msra.mxu0 0
        %759 = vmatprep.subr.bf16.mxu0 0
        %760 = vmatpush2.bf16.msra.mxu0 0
        %761 = vmatprep.subr.bf16.mxu0 0
        %762 = vmatpush2.bf16.msra.mxu0 0
        %763 = vmatprep.subr.bf16.mxu0 0
        %764 = vmatpush2.bf16.msra.mxu0 0
        %765 = vmatprep.mubr.bf16.mxu0 0
        %766 = vmatmul.mubr.bf16.gmra.mxu0 %v577
        %v767 = vpop.f32.mrf.mxu0
        %v768 = vadd.f32 %v383, %v767
        %v769 = vpop.f32.mrf.mxu0
        %v770 = vadd.f32 %v383, %v769
        %v771 = vpop.f32.mrf.mxu0
        %v772 = vadd.f32 %v388, %v771
        %v773 = vpop.f32.mrf.mxu0
        %v774 = vadd.f32 %v388, %v773
        %775 = vdwg.mxu0
        %v776 = vxor.u32 %v639, 2147483648
        %v777 = vxor.u32 %v641, 2147483648
        %v778 = vxor.u32 %v682, 2147483648
        %v779 = vxor.u32 %v684, 2147483648
        %v780 = vxor.u32 %v725, 2147483648
        %v781 = vxor.u32 %v727, 2147483648
        %v782 = vxor.u32 %v768, 2147483648
        %v783 = vxor.u32 %v770, 2147483648
        %v784 = vxor.u32 %v643, 2147483648
        %v785 = vxor.u32 %v645, 2147483648
        %v786 = vxor.u32 %v686, 2147483648
        %v787 = vxor.u32 %v688, 2147483648
        %v788 = vxor.u32 %v729, 2147483648
        %v789 = vxor.u32 %v731, 2147483648
        %v790 = vxor.u32 %v772, 2147483648
        %v791 = vxor.u32 %v774, 2147483648
        %v792 = vmul.f32 %v776, 1.442695
        %v793 = vpow.pop %v792
        %v794 = vmul.f32 %v777, 1.442695
        %v795 = vpow.pop %v794
        %v796 = vmul.f32 %v778, 1.442695
        %v797 = vpow.pop %v796
        %v798 = vmul.f32 %v779, 1.442695
        %v799 = vpow.pop %v798
        %v800 = vmul.f32 %v780, 1.442695
        %v801 = vpow.pop %v800
        %v802 = vmul.f32 %v781, 1.442695
        %v803 = vpow.pop %v802
        %v804 = vmul.f32 %v782, 1.442695
        %v805 = vpow.pop %v804
        %v806 = vmul.f32 %v783, 1.442695
        %v807 = vpow.pop %v806
        %v808 = vmul.f32 %v784, 1.442695
        %v809 = vpow.pop %v808
        %v810 = vmul.f32 %v785, 1.442695
        %v811 = vpow.pop %v810
        %v812 = vmul.f32 %v786, 1.442695
        %v813 = vpow.pop %v812
        %v814 = vmul.f32 %v787, 1.442695
        %v815 = vpow.pop %v814
        %v816 = vmul.f32 %v788, 1.442695
        %v817 = vpow.pop %v816
        %v818 = vmul.f32 %v789, 1.442695
        %v819 = vpow.pop %v818
        %v820 = vmul.f32 %v790, 1.442695
        %v821 = vpow.pop %v820
        %v822 = vmul.f32 %v791, 1.442695
        %v823 = vpow.pop %v822
        %v824 = vadd.f32 %v793, 1.0
        %v825 = vadd.f32 %v795, 1.0
        %v826 = vadd.f32 %v797, 1.0
        %v827 = vadd.f32 %v799, 1.0
        %v828 = vadd.f32 %v801, 1.0
        %v829 = vadd.f32 %v803, 1.0
        %v830 = vadd.f32 %v805, 1.0
        %v831 = vadd.f32 %v807, 1.0
        %v832 = vadd.f32 %v809, 1.0
        %v833 = vadd.f32 %v811, 1.0
        %v834 = vadd.f32 %v813, 1.0
        %v835 = vadd.f32 %v815, 1.0
        %v836 = vadd.f32 %v817, 1.0
        %v837 = vadd.f32 %v819, 1.0
        %v838 = vadd.f32 %v821, 1.0
        %v839 = vadd.f32 %v823, 1.0
        %v840 = vrcp.pop %v824
        %v841 = vmul.f32 1.0, %v840
        %v842 = vrcp.pop %v825
        %v843 = vmul.f32 1.0, %v842
        %v844 = vrcp.pop %v826
        %v845 = vmul.f32 1.0, %v844
        %v846 = vrcp.pop %v827
        %v847 = vmul.f32 1.0, %v846
        %v848 = vrcp.pop %v828
        %v849 = vmul.f32 1.0, %v848
        %v850 = vrcp.pop %v829
        %v851 = vmul.f32 1.0, %v850
        %v852 = vrcp.pop %v830
        %v853 = vmul.f32 1.0, %v852
        %v854 = vrcp.pop %v831
        %v855 = vmul.f32 1.0, %v854
        %v856 = vrcp.pop %v832
        %v857 = vmul.f32 1.0, %v856
        %v858 = vrcp.pop %v833
        %v859 = vmul.f32 1.0, %v858
        %v860 = vrcp.pop %v834
        %v861 = vmul.f32 1.0, %v860
        %v862 = vrcp.pop %v835
        %v863 = vmul.f32 1.0, %v862
        %v864 = vrcp.pop %v836
        %v865 = vmul.f32 1.0, %v864
        %v866 = vrcp.pop %v837
        %v867 = vmul.f32 1.0, %v866
        %v868 = vrcp.pop %v838
        %v869 = vmul.f32 1.0, %v868
        %v870 = vrcp.pop %v839
        %v871 = vmul.f32 1.0, %v870
        %v872 = vmul.f32 %v639, %v841
        %v873 = vmul.f32 %v641, %v843
        %v874 = vmul.f32 %v682, %v845
        %v875 = vmul.f32 %v684, %v847
        %v876 = vmul.f32 %v725, %v849
        %v877 = vmul.f32 %v727, %v851
        %v878 = vmul.f32 %v768, %v853
        %v879 = vmul.f32 %v770, %v855
        %v880 = vmul.f32 %v643, %v857
        %v881 = vmul.f32 %v645, %v859
        %v882 = vmul.f32 %v686, %v861
        %v883 = vmul.f32 %v688, %v863
        %v884 = vmul.f32 %v729, %v865
        %v885 = vmul.f32 %v731, %v867
        %v886 = vmul.f32 %v772, %v869
        %v887 = vmul.f32 %v774, %v871
        %v888 = vld [vmem:[%s310] sm:$0xff]
        %v889 = vld [vmem:[%s310 + $0x8] sm:$0xff]
        %v890 = vld [vmem:[%s310 + $0x10] sm:$0xff]
        %v891 = vld [vmem:[%s310 + $0x18] sm:$0xff]
        %v892 = vld [vmem:[%s310 + $0x20] sm:$0xff]
        %v893 = vld [vmem:[%s310 + $0x28] sm:$0xff]
        %v894 = vld [vmem:[%s310 + $0x30] sm:$0xff]
        %v895 = vld [vmem:[%s310 + $0x38] sm:$0xff]
        %v896 = vunpack.c.l.bf16 %v888
        %v897 = vunpack.c.h.bf16 %v888
        %v898 = vunpack.c.l.bf16 %v889
        %v899 = vunpack.c.h.bf16 %v889
        %v900 = vunpack.c.l.bf16 %v890
        %v901 = vunpack.c.h.bf16 %v890
        %v902 = vunpack.c.l.bf16 %v891
        %v903 = vunpack.c.h.bf16 %v891
        %v904 = vunpack.c.l.bf16 %v892
        %v905 = vunpack.c.h.bf16 %v892
        %v906 = vunpack.c.l.bf16 %v893
        %v907 = vunpack.c.h.bf16 %v893
        %v908 = vunpack.c.l.bf16 %v894
        %v909 = vunpack.c.h.bf16 %v894
        %v910 = vunpack.c.l.bf16 %v895
        %v911 = vunpack.c.h.bf16 %v895
        %v912 = vadd.f32 %v872, %v896
        %v913 = vadd.f32 %v873, %v897
        %v914 = vadd.f32 %v874, %v898
        %v915 = vadd.f32 %v875, %v899
        %v916 = vadd.f32 %v876, %v900
        %v917 = vadd.f32 %v877, %v901
        %v918 = vadd.f32 %v878, %v902
        %v919 = vadd.f32 %v879, %v903
        %v920 = vadd.f32 %v880, %v904
        %v921 = vadd.f32 %v881, %v905
        %v922 = vadd.f32 %v882, %v906
        %v923 = vadd.f32 %v883, %v907
        %v924 = vadd.f32 %v884, %v908
        %v925 = vadd.f32 %v885, %v909
        %v926 = vadd.f32 %v886, %v910
        %v927 = vadd.f32 %v887, %v911
        %v928 = vpack.c.bf16 %v920, %v912
        %v929 = vpack.c.bf16 %v921, %v913
        %v930 = vpack.c.bf16 %v922, %v914
        %v931 = vpack.c.bf16 %v923, %v915
        %v932 = vpack.c.bf16 %v924, %v916
        %v933 = vpack.c.bf16 %v925, %v917
        %v934 = vpack.c.bf16 %v926, %v918
        %v935 = vpack.c.bf16 %v927, %v919
        %v944 = vunpack.c.l.b16 %v928
        %v945 = vunpack.c.l.b16 %v929
        %v946 = vunpack.c.l.b16 %v930
        %v947 = vunpack.c.l.b16 %v931
        %v948 = vunpack.c.l.b16 %v932
        %v949 = vunpack.c.l.b16 %v933
        %v950 = vunpack.c.l.b16 %v934
        %v951 = vunpack.c.l.b16 %v935
        %v952 = vunpack.c.h.b16 %v928
        %v953 = vunpack.c.h.b16 %v929
        %v954 = vunpack.c.h.b16 %v930
        %v955 = vunpack.c.h.b16 %v931
        %v956 = vunpack.c.h.b16 %v932
        %v957 = vunpack.c.h.b16 %v933
        %v958 = vunpack.c.h.b16 %v934
        %v959 = vunpack.c.h.b16 %v935
        %v960 = vpack.c.b16 %v945, %v944
        %v961 = vpack.c.b16 %v947, %v946
        %v962 = vpack.c.b16 %v949, %v948
        %v963 = vpack.c.b16 %v951, %v950
        %v964 = vpack.c.b16 %v953, %v952
        %v965 = vpack.c.b16 %v955, %v954
        %v966 = vpack.c.b16 %v957, %v956
        %v967 = vpack.c.b16 %v959, %v958
        %976 = vst [vmem:[%s335] sm:$0xff] %v960
        %977 = vst [vmem:[%s335 + $0x8] sm:$0xff] %v961
        %978 = vst [vmem:[%s335 + $0x10] sm:$0xff] %v962
        %979 = vst [vmem:[%s335 + $0x18] sm:$0xff] %v963
        %980 = vst [vmem:[%s335 + $0x20] sm:$0xff] %v964
        %981 = vst [vmem:[%s335 + $0x28] sm:$0xff] %v965
        %982 = vst [vmem:[%s335 + $0x30] sm:$0xff] %v966
        %983 = vst [vmem:[%s335 + $0x38] sm:$0xff] %v967
        %s984 = sand.u32 %s117, 1
        %s985 = sand.u32 %s117, 1
        %s986 = smul.addr %s985, 64
        %s987 = scalar_lea.vmem [#allocation4], %s986
        // Predicated region
        $region83: #{darknet_forward.17} parent=73 // pred_check
          %p988 = pneg %p127
        $region84: #{darknet_forward.17} parent=73 // pred_check_branch
          %990 = sbr.rel (%p988) target = $region86
        $region85: #{darknet_forward.17} parent=73 // pred_region
          %s991 = smul.u32 8, %s15
          %s992 = smul.addr %s991, 4
          %s993 = scalar_lea.vmem %s4, %s992
          // Predicated region
          $region87: #{darknet_forward.17} parent=85 // pred_check
            _
          $region88: #{darknet_forward.17} parent=85 // pred_check_branch
            %995 = sbr.rel (0) target = $region90
          $region89: #{darknet_forward.17} parent=85 // pred_region
            // Predicated region
            $region91: #{darknet_forward.17} parent=89 // pred_check
              _
            $region92: #{darknet_forward.17} parent=89 // pred_check_branch
              %997 = sbr.rel (0) target = $region94
            $region93: #{darknet_forward.17} parent=89 // pred_region
              loop: start=0, step=1, limit=1
              $region95: #{darknet_forward.17} parent=93 // loop_pre_header
                _
              $region96: #{darknet_forward.17} parent=93 // loop_header
                %s999 = sphi 0, %s1003
                %p1000 = scmp.ge.s32.totalorder %s999, 1
                %s1004 = sphi %s987, %s987
                %s1005 = sphi %s993, %s993
              $region97: #{darknet_forward.17} parent=93 // loop_header_branch
                %1002 = sbr.rel (%p1000) target = $region101
              $region98: #{darknet_forward.17} parent=93 // loop_body
                %v1006 = vld [vmem:[%s1004] sm:$0xff]
                %1007 = vst [vmem:[%s1005] sm:$0xff] %v1006
                %v1008 = vld [vmem:[%s1004 + $0x8] sm:$0xff]
                %1009 = vst [vmem:[%s1005 + $0x8] sm:$0xff] %v1008
                %v1010 = vld [vmem:[%s1004 + $0x10] sm:$0xff]
                %1011 = vst [vmem:[%s1005 + $0x10] sm:$0xff] %v1010
                %v1012 = vld [vmem:[%s1004 + $0x18] sm:$0xff]
                %1013 = vst [vmem:[%s1005 + $0x18] sm:$0xff] %v1012
                %v1014 = vld [vmem:[%s1004 + $0x20] sm:$0xff]
                %1015 = vst [vmem:[%s1005 + $0x40] sm:$0xff] %v1014
                %v1016 = vld [vmem:[%s1004 + $0x28] sm:$0xff]
                %1017 = vst [vmem:[%s1005 + $0x48] sm:$0xff] %v1016
                %v1018 = vld [vmem:[%s1004 + $0x30] sm:$0xff]
                %1019 = vst [vmem:[%s1005 + $0x50] sm:$0xff] %v1018
                %v1020 = vld [vmem:[%s1004 + $0x38] sm:$0xff]
                %1021 = vst [vmem:[%s1005 + $0x58] sm:$0xff] %v1020
              $region99: #{darknet_forward.17} parent=93 // loop_footer
                %s1003 = sadd.s32 1, %s999
              $region100: #{darknet_forward.17} parent=93 // loop_footer_branch
                %998 = sbr.rel target = $region96
              $region101: #{darknet_forward.17} parent=93 // loop_exit
                _
            $region94: #{darknet_forward.17} parent=89 // pred_fallthru
              _
            // Predicated region
            $region102: #{darknet_forward.17} parent=89 // pred_check
              _
            $region103: #{darknet_forward.17} parent=89 // pred_check_branch
              %1023 = sbr.rel target = $region105
            $region104: #{darknet_forward.17} parent=89 // pred_region
              _
            $region105: #{darknet_forward.17} parent=89 // pred_fallthru
              _
          $region90: #{darknet_forward.17} parent=85 // pred_fallthru
            _
          %1024 = vnop
        $region86: #{darknet_forward.17} parent=73 // pred_fallthru
          _
      $region74: #{darknet_forward.17} parent=5 // pred_fallthru
        _
      %p1025 = scmp.le.s32.totalorder 2, %s10
      // Predicated region
      $region106: #{darknet_forward.17} parent=5 // pred_check
        %p1026 = pneg %p1025
      $region107: #{darknet_forward.17} parent=5 // pred_check_branch
        %1028 = sbr.rel (%p1026) target = $region109
      $region108: #{darknet_forward.17} parent=5 // pred_region
        %s1029 = ssub.s32 %s10, 2
        // Predicated region
        $region110: #{darknet_forward.17} parent=108 // pred_check
          %p1030 = pneg %p133
        $region111: #{darknet_forward.17} parent=108 // pred_check_branch
          %1032 = sbr.rel (%p1030) target = $region113
        $region112: #{darknet_forward.17} parent=108 // pred_region
          %s1033 = sand.u32 %s118, 1
          %s1034 = sand.u32 %s118, 1
          %s1035 = smul.addr %s1034, 64
          %s1036 = scalar_lea.vmem [#allocation4], %s1035
        $region113: #{darknet_forward.17} parent=108 // pred_fallthru
          _
      $region109: #{darknet_forward.17} parent=5 // pred_fallthru
        _
    $region6: #{darknet_forward.17} parent=1 // loop_footer
      %s14 = sadd.s32 1, %s10
    $region7: #{darknet_forward.17} parent=1 // loop_footer_branch
      %9 = sbr.rel target = $region3
    $region8: #{darknet_forward.17} parent=1 // loop_exit
      _

// kernel: darknet_forward.18
$region0: #{darknet_forward.18}
  #allocation0 [shape = 'u32[]', space=smem, size = 0x4, offset = 0x4, fixed_abs, tag = 'smem constant byte address 0x4 - core index']
  #allocation1 [shape = 'u32[144,128]{1,0:T(1,128)}', space=vmem, size = 0x12000, scoped, tag = 'internal scratch']
  %s0 = inlined_call_operand.vmem [shape: bf16[16,144], index: 0, kind: input, shape index: {}]
  %s1 = inlined_call_operand.vmem [shape: bf16[144,512], index: 1, kind: input, shape index: {}]
  %s2 = inlined_call_operand.vmem [shape: f32[16,1], index: 2, kind: input, shape index: {}]
  %s3 = inlined_call_operand.vmem [shape: bf16[16,512], index: 3, kind: output, shape index: {}]
  %s4 = sld [smem:[#allocation0]]
  $region117: #{darknet_forward.18} parent=0
    _
  %s6 = ssub.s32 1, %s4
  %s7 = scalar_select 0, %s6, %s4
  $region1: #{darknet_forward.18} parent=0
    #allocation2 [shape = 'u8[147456]{0}', space=vmem, size = 0x24000, scoped, tag = 'input window, operand 1']
    #allocation3 [shape = 'u8[16384]{0}', space=vmem, size = 0x4000, scoped, tag = 'output window, operand 0']
    loop: start=0, step=1, limit=4
    $region2: #{darknet_forward.18} parent=1 // loop_pre_header
      _
    $region3: #{darknet_forward.18} parent=1 // loop_header
      %s9 = sphi 0, %s13
      %p10 = scmp.ge.s32.totalorder %s9, 4
      %s17 = sphi 0, %s17
      %s19 = sphi 0, %s17
      %s20 = sphi 0, %s19
      %s34 = sphi 0, %s20
      %s40 = sphi 0, %s42
      %s43 = sphi 0, %s40
      %s44 = sphi 0, %s43
      %s60 = sphi 0, %s44
      %s64 = sphi 0, %s64
      %s66 = sphi 0, %s64
      %s67 = sphi 0, %s66
      %s81 = sphi 0, %s67
      %s87 = sphi 0, %s89
      %s90 = sphi 0, %s87
      %s91 = sphi 0, %s90
      %s107 = sphi 0, %s91
    $region4: #{darknet_forward.18} parent=1 // loop_header_branch
      %12 = sbr.rel (%p10) target = $region8
    $region5: #{darknet_forward.18} parent=1 // loop_body
      %s14 = ssub.s32 %s9, 1
      %s15 = ssub.s32 %s9, 2
      %s16 = sadd.s32 %s9, 1
      %s18 = sadd.s32 %s17, 1
      %p21 = scmp.eq.s32.totalorder %s9, 1
      %p22 = scmp.ne.s32.totalorder %s17, %s19
      %p23 = scmp.eq.s32.totalorder %s9, 0
      %p24 = por %p22, %p23
      %p25 = scmp.ne.s32.totalorder %s17, %s19
      %p26 = scmp.eq.s32.totalorder %s14, 1
      %p27 = por %p25, %p26
      %p28 = scmp.ne.s32.totalorder %s19, %s20
      %p29 = scmp.eq.s32.totalorder %s14, 0
      %p30 = por %p28, %p29
      %p31 = scmp.ne.s32.totalorder %s19, %s20
      %p32 = scmp.eq.s32.totalorder %s15, 1
      %p33 = por %p31, %p32
      %p35 = scmp.ne.s32.totalorder %s20, %s34
      %p36 = scmp.eq.s32.totalorder %s15, 0
      %p37 = por %p35, %p36
      %s38 = ssub.s32 %s9, %s16
      %p39 = scmp.eq.s32.totalorder %s38, 0
      %s41 = sadd.s32 %s40, 1
      %s42 = scalar_select %p39, %s40, %s41
      %p45 = pneg %p39
      %p46 = scmp.eq.s32.totalorder %s9, 1
      %p47 = por %p45, %p46
      %p48 = scmp.ne.s32.totalorder %s40, %s43
      %p49 = scmp.eq.s32.totalorder %s9, 0
      %p50 = por %p48, %p49
      %p51 = scmp.ne.s32.totalorder %s40, %s43
      %p52 = scmp.eq.s32.totalorder %s14, 1
      %p53 = por %p51, %p52
      %p54 = scmp.ne.s32.totalorder %s43, %s44
      %p55 = scmp.eq.s32.totalorder %s14, 0
      %p56 = por %p54, %p55
      %p57 = scmp.ne.s32.totalorder %s43, %s44
      %p58 = scmp.eq.s32.totalorder %s15, 1
      %p59 = por %p57, %p58
      %p61 = scmp.ne.s32.totalorder %s44, %s60
      %p62 = scmp.eq.s32.totalorder %s15, 0
      %p63 = por %p61, %p62
      %s65 = sadd.s32 %s64, 1
      %p68 = scmp.eq.s32.totalorder %s9, 1
      %p69 = scmp.ne.s32.totalorder %s64, %s66
      %p70 = scmp.eq.s32.totalorder %s9, 0
      %p71 = por %p69, %p70
      %p72 = scmp.ne.s32.totalorder %s64, %s66
      %p73 = scmp.eq.s32.totalorder %s14, 1
      %p74 = por %p72, %p73
      %p75 = scmp.ne.s32.totalorder %s66, %s67
      %p76 = scmp.eq.s32.totalorder %s14, 0
      %p77 = por %p75, %p76
      %p78 = scmp.ne.s32.totalorder %s66, %s67
      %p79 = scmp.eq.s32.totalorder %s15, 1
      %p80 = por %p78, %p79
      %p82 = scmp.ne.s32.totalorder %s67, %s81
      %p83 = scmp.eq.s32.totalorder %s15, 0
      %p84 = por %p82, %p83
      %s85 = ssub.s32 %s9, %s16
      %p86 = scmp.eq.s32.totalorder %s85, 0
      %s88 = sadd.s32 %s87, 1
      %s89 = scalar_select %p86, %s87, %s88
      %p92 = pneg %p86
      %p93 = scmp.eq.s32.totalorder %s9, 1
      %p94 = por %p92, %p93
      %p95 = scmp.ne.s32.totalorder %s87, %s90
      %p96 = scmp.eq.s32.totalorder %s9, 0
      %p97 = por %p95, %p96
      %p98 = scmp.ne.s32.totalorder %s87, %s90
      %p99 = scmp.eq.s32.totalorder %s14, 1
      %p100 = por %p98, %p99
      %p101 = scmp.ne.s32.totalorder %s90, %s91
      %p102 = scmp.eq.s32.totalorder %s14, 0
      %p103 = por %p101, %p102
      %p104 = scmp.ne.s32.totalorder %s90, %s91
      %p105 = scmp.eq.s32.totalorder %s15, 1
      %p106 = por %p104, %p105
      %p108 = scmp.ne.s32.totalorder %s91, %s107
      %p109 = scmp.eq.s32.totalorder %s15, 0
      %p110 = por %p108, %p109
      %p111 = scmp.le.s32.totalorder 1, %s9
      %p112 = scmp.lt.s32.totalorder %s9, 3
      %p113 = pnand %p111, %p112
      %p114 = pneg %p113
      // Predicated region
      $region9: #{darknet_forward.18} parent=5 // pred_check
        _
      $region10: #{darknet_forward.18} parent=5 // pred_check_branch
        %116 = sbr.rel (%p113) target = $region12
      $region11: #{darknet_forward.18} parent=5 // pred_region
        %s117 = ssub.s32 %s9, 1
        // Predicated region
        $region13: #{darknet_forward.18} parent=11 // pred_check
          %p118 = pneg %p30
        $region14: #{darknet_forward.18} parent=11 // pred_check_branch
          %120 = sbr.rel (%p118) target = $region16
        $region15: #{darknet_forward.18} parent=11 // pred_region
          _
        $region16: #{darknet_forward.18} parent=11 // pred_fallthru
          _
        // Predicated region
        $region17: #{darknet_forward.18} parent=11 // pred_check
          %p121 = pneg %p77
        $region18: #{darknet_forward.18} parent=11 // pred_check_branch
          %123 = sbr.rel (%p121) target = $region20
        $region19: #{darknet_forward.18} parent=11 // pred_region
          _
        $region20: #{darknet_forward.18} parent=11 // pred_fallthru
          _
      $region12: #{darknet_forward.18} parent=5 // pred_fallthru
        _
      %p124 = scmp.lt.s32.totalorder %s9, 2
      // Predicated region
      $region21: #{darknet_forward.18} parent=5 // pred_check
        %p125 = pneg %p124
      $region22: #{darknet_forward.18} parent=5 // pred_check_branch
        %127 = sbr.rel (%p125) target = $region24
      $region23: #{darknet_forward.18} parent=5 // pred_region
        // Predicated region
        $region25: #{darknet_forward.18} parent=23 // pred_check
          %p128 = pneg %p50
        $region26: #{darknet_forward.18} parent=23 // pred_check_branch
          %130 = sbr.rel (%p128) target = $region28
        $region27: #{darknet_forward.18} parent=23 // pred_region
          %s131 = sand.u32 %s40, 1
          %s132 = sand.u32 %s40, 1
          %s133 = smul.addr %s132, 144
          %s134 = scalar_lea.vmem [#allocation2], %s133
          %s135 = smul.u32 2, %s9
          %s136 = smul.addr %s135, 4
          %s137 = scalar_lea.vmem %s1, %s136
          // Predicated region
          $region29: #{darknet_forward.18} parent=27 // pred_check
            _
          $region30: #{darknet_forward.18} parent=27 // pred_check_branch
            %139 = sbr.rel (0) target = $region32
          $region31: #{darknet_forward.18} parent=27 // pred_region
            // Predicated region
            $region33: #{darknet_forward.18} parent=31 // pred_check
              _
            $region34: #{darknet_forward.18} parent=31 // pred_check_branch
              %141 = sbr.rel (0) target = $region36
            $region35: #{darknet_forward.18} parent=31 // pred_region
              // Predicated region
              $region48: #{darknet_forward.18} parent=35 // pred_check
                _
              $region49: #{darknet_forward.18} parent=35 // pred_check_branch
                %191 = sbr.rel (0) target = $region51
              $region50: #{darknet_forward.18} parent=35 // pred_region
                loop: start=0, step=1, limit=1
                $region52: #{darknet_forward.18} parent=50 // loop_pre_header
                  _
                $region53: #{darknet_forward.18} parent=50 // loop_header
                  %s193 = sphi 0, %s197
                  %p194 = scmp.ge.s32.totalorder %s193, 1
                  %s198 = sphi %s137, %s137
                  %s199 = sphi %s134, %s134
                $region54: #{darknet_forward.18} parent=50 // loop_header_branch
                  %196 = sbr.rel (%p194) target = $region58
                $region55: #{darknet_forward.18} parent=50 // loop_body
                  %v200 = vld [vmem:[%s198] sm:$0xff]
                  %201 = vst [vmem:[%s199] sm:$0xff] %v200
                  %v202 = vld [vmem:[%s198 + $0x10] sm:$0xff]
                  %203 = vst [vmem:[%s199 + $0x8] sm:$0xff] %v202
                  %v204 = vld [vmem:[%s198 + $0x20] sm:$0xff]
                  %205 = vst [vmem:[%s199 + $0x10] sm:$0xff] %v204
                  %v206 = vld [vmem:[%s198 + $0x30] sm:$0xff]
                  %207 = vst [vmem:[%s199 + $0x18] sm:$0xff] %v206
                  %v208 = vld [vmem:[%s198 + $0x40] sm:$0xff]
                  %209 = vst [vmem:[%s199 + $0x20] sm:$0xff] %v208
                  %v210 = vld [vmem:[%s198 + $0x50] sm:$0xff]
                  %211 = vst [vmem:[%s199 + $0x28] sm:$0xff] %v210
                  %v212 = vld [vmem:[%s198 + $0x60] sm:$0xff]
                  %213 = vst [vmem:[%s199 + $0x30] sm:$0xff] %v212
                  %v214 = vld [vmem:[%s198 + $0x70] sm:$0xff]
                  %215 = vst [vmem:[%s199 + $0x38] sm:$0xff] %v214
                  %v216 = vld [vmem:[%s198 + $0x80] sm:$0xff]
                  %217 = vst [vmem:[%s199 + $0x40] sm:$0xff] %v216
                  %v218 = vld [vmem:[%s198 + $0x90] sm:$0xff]
                  %219 = vst [vmem:[%s199 + $0x48] sm:$0xff] %v218
                  %v220 = vld [vmem:[%s198 + $0xa0] sm:$0xff]
                  %221 = vst [vmem:[%s199 + $0x50] sm:$0xff] %v220
                  %v222 = vld [vmem:[%s198 + $0xb0] sm:$0xff]
                  %223 = vst [vmem:[%s199 + $0x58] sm:$0xff] %v222
                  %v224 = vld [vmem:[%s198 + $0xc0] sm:$0xff]
                  %225 = vst [vmem:[%s199 + $0x60] sm:$0xff] %v224
                  %v226 = vld [vmem:[%s198 + $0xd0] sm:$0xff]
                  %227 = vst [vmem:[%s199 + $0x68] sm:$0xff] %v226
                  %v228 = vld [vmem:[%s198 + $0xe0] sm:$0xff]
                  %229 = vst [vmem:[%s199 + $0x70] sm:$0xff] %v228
                  %v230 = vld [vmem:[%s198 + $0xf0] sm:$0xff]
                  %231 = vst [vmem:[%s199 + $0x78] sm:$0xff] %v230
                  %v232 = vld [vmem:[%s198 + $0x100] sm:$0xff]
                  %233 = vst [vmem:[%s199 + $0x80] sm:$0xff] %v232
                  %v234 = vld [vmem:[%s198 + $0x110] sm:$0xff]
                  %235 = vst [vmem:[%s199 + $0x88] sm:$0xff] %v234
                $region56: #{darknet_forward.18} parent=50 // loop_footer
                  %s197 = sadd.s32 1, %s193
                $region57: #{darknet_forward.18} parent=50 // loop_footer_branch
                  %192 = sbr.rel target = $region53
                $region58: #{darknet_forward.18} parent=50 // loop_exit
                  _
              $region51: #{darknet_forward.18} parent=35 // pred_fallthru
                _
              // Predicated region
              $region59: #{darknet_forward.18} parent=35 // pred_check
                _
              $region60: #{darknet_forward.18} parent=35 // pred_check_branch
                %237 = sbr.rel target = $region62
              $region61: #{darknet_forward.18} parent=35 // pred_region
                _
              $region62: #{darknet_forward.18} parent=35 // pred_fallthru
                _
            $region36: #{darknet_forward.18} parent=31 // pred_fallthru
              _
            // Predicated region
            $region37: #{darknet_forward.18} parent=31 // pred_check
              _
            $region38: #{darknet_forward.18} parent=31 // pred_check_branch
              %143 = sbr.rel target = $region40
            $region39: #{darknet_forward.18} parent=31 // pred_region
              %s145 = ssub.s32 256, 1
              loop: start=0, step=1, limit=1
              $region41: #{darknet_forward.18} parent=39 // loop_pre_header
                _
              $region42: #{darknet_forward.18} parent=39 // loop_header
                %s147 = sphi 0, %s151
                %p148 = scmp.ge.s32.totalorder %s147, 1
                %s152 = sphi %s137, %s137
                %s153 = sphi %s134, %s134
              $region43: #{darknet_forward.18} parent=39 // loop_header_branch
                %150 = sbr.rel (%p148) target = $region47
              $region44: #{darknet_forward.18} parent=39 // loop_body
                %v154 = vld [vmem:[%s152] sm:%s145]
                %155 = vst [vmem:[%s153] sm:%s145] %v154
                %v156 = vld [vmem:[%s152 + $0x10] sm:%s145]
                %157 = vst [vmem:[%s153 + $0x8] sm:%s145] %v156
                %v158 = vld [vmem:[%s152 + $0x20] sm:%s145]
                %159 = vst [vmem:[%s153 + $0x10] sm:%s145] %v158
                %v160 = vld [vmem:[%s152 + $0x30] sm:%s145]
                %161 = vst [vmem:[%s153 + $0x18] sm:%s145] %v160
                %v162 = vld [vmem:[%s152 + $0x40] sm:%s145]
                %163 = vst [vmem:[%s153 + $0x20] sm:%s145] %v162
                %v164 = vld [vmem:[%s152 + $0x50] sm:%s145]
                %165 = vst [vmem:[%s153 + $0x28] sm:%s145] %v164
                %v166 = vld [vmem:[%s152 + $0x60] sm:%s145]
                %167 = vst [vmem:[%s153 + $0x30] sm:%s145] %v166
                %v168 = vld [vmem:[%s152 + $0x70] sm:%s145]
                %169 = vst [vmem:[%s153 + $0x38] sm:%s145] %v168
                %v170 = vld [vmem:[%s152 + $0x80] sm:%s145]
                %171 = vst [vmem:[%s153 + $0x40] sm:%s145] %v170
                %v172 = vld [vmem:[%s152 + $0x90] sm:%s145]
                %173 = vst [vmem:[%s153 + $0x48] sm:%s145] %v172
                %v174 = vld [vmem:[%s152 + $0xa0] sm:%s145]
                %175 = vst [vmem:[%s153 + $0x50] sm:%s145] %v174
                %v176 = vld [vmem:[%s152 + $0xb0] sm:%s145]
                %177 = vst [vmem:[%s153 + $0x58] sm:%s145] %v176
                %v178 = vld [vmem:[%s152 + $0xc0] sm:%s145]
                %179 = vst [vmem:[%s153 + $0x60] sm:%s145] %v178
                %v180 = vld [vmem:[%s152 + $0xd0] sm:%s145]
                %181 = vst [vmem:[%s153 + $0x68] sm:%s145] %v180
                %v182 = vld [vmem:[%s152 + $0xe0] sm:%s145]
                %183 = vst [vmem:[%s153 + $0x70] sm:%s145] %v182
                %v184 = vld [vmem:[%s152 + $0xf0] sm:%s145]
                %185 = vst [vmem:[%s153 + $0x78] sm:%s145] %v184
                %v186 = vld [vmem:[%s152 + $0x100] sm:%s145]
                %187 = vst [vmem:[%s153 + $0x80] sm:%s145] %v186
                %v188 = vld [vmem:[%s152 + $0x110] sm:%s145]
                %189 = vst [vmem:[%s153 + $0x88] sm:%s145] %v188
              $region45: #{darknet_forward.18} parent=39 // loop_footer
                %s151 = sadd.s32 1, %s147
              $region46: #{darknet_forward.18} parent=39 // loop_footer_branch
                %146 = sbr.rel target = $region42
              $region47: #{darknet_forward.18} parent=39 // loop_exit
                _
            $region40: #{darknet_forward.18} parent=31 // pred_fallthru
              _
          $region32: #{darknet_forward.18} parent=27 // pred_fallthru
            _
          %238 = vnop
        $region28: #{darknet_forward.18} parent=23 // pred_fallthru
          _
      $region24: #{darknet_forward.18} parent=5 // pred_fallthru
        _
      %p239 = scmp.le.s32.totalorder 1, %s9
      %p240 = scmp.lt.s32.totalorder %s9, 3
      %p241 = pnand %p239, %p240
      %p242 = pneg %p241
      // Predicated region
      $region63: #{darknet_forward.18} parent=5 // pred_check
        _
      $region64: #{darknet_forward.18} parent=5 // pred_check_branch
        %244 = sbr.rel (%p241) target = $region66
      $region65: #{darknet_forward.18} parent=5 // pred_region
        %s245 = ssub.s32 %s9, 1
        %s246 = sand.u32 %s43, 1
        %s247 = sand.u32 %s43, 1
        %s248 = smul.addr %s247, 144
        %s249 = scalar_lea.vmem [#allocation2], %s248
        // Predicated region
        $region67: #{darknet_forward.18} parent=65 // pred_check
          %p250 = pneg %p56
        $region68: #{darknet_forward.18} parent=65 // pred_check_branch
          %252 = sbr.rel (%p250) target = $region70
        $region69: #{darknet_forward.18} parent=65 // pred_region
          _
        $region70: #{darknet_forward.18} parent=65 // pred_fallthru
          _
        %p253 = pneg %p30
        %p254 = pneg %p27
        %s255 = sand.u32 %s43, 1
        %s256 = sand.u32 %s43, 1
        %s257 = smul.addr %s256, 144
        %s258 = scalar_lea.vmem [#allocation2], %s257
        %p259 = pneg %p56
        %p260 = pneg %p53
        %p261 = pneg %p77
        %p262 = pneg %p74
        %p263 = pneg %p103
        %p264 = pneg %p100
        %s265 = sand.u32 %s90, 1
        %s266 = sand.u32 %s90, 1
        %s267 = smul.addr %s266, 16
        %s268 = scalar_lea.vmem [#allocation3], %s267
        %s269 = smul.u32 2, %s14
        %s270 = smul.u32 2, %s14
        %v272 = vld [vmem:[%s0] sm:$0xff]
        %v273 = vld [vmem:[%s0 + $0x8] sm:$0xff]
        %v274 = vld [vmem:[%s249] sm:$0xff]
        %v275 = vld [vmem:[%s249 + $0x8] sm:$0xff]
        %v276 = vld [vmem:[%s249 + $0x10] sm:$0xff]
        %v277 = vld [vmem:[%s249 + $0x18] sm:$0xff]
        %v278 = vld [vmem:[%s249 + $0x20] sm:$0xff]
        %v279 = vld [vmem:[%s249 + $0x28] sm:$0xff]
        %v280 = vld [vmem:[%s249 + $0x30] sm:$0xff]
        %v281 = vld [vmem:[%s249 + $0x38] sm:$0xff]
        %v282 = vld [vmem:[%s249 + $0x40] sm:$0xff]
        %v283 = vld [vmem:[%s249 + $0x48] sm:$0xff]
        %v284 = vld [vmem:[%s249 + $0x50] sm:$0xff]
        %v285 = vld [vmem:[%s249 + $0x58] sm:$0xff]
        %v286 = vld [vmem:[%s249 + $0x60] sm:$0xff]
        %v287 = vld [vmem:[%s249 + $0x68] sm:$0xff]
        %v288 = vld [vmem:[%s249 + $0x70] sm:$0xff]
        %v289 = vld [vmem:[%s249 + $0x78] sm:$0xff]
        %v290 = vld [vmem:[%s249 + $0x80] sm:$0xff]
        %v291 = vld [vmem:[%s249 + $0x88] sm:$0xff]
        %v292 = vld [vmem:[%s2] sm:$0xff]
        %v293 = vld [vmem:[%s2 + $0x8] sm:$0xff]
        %295 = vset.pattern.permute.xlu0 0
        %296 = vperm.xlu0 %295, %v292
        %v297 = vpop.permute.xlu0 %296
        %300 = vset.pattern.permute.xlu0 0
        %301 = vperm.xlu0 %300, %v293
        %v302 = vpop.permute.xlu0 %301
        %v306 = vunpack.c.l.b16 %v272
        %v307 = vunpack.c.h.b16 %v272
        %v308 = vunpack.c.l.b16 %v273
        %v309 = vunpack.c.h.b16 %v273
        %v310 = vpack.c.b16 %v308, %v306
        %v311 = vpack.c.b16 %v309, %v307
        %v331 = vunpack.c.l.b16 %v274
        %v332 = vunpack.c.h.b16 %v274
        %v333 = vunpack.c.l.b16 %v275
        %v334 = vunpack.c.h.b16 %v275
        %v335 = vunpack.c.l.b16 %v276
        %v336 = vunpack.c.h.b16 %v276
        %v337 = vunpack.c.l.b16 %v277
        %v338 = vunpack.c.h.b16 %v277
        %v339 = vunpack.c.l.b16 %v278
        %v340 = vunpack.c.h.b16 %v278
        %v341 = vunpack.c.l.b16 %v279
        %v342 = vunpack.c.h.b16 %v279
        %v343 = vunpack.c.l.b16 %v280
        %v344 = vunpack.c.h.b16 %v280
        %v345 = vunpack.c.l.b16 %v281
        %v346 = vunpack.c.h.b16 %v281
        %v347 = vunpack.c.l.b16 %v282
        %v348 = vunpack.c.h.b16 %v282
        %v349 = vunpack.c.l.b16 %v283
        %v350 = vunpack.c.h.b16 %v283
        %v351 = vunpack.c.l.b16 %v284
        %v352 = vunpack.c.h.b16 %v284
        %v353 = vunpack.c.l.b16 %v285
        %v354 = vunpack.c.h.b16 %v285
        %v355 = vunpack.c.l.b16 %v286
        %v356 = vunpack.c.h.b16 %v286
        %v357 = vunpack.c.l.b16 %v287
        %v358 = vunpack.c.h.b16 %v287
        %v359 = vunpack.c.l.b16 %v288
        %v360 = vunpack.c.h.b16 %v288
        %v361 = vunpack.c.l.b16 %v289
        %v362 = vunpack.c.h.b16 %v289
        %v363 = vunpack.c.l.b16 %v290
        %v364 = vunpack.c.h.b16 %v290
        %v365 = vunpack.c.l.b16 %v291
        %v366 = vunpack.c.h.b16 %v291
        %v367 = vpack.c.b16 %v333, %v331
        %v368 = vpack.c.b16 %v334, %v332
        %v369 = vpack.c.b16 %v337, %v335
        %v370 = vpack.c.b16 %v338, %v336
        %v371 = vpack.c.b16 %v341, %v339
        %v372 = vpack.c.b16 %v342, %v340
        %v373 = vpack.c.b16 %v345, %v343
        %v374 = vpack.c.b16 %v346, %v344
        %v375 = vpack.c.b16 %v349, %v347
        %v376 = vpack.c.b16 %v350, %v348
        %v377 = vpack.c.b16 %v353, %v351
        %v378 = vpack.c.b16 %v354, %v352
        %v379 = vpack.c.b16 %v357, %v355
        %v380 = vpack.c.b16 %v358, %v356
        %v381 = vpack.c.b16 %v361, %v359
        %v382 = vpack.c.b16 %v362, %v360
        %v383 = vpack.c.b16 %v365, %v363
        %v384 = vpack.c.b16 %v366, %v364
        %vm403 = vcmask 130048
        %v405 = vsel %vm403, %v311, 0
        %407 = vmatprep.subr.bf16.mxu0 %v382
        %408 = vmatpush1.bf16.msra.mxu0 %v381
        %409 = vmatprep.subr.bf16.mxu0 %v380
        %410 = vmatpush1.bf16.msra.mxu0 %v379
        %411 = vmatprep.subr.bf16.mxu0 %v378
        %412 = vmatpush1.bf16.msra.mxu0 %v377
        %413 = vmatprep.subr.bf16.mxu0 %v376
        %414 = vmatpush1.bf16.msra.mxu0 %v375
        %415 = vmatprep.subr.bf16.mxu0 %v374
        %416 = vmatpush1.bf16.msra.mxu0 %v373
        %417 = vmatprep.subr.bf16.mxu0 %v372
        %418 = vmatpush1.bf16.msra.mxu0 %v371
        %419 = vmatprep.subr.bf16.mxu0 %v370
        %420 = vmatpush1.bf16.msra.mxu0 %v369
        %421 = vmatprep.subr.bf16.mxu0 %v368
        %422 = vmatpush1.bf16.msra.mxu0 %v367
        %423 = vmatprep.subr.bf16.mxu0 0
        %424 = vmatpush2.bf16.msra.mxu0 0
        %425 = vmatprep.subr.bf16.mxu0 0
        %426 = vmatpush2.bf16.msra.mxu0 0
        %427 = vmatprep.subr.bf16.mxu0 0
        %428 = vmatpush2.bf16.msra.mxu0 0
        %429 = vmatprep.subr.bf16.mxu0 0
        %430 = vmatpush2.bf16.msra.mxu0 0
        %431 = vmatprep.subr.bf16.mxu0 0
        %432 = vmatpush2.bf16.msra.mxu0 0
        %433 = vmatprep.subr.bf16.mxu0 0
        %434 = vmatpush2.bf16.msra.mxu0 0
        %435 = vmatprep.subr.bf16.mxu0 0
        %436 = vmatpush2.bf16.msra.mxu0 0
        %437 = vmatprep.subr.bf16.mxu0 %v384
        %438 = vmatpush2.bf16.msra.mxu0 %v383
        %439 = vmatprep.mubr.bf16.mxu0 %v405
        %440 = vmatmul.mubr.bf16.gmra.mxu0 %v310
        %v441 = vpop.f32.mrf.mxu0
        %v442 = vadd.f32 %v297, %v441
        %v443 = vpop.f32.mrf.mxu0
        %v444 = vadd.f32 %v297, %v443
        %v445 = vpop.f32.mrf.mxu0
        %v446 = vadd.f32 %v302, %v445
        %v447 = vpop.f32.mrf.mxu0
        %v448 = vadd.f32 %v302, %v447
        %449 = vdwg.mxu0
        %v450 = vxor.u32 %v442, 2147483648
        %v451 = vxor.u32 %v444, 2147483648
        %v452 = vxor.u32 %v446, 2147483648
        %v453 = vxor.u32 %v448, 2147483648
        %v454 = vmul.f32 %v450, 1.442695
        %v455 = vpow.pop %v454
        %v456 = vmul.f32 %v451, 1.442695
        %v457 = vpow.pop %v456
        %v458 = vmul.f32 %v452, 1.442695
        %v459 = vpow.pop %v458
        %v460 = vmul.f32 %v453, 1.442695
        %v461 = vpow.pop %v460
        %v462 = vadd.f32 %v455, 1.0
        %v463 = vadd.f32 %v457, 1.0
        %v464 = vadd.f32 %v459, 1.0
        %v465 = vadd.f32 %v461, 1.0
        %v466 = vrcp.pop %v462
        %v467 = vmul.f32 1.0, %v466
        %v468 = vrcp.pop %v463
        %v469 = vmul.f32 1.0, %v468
        %v470 = vrcp.pop %v464
        %v471 = vmul.f32 1.0, %v470
        %v472 = vrcp.pop %v465
        %v473 = vmul.f32 1.0, %v472
        %v474 = vmul.f32 %v442, %v467
        %v475 = vmul.f32 %v444, %v469
        %v476 = vmul.f32 %v446, %v471
        %v477 = vmul.f32 %v448, %v473
        %v478 = vpack.c.bf16 %v476, %v474
        %v479 = vpack.c.bf16 %v477, %v475
        %v482 = vunpack.c.l.b16 %v478
        %v483 = vunpack.c.l.b16 %v479
        %v484 = vunpack.c.h.b16 %v478
        %v485 = vunpack.c.h.b16 %v479
        %v486 = vpack.c.b16 %v483, %v482
        %v487 = vpack.c.b16 %v485, %v484
        %490 = vst [vmem:[%s268] sm:$0xff] %v486
        %491 = vst [vmem:[%s268 + $0x8] sm:$0xff] %v487
        %s492 = sand.u32 %s90, 1
        %s493 = sand.u32 %s90, 1
        %s494 = smul.addr %s493, 16
        %s495 = scalar_lea.vmem [#allocation3], %s494
        // Predicated region
        $region71: #{darknet_forward.18} parent=65 // pred_check
          %p496 = pneg %p100
        $region72: #{darknet_forward.18} parent=65 // pred_check_branch
          %498 = sbr.rel (%p496) target = $region74
        $region73: #{darknet_forward.18} parent=65 // pred_region
          %s499 = smul.u32 2, %s14
          %s500 = smul.addr %s499, 4
          %s501 = scalar_lea.vmem %s3, %s500
          // Predicated region
          $region75: #{darknet_forward.18} parent=73 // pred_check
            _
          $region76: #{darknet_forward.18} parent=73 // pred_check_branch
            %503 = sbr.rel (0) target = $region78
          $region77: #{darknet_forward.18} parent=73 // pred_region
            // Predicated region
            $region79: #{darknet_forward.18} parent=77 // pred_check
              _
            $region80: #{darknet_forward.18} parent=77 // pred_check_branch
              %505 = sbr.rel (0) target = $region82
            $region81: #{darknet_forward.18} parent=77 // pred_region
              // Predicated region
              $region94: #{darknet_forward.18} parent=81 // pred_check
                _
              $region95: #{darknet_forward.18} parent=81 // pred_check_branch
                %523 = sbr.rel (0) target = $region97
              $region96: #{darknet_forward.18} parent=81 // pred_region
                loop: start=0, step=1, limit=1
                $region98: #{darknet_forward.18} parent=96 // loop_pre_header
                  _
                $region99: #{darknet_forward.18} parent=96 // loop_header
                  %s525 = sphi 0, %s529
                  %p526 = scmp.ge.s32.totalorder %s525, 1
                  %s530 = sphi %s495, %s495
                  %s531 = sphi %s501, %s501
                $region100: #{darknet_forward.18} parent=96 // loop_header_branch
                  %528 = sbr.rel (%p526) target = $region104
                $region101: #{darknet_forward.18} parent=96 // loop_body
                  %v532 = vld [vmem:[%s530] sm:$0xff]
                  %533 = vst [vmem:[%s531] sm:$0xff] %v532
                  %v534 = vld [vmem:[%s530 + $0x8] sm:$0xff]
                  %535 = vst [vmem:[%s531 + $0x10] sm:$0xff] %v534
                $region102: #{darknet_forward.18} parent=96 // loop_footer
                  %s529 = sadd.s32 1, %s525
                $region103: #{darknet_forward.18} parent=96 // loop_footer_branch
                  %524 = sbr.rel target = $region99
                $region104: #{darknet_forward.18} parent=96 // loop_exit
                  _
              $region97: #{darknet_forward.18} parent=81 // pred_fallthru
                _
              // Predicated region
              $region105: #{darknet_forward.18} parent=81 // pred_check
                _
              $region106: #{darknet_forward.18} parent=81 // pred_check_branch
                %537 = sbr.rel target = $region108
              $region107: #{darknet_forward.18} parent=81 // pred_region
                _
              $region108: #{darknet_forward.18} parent=81 // pred_fallthru
                _
            $region82: #{darknet_forward.18} parent=77 // pred_fallthru
              _
            // Predicated region
            $region83: #{darknet_forward.18} parent=77 // pred_check
              _
            $region84: #{darknet_forward.18} parent=77 // pred_check_branch
              %507 = sbr.rel target = $region86
            $region85: #{darknet_forward.18} parent=77 // pred_region
              %s509 = ssub.s32 256, 1
              loop: start=0, step=1, limit=1
              $region87: #{darknet_forward.18} parent=85 // loop_pre_header
                _
              $region88: #{darknet_forward.18} parent=85 // loop_header
                %s511 = sphi 0, %s515
                %p512 = scmp.ge.s32.totalorder %s511, 1
                %s516 = sphi %s495, %s495
                %s517 = sphi %s501, %s501
              $region89: #{darknet_forward.18} parent=85 // loop_header_branch
                %514 = sbr.rel (%p512) target = $region93
              $region90: #{darknet_forward.18} parent=85 // loop_body
                %v518 = vld [vmem:[%s516] sm:%s509]
                %519 = vst [vmem:[%s517] sm:%s509] %v518
                %v520 = vld [vmem:[%s516 + $0x8] sm:%s509]
                %521 = vst [vmem:[%s517 + $0x10] sm:%s509] %v520
              $region91: #{darknet_forward.18} parent=85 // loop_footer
                %s515 = sadd.s32 1, %s511
              $region92: #{darknet_forward.18} parent=85 // loop_footer_branch
                %510 = sbr.rel target = $region88
              $region93: #{darknet_forward.18} parent=85 // loop_exit
                _
            $region86: #{darknet_forward.18} parent=77 // pred_fallthru
              _
          $region78: #{darknet_forward.18} parent=73 // pred_fallthru
            _
          %538 = vnop
        $region74: #{darknet_forward.18} parent=65 // pred_fallthru
          _
      $region66: #{darknet_forward.18} parent=5 // pred_fallthru
        _
      %p539 = scmp.le.s32.totalorder 2, %s9
      // Predicated region
      $region109: #{darknet_forward.18} parent=5 // pred_check
        %p540 = pneg %p539
      $region110: #{darknet_forward.18} parent=5 // pred_check_branch
        %542 = sbr.rel (%p540) target = $region112
      $region111: #{darknet_forward.18} parent=5 // pred_region
        %s543 = ssub.s32 %s9, 2
        // Predicated region
        $region113: #{darknet_forward.18} parent=111 // pred_check
          %p544 = pneg %p106
        $region114: #{darknet_forward.18} parent=111 // pred_check_branch
          %546 = sbr.rel (%p544) target = $region116
        $region115: #{darknet_forward.18} parent=111 // pred_region
          %s547 = sand.u32 %s91, 1
          %s548 = sand.u32 %s91, 1
          %s549 = smul.addr %s548, 16
          %s550 = scalar_lea.vmem [#allocation3], %s549
        $region116: #{darknet_forward.18} parent=111 // pred_fallthru
          _
      $region112: #{darknet_forward.18} parent=5 // pred_fallthru
        _
    $region6: #{darknet_forward.18} parent=1 // loop_footer
      %s13 = sadd.s32 1, %s9
    $region7: #{darknet_forward.18} parent=1 // loop_footer_branch
      %8 = sbr.rel target = $region3
    $region8: #{darknet_forward.18} parent=1 // loop_exit
      _

// kernel: darknet_forward.19
$region0: #{darknet_forward.19}
  #allocation0 [shape = 'u32[]', space=smem, size = 0x4, offset = 0x4, fixed_abs, tag = 'smem constant byte address 0x4 - core index']
  #allocation1 [shape = 'u32[144,128]{1,0:T(1,128)}', space=vmem, size = 0x12000, scoped, tag = 'internal scratch']
  %s0 = inlined_call_operand.vmem [shape: bf16[8,16], index: 0, kind: input, shape index: {}]
  %s1 = inlined_call_operand.vmem [shape: bf16[16,512], index: 1, kind: input, shape index: {}]
  %s2 = inlined_call_operand.vmem [shape: f32[8,1], index: 2, kind: input, shape index: {}]
  %s3 = inlined_call_operand.vmem [shape: bf16[8,512], index: 3, kind: output, shape index: {}]
  %s4 = sld [smem:[#allocation0]]
  $region83: #{darknet_forward.19} parent=0
    _
  %s6 = ssub.s32 1, %s4
  %s7 = scalar_select 0, %s6, %s4
  $region1: #{darknet_forward.19} parent=0
    #allocation2 [shape = 'u8[16384]{0}', space=vmem, size = 0x4000, scoped, tag = 'input window, operand 1']
    loop: start=0, step=1, limit=4
    $region2: #{darknet_forward.19} parent=1 // loop_pre_header
      _
    $region3: #{darknet_forward.19} parent=1 // loop_header
      %s9 = sphi 0, %s13
      %p10 = scmp.ge.s32.totalorder %s9, 4
      %s17 = sphi 0, %s17
      %s19 = sphi 0, %s17
      %s20 = sphi 0, %s19
      %s34 = sphi 0, %s20
      %s40 = sphi 0, %s42
      %s43 = sphi 0, %s40
      %s44 = sphi 0, %s43
      %s60 = sphi 0, %s44
      %s64 = sphi 0, %s64
      %s66 = sphi 0, %s64
      %s67 = sphi 0, %s66
      %s81 = sphi 0, %s67
      %s87 = sphi 0, %s89
      %s90 = sphi 0, %s87
      %s91 = sphi 0, %s90
      %s107 = sphi 0, %s91
    $region4: #{darknet_forward.19} parent=1 // loop_header_branch
      %12 = sbr.rel (%p10) target = $region8
    $region5: #{darknet_forward.19} parent=1 // loop_body
      %s14 = ssub.s32 %s9, 1
      %s15 = ssub.s32 %s9, 2
      %s16 = sadd.s32 %s9, 1
      %s18 = sadd.s32 %s17, 1
      %p21 = scmp.eq.s32.totalorder %s9, 1
      %p22 = scmp.ne.s32.totalorder %s17, %s19
      %p23 = scmp.eq.s32.totalorder %s9, 0
      %p24 = por %p22, %p23
      %p25 = scmp.ne.s32.totalorder %s17, %s19
      %p26 = scmp.eq.s32.totalorder %s14, 1
      %p27 = por %p25, %p26
      %p28 = scmp.ne.s32.totalorder %s19, %s20
      %p29 = scmp.eq.s32.totalorder %s14, 0
      %p30 = por %p28, %p29
      %p31 = scmp.ne.s32.totalorder %s19, %s20
      %p32 = scmp.eq.s32.totalorder %s15, 1
      %p33 = por %p31, %p32
      %p35 = scmp.ne.s32.totalorder %s20, %s34
      %p36 = scmp.eq.s32.totalorder %s15, 0
      %p37 = por %p35, %p36
      %s38 = ssub.s32 %s9, %s16
      %p39 = scmp.eq.s32.totalorder %s38, 0
      %s41 = sadd.s32 %s40, 1
      %s42 = scalar_select %p39, %s40, %s41
      %p45 = pneg %p39
      %p46 = scmp.eq.s32.totalorder %s9, 1
      %p47 = por %p45, %p46
      %p48 = scmp.ne.s32.totalorder %s40, %s43
      %p49 = scmp.eq.s32.totalorder %s9, 0
      %p50 = por %p48, %p49
      %p51 = scmp.ne.s32.totalorder %s40, %s43
      %p52 = scmp.eq.s32.totalorder %s14, 1
      %p53 = por %p51, %p52
      %p54 = scmp.ne.s32.totalorder %s43, %s44
      %p55 = scmp.eq.s32.totalorder %s14, 0
      %p56 = por %p54, %p55
      %p57 = scmp.ne.s32.totalorder %s43, %s44
      %p58 = scmp.eq.s32.totalorder %s15, 1
      %p59 = por %p57, %p58
      %p61 = scmp.ne.s32.totalorder %s44, %s60
      %p62 = scmp.eq.s32.totalorder %s15, 0
      %p63 = por %p61, %p62
      %s65 = sadd.s32 %s64, 1
      %p68 = scmp.eq.s32.totalorder %s9, 1
      %p69 = scmp.ne.s32.totalorder %s64, %s66
      %p70 = scmp.eq.s32.totalorder %s9, 0
      %p71 = por %p69, %p70
      %p72 = scmp.ne.s32.totalorder %s64, %s66
      %p73 = scmp.eq.s32.totalorder %s14, 1
      %p74 = por %p72, %p73
      %p75 = scmp.ne.s32.totalorder %s66, %s67
      %p76 = scmp.eq.s32.totalorder %s14, 0
      %p77 = por %p75, %p76
      %p78 = scmp.ne.s32.totalorder %s66, %s67
      %p79 = scmp.eq.s32.totalorder %s15, 1
      %p80 = por %p78, %p79
      %p82 = scmp.ne.s32.totalorder %s67, %s81
      %p83 = scmp.eq.s32.totalorder %s15, 0
      %p84 = por %p82, %p83
      %s85 = ssub.s32 %s9, %s16
      %p86 = scmp.eq.s32.totalorder %s85, 0
      %s88 = sadd.s32 %s87, 1
      %s89 = scalar_select %p86, %s87, %s88
      %p92 = pneg %p86
      %p93 = scmp.eq.s32.totalorder %s9, 1
      %p94 = por %p92, %p93
      %p95 = scmp.ne.s32.totalorder %s87, %s90
      %p96 = scmp.eq.s32.totalorder %s9, 0
      %p97 = por %p95, %p96
      %p98 = scmp.ne.s32.totalorder %s87, %s90
      %p99 = scmp.eq.s32.totalorder %s14, 1
      %p100 = por %p98, %p99
      %p101 = scmp.ne.s32.totalorder %s90, %s91
      %p102 = scmp.eq.s32.totalorder %s14, 0
      %p103 = por %p101, %p102
      %p104 = scmp.ne.s32.totalorder %s90, %s91
      %p105 = scmp.eq.s32.totalorder %s15, 1
      %p106 = por %p104, %p105
      %p108 = scmp.ne.s32.totalorder %s91, %s107
      %p109 = scmp.eq.s32.totalorder %s15, 0
      %p110 = por %p108, %p109
      %p111 = scmp.le.s32.totalorder 1, %s9
      %p112 = scmp.lt.s32.totalorder %s9, 3
      %p113 = pnand %p111, %p112
      %p114 = pneg %p113
      // Predicated region
      $region9: #{darknet_forward.19} parent=5 // pred_check
        _
      $region10: #{darknet_forward.19} parent=5 // pred_check_branch
        %116 = sbr.rel (%p113) target = $region12
      $region11: #{darknet_forward.19} parent=5 // pred_region
        %s117 = ssub.s32 %s9, 1
        // Predicated region
        $region13: #{darknet_forward.19} parent=11 // pred_check
          %p118 = pneg %p30
        $region14: #{darknet_forward.19} parent=11 // pred_check_branch
          %120 = sbr.rel (%p118) target = $region16
        $region15: #{darknet_forward.19} parent=11 // pred_region
          _
        $region16: #{darknet_forward.19} parent=11 // pred_fallthru
          _
        // Predicated region
        $region17: #{darknet_forward.19} parent=11 // pred_check
          %p121 = pneg %p77
        $region18: #{darknet_forward.19} parent=11 // pred_check_branch
          %123 = sbr.rel (%p121) target = $region20
        $region19: #{darknet_forward.19} parent=11 // pred_region
          _
        $region20: #{darknet_forward.19} parent=11 // pred_fallthru
          _
      $region12: #{darknet_forward.19} parent=5 // pred_fallthru
        _
      %p124 = scmp.lt.s32.totalorder %s9, 2
      // Predicated region
      $region21: #{darknet_forward.19} parent=5 // pred_check
        %p125 = pneg %p124
      $region22: #{darknet_forward.19} parent=5 // pred_check_branch
        %127 = sbr.rel (%p125) target = $region24
      $region23: #{darknet_forward.19} parent=5 // pred_region
        // Predicated region
        $region25: #{darknet_forward.19} parent=23 // pred_check
          %p128 = pneg %p50
        $region26: #{darknet_forward.19} parent=23 // pred_check_branch
          %130 = sbr.rel (%p128) target = $region28
        $region27: #{darknet_forward.19} parent=23 // pred_region
          %s131 = sand.u32 %s40, 1
          %s132 = sand.u32 %s40, 1
          %s133 = smul.addr %s132, 16
          %s134 = scalar_lea.vmem [#allocation2], %s133
          %s135 = smul.u32 2, %s9
          %s136 = smul.addr %s135, 4
          %s137 = scalar_lea.vmem %s1, %s136
          // Predicated region
          $region29: #{darknet_forward.19} parent=27 // pred_check
            _
          $region30: #{darknet_forward.19} parent=27 // pred_check_branch
            %139 = sbr.rel (0) target = $region32
          $region31: #{darknet_forward.19} parent=27 // pred_region
            // Predicated region
            $region33: #{darknet_forward.19} parent=31 // pred_check
              _
            $region34: #{darknet_forward.19} parent=31 // pred_check_branch
              %141 = sbr.rel (0) target = $region36
            $region35: #{darknet_forward.19} parent=31 // pred_region
              // Predicated region
              $region48: #{darknet_forward.19} parent=35 // pred_check
                _
              $region49: #{darknet_forward.19} parent=35 // pred_check_branch
                %159 = sbr.rel (0) target = $region51
              $region50: #{darknet_forward.19} parent=35 // pred_region
                loop: start=0, step=1, limit=1
                $region52: #{darknet_forward.19} parent=50 // loop_pre_header
                  _
                $region53: #{darknet_forward.19} parent=50 // loop_header
                  %s161 = sphi 0, %s165
                  %p162 = scmp.ge.s32.totalorder %s161, 1
                  %s166 = sphi %s137, %s137
                  %s167 = sphi %s134, %s134
                $region54: #{darknet_forward.19} parent=50 // loop_header_branch
                  %164 = sbr.rel (%p162) target = $region58
                $region55: #{darknet_forward.19} parent=50 // loop_body
                  %v168 = vld [vmem:[%s166] sm:$0xff]
                  %169 = vst [vmem:[%s167] sm:$0xff] %v168
                  %v170 = vld [vmem:[%s166 + $0x10] sm:$0xff]
                  %171 = vst [vmem:[%s167 + $0x8] sm:$0xff] %v170
                $region56: #{darknet_forward.19} parent=50 // loop_footer
                  %s165 = sadd.s32 1, %s161
                $region57: #{darknet_forward.19} parent=50 // loop_footer_branch
                  %160 = sbr.rel target = $region53
                $region58: #{darknet_forward.19} parent=50 // loop_exit
                  _
              $region51: #{darknet_forward.19} parent=35 // pred_fallthru
                _
              // Predicated region
              $region59: #{darknet_forward.19} parent=35 // pred_check
                _
              $region60: #{darknet_forward.19} parent=35 // pred_check_branch
                %173 = sbr.rel target = $region62
              $region61: #{darknet_forward.19} parent=35 // pred_region
                _
              $region62: #{darknet_forward.19} parent=35 // pred_fallthru
                _
            $region36: #{darknet_forward.19} parent=31 // pred_fallthru
              _
            // Predicated region
            $region37: #{darknet_forward.19} parent=31 // pred_check
              _
            $region38: #{darknet_forward.19} parent=31 // pred_check_branch
              %143 = sbr.rel target = $region40
            $region39: #{darknet_forward.19} parent=31 // pred_region
              %s145 = ssub.s32 256, 1
              loop: start=0, step=1, limit=1
              $region41: #{darknet_forward.19} parent=39 // loop_pre_header
                _
              $region42: #{darknet_forward.19} parent=39 // loop_header
                %s147 = sphi 0, %s151
                %p148 = scmp.ge.s32.totalorder %s147, 1
                %s152 = sphi %s137, %s137
                %s153 = sphi %s134, %s134
              $region43: #{darknet_forward.19} parent=39 // loop_header_branch
                %150 = sbr.rel (%p148) target = $region47
              $region44: #{darknet_forward.19} parent=39 // loop_body
                %v154 = vld [vmem:[%s152] sm:%s145]
                %155 = vst [vmem:[%s153] sm:%s145] %v154
                %v156 = vld [vmem:[%s152 + $0x10] sm:%s145]
                %157 = vst [vmem:[%s153 + $0x8] sm:%s145] %v156
              $region45: #{darknet_forward.19} parent=39 // loop_footer
                %s151 = sadd.s32 1, %s147
              $region46: #{darknet_forward.19} parent=39 // loop_footer_branch
                %146 = sbr.rel target = $region42
              $region47: #{darknet_forward.19} parent=39 // loop_exit
                _
            $region40: #{darknet_forward.19} parent=31 // pred_fallthru
              _
          $region32: #{darknet_forward.19} parent=27 // pred_fallthru
            _
          %174 = vnop
        $region28: #{darknet_forward.19} parent=23 // pred_fallthru
          _
      $region24: #{darknet_forward.19} parent=5 // pred_fallthru
        _
      %p175 = scmp.le.s32.totalorder 1, %s9
      %p176 = scmp.lt.s32.totalorder %s9, 3
      %p177 = pnand %p175, %p176
      %p178 = pneg %p177
      // Predicated region
      $region63: #{darknet_forward.19} parent=5 // pred_check
        _
      $region64: #{darknet_forward.19} parent=5 // pred_check_branch
        %180 = sbr.rel (%p177) target = $region66
      $region65: #{darknet_forward.19} parent=5 // pred_region
        %s181 = ssub.s32 %s9, 1
        %s182 = sand.u32 %s43, 1
        %s183 = sand.u32 %s43, 1
        %s184 = smul.addr %s183, 16
        %s185 = scalar_lea.vmem [#allocation2], %s184
        // Predicated region
        $region67: #{darknet_forward.19} parent=65 // pred_check
          %p186 = pneg %p56
        $region68: #{darknet_forward.19} parent=65 // pred_check_branch
          %188 = sbr.rel (%p186) target = $region70
        $region69: #{darknet_forward.19} parent=65 // pred_region
          _
        $region70: #{darknet_forward.19} parent=65 // pred_fallthru
          _
        %p189 = pneg %p30
        %p190 = pneg %p27
        %s191 = sand.u32 %s43, 1
        %s192 = sand.u32 %s43, 1
        %s193 = smul.addr %s192, 16
        %s194 = scalar_lea.vmem [#allocation2], %s193
        %p195 = pneg %p56
        %p196 = pneg %p53
        %p197 = pneg %p77
        %p198 = pneg %p74
        %p199 = pneg %p103
        %p200 = pneg %p100
        %s201 = smul.u32 2, %s14
        %p202 = scmp.lt.s32.totalorder %s201, 3
        %s203 = scalar_select %p202, %s201, 3
        %s204 = smul.addr %s203, 4
        %s205 = scalar_lea.vmem %s3, %s204
        %s206 = smul.u32 2, %s14
        %s207 = smul.u32 2, %s14
        %p208 = scmp.lt.s32.totalorder %s207, 3
        %s209 = scalar_select %p208, %s207, 3
        %s210 = smul.addr %s209, 4
        %s211 = scalar_lea.vmem %s3, %s210
        %s212 = smul.u32 2, %s14
        %v214 = vld [vmem:[%s0] sm:$0xf]
        %v215 = vld [vmem:[%s185] sm:$0xff]
        %v216 = vld [vmem:[%s185 + $0x8] sm:$0xff]
        %v217 = vld [vmem:[%s2] sm:$0xff]
        %219 = vset.pattern.permute.xlu0 0
        %220 = vperm.xlu0 %219, %v217
        %v221 = vpop.permute.xlu0 %220
        %v225 = vunpack.c.l.b16 %v215
        %v226 = vunpack.c.h.b16 %v215
        %v227 = vunpack.c.l.b16 %v216
        %v228 = vunpack.c.h.b16 %v216
        %v229 = vpack.c.b16 %v227, %v225
        %v230 = vpack.c.b16 %v228, %v226
        %vm233 = vcmask 130048
        %v235 = vsel %vm233, %v214, 0
        %237 = vmatprep.subr.bf16.mxu0 0
        %238 = vmatpush1.bf16.msra.mxu0 0
        %239 = vmatprep.subr.bf16.mxu0 0
        %240 = vmatpush1.bf16.msra.mxu0 0
        %241 = vmatprep.subr.bf16.mxu0 0
        %242 = vmatpush1.bf16.msra.mxu0 0
        %243 = vmatprep.subr.bf16.mxu0 0
        %244 = vmatpush1.bf16.msra.mxu0 0
        %245 = vmatprep.subr.bf16.mxu0 0
        %246 = vmatpush1.bf16.msra.mxu0 0
        %247 = vmatprep.subr.bf16.mxu0 0
        %248 = vmatpush1.bf16.msra.mxu0 0
        %249 = vmatprep.subr.bf16.mxu0 0
        %250 = vmatpush1.bf16.msra.mxu0 0
        %251 = vmatprep.subr.bf16.mxu0 %v230
        %252 = vmatpush1.bf16.msra.mxu0 %v229
        %253 = vmatprep.subr.bf16.mxu0 0
        %254 = vmatpush2.bf16.msra.mxu0 0
        %255 = vmatprep.subr.bf16.mxu0 0
        %256 = vmatpush2.bf16.msra.mxu0 0
        %257 = vmatprep.subr.bf16.mxu0 0
        %258 = vmatpush2.bf16.msra.mxu0 0
        %259 = vmatprep.subr.bf16.mxu0 0
        %260 = vmatpush2.bf16.msra.mxu0 0
        %261 = vmatprep.subr.bf16.mxu0 0
        %262 = vmatpush2.bf16.msra.mxu0 0
        %263 = vmatprep.subr.bf16.mxu0 0
        %264 = vmatpush2.bf16.msra.mxu0 0
        %265 = vmatprep.subr.bf16.mxu0 0
        %266 = vmatpush2.bf16.msra.mxu0 0
        %267 = vmatprep.subr.bf16.mxu0 0
        %268 = vmatpush2.bf16.msra.mxu0 0
        %269 = vmatprep.mubr.bf16.mxu0 0
        %270 = vmatmul.mubr.bf16.gmra.mxu0 %v235
        %v271 = vpop.f32.mrf.mxu0
        %v272 = vadd.f32 %v221, %v271
        %v273 = vpop.f32.mrf.mxu0
        %v274 = vadd.f32 %v221, %v273
        %v275 = vpop.f32.mrf.mxu0
        %v276 = vpop.f32.mrf.mxu0
        %277 = vdwg.mxu0
        %v278 = vxor.u32 %v272, 2147483648
        %v279 = vxor.u32 %v274, 2147483648
        %v280 = vmul.f32 %v278, 1.442695
        %v281 = vpow.pop %v280
        %v282 = vmul.f32 %v279, 1.442695
        %v283 = vpow.pop %v282
        %v284 = vadd.f32 %v281, 1.0
        %v285 = vadd.f32 %v283, 1.0
        %v286 = vrcp.pop %v284
        %v287 = vmul.f32 1.0, %v286
        %v288 = vrcp.pop %v285
        %v289 = vmul.f32 1.0, %v288
        %v290 = vmul.f32 %v272, %v287
        %v291 = vmul.f32 %v274, %v289
        %v292 = vpack.c.bf16 %v290, %v290
        %v293 = vpack.c.bf16 %v291, %v291
        %v296 = vunpack.c.l.b16 %v292
        %v297 = vunpack.c.l.b16 %v293
        %v298 = vpack.c.b16 %v297, %v296
        %300 = vst [vmem:[%s211] sm:$0xff] %v298
        %s301 = smul.u32 2, %s14
        %p302 = scmp.lt.s32.totalorder %s301, 3
        %s303 = scalar_select %p302, %s301, 3
        %s304 = smul.addr %s303, 4
        %s305 = scalar_lea.vmem %s3, %s304
        // Predicated region
        $region71: #{darknet_forward.19} parent=65 // pred_check
          %p306 = pneg %p100
        $region72: #{darknet_forward.19} parent=65 // pred_check_branch
          %308 = sbr.rel (%p306) target = $region74
        $region73: #{darknet_forward.19} parent=65 // pred_region
          %s309 = smul.u32 2, %s14
        $region74: #{darknet_forward.19} parent=65 // pred_fallthru
          _
      $region66: #{darknet_forward.19} parent=5 // pred_fallthru
        _
      %p310 = scmp.le.s32.totalorder 2, %s9
      // Predicated region
      $region75: #{darknet_forward.19} parent=5 // pred_check
        %p311 = pneg %p310
      $region76: #{darknet_forward.19} parent=5 // pred_check_branch
        %313 = sbr.rel (%p311) target = $region78
      $region77: #{darknet_forward.19} parent=5 // pred_region
        %s314 = ssub.s32 %s9, 2
        // Predicated region
        $region79: #{darknet_forward.19} parent=77 // pred_check
          %p315 = pneg %p106
        $region80: #{darknet_forward.19} parent=77 // pred_check_branch
          %317 = sbr.rel (%p315) target = $region82
        $region81: #{darknet_forward.19} parent=77 // pred_region
          %s318 = smul.u32 2, %s15
          %p319 = scmp.lt.s32.totalorder %s318, 3
          %s320 = scalar_select %p319, %s318, 3
          %s321 = smul.addr %s320, 4
          %s322 = scalar_lea.vmem %s3, %s321
        $region82: #{darknet_forward.19} parent=77 // pred_fallthru
          _
      $region78: #{darknet_forward.19} parent=5 // pred_fallthru
        _
    $region6: #{darknet_forward.19} parent=1 // loop_footer
      %s13 = sadd.s32 1, %s9
    $region7: #{darknet_forward.19} parent=1 // loop_footer_branch
      %8 = sbr.rel target = $region3
    $region8: #{darknet_forward.19} parent=1 // loop_exit
      _

// kernel: darknet_forward.20
$region0: #{darknet_forward.20}
  #allocation0 [shape = 'u32[]', space=smem, size = 0x4, offset = 0x4, fixed_abs, tag = 'smem constant byte address 0x4 - core index']
  #allocation1 [shape = 'u32[144,128]{1,0:T(1,128)}', space=vmem, size = 0x12000, scoped, tag = 'internal scratch']
  %s0 = inlined_call_operand.vmem [shape: bf16[16,72], index: 0, kind: input, shape index: {}]
  %s1 = inlined_call_operand.vmem [shape: bf16[72,512], index: 1, kind: input, shape index: {}]
  %s2 = inlined_call_operand.vmem [shape: f32[16,1], index: 2, kind: input, shape index: {}]
  %s3 = inlined_call_operand.vmem [shape: bf16[16,512], index: 3, kind: input, shape index: {}]
  %s4 = inlined_call_operand.vmem [shape: bf16[16,512], index: 4, kind: output, shape index: {}]
  %s5 = sld [smem:[#allocation0]]
  $region159: #{darknet_forward.20} parent=0
    _
  %s7 = ssub.s32 1, %s5
  %s8 = scalar_select 0, %s7, %s5
  $region1: #{darknet_forward.20} parent=0
    #allocation2 [shape = 'u8[73728]{0}', space=vmem, size = 0x12000, scoped, tag = 'input window, operand 1']
    #allocation3 [shape = 'u8[16384]{0}', space=vmem, size = 0x4000, scoped, tag = 'input window, operand 3']
    #allocation4 [shape = 'u8[16384]{0}', space=vmem, size = 0x4000, scoped, tag = 'output window, operand 0']
    loop: start=0, step=1, limit=4
    $region2: #{darknet_forward.20} parent=1 // loop_pre_header
      _
    $region3: #{darknet_forward.20} parent=1 // loop_header
      %s10 = sphi 0, %s14
      %p11 = scmp.ge.s32.totalorder %s10, 4
      %s18 = sphi 0, %s18
      %s20 = sphi 0, %s18
      %s21 = sphi 0, %s20
      %s35 = sphi 0, %s21
      %s41 = sphi 0, %s43
      %s44 = sphi 0, %s41
      %s45 = sphi 0, %s44
      %s61 = sphi 0, %s45
      %s65 = sphi 0, %s65
      %s67 = sphi 0, %s65
      %s68 = sphi 0, %s67
      %s82 = sphi 0, %s68
      %s88 = sphi 0, %s90
      %s91 = sphi 0, %s88
      %s92 = sphi 0, %s91
      %s108 = sphi 0, %s92
      %s114 = sphi 0, %s116
      %s117 = sphi 0, %s114
      %s118 = sphi 0, %s117
      %s134 = sphi 0, %s118
    $region4: #{darknet_forward.20} parent=1 // loop_header_branch
      %13 = sbr.rel (%p11) target = $region8
    $region5: #{darknet_forward.20} parent=1 // loop_body
      %s15 = ssub.s32 %s10, 1
      %s16 = ssub.s32 %s10, 2
      %s17 = sadd.s32 %s10, 1
      %s19 = sadd.s32 %s18, 1
      %p22 = scmp.eq.s32.totalorder %s10, 1
      %p23 = scmp.ne.s32.totalorder %s18, %s20
      %p24 = scmp.eq.s32.totalorder %s10, 0
      %p25 = por %p23, %p24
      %p26 = scmp.ne.s32.totalorder %s18, %s20
      %p27 = scmp.eq.s32.totalorder %s15, 1
      %p28 = por %p26, %p27
      %p29 = scmp.ne.s32.totalorder %s20, %s21
      %p30 = scmp.eq.s32.totalorder %s15, 0
      %p31 = por %p29, %p30
      %p32 = scmp.ne.s32.totalorder %s20, %s21
      %p33 = scmp.eq.s32.totalorder %s16, 1
      %p34 = por %p32, %p33
      %p36 = scmp.ne.s32.totalorder %s21, %s35
      %p37 = scmp.eq.s32.totalorder %s16, 0
      %p38 = por %p36, %p37
      %s39 = ssub.s32 %s10, %s17
      %p40 = scmp.eq.s32.totalorder %s39, 0
      %s42 = sadd.s32 %s41, 1
      %s43 = scalar_select %p40, %s41, %s42
      %p46 = pneg %p40
      %p47 = scmp.eq.s32.totalorder %s10, 1
      %p48 = por %p46, %p47
      %p49 = scmp.ne.s32.totalorder %s41, %s44
      %p50 = scmp.eq.s32.totalorder %s10, 0
      %p51 = por %p49, %p50
      %p52 = scmp.ne.s32.totalorder %s41, %s44
      %p53 = scmp.eq.s32.totalorder %s15, 1
      %p54 = por %p52, %p53
      %p55 = scmp.ne.s32.totalorder %s44, %s45
      %p56 = scmp.eq.s32.totalorder %s15, 0
      %p57 = por %p55, %p56
      %p58 = scmp.ne.s32.totalorder %s44, %s45
      %p59 = scmp.eq.s32.totalorder %s16, 1
      %p60 = por %p58, %p59
      %p62 = scmp.ne.s32.totalorder %s45, %s61
      %p63 = scmp.eq.s32.totalorder %s16, 0
      %p64 = por %p62, %p63
      %s66 = sadd.s32 %s65, 1
      %p69 = scmp.eq.s32.totalorder %s10, 1
      %p70 = scmp.ne.s32.totalorder %s65, %s67
      %p71 = scmp.eq.s32.totalorder %s10, 0
      %p72 = por %p70, %p71
      %p73 = scmp.ne.s32.totalorder %s65, %s67
      %p74 = scmp.eq.s32.totalorder %s15, 1
      %p75 = por %p73, %p74
      %p76 = scmp.ne.s32.totalorder %s67, %s68
      %p77 = scmp.eq.s32.totalorder %s15, 0
      %p78 = por %p76, %p77
      %p79 = scmp.ne.s32.totalorder %s67, %s68
      %p80 = scmp.eq.s32.totalorder %s16, 1
      %p81 = por %p79, %p80
      %p83 = scmp.ne.s32.totalorder %s68, %s82
      %p84 = scmp.eq.s32.totalorder %s16, 0
      %p85 = por %p83, %p84
      %s86 = ssub.s32 %s10, %s17
      %p87 = scmp.eq.s32.totalorder %s86, 0
      %s89 = sadd.s32 %s88, 1
      %s90 = scalar_select %p87, %s88, %s89
      %p93 = pneg %p87
      %p94 = scmp.eq.s32.totalorder %s10, 1
      %p95 = por %p93, %p94
      %p96 = scmp.ne.s32.totalorder %s88, %s91
      %p97 = scmp.eq.s32.totalorder %s10, 0
      %p98 = por %p96, %p97
      %p99 = scmp.ne.s32.totalorder %s88, %s91
      %p100 = scmp.eq.s32.totalorder %s15, 1
      %p101 = por %p99, %p100
      %p102 = scmp.ne.s32.totalorder %s91, %s92
      %p103 = scmp.eq.s32.totalorder %s15, 0
      %p104 = por %p102, %p103
      %p105 = scmp.ne.s32.totalorder %s91, %s92
      %p106 = scmp.eq.s32.totalorder %s16, 1
      %p107 = por %p105, %p106
      %p109 = scmp.ne.s32.totalorder %s92, %s108
      %p110 = scmp.eq.s32.totalorder %s16, 0
      %p111 = por %p109, %p110
      %s112 = ssub.s32 %s10, %s17
      %p113 = scmp.eq.s32.totalorder %s112, 0
      %s115 = sadd.s32 %s114, 1
      %s116 = scalar_select %p113, %s114, %s115
      %p119 = pneg %p113
      %p120 = scmp.eq.s32.totalorder %s10, 1
      %p121 = por %p119, %p120
      %p122 = scmp.ne.s32.totalorder %s114, %s117
      %p123 = scmp.eq.s32.totalorder %s10, 0
      %p124 = por %p122, %p123
      %p125 = scmp.ne.s32.totalorder %s114, %s117
      %p126 = scmp.eq.s32.totalorder %s15, 1
      %p127 = por %p125, %p126
      %p128 = scmp.ne.s32.totalorder %s117, %s118
      %p129 = scmp.eq.s32.totalorder %s15, 0
      %p130 = por %p128, %p129
      %p131 = scmp.ne.s32.totalorder %s117, %s118
      %p132 = scmp.eq.s32.totalorder %s16, 1
      %p133 = por %p131, %p132
      %p135 = scmp.ne.s32.totalorder %s118, %s134
      %p136 = scmp.eq.s32.totalorder %s16, 0
      %p137 = por %p135, %p136
      %p138 = scmp.le.s32.totalorder 1, %s10
      %p139 = scmp.lt.s32.totalorder %s10, 3
      %p140 = pnand %p138, %p139
      %p141 = pneg %p140
      // Predicated region
      $region9: #{darknet_forward.20} parent=5 // pred_check
        _
      $region10: #{darknet_forward.20} parent=5 // pred_check_branch
        %143 = sbr.rel (%p140) target = $region12
      $region11: #{darknet_forward.20} parent=5 // pred_region
        %s144 = ssub.s32 %s10, 1
        // Predicated region
        $region13: #{darknet_forward.20} parent=11 // pred_check
          %p145 = pneg %p31
        $region14: #{darknet_forward.20} parent=11 // pred_check_branch
          %147 = sbr.rel (%p145) target = $region16
        $region15: #{darknet_forward.20} parent=11 // pred_region
          _
        $region16: #{darknet_forward.20} parent=11 // pred_fallthru
          _
        // Predicated region
        $region17: #{darknet_forward.20} parent=11 // pred_check
          %p148 = pneg %p78
        $region18: #{darknet_forward.20} parent=11 // pred_check_branch
          %150 = sbr.rel (%p148) target = $region20
        $region19: #{darknet_forward.20} parent=11 // pred_region
          _
        $region20: #{darknet_forward.20} parent=11 // pred_fallthru
          _
      $region12: #{darknet_forward.20} parent=5 // pred_fallthru
        _
      %p151 = scmp.lt.s32.totalorder %s10, 2
      // Predicated region
      $region21: #{darknet_forward.20} parent=5 // pred_check
        %p152 = pneg %p151
      $region22: #{darknet_forward.20} parent=5 // pred_check_branch
        %154 = sbr.rel (%p152) target = $region24
      $region23: #{darknet_forward.20} parent=5 // pred_region
        // Predicated region
        $region25: #{darknet_forward.20} parent=23 // pred_check
          %p155 = pneg %p51
        $region26: #{darknet_forward.20} parent=23 // pred_check_branch
          %157 = sbr.rel (%p155) target = $region28
        $region27: #{darknet_forward.20} parent=23 // pred_region
          %s158 = sand.u32 %s41, 1
          %s159 = sand.u32 %s41, 1
          %s160 = smul.addr %s159, 72
          %s161 = scalar_lea.vmem [#allocation2], %s160
          %s162 = smul.u32 2, %s10
          %s163 = smul.addr %s162, 4
          %s164 = scalar_lea.vmem %s1, %s163
          // Predicated region
          $region29: #{darknet_forward.20} parent=27 // pred_check
            _
          $region30: #{darknet_forward.20} parent=27 // pred_check_branch
            %166 = sbr.rel (0) target = $region32
          $region31: #{darknet_forward.20} parent=27 // pred_region
            // Predicated region
            $region33: #{darknet_forward.20} parent=31 // pred_check
              _
            $region34: #{darknet_forward.20} parent=31 // pred_check_branch
              %168 = sbr.rel (0) target = $region36
            $region35: #{darknet_forward.20} parent=31 // pred_region
              // Predicated region
              $region48: #{darknet_forward.20} parent=35 // pred_check
                _
              $region49: #{darknet_forward.20} parent=35 // pred_check_branch
                %200 = sbr.rel (0) target = $region51
              $region50: #{darknet_forward.20} parent=35 // pred_region
                loop: start=0, step=1, limit=1
                $region52: #{darknet_forward.20} parent=50 // loop_pre_header
                  _
                $region53: #{darknet_forward.20} parent=50 // loop_header
                  %s202 = sphi 0, %s206
                  %p203 = scmp.ge.s32.totalorder %s202, 1
                  %s207 = sphi %s164, %s164
                  %s208 = sphi %s161, %s161
                $region54: #{darknet_forward.20} parent=50 // loop_header_branch
                  %205 = sbr.rel (%p203) target = $region58
                $region55: #{darknet_forward.20} parent=50 // loop_body
                  %v209 = vld [vmem:[%s207] sm:$0xff]
                  %210 = vst [vmem:[%s208] sm:$0xff] %v209
                  %v211 = vld [vmem:[%s207 + $0x10] sm:$0xff]
                  %212 = vst [vmem:[%s208 + $0x8] sm:$0xff] %v211
                  %v213 = vld [vmem:[%s207 + $0x20] sm:$0xff]
                  %214 = vst [vmem:[%s208 + $0x10] sm:$0xff] %v213
                  %v215 = vld [vmem:[%s207 + $0x30] sm:$0xff]
                  %216 = vst [vmem:[%s208 + $0x18] sm:$0xff] %v215
                  %v217 = vld [vmem:[%s207 + $0x40] sm:$0xff]
                  %218 = vst [vmem:[%s208 + $0x20] sm:$0xff] %v217
                  %v219 = vld [vmem:[%s207 + $0x50] sm:$0xff]
                  %220 = vst [vmem:[%s208 + $0x28] sm:$0xff] %v219
                  %v221 = vld [vmem:[%s207 + $0x60] sm:$0xff]
                  %222 = vst [vmem:[%s208 + $0x30] sm:$0xff] %v221
                  %v223 = vld [vmem:[%s207 + $0x70] sm:$0xff]
                  %224 = vst [vmem:[%s208 + $0x38] sm:$0xff] %v223
                  %v225 = vld [vmem:[%s207 + $0x80] sm:$0xff]
                  %226 = vst [vmem:[%s208 + $0x40] sm:$0xff] %v225
                $region56: #{darknet_forward.20} parent=50 // loop_footer
                  %s206 = sadd.s32 1, %s202
                $region57: #{darknet_forward.20} parent=50 // loop_footer_branch
                  %201 = sbr.rel target = $region53
                $region58: #{darknet_forward.20} parent=50 // loop_exit
                  _
              $region51: #{darknet_forward.20} parent=35 // pred_fallthru
                _
              // Predicated region
              $region59: #{darknet_forward.20} parent=35 // pred_check
                _
              $region60: #{darknet_forward.20} parent=35 // pred_check_branch
                %228 = sbr.rel target = $region62
              $region61: #{darknet_forward.20} parent=35 // pred_region
                _
              $region62: #{darknet_forward.20} parent=35 // pred_fallthru
                _
            $region36: #{darknet_forward.20} parent=31 // pred_fallthru
              _
            // Predicated region
            $region37: #{darknet_forward.20} parent=31 // pred_check
              _
            $region38: #{darknet_forward.20} parent=31 // pred_check_branch
              %170 = sbr.rel target = $region40
            $region39: #{darknet_forward.20} parent=31 // pred_region
              %s172 = ssub.s32 256, 1
              loop: start=0, step=1, limit=1
              $region41: #{darknet_forward.20} parent=39 // loop_pre_header
                _
              $region42: #{darknet_forward.20} parent=39 // loop_header
                %s174 = sphi 0, %s178
                %p175 = scmp.ge.s32.totalorder %s174, 1
                %s179 = sphi %s164, %s164
                %s180 = sphi %s161, %s161
              $region43: #{darknet_forward.20} parent=39 // loop_header_branch
                %177 = sbr.rel (%p175) target = $region47
              $region44: #{darknet_forward.20} parent=39 // loop_body
                %v181 = vld [vmem:[%s179] sm:%s172]
                %182 = vst [vmem:[%s180] sm:%s172] %v181
                %v183 = vld [vmem:[%s179 + $0x10] sm:%s172]
                %184 = vst [vmem:[%s180 + $0x8] sm:%s172] %v183
                %v185 = vld [vmem:[%s179 + $0x20] sm:%s172]
                %186 = vst [vmem:[%s180 + $0x10] sm:%s172] %v185
                %v187 = vld [vmem:[%s179 + $0x30] sm:%s172]
                %188 = vst [vmem:[%s180 + $0x18] sm:%s172] %v187
                %v189 = vld [vmem:[%s179 + $0x40] sm:%s172]
                %190 = vst [vmem:[%s180 + $0x20] sm:%s172] %v189
                %v191 = vld [vmem:[%s179 + $0x50] sm:%s172]
                %192 = vst [vmem:[%s180 + $0x28] sm:%s172] %v191
                %v193 = vld [vmem:[%s179 + $0x60] sm:%s172]
                %194 = vst [vmem:[%s180 + $0x30] sm:%s172] %v193
                %v195 = vld [vmem:[%s179 + $0x70] sm:%s172]
                %196 = vst [vmem:[%s180 + $0x38] sm:%s172] %v195
                %v197 = vld [vmem:[%s179 + $0x80] sm:%s172]
                %198 = vst [vmem:[%s180 + $0x40] sm:%s172] %v197
              $region45: #{darknet_forward.20} parent=39 // loop_footer
                %s178 = sadd.s32 1, %s174
              $region46: #{darknet_forward.20} parent=39 // loop_footer_branch
                %173 = sbr.rel target = $region42
              $region47: #{darknet_forward.20} parent=39 // loop_exit
                _
            $region40: #{darknet_forward.20} parent=31 // pred_fallthru
              _
          $region32: #{darknet_forward.20} parent=27 // pred_fallthru
            _
          %229 = vnop
        $region28: #{darknet_forward.20} parent=23 // pred_fallthru
          _
        // Predicated region
        $region63: #{darknet_forward.20} parent=23 // pred_check
          %p230 = pneg %p98
        $region64: #{darknet_forward.20} parent=23 // pred_check_branch
          %232 = sbr.rel (%p230) target = $region66
        $region65: #{darknet_forward.20} parent=23 // pred_region
          %s233 = sand.u32 %s88, 1
          %s234 = sand.u32 %s88, 1
          %s235 = smul.addr %s234, 16
          %s236 = scalar_lea.vmem [#allocation3], %s235
          %s237 = smul.u32 2, %s10
          %s238 = smul.addr %s237, 4
          %s239 = scalar_lea.vmem %s3, %s238
          // Predicated region
          $region67: #{darknet_forward.20} parent=65 // pred_check
            _
          $region68: #{darknet_forward.20} parent=65 // pred_check_branch
            %241 = sbr.rel (0) target = $region70
          $region69: #{darknet_forward.20} parent=65 // pred_region
            // Predicated region
            $region71: #{darknet_forward.20} parent=69 // pred_check
              _
            $region72: #{darknet_forward.20} parent=69 // pred_check_branch
              %243 = sbr.rel (0) target = $region74
            $region73: #{darknet_forward.20} parent=69 // pred_region
              // Predicated region
              $region86: #{darknet_forward.20} parent=73 // pred_check
                _
              $region87: #{darknet_forward.20} parent=73 // pred_check_branch
                %261 = sbr.rel (0) target = $region89
              $region88: #{darknet_forward.20} parent=73 // pred_region
                loop: start=0, step=1, limit=1
                $region90: #{darknet_forward.20} parent=88 // loop_pre_header
                  _
                $region91: #{darknet_forward.20} parent=88 // loop_header
                  %s263 = sphi 0, %s267
                  %p264 = scmp.ge.s32.totalorder %s263, 1
                  %s268 = sphi %s239, %s239
                  %s269 = sphi %s236, %s236
                $region92: #{darknet_forward.20} parent=88 // loop_header_branch
                  %266 = sbr.rel (%p264) target = $region96
                $region93: #{darknet_forward.20} parent=88 // loop_body
                  %v270 = vld [vmem:[%s268] sm:$0xff]
                  %271 = vst [vmem:[%s269] sm:$0xff] %v270
                  %v272 = vld [vmem:[%s268 + $0x10] sm:$0xff]
                  %273 = vst [vmem:[%s269 + $0x8] sm:$0xff] %v272
                $region94: #{darknet_forward.20} parent=88 // loop_footer
                  %s267 = sadd.s32 1, %s263
                $region95: #{darknet_forward.20} parent=88 // loop_footer_branch
                  %262 = sbr.rel target = $region91
                $region96: #{darknet_forward.20} parent=88 // loop_exit
                  _
              $region89: #{darknet_forward.20} parent=73 // pred_fallthru
                _
              // Predicated region
              $region97: #{darknet_forward.20} parent=73 // pred_check
                _
              $region98: #{darknet_forward.20} parent=73 // pred_check_branch
                %275 = sbr.rel target = $region100
              $region99: #{darknet_forward.20} parent=73 // pred_region
                _
              $region100: #{darknet_forward.20} parent=73 // pred_fallthru
                _
            $region74: #{darknet_forward.20} parent=69 // pred_fallthru
              _
            // Predicated region
            $region75: #{darknet_forward.20} parent=69 // pred_check
              _
            $region76: #{darknet_forward.20} parent=69 // pred_check_branch
              %245 = sbr.rel target = $region78
            $region77: #{darknet_forward.20} parent=69 // pred_region
              %s247 = ssub.s32 256, 1
              loop: start=0, step=1, limit=1
              $region79: #{darknet_forward.20} parent=77 // loop_pre_header
                _
              $region80: #{darknet_forward.20} parent=77 // loop_header
                %s249 = sphi 0, %s253
                %p250 = scmp.ge.s32.totalorder %s249, 1
                %s254 = sphi %s239, %s239
                %s255 = sphi %s236, %s236
              $region81: #{darknet_forward.20} parent=77 // loop_header_branch
                %252 = sbr.rel (%p250) target = $region85
              $region82: #{darknet_forward.20} parent=77 // loop_body
                %v256 = vld [vmem:[%s254] sm:%s247]
                %257 = vst [vmem:[%s255] sm:%s247] %v256
                %v258 = vld [vmem:[%s254 + $0x10] sm:%s247]
                %259 = vst [vmem:[%s255 + $0x8] sm:%s247] %v258
              $region83: #{darknet_forward.20} parent=77 // loop_footer
                %s253 = sadd.s32 1, %s249
              $region84: #{darknet_forward.20} parent=77 // loop_footer_branch
                %248 = sbr.rel target = $region80
              $region85: #{darknet_forward.20} parent=77 // loop_exit
                _
            $region78: #{darknet_forward.20} parent=69 // pred_fallthru
              _
          $region70: #{darknet_forward.20} parent=65 // pred_fallthru
            _
          %276 = vnop
        $region66: #{darknet_forward.20} parent=23 // pred_fallthru
          _
      $region24: #{darknet_forward.20} parent=5 // pred_fallthru
        _
      %p277 = scmp.le.s32.totalorder 1, %s10
      %p278 = scmp.lt.s32.totalorder %s10, 3
      %p279 = pnand %p277, %p278
      %p280 = pneg %p279
      // Predicated region
      $region101: #{darknet_forward.20} parent=5 // pred_check
        _
      $region102: #{darknet_forward.20} parent=5 // pred_check_branch
        %282 = sbr.rel (%p279) target = $region104
      $region103: #{darknet_forward.20} parent=5 // pred_region
        %s283 = ssub.s32 %s10, 1
        %s284 = sand.u32 %s44, 1
        %s285 = sand.u32 %s44, 1
        %s286 = smul.addr %s285, 72
        %s287 = scalar_lea.vmem [#allocation2], %s286
        // Predicated region
        $region105: #{darknet_forward.20} parent=103 // pred_check
          %p288 = pneg %p57
        $region106: #{darknet_forward.20} parent=103 // pred_check_branch
          %290 = sbr.rel (%p288) target = $region108
        $region107: #{darknet_forward.20} parent=103 // pred_region
          _
        $region108: #{darknet_forward.20} parent=103 // pred_fallthru
          _
        %s291 = sand.u32 %s91, 1
        %s292 = sand.u32 %s91, 1
        %s293 = smul.addr %s292, 16
        %s294 = scalar_lea.vmem [#allocation3], %s293
        // Predicated region
        $region109: #{darknet_forward.20} parent=103 // pred_check
          %p295 = pneg %p104
        $region110: #{darknet_forward.20} parent=103 // pred_check_branch
          %297 = sbr.rel (%p295) target = $region112
        $region111: #{darknet_forward.20} parent=103 // pred_region
          _
        $region112: #{darknet_forward.20} parent=103 // pred_fallthru
          _
        %p298 = pneg %p31
        %p299 = pneg %p28
        %s300 = sand.u32 %s44, 1
        %s301 = sand.u32 %s44, 1
        %s302 = smul.addr %s301, 72
        %s303 = scalar_lea.vmem [#allocation2], %s302
        %p304 = pneg %p57
        %p305 = pneg %p54
        %p306 = pneg %p78
        %p307 = pneg %p75
        %s308 = sand.u32 %s91, 1
        %s309 = sand.u32 %s91, 1
        %s310 = smul.addr %s309, 16
        %s311 = scalar_lea.vmem [#allocation3], %s310
        %p312 = pneg %p104
        %p313 = pneg %p101
        %p314 = pneg %p130
        %p315 = pneg %p127
        %s316 = sand.u32 %s117, 1
        %s317 = sand.u32 %s117, 1
        %s318 = smul.addr %s317, 16
        %s319 = scalar_lea.vmem [#allocation4], %s318
        %s320 = smul.u32 2, %s15
        %s321 = smul.u32 2, %s15
        %s322 = smul.u32 2, %s15
        %v324 = vld [vmem:[%s0] sm:$0xf]
        %v325 = vld [vmem:[%s0 + $0x4] sm:$0xf]
        %v326 = vld [vmem:[%s287] sm:$0xff]
        %v327 = vld [vmem:[%s287 + $0x8] sm:$0xff]
        %v328 = vld [vmem:[%s287 + $0x10] sm:$0xff]
        %v329 = vld [vmem:[%s287 + $0x18] sm:$0xff]
        %v330 = vld [vmem:[%s287 + $0x20] sm:$0xff]
        %v331 = vld [vmem:[%s287 + $0x28] sm:$0xff]
        %v332 = vld [vmem:[%s287 + $0x30] sm:$0xff]
        %v333 = vld [vmem:[%s287 + $0x38] sm:$0xff]
        %v334 = vld [vmem:[%s287 + $0x40] sm:$0xff]
        %v335 = vld [vmem:[%s2] sm:$0xff]
        %v336 = vld [vmem:[%s2 + $0x8] sm:$0xff]
        %338 = vset.pattern.permute.xlu0 0
        %339 = vperm.xlu0 %338, %v335
        %v340 = vpop.permute.xlu0 %339
        %343 = vset.pattern.permute.xlu0 0
        %344 = vperm.xlu0 %343, %v336
        %v345 = vpop.permute.xlu0 %344
        %v349 = vunpack.c.l.b16 %v324
        %v350 = vunpack.c.l.b16 %v325
        %v351 = vpack.c.b16 %v350, %v349
        %v361 = vunpack.c.l.b16 %v326
        %v362 = vunpack.c.h.b16 %v326
        %v363 = vunpack.c.l.b16 %v327
        %v364 = vunpack.c.h.b16 %v327
        %v365 = vunpack.c.l.b16 %v328
        %v366 = vunpack.c.h.b16 %v328
        %v367 = vunpack.c.l.b16 %v329
        %v368 = vunpack.c.h.b16 %v329
        %v369 = vunpack.c.l.b16 %v330
        %v370 = vunpack.c.h.b16 %v330
        %v371 = vunpack.c.l.b16 %v331
        %v372 = vunpack.c.h.b16 %v331
        %v373 = vunpack.c.l.b16 %v332
        %v374 = vunpack.c.h.b16 %v332
        %v375 = vunpack.c.l.b16 %v333
        %v376 = vunpack.c.h.b16 %v333
        %v377 = vunpack.c.l.b16 %v334
        %v378 = vunpack.c.h.b16 %v334
        %v379 = vpack.c.b16 %v363, %v361
        %v380 = vpack.c.b16 %v364, %v362
        %v381 = vpack.c.b16 %v367, %v365
        %v382 = vpack.c.b16 %v368, %v366
        %v383 = vpack.c.b16 %v371, %v369
        %v384 = vpack.c.b16 %v372, %v370
        %v385 = vpack.c.b16 %v375, %v373
        %v386 = vpack.c.b16 %v376, %v374
        %v387 = vpack.c.b16 %v377, %v377
        %v388 = vpack.c.b16 %v378, %v378
        %vm397 = vcmask 588800
        %v399 = vsel %vm397, %v351, 0
        %vm401 = vcmask 1043456
        %v403 = vsel %vm401, %v387, 0
        %v406 = vsel %vm401, %v388, 0
        %408 = vmatprep.subr.bf16.mxu0 0
        %409 = vmatpush1.bf16.msra.mxu0 0
        %410 = vmatprep.subr.bf16.mxu0 0
        %411 = vmatpush1.bf16.msra.mxu0 0
        %412 = vmatprep.subr.bf16.mxu0 0
        %413 = vmatpush1.bf16.msra.mxu0 0
        %414 = vmatprep.subr.bf16.mxu0 %v406
        %415 = vmatpush1.bf16.msra.mxu0 %v403
        %416 = vmatprep.subr.bf16.mxu0 %v386
        %417 = vmatpush1.bf16.msra.mxu0 %v385
        %418 = vmatprep.subr.bf16.mxu0 %v384
        %419 = vmatpush1.bf16.msra.mxu0 %v383
        %420 = vmatprep.subr.bf16.mxu0 %v382
        %421 = vmatpush1.bf16.msra.mxu0 %v381
        %422 = vmatprep.subr.bf16.mxu0 %v380
        %423 = vmatpush1.bf16.msra.mxu0 %v379
        %424 = vmatprep.subr.bf16.mxu0 0
        %425 = vmatpush2.bf16.msra.mxu0 0
        %426 = vmatprep.subr.bf16.mxu0 0
        %427 = vmatpush2.bf16.msra.mxu0 0
        %428 = vmatprep.subr.bf16.mxu0 0
        %429 = vmatpush2.bf16.msra.mxu0 0
        %430 = vmatprep.subr.bf16.mxu0 0
        %431 = vmatpush2.bf16.msra.mxu0 0
        %432 = vmatprep.subr.bf16.mxu0 0
        %433 = vmatpush2.bf16.msra.mxu0 0
        %434 = vmatprep.subr.bf16.mxu0 0
        %435 = vmatpush2.bf16.msra.mxu0 0
        %436 = vmatprep.subr.bf16.mxu0 0
        %437 = vmatpush2.bf16.msra.mxu0 0
        %438 = vmatprep.subr.bf16.mxu0 0
        %439 = vmatpush2.bf16.msra.mxu0 0
        %440 = vmatprep.mubr.bf16.mxu0 0
        %441 = vmatmul.mubr.bf16.gmra.mxu0 %v399
        %v442 = vpop.f32.mrf.mxu0
        %v443 = vadd.f32 %v340, %v442
        %v444 = vpop.f32.mrf.mxu0
        %v445 = vadd.f32 %v340, %v444
        %v446 = vpop.f32.mrf.mxu0
        %v447 = vadd.f32 %v345, %v446
        %v448 = vpop.f32.mrf.mxu0
        %v449 = vadd.f32 %v345, %v448
        %450 = vdwg.mxu0
        %v451 = vxor.u32 %v443, 2147483648
        %v452 = vxor.u32 %v445, 2147483648
        %v453 = vxor.u32 %v447, 2147483648
        %v454 = vxor.u32 %v449, 2147483648
        %v455 = vmul.f32 %v451, 1.442695
        %v456 = vpow.pop %v455
        %v457 = vmul.f32 %v452, 1.442695
        %v458 = vpow.pop %v457
        %v459 = vmul.f32 %v453, 1.442695
        %v460 = vpow.pop %v459
        %v461 = vmul.f32 %v454, 1.442695
        %v462 = vpow.pop %v461
        %v463 = vadd.f32 %v456, 1.0
        %v464 = vadd.f32 %v458, 1.0
        %v465 = vadd.f32 %v460, 1.0
        %v466 = vadd.f32 %v462, 1.0
        %v467 = vrcp.pop %v463
        %v468 = vmul.f32 1.0, %v467
        %v469 = vrcp.pop %v464
        %v470 = vmul.f32 1.0, %v469
        %v471 = vrcp.pop %v465
        %v472 = vmul.f32 1.0, %v471
        %v473 = vrcp.pop %v466
        %v474 = vmul.f32 1.0, %v473
        %v475 = vmul.f32 %v443, %v468
        %v476 = vmul.f32 %v445, %v470
        %v477 = vmul.f32 %v447, %v472
        %v478 = vmul.f32 %v449, %v474
        %v479 = vld [vmem:[%s294] sm:$0xff]
        %v480 = vld [vmem:[%s294 + $0x8] sm:$0xff]
        %v481 = vunpack.c.l.bf16 %v479
        %v482 = vunpack.c.h.bf16 %v479
        %v483 = vunpack.c.l.bf16 %v480
        %v484 = vunpack.c.h.bf16 %v480
        %v485 = vadd.f32 %v475, %v481
        %v486 = vadd.f32 %v476, %v482
        %v487 = vadd.f32 %v477, %v483
        %v488 = vadd.f32 %v478, %v484
        %v489 = vpack.c.bf16 %v487, %v485
        %v490 = vpack.c.bf16 %v488, %v486
        %v493 = vunpack.c.l.b16 %v489
        %v494 = vunpack.c.l.b16 %v490
        %v495 = vunpack.c.h.b16 %v489
        %v496 = vunpack.c.h.b16 %v490
        %v497 = vpack.c.b16 %v494, %v493
        %v498 = vpack.c.b16 %v496, %v495
        %501 = vst [vmem:[%s319] sm:$0xff] %v497
        %502 = vst [vmem:[%s319 + $0x8] sm:$0xff] %v498
        %s503 = sand.u32 %s117, 1
        %s504 = sand.u32 %s117, 1
        %s505 = smul.addr %s504, 16
        %s506 = scalar_lea.vmem [#allocation4], %s505
        // Predicated region
        $region113: #{darknet_forward.20} parent=103 // pred_check
          %p507 = pneg %p127
        $region114: #{darknet_forward.20} parent=103 // pred_check_branch
          %509 = sbr.rel (%p507) target = $region116
        $region115: #{darknet_forward.20} parent=103 // pred_region
          %s510 = smul.u32 2, %s15
          %s511 = smul.addr %s510, 4
          %s512 = scalar_lea.vmem %s4, %s511
          // Predicated region
          $region117: #{darknet_forward.20} parent=115 // pred_check
            _
          $region118: #{darknet_forward.20} parent=115 // pred_check_branch
            %514 = sbr.rel (0) target = $region120
          $region119: #{darknet_forward.20} parent=115 // pred_region
            // Predicated region
            $region121: #{darknet_forward.20} parent=119 // pred_check
              _
            $region122: #{darknet_forward.20} parent=119 // pred_check_branch
              %516 = sbr.rel (0) target = $region124
            $region123: #{darknet_forward.20} parent=119 // pred_region
              // Predicated region
              $region136: #{darknet_forward.20} parent=123 // pred_check
                _
              $region137: #{darknet_forward.20} parent=123 // pred_check_branch
                %534 = sbr.rel (0) target = $region139
              $region138: #{darknet_forward.20} parent=123 // pred_region
                loop: start=0, step=1, limit=1
                $region140: #{darknet_forward.20} parent=138 // loop_pre_header
                  _
                $region141: #{darknet_forward.20} parent=138 // loop_header
                  %s536 = sphi 0, %s540
                  %p537 = scmp.ge.s32.totalorder %s536, 1
                  %s541 = sphi %s506, %s506
                  %s542 = sphi %s512, %s512
                $region142: #{darknet_forward.20} parent=138 // loop_header_branch
                  %539 = sbr.rel (%p537) target = $region146
                $region143: #{darknet_forward.20} parent=138 // loop_body
                  %v543 = vld [vmem:[%s541] sm:$0xff]
                  %544 = vst [vmem:[%s542] sm:$0xff] %v543
                  %v545 = vld [vmem:[%s541 + $0x8] sm:$0xff]
                  %546 = vst [vmem:[%s542 + $0x10] sm:$0xff] %v545
                $region144: #{darknet_forward.20} parent=138 // loop_footer
                  %s540 = sadd.s32 1, %s536
                $region145: #{darknet_forward.20} parent=138 // loop_footer_branch
                  %535 = sbr.rel target = $region141
                $region146: #{darknet_forward.20} parent=138 // loop_exit
                  _
              $region139: #{darknet_forward.20} parent=123 // pred_fallthru
                _
              // Predicated region
              $region147: #{darknet_forward.20} parent=123 // pred_check
                _
              $region148: #{darknet_forward.20} parent=123 // pred_check_branch
                %548 = sbr.rel target = $region150
              $region149: #{darknet_forward.20} parent=123 // pred_region
                _
              $region150: #{darknet_forward.20} parent=123 // pred_fallthru
                _
            $region124: #{darknet_forward.20} parent=119 // pred_fallthru
              _
            // Predicated region
            $region125: #{darknet_forward.20} parent=119 // pred_check
              _
            $region126: #{darknet_forward.20} parent=119 // pred_check_branch
              %518 = sbr.rel target = $region128
            $region127: #{darknet_forward.20} parent=119 // pred_region
              %s520 = ssub.s32 256, 1
              loop: start=0, step=1, limit=1
              $region129: #{darknet_forward.20} parent=127 // loop_pre_header
                _
              $region130: #{darknet_forward.20} parent=127 // loop_header
                %s522 = sphi 0, %s526
                %p523 = scmp.ge.s32.totalorder %s522, 1
                %s527 = sphi %s506, %s506
                %s528 = sphi %s512, %s512
              $region131: #{darknet_forward.20} parent=127 // loop_header_branch
                %525 = sbr.rel (%p523) target = $region135
              $region132: #{darknet_forward.20} parent=127 // loop_body
                %v529 = vld [vmem:[%s527] sm:%s520]
                %530 = vst [vmem:[%s528] sm:%s520] %v529
                %v531 = vld [vmem:[%s527 + $0x8] sm:%s520]
                %532 = vst [vmem:[%s528 + $0x10] sm:%s520] %v531
              $region133: #{darknet_forward.20} parent=127 // loop_footer
                %s526 = sadd.s32 1, %s522
              $region134: #{darknet_forward.20} parent=127 // loop_footer_branch
                %521 = sbr.rel target = $region130
              $region135: #{darknet_forward.20} parent=127 // loop_exit
                _
            $region128: #{darknet_forward.20} parent=119 // pred_fallthru
              _
          $region120: #{darknet_forward.20} parent=115 // pred_fallthru
            _
          %549 = vnop
        $region116: #{darknet_forward.20} parent=103 // pred_fallthru
          _
      $region104: #{darknet_forward.20} parent=5 // pred_fallthru
        _
      %p550 = scmp.le.s32.totalorder 2, %s10
      // Predicated region
      $region151: #{darknet_forward.20} parent=5 // pred_check
        %p551 = pneg %p550
      $region152: #{darknet_forward.20} parent=5 // pred_check_branch
        %553 = sbr.rel (%p551) target = $region154
      $region153: #{darknet_forward.20} parent=5 // pred_region
        %s554 = ssub.s32 %s10, 2
        // Predicated region
        $region155: #{darknet_forward.20} parent=153 // pred_check
          %p555 = pneg %p133
        $region156: #{darknet_forward.20} parent=153 // pred_check_branch
          %557 = sbr.rel (%p555) target = $region158
        $region157: #{darknet_forward.20} parent=153 // pred_region
          %s558 = sand.u32 %s118, 1
          %s559 = sand.u32 %s118, 1
          %s560 = smul.addr %s559, 16
          %s561 = scalar_lea.vmem [#allocation4], %s560
        $region158: #{darknet_forward.20} parent=153 // pred_fallthru
          _
      $region154: #{darknet_forward.20} parent=5 // pred_fallthru
        _
    $region6: #{darknet_forward.20} parent=1 // loop_footer
      %s14 = sadd.s32 1, %s10
    $region7: #{darknet_forward.20} parent=1 // loop_footer_branch
      %9 = sbr.rel target = $region3
    $region8: #{darknet_forward.20} parent=1 // loop_exit
      _

// kernel: darknet_forward.23
$region0: #{darknet_forward.23}
  #allocation0 [shape = 'u32[]', space=smem, size = 0x4, offset = 0x4, fixed_abs, tag = 'smem constant byte address 0x4 - core index']
  #allocation1 [shape = 'u32[144,128]{1,0:T(1,128)}', space=vmem, size = 0x12000, scoped, tag = 'internal scratch']
  %s0 = inlined_call_operand.vmem [shape: bf16[24,144], index: 0, kind: input, shape index: {}]
  %s1 = inlined_call_operand.vmem [shape: bf16[144,128], index: 1, kind: input, shape index: {}]
  %s2 = inlined_call_operand.vmem [shape: f32[24,1], index: 2, kind: input, shape index: {}]
  %s3 = inlined_call_operand.vmem [shape: bf16[24,128], index: 3, kind: output, shape index: {}]
  %s4 = sld [smem:[#allocation0]]
  $region22: #{darknet_forward.23} parent=0
    _
  %s6 = ssub.s32 1, %s4
  %s7 = scalar_select 0, %s6, %s4
  // Predicated region
  $region2: #{darknet_forward.23} parent=0 // pred_check
    _
  $region3: #{darknet_forward.23} parent=0 // pred_check_branch
    %9 = sbr.rel (0) target = $region5
  $region4: #{darknet_forward.23} parent=0 // pred_region
    _
  $region5: #{darknet_forward.23} parent=0 // pred_fallthru
    _
  // Predicated region
  $region6: #{darknet_forward.23} parent=0 // pred_check
    _
  $region7: #{darknet_forward.23} parent=0 // pred_check_branch
    %11 = sbr.rel (0) target = $region9
  $region8: #{darknet_forward.23} parent=0 // pred_region
    _
  $region9: #{darknet_forward.23} parent=0 // pred_fallthru
    _
  // Predicated region
  $region10: #{darknet_forward.23} parent=0 // pred_check
    _
  $region11: #{darknet_forward.23} parent=0 // pred_check_branch
    %13 = sbr.rel (0) target = $region13
  $region12: #{darknet_forward.23} parent=0 // pred_region
    _
  $region13: #{darknet_forward.23} parent=0 // pred_fallthru
    _
  %v15 = vld [vmem:[%s0] sm:$0xff]
  %v16 = vld [vmem:[%s0 + $0x8] sm:$0xff]
  %v17 = vld [vmem:[%s0 + $0x10] sm:$0xff]
  %v18 = vld [vmem:[%s1] sm:$0xf]
  %v19 = vld [vmem:[%s1 + $0x4] sm:$0xf]
  %v20 = vld [vmem:[%s1 + $0x8] sm:$0xf]
  %v21 = vld [vmem:[%s1 + $0xc] sm:$0xf]
  %v22 = vld [vmem:[%s1 + $0x10] sm:$0xf]
  %v23 = vld [vmem:[%s1 + $0x14] sm:$0xf]
  %v24 = vld [vmem:[%s1 + $0x18] sm:$0xf]
  %v25 = vld [vmem:[%s1 + $0x1c] sm:$0xf]
  %v26 = vld [vmem:[%s1 + $0x20] sm:$0xf]
  %v27 = vld [vmem:[%s1 + $0x24] sm:$0xf]
  %v28 = vld [vmem:[%s1 + $0x28] sm:$0xf]
  %v29 = vld [vmem:[%s1 + $0x2c] sm:$0xf]
  %v30 = vld [vmem:[%s1 + $0x30] sm:$0xf]
  %v31 = vld [vmem:[%s1 + $0x34] sm:$0xf]
  %v32 = vld [vmem:[%s1 + $0x38] sm:$0xf]
  %v33 = vld [vmem:[%s1 + $0x3c] sm:$0xf]
  %v34 = vld [vmem:[%s1 + $0x40] sm:$0xf]
  %v35 = vld [vmem:[%s1 + $0x44] sm:$0xf]
  %v36 = vld [vmem:[%s2] sm:$0xff]
  %v37 = vld [vmem:[%s2 + $0x8] sm:$0xff]
  %v38 = vld [vmem:[%s2 + $0x10] sm:$0xff]
  %40 = vset.pattern.permute.xlu0 0
  %41 = vperm.xlu0 %40, %v36
  %v42 = vpop.permute.xlu0 %41
  %45 = vset.pattern.permute.xlu0 0
  %46 = vperm.xlu0 %45, %v37
  %v47 = vpop.permute.xlu0 %46
  %50 = vset.pattern.permute.xlu0 0
  %51 = vperm.xlu0 %50, %v38
  %v52 = vpop.permute.xlu0 %51
  %v57 = vunpack.c.l.b16 %v15
  %v58 = vunpack.c.h.b16 %v15
  %v59 = vunpack.c.l.b16 %v16
  %v60 = vunpack.c.h.b16 %v16
  %v61 = vunpack.c.l.b16 %v17
  %v62 = vunpack.c.h.b16 %v17
  %v63 = vpack.c.b16 %v59, %v57
  %v64 = vpack.c.b16 %v60, %v58
  %v65 = vpack.c.b16 %v61, %v61
  %v66 = vpack.c.b16 %v62, %v62
  %v87 = vunpack.c.l.b16 %v18
  %v88 = vunpack.c.l.b16 %v19
  %v89 = vunpack.c.l.b16 %v20
  %v90 = vunpack.c.l.b16 %v21
  %v91 = vunpack.c.l.b16 %v22
  %v92 = vunpack.c.l.b16 %v23
  %v93 = vunpack.c.l.b16 %v24
  %v94 = vunpack.c.l.b16 %v25
  %v95 = vunpack.c.l.b16 %v26
  %v96 = vunpack.c.l.b16 %v27
  %v97 = vunpack.c.l.b16 %v28
  %v98 = vunpack.c.l.b16 %v29
  %v99 = vunpack.c.l.b16 %v30
  %v100 = vunpack.c.l.b16 %v31
  %v101 = vunpack.c.l.b16 %v32
  %v102 = vunpack.c.l.b16 %v33
  %v103 = vunpack.c.l.b16 %v34
  %v104 = vunpack.c.l.b16 %v35
  %v105 = vpack.c.b16 %v88, %v87
  %v106 = vpack.c.b16 %v90, %v89
  %v107 = vpack.c.b16 %v92, %v91
  %v108 = vpack.c.b16 %v94, %v93
  %v109 = vpack.c.b16 %v96, %v95
  %v110 = vpack.c.b16 %v98, %v97
  %v111 = vpack.c.b16 %v100, %v99
  %v112 = vpack.c.b16 %v102, %v101
  %v113 = vpack.c.b16 %v104, %v103
  %vm123 = vcmask 130048
  %v125 = vsel %vm123, %v64, 0
  %v128 = vsel %vm123, %v66, 0
  %130 = vmatprep.subr.bf16.mxu0 0
  %131 = vmatpush1.bf16.msra.mxu0 %v112
  %132 = vmatprep.subr.bf16.mxu0 0
  %133 = vmatpush1.bf16.msra.mxu0 %v111
  %134 = vmatprep.subr.bf16.mxu0 0
  %135 = vmatpush1.bf16.msra.mxu0 %v110
  %136 = vmatprep.subr.bf16.mxu0 0
  %137 = vmatpush1.bf16.msra.mxu0 %v109
  %138 = vmatprep.subr.bf16.mxu0 0
  %139 = vmatpush1.bf16.msra.mxu0 %v108
  %140 = vmatprep.subr.bf16.mxu0 0
  %141 = vmatpush1.bf16.msra.mxu0 %v107
  %142 = vmatprep.subr.bf16.mxu0 0
  %143 = vmatpush1.bf16.msra.mxu0 %v106
  %144 = vmatprep.subr.bf16.mxu0 0
  %145 = vmatpush1.bf16.msra.mxu0 %v105
  %146 = vmatprep.subr.bf16.mxu0 0
  %147 = vmatpush2.bf16.msra.mxu0 0
  %148 = vmatprep.subr.bf16.mxu0 0
  %149 = vmatpush2.bf16.msra.mxu0 0
  %150 = vmatprep.subr.bf16.mxu0 0
  %151 = vmatpush2.bf16.msra.mxu0 0
  %152 = vmatprep.subr.bf16.mxu0 0
  %153 = vmatpush2.bf16.msra.mxu0 0
  %154 = vmatprep.subr.bf16.mxu0 0
  %155 = vmatpush2.bf16.msra.mxu0 0
  %156 = vmatprep.subr.bf16.mxu0 0
  %157 = vmatpush2.bf16.msra.mxu0 0
  %158 = vmatprep.subr.bf16.mxu0 0
  %159 = vmatpush2.bf16.msra.mxu0 0
  %160 = vmatprep.subr.bf16.mxu0 0
  %161 = vmatpush2.bf16.msra.mxu0 %v113
  %162 = vmatprep.mubr.bf16.mxu0 %v125
  %163 = vmatmul.mubr.bf16.gmra.mxu0 %v63
  %v164 = vpop.f32.mrf.mxu0
  %v165 = vadd.f32 %v42, %v164
  %v166 = vpop.f32.mrf.mxu0
  %v167 = vpop.f32.mrf.mxu0
  %v168 = vadd.f32 %v47, %v167
  %v169 = vpop.f32.mrf.mxu0
  %170 = vmatprep.mubr.bf16.mxu0 %v128
  %171 = vmatmul.mubr.bf16.gmra.mxu0 %v65
  %v172 = vpop.f32.mrf.mxu0
  %v173 = vadd.f32 %v52, %v172
  %v174 = vpop.f32.mrf.mxu0
  %v175 = vpop.f32.mrf.mxu0
  %v176 = vpop.f32.mrf.mxu0
  %177 = vdwg.mxu0
  %v178 = vxor.u32 %v165, 2147483648
  %v179 = vxor.u32 %v168, 2147483648
  %v180 = vxor.u32 %v173, 2147483648
  %v181 = vmul.f32 %v178, 1.442695
  %v182 = vpow.pop %v181
  %v183 = vmul.f32 %v179, 1.442695
  %v184 = vpow.pop %v183
  %v185 = vmul.f32 %v180, 1.442695
  %v186 = vpow.pop %v185
  %v187 = vadd.f32 %v182, 1.0
  %v188 = vadd.f32 %v184, 1.0
  %v189 = vadd.f32 %v186, 1.0
  %v190 = vrcp.pop %v187
  %v191 = vmul.f32 1.0, %v190
  %v192 = vrcp.pop %v188
  %v193 = vmul.f32 1.0, %v192
  %v194 = vrcp.pop %v189
  %v195 = vmul.f32 1.0, %v194
  %v196 = vmul.f32 %v165, %v191
  %v197 = vmul.f32 %v168, %v193
  %v198 = vmul.f32 %v173, %v195
  %v199 = vpack.c.bf16 %v197, %v196
  %v200 = vpack.c.bf16 %v198, %v198
  %v203 = vunpack.c.l.b16 %v199
  %v204 = vunpack.c.h.b16 %v199
  %v205 = vunpack.c.l.b16 %v200
  %v206 = vpack.c.b16 %v203, %v203
  %v207 = vpack.c.b16 %v204, %v204
  %v208 = vpack.c.b16 %v205, %v205
  %212 = vst [vmem:[%s3] sm:$0xf] %v206
  %213 = vst [vmem:[%s3 + $0x4] sm:$0xf] %v207
  %214 = vst [vmem:[%s3 + $0x8] sm:$0xf] %v208
  // Predicated region
  $region14: #{darknet_forward.23} parent=0 // pred_check
    _
  $region15: #{darknet_forward.23} parent=0 // pred_check_branch
    %216 = sbr.rel (0) target = $region17
  $region16: #{darknet_forward.23} parent=0 // pred_region
    _
  $region17: #{darknet_forward.23} parent=0 // pred_fallthru
    _
  // Predicated region
  $region18: #{darknet_forward.23} parent=0 // pred_check
    _
  $region19: #{darknet_forward.23} parent=0 // pred_check_branch
    %218 = sbr.rel (0) target = $region21
  $region20: #{darknet_forward.23} parent=0 // pred_region
    _
  $region21: #{darknet_forward.23} parent=0 // pred_fallthru
    _

// kernel: darknet_forward.24
$region0: #{darknet_forward.24}
  #allocation0 [shape = 'u32[]', space=smem, size = 0x4, offset = 0x4, fixed_abs, tag = 'smem constant byte address 0x4 - core index']
  #allocation1 [shape = 'u32[144,128]{1,0:T(1,128)}', space=vmem, size = 0x12000, scoped, tag = 'internal scratch']
  %s0 = inlined_call_operand.vmem [shape: bf16[12,24], index: 0, kind: input, shape index: {}]
  %s1 = inlined_call_operand.vmem [shape: bf16[24,128], index: 1, kind: input, shape index: {}]
  %s2 = inlined_call_operand.vmem [shape: f32[12,1], index: 2, kind: input, shape index: {}]
  %s3 = inlined_call_operand.vmem [shape: bf16[12,128], index: 3, kind: output, shape index: {}]
  %s4 = sld [smem:[#allocation0]]
  $region22: #{darknet_forward.24} parent=0
    _
  %s6 = ssub.s32 1, %s4
  %s7 = scalar_select 0, %s6, %s4
  // Predicated region
  $region2: #{darknet_forward.24} parent=0 // pred_check
    _
  $region3: #{darknet_forward.24} parent=0 // pred_check_branch
    %9 = sbr.rel (0) target = $region5
  $region4: #{darknet_forward.24} parent=0 // pred_region
    _
  $region5: #{darknet_forward.24} parent=0 // pred_fallthru
    _
  // Predicated region
  $region6: #{darknet_forward.24} parent=0 // pred_check
    _
  $region7: #{darknet_forward.24} parent=0 // pred_check_branch
    %11 = sbr.rel (0) target = $region9
  $region8: #{darknet_forward.24} parent=0 // pred_region
    _
  $region9: #{darknet_forward.24} parent=0 // pred_fallthru
    _
  // Predicated region
  $region10: #{darknet_forward.24} parent=0 // pred_check
    _
  $region11: #{darknet_forward.24} parent=0 // pred_check_branch
    %13 = sbr.rel (0) target = $region13
  $region12: #{darknet_forward.24} parent=0 // pred_region
    _
  $region13: #{darknet_forward.24} parent=0 // pred_fallthru
    _
  %v15 = vld [vmem:[%s0] sm:$0xf]
  %v16 = vld [vmem:[%s0 + $0x4] sm:$0x3]
  %v17 = vld [vmem:[%s1] sm:$0xf]
  %v18 = vld [vmem:[%s1 + $0x4] sm:$0xf]
  %v19 = vld [vmem:[%s1 + $0x8] sm:$0xf]
  %v20 = vld [vmem:[%s2] sm:$0xff]
  %v21 = vld [vmem:[%s2 + $0x8] sm:$0xf]
  %23 = vset.pattern.permute.xlu0 0
  %24 = vperm.xlu0 %23, %v20
  %v25 = vpop.permute.xlu0 %24
  %28 = vset.pattern.permute.xlu0 0
  %29 = vperm.xlu0 %28, %v21
  %v30 = vpop.permute.xlu0 %29
  %v34 = vunpack.c.l.b16 %v15
  %v35 = vunpack.c.l.b16 %v16
  %v36 = vpack.c.b16 %v35, %v34
  %v40 = vunpack.c.l.b16 %v17
  %v41 = vunpack.c.l.b16 %v18
  %v42 = vunpack.c.l.b16 %v19
  %v43 = vpack.c.b16 %v41, %v40
  %v44 = vpack.c.b16 %v42, %v42
  %vm46 = vcmask 195584
  %v48 = vsel %vm46, %v36, 0
  %vm50 = vcmask 1043456
  %v52 = vsel %vm50, %v44, 0
  %54 = vmatprep.subr.bf16.mxu0 0
  %55 = vmatpush1.bf16.msra.mxu0 0
  %56 = vmatprep.subr.bf16.mxu0 0
  %57 = vmatpush1.bf16.msra.mxu0 0
  %58 = vmatprep.subr.bf16.mxu0 0
  %59 = vmatpush1.bf16.msra.mxu0 0
  %60 = vmatprep.subr.bf16.mxu0 0
  %61 = vmatpush1.bf16.msra.mxu0 0
  %62 = vmatprep.subr.bf16.mxu0 0
  %63 = vmatpush1.bf16.msra.mxu0 0
  %64 = vmatprep.subr.bf16.mxu0 0
  %65 = vmatpush1.bf16.msra.mxu0 0
  %66 = vmatprep.subr.bf16.mxu0 0
  %67 = vmatpush1.bf16.msra.mxu0 %v52
  %68 = vmatprep.subr.bf16.mxu0 0
  %69 = vmatpush1.bf16.msra.mxu0 %v43
  %70 = vmatprep.subr.bf16.mxu0 0
  %71 = vmatpush2.bf16.msra.mxu0 0
  %72 = vmatprep.subr.bf16.mxu0 0
  %73 = vmatpush2.bf16.msra.mxu0 0
  %74 = vmatprep.subr.bf16.mxu0 0
  %75 = vmatpush2.bf16.msra.mxu0 0
  %76 = vmatprep.subr.bf16.mxu0 0
  %77 = vmatpush2.bf16.msra.mxu0 0
  %78 = vmatprep.subr.bf16.mxu0 0
  %79 = vmatpush2.bf16.msra.mxu0 0
  %80 = vmatprep.subr.bf16.mxu0 0
  %81 = vmatpush2.bf16.msra.mxu0 0
  %82 = vmatprep.subr.bf16.mxu0 0
  %83 = vmatpush2.bf16.msra.mxu0 0
  %84 = vmatprep.subr.bf16.mxu0 0
  %85 = vmatpush2.bf16.msra.mxu0 0
  %86 = vmatprep.mubr.bf16.mxu0 0
  %87 = vmatmul.mubr.bf16.gmra.mxu0 %v48
  %v88 = vpop.f32.mrf.mxu0
  %v89 = vadd.f32 %v25, %v88
  %v90 = vpop.f32.mrf.mxu0
  %v91 = vpop.f32.mrf.mxu0
  %v92 = vadd.f32 %v30, %v91
  %v93 = vpop.f32.mrf.mxu0
  %94 = vdwg.mxu0
  %v95 = vxor.u32 %v89, 2147483648
  %v96 = vxor.u32 %v92, 2147483648
  %v97 = vmul.f32 %v95, 1.442695
  %v98 = vpow.pop %v97
  %v99 = vmul.f32 %v96, 1.442695
  %v100 = vpow.pop %v99
  %v101 = vadd.f32 %v98, 1.0
  %v102 = vadd.f32 %v100, 1.0
  %v103 = vrcp.pop %v101
  %v104 = vmul.f32 1.0, %v103
  %v105 = vrcp.pop %v102
  %v106 = vmul.f32 1.0, %v105
  %v107 = vmul.f32 %v89, %v104
  %v108 = vmul.f32 %v92, %v106
  %v109 = vpack.c.bf16 %v108, %v107
  %v111 = vunpack.c.l.b16 %v109
  %v112 = vunpack.c.h.b16 %v109
  %v113 = vpack.c.b16 %v111, %v111
  %v114 = vpack.c.b16 %v112, %v112
  %117 = vst [vmem:[%s3] sm:$0xf] %v113
  %118 = vst [vmem:[%s3 + $0x4] sm:$0x3] %v114
  // Predicated region
  $region14: #{darknet_forward.24} parent=0 // pred_check
    _
  $region15: #{darknet_forward.24} parent=0 // pred_check_branch
    %120 = sbr.rel (0) target = $region17
  $region16: #{darknet_forward.24} parent=0 // pred_region
    _
  $region17: #{darknet_forward.24} parent=0 // pred_fallthru
    _
  // Predicated region
  $region18: #{darknet_forward.24} parent=0 // pred_check
    _
  $region19: #{darknet_forward.24} parent=0 // pred_check_branch
    %122 = sbr.rel (0) target = $region21
  $region20: #{darknet_forward.24} parent=0 // pred_region
    _
  $region21: #{darknet_forward.24} parent=0 // pred_fallthru
    _

// kernel: darknet_forward.25
$region0: #{darknet_forward.25}
  #allocation0 [shape = 'u32[]', space=smem, size = 0x4, offset = 0x4, fixed_abs, tag = 'smem constant byte address 0x4 - core index']
  #allocation1 [shape = 'u32[144,128]{1,0:T(1,128)}', space=vmem, size = 0x12000, scoped, tag = 'internal scratch']
  %s0 = inlined_call_operand.vmem [shape: bf16[24,108], index: 0, kind: input, shape index: {}]
  %s1 = inlined_call_operand.vmem [shape: bf16[108,128], index: 1, kind: input, shape index: {}]
  %s2 = inlined_call_operand.vmem [shape: f32[24,1], index: 2, kind: input, shape index: {}]
  %s3 = inlined_call_operand.vmem [shape: bf16[24,128], index: 3, kind: input, shape index: {}]
  %s4 = inlined_call_operand.vmem [shape: bf16[24,128], index: 4, kind: output, shape index: {}]
  %s5 = sld [smem:[#allocation0]]
  $region26: #{darknet_forward.25} parent=0
    _
  %s7 = ssub.s32 1, %s5
  %s8 = scalar_select 0, %s7, %s5
  // Predicated region
  $region2: #{darknet_forward.25} parent=0 // pred_check
    _
  $region3: #{darknet_forward.25} parent=0 // pred_check_branch
    %10 = sbr.rel (0) target = $region5
  $region4: #{darknet_forward.25} parent=0 // pred_region
    _
  $region5: #{darknet_forward.25} parent=0 // pred_fallthru
    _
  // Predicated region
  $region6: #{darknet_forward.25} parent=0 // pred_check
    _
  $region7: #{darknet_forward.25} parent=0 // pred_check_branch
    %12 = sbr.rel (0) target = $region9
  $region8: #{darknet_forward.25} parent=0 // pred_region
    _
  $region9: #{darknet_forward.25} parent=0 // pred_fallthru
    _
  // Predicated region
  $region10: #{darknet_forward.25} parent=0 // pred_check
    _
  $region11: #{darknet_forward.25} parent=0 // pred_check_branch
    %14 = sbr.rel (0) target = $region13
  $region12: #{darknet_forward.25} parent=0 // pred_region
    _
  $region13: #{darknet_forward.25} parent=0 // pred_fallthru
    _
  // Predicated region
  $region14: #{darknet_forward.25} parent=0 // pred_check
    _
  $region15: #{darknet_forward.25} parent=0 // pred_check_branch
    %16 = sbr.rel (0) target = $region17
  $region16: #{darknet_forward.25} parent=0 // pred_region
    _
  $region17: #{darknet_forward.25} parent=0 // pred_fallthru
    _
  %v18 = vld [vmem:[%s0] sm:$0xf]
  %v19 = vld [vmem:[%s0 + $0x4] sm:$0xf]
  %v20 = vld [vmem:[%s0 + $0x8] sm:$0xf]
  %v21 = vld [vmem:[%s1] sm:$0xf]
  %v22 = vld [vmem:[%s1 + $0x4] sm:$0xf]
  %v23 = vld [vmem:[%s1 + $0x8] sm:$0xf]
  %v24 = vld [vmem:[%s1 + $0xc] sm:$0xf]
  %v25 = vld [vmem:[%s1 + $0x10] sm:$0xf]
  %v26 = vld [vmem:[%s1 + $0x14] sm:$0xf]
  %v27 = vld [vmem:[%s1 + $0x18] sm:$0xf]
  %v28 = vld [vmem:[%s1 + $0x1c] sm:$0xf]
  %v29 = vld [vmem:[%s1 + $0x20] sm:$0xf]
  %v30 = vld [vmem:[%s1 + $0x24] sm:$0xf]
  %v31 = vld [vmem:[%s1 + $0x28] sm:$0xf]
  %v32 = vld [vmem:[%s1 + $0x2c] sm:$0xf]
  %v33 = vld [vmem:[%s1 + $0x30] sm:$0xf]
  %v34 = vld [vmem:[%s1 + $0x34] sm:$0x3]
  %v35 = vld [vmem:[%s2] sm:$0xff]
  %v36 = vld [vmem:[%s2 + $0x8] sm:$0xff]
  %v37 = vld [vmem:[%s2 + $0x10] sm:$0xff]
  %39 = vset.pattern.permute.xlu0 0
  %40 = vperm.xlu0 %39, %v35
  %v41 = vpop.permute.xlu0 %40
  %44 = vset.pattern.permute.xlu0 0
  %45 = vperm.xlu0 %44, %v36
  %v46 = vpop.permute.xlu0 %45
  %49 = vset.pattern.permute.xlu0 0
  %50 = vperm.xlu0 %49, %v37
  %v51 = vpop.permute.xlu0 %50
  %v56 = vunpack.c.l.b16 %v18
  %v57 = vunpack.c.l.b16 %v19
  %v58 = vunpack.c.l.b16 %v20
  %v59 = vpack.c.b16 %v57, %v56
  %v60 = vpack.c.b16 %v58, %v58
  %v75 = vunpack.c.l.b16 %v21
  %v76 = vunpack.c.l.b16 %v22
  %v77 = vunpack.c.l.b16 %v23
  %v78 = vunpack.c.l.b16 %v24
  %v79 = vunpack.c.l.b16 %v25
  %v80 = vunpack.c.l.b16 %v26
  %v81 = vunpack.c.l.b16 %v27
  %v82 = vunpack.c.l.b16 %v28
  %v83 = vunpack.c.l.b16 %v29
  %v84 = vunpack.c.l.b16 %v30
  %v85 = vunpack.c.l.b16 %v31
  %v86 = vunpack.c.l.b16 %v32
  %v87 = vunpack.c.l.b16 %v33
  %v88 = vunpack.c.l.b16 %v34
  %v89 = vpack.c.b16 %v76, %v75
  %v90 = vpack.c.b16 %v78, %v77
  %v91 = vpack.c.b16 %v80, %v79
  %v92 = vpack.c.b16 %v82, %v81
  %v93 = vpack.c.b16 %v84, %v83
  %v94 = vpack.c.b16 %v86, %v85
  %v95 = vpack.c.b16 %v88, %v87
  %vm102 = vcmask 883712
  %v104 = vsel %vm102, %v59, 0
  %v107 = vsel %vm102, %v60, 0
  %vm109 = vcmask 1045504
  %v111 = vsel %vm109, %v95, 0
  %113 = vmatprep.subr.bf16.mxu0 0
  %114 = vmatpush1.bf16.msra.mxu0 0
  %115 = vmatprep.subr.bf16.mxu0 0
  %116 = vmatpush1.bf16.msra.mxu0 %v111
  %117 = vmatprep.subr.bf16.mxu0 0
  %118 = vmatpush1.bf16.msra.mxu0 %v94
  %119 = vmatprep.subr.bf16.mxu0 0
  %120 = vmatpush1.bf16.msra.mxu0 %v93
  %121 = vmatprep.subr.bf16.mxu0 0
  %122 = vmatpush1.bf16.msra.mxu0 %v92
  %123 = vmatprep.subr.bf16.mxu0 0
  %124 = vmatpush1.bf16.msra.mxu0 %v91
  %125 = vmatprep.subr.bf16.mxu0 0
  %126 = vmatpush1.bf16.msra.mxu0 %v90
  %127 = vmatprep.subr.bf16.mxu0 0
  %128 = vmatpush1.bf16.msra.mxu0 %v89
  %129 = vmatprep.subr.bf16.mxu0 0
  %130 = vmatpush2.bf16.msra.mxu0 0
  %131 = vmatprep.subr.bf16.mxu0 0
  %132 = vmatpush2.bf16.msra.mxu0 0
  %133 = vmatprep.subr.bf16.mxu0 0
  %134 = vmatpush2.bf16.msra.mxu0 0
  %135 = vmatprep.subr.bf16.mxu0 0
  %136 = vmatpush2.bf16.msra.mxu0 0
  %137 = vmatprep.subr.bf16.mxu0 0
  %138 = vmatpush2.bf16.msra.mxu0 0
  %139 = vmatprep.subr.bf16.mxu0 0
  %140 = vmatpush2.bf16.msra.mxu0 0
  %141 = vmatprep.subr.bf16.mxu0 0
  %142 = vmatpush2.bf16.msra.mxu0 0
  %143 = vmatprep.subr.bf16.mxu0 0
  %144 = vmatpush2.bf16.msra.mxu0 0
  %145 = vmatprep.mubr.bf16.mxu0 0
  %146 = vmatmul.mubr.bf16.gmra.mxu0 %v104
  %v147 = vpop.f32.mrf.mxu0
  %v148 = vadd.f32 %v41, %v147
  %v149 = vpop.f32.mrf.mxu0
  %v150 = vpop.f32.mrf.mxu0
  %v151 = vadd.f32 %v46, %v150
  %v152 = vpop.f32.mrf.mxu0
  %153 = vmatprep.mubr.bf16.mxu0 0
  %154 = vmatmul.mubr.bf16.gmra.mxu0 %v107
  %v155 = vpop.f32.mrf.mxu0
  %v156 = vadd.f32 %v51, %v155
  %v157 = vpop.f32.mrf.mxu0
  %v158 = vpop.f32.mrf.mxu0
  %v159 = vpop.f32.mrf.mxu0
  %160 = vdwg.mxu0
  %v161 = vxor.u32 %v148, 2147483648
  %v162 = vxor.u32 %v151, 2147483648
  %v163 = vxor.u32 %v156, 2147483648
  %v164 = vmul.f32 %v161, 1.442695
  %v165 = vpow.pop %v164
  %v166 = vmul.f32 %v162, 1.442695
  %v167 = vpow.pop %v166
  %v168 = vmul.f32 %v163, 1.442695
  %v169 = vpow.pop %v168
  %v170 = vadd.f32 %v165, 1.0
  %v171 = vadd.f32 %v167, 1.0
  %v172 = vadd.f32 %v169, 1.0
  %v173 = vrcp.pop %v170
  %v174 = vmul.f32 1.0, %v173
  %v175 = vrcp.pop %v171
  %v176 = vmul.f32 1.0, %v175
  %v177 = vrcp.pop %v172
  %v178 = vmul.f32 1.0, %v177
  %v179 = vmul.f32 %v148, %v174
  %v180 = vmul.f32 %v151, %v176
  %v181 = vmul.f32 %v156, %v178
  %v182 = vld [vmem:[%s3] sm:$0xf]
  %v183 = vld [vmem:[%s3 + $0x4] sm:$0xf]
  %v184 = vld [vmem:[%s3 + $0x8] sm:$0xf]
  %v185 = vunpack.c.l.bf16 %v182
  %v186 = vunpack.c.l.bf16 %v183
  %v187 = vunpack.c.l.bf16 %v184
  %v188 = vadd.f32 %v179, %v185
  %v189 = vadd.f32 %v180, %v186
  %v190 = vadd.f32 %v181, %v187
  %v191 = vpack.c.bf16 %v189, %v188
  %v192 = vpack.c.bf16 %v190, %v190
  %v195 = vunpack.c.l.b16 %v191
  %v196 = vunpack.c.h.b16 %v191
  %v197 = vunpack.c.l.b16 %v192
  %v198 = vpack.c.b16 %v195, %v195
  %v199 = vpack.c.b16 %v196, %v196
  %v200 = vpack.c.b16 %v197, %v197
  %204 = vst [vmem:[%s4] sm:$0xf] %v198
  %205 = vst [vmem:[%s4 + $0x4] sm:$0xf] %v199
  %206 = vst [vmem:[%s4 + $0x8] sm:$0xf] %v200
  // Predicated region
  $region18: #{darknet_forward.25} parent=0 // pred_check
    _
  $region19: #{darknet_forward.25} parent=0 // pred_check_branch
    %208 = sbr.rel (0) target = $region21
  $region20: #{darknet_forward.25} parent=0 // pred_region
    _
  $region21: #{darknet_forward.25} parent=0 // pred_fallthru
    _
  // Predicated region
  $region22: #{darknet_forward.25} parent=0 // pred_check
    _
  $region23: #{darknet_forward.25} parent=0 // pred_check_branch
    %210 = sbr.rel (0) target = $region25
  $region24: #{darknet_forward.25} parent=0 // pred_region
    _
  $region25: #{darknet_forward.25} parent=0 // pred_fallthru
    _

</llo_original>
